<compile_context>
chip_gen: v7x
topology: tpu7x:2x2x1
jax: 0.10.0
libtpu: 0.0.40
codegen_flags: <defaults>
</compile_context>

<pallas_src>
import jax
import jax.numpy as jnp
from jax.experimental import pallas as pl
from jax.experimental.pallas import tpu as pltpu

IN_FEATURES = 5000          # 200 channels * 5 * 5 per subnet chunk
HIDDEN = 512
CLASSES = 11
PAD_CLASSES = 128           # lane-dense output / w3 padding
BN_EPS = 1e-5
NEG_BIG = -1e30             # bias for padded logit columns -> exp() underflows to 0


def fc_subnet_kernel(x_ref, w1_ref, b1_ref, w2_ref, b2_ref, w3_ref, b3_ref, o_ref):
    # fc1 (BatchNorm already folded into w1/b1) + ReLU; full-K single-block matmul,
    # bf16 x bf16 -> f32 accumulate on the MXU.
    h = jnp.dot(x_ref[0], w1_ref[0], preferred_element_type=jnp.float32) + b1_ref[0]
    h = jnp.maximum(h, 0.0)
    # fc2 (dropout is identity at inference time).
    h = jnp.dot(h.astype(jnp.bfloat16), w2_ref[0],
                preferred_element_type=jnp.float32) + b2_ref[0]
    # fc3 (output padded to 128 lanes; pad columns carry a -1e30 bias).
    logits = jnp.dot(h.astype(jnp.bfloat16), w3_ref[0],
                     preferred_element_type=jnp.float32) + b3_ref[0]
    # Softmax over dim=1 (pad columns contribute exp(~-1e30) == 0);
    # divide goes to the otherwise idle EUP slot.
    m = jnp.max(logits, axis=-1, keepdims=True)
    e = jnp.exp(logits - m)
    inv = pl.reciprocal(jnp.sum(e, axis=-1, keepdims=True), approx=True)
    o_ref[0] = (e * inv).astype(o_ref.dtype)


def ensnet_fc_subnets(x, params):
    """x: (S, B, 5000) bf16 (already flattened / cast).
    params: dict of stacked, BN-folded, class-padded, bf16-cast per-subnet weights."""
    S, B, K = x.shape
    assert K == IN_FEATURES

    grid_spec = pltpu.PrefetchScalarGridSpec(
        num_scalar_prefetch=0,
        grid=(S,),
        in_specs=[
            pl.BlockSpec((1, B, K), lambda s: (s, 0, 0)),                    # x
            pl.BlockSpec((1, K, HIDDEN), lambda s: (s, 0, 0)),               # w1 (full K)
            pl.BlockSpec((1, 1, HIDDEN), lambda s: (s, 0, 0)),               # b1
            pl.BlockSpec((1, HIDDEN, HIDDEN), lambda s: (s, 0, 0)),          # w2
            pl.BlockSpec((1, 1, HIDDEN), lambda s: (s, 0, 0)),               # b2
            pl.BlockSpec((1, HIDDEN, PAD_CLASSES), lambda s: (s, 0, 0)),     # w3
            pl.BlockSpec((1, 1, PAD_CLASSES), lambda s: (s, 0, 0)),          # b3
        ],
        out_specs=pl.BlockSpec((1, B, PAD_CLASSES), lambda s: (s, 0, 0)),
    )

    out = pl.pallas_call(
        fc_subnet_kernel,
        out_shape=jax.ShapeDtypeStruct((S, B, PAD_CLASSES), jnp.float32),
        grid_spec=grid_spec,
        compiler_params=pltpu.CompilerParams(
            dimension_semantics=("parallel",),
            vmem_limit_bytes=32 * 1024 * 1024,   # ~11.5 MiB live (double-buffered)
        ),
    )(x, params["w1"], params["b1"], params["w2"], params["b2"],
      params["w3"], params["b3"])

    return out[..., :CLASSES]


def init_params(key, num_subnets):
    """Raw per-subnet parameters (PyTorch Linear defaults; BN running stats)."""
    ks = jax.random.split(key, 10)

    def linear(kw, kb, fan_in, fan_out):
        bound = 1.0 / float(fan_in) ** 0.5
        w = jax.random.uniform(kw, (num_subnets, fan_in, fan_out),
                               jnp.float32, -bound, bound)   # stored as (in, out)
        b = jax.random.uniform(kb, (num_subnets, 1, fan_out),
                               jnp.float32, -bound, bound)
        return w, b

    w1, b1 = linear(ks[0], ks[1], IN_FEATURES, HIDDEN)
    w2, b2 = linear(ks[2], ks[3], HIDDEN, HIDDEN)
    w3, b3 = linear(ks[4], ks[5], HIDDEN, CLASSES)

    gamma = jax.random.uniform(ks[6], (num_subnets, 1, HIDDEN), jnp.float32, 0.5, 1.5)
    beta = jax.random.uniform(ks[7], (num_subnets, 1, HIDDEN), jnp.float32, -0.5, 0.5)
    mean = jax.random.normal(ks[8], (num_subnets, 1, HIDDEN), jnp.float32) * 0.1
    var = jax.random.uniform(ks[9], (num_subnets, 1, HIDDEN), jnp.float32, 0.5, 1.5)

    return dict(w1=w1, b1=b1, w2=w2, b2=b2, w3=w3, b3=b3,
                gamma=gamma, beta=beta, mean=mean, var=var)


def prepare_params(raw):
    """Fold eval-mode BatchNorm into fc1, pad classes to 128 lanes, cast to bf16."""
    scale = raw["gamma"] * jax.lax.rsqrt(raw["var"] + BN_EPS)          # (S,1,H)
    w1 = raw["w1"] * scale                                             # (S,K,H)
    b1 = (raw["b1"] - raw["mean"]) * scale + raw["beta"]               # (S,1,H)

    w3 = jnp.pad(raw["w3"], ((0, 0), (0, 0), (0, PAD_CLASSES - CLASSES)))
    b3 = jnp.pad(raw["b3"], ((0, 0), (0, 0), (0, PAD_CLASSES - CLASSES)),
                 constant_values=NEG_BIG)

    return dict(
        w1=w1.astype(jnp.bfloat16), b1=b1.astype(jnp.float32),
        w2=raw["w2"].astype(jnp.bfloat16), b2=raw["b2"].astype(jnp.float32),
        w3=w3.astype(jnp.bfloat16), b3=b3.astype(jnp.float32),
    )


def prepare_x(x):
    """x: (S, B, 200, 5, 5) per-subnet feature chunks -> (S, B, 5000) bf16."""
    S, B = x.shape[:2]
    x2 = x.reshape(S, B, -1).astype(jnp.float32)
    assert x2.shape[-1] == IN_FEATURES, f"expected {IN_FEATURES}, got {x2.shape[-1]}"
    return x2.astype(jnp.bfloat16)


def reference(x_bf16, p):
    """Pure-JAX reference using the SAME prepared (BN-folded, bf16) parameters."""
    x = x_bf16.astype(jnp.float32)
    h = jnp.einsum("sbk,skh->sbh", x, p["w1"].astype(jnp.float32)) + p["b1"]
    h = jnp.maximum(h, 0.0)
    hb = h.astype(jnp.bfloat16).astype(jnp.float32)
    h = jnp.einsum("sbh,shg->sbg", hb, p["w2"].astype(jnp.float32)) + p["b2"]
    hb = h.astype(jnp.bfloat16).astype(jnp.float32)
    logits = jnp.einsum("sbh,shc->sbc", hb, p["w3"].astype(jnp.float32)) + p["b3"]
    return jax.nn.softmax(logits[..., :CLASSES], axis=-1)


if __name__ == "__main__":
    key = jax.random.PRNGKey(0)
    kparam, kx = jax.random.split(key)

    num_subnets = 4          # small ensemble for the demo (module default is 10)
    batch = 16               # >=16 keeps bf16 sublane packing dense

    raw = init_params(kparam, num_subnets)
    params = prepare_params(raw)

    # Per-subnet feature chunks: EnsNet chunks (B, 2000, 5, 5) -> (B, 200, 5, 5) each.
    x = jax.random.normal(kx, (num_subnets, batch, 200, 5, 5), jnp.float32)
    xk = prepare_x(x)

    out = ensnet_fc_subnets(xk, params)
    out = jax.block_until_ready(out)

    ref = reference(xk, params)
    assert out.shape == (num_subnets, batch, CLASSES)
    # approx reciprocal in the softmax -> slightly looser tolerances than exact divide
    assert bool(jnp.allclose(jnp.sum(out, axis=-1), 1.0, atol=1e-2))
    max_err = float(jnp.max(jnp.abs(out - ref)))
    assert bool(jnp.allclose(out, ref, atol=5e-3, rtol=5e-3)), max_err

    print("KERNEL_OK")
</pallas_src>

<mosaic_0001>
module attributes {stable_mosaic.version = 11 : i64} {
  func.func @fc_subnet_kernel(%arg0: i32, %arg1: memref<1x16x5000xbf16, #tpu.memory_space<vmem>>, %arg2: memref<1x5000x512xbf16, #tpu.memory_space<vmem>>, %arg3: memref<1x1x512xf32, #tpu.memory_space<vmem>>, %arg4: memref<1x512x512xbf16, #tpu.memory_space<vmem>>, %arg5: memref<1x1x512xf32, #tpu.memory_space<vmem>>, %arg6: memref<1x512x128xbf16, #tpu.memory_space<vmem>>, %arg7: memref<1x1x128xf32, #tpu.memory_space<vmem>>, %arg8: memref<1x16x128xf32, #tpu.memory_space<vmem>>) attributes {dimension_semantics = [#tpu.dimension_semantics<parallel>], iteration_bounds = array<i64: 4>, scalar_prefetch = 0 : i64, scratch_operands = 0 : i64, tpu.core_type = #tpu.core_type<tc>, window_params = [{transform_indices = @transform_0, window_bounds = array<i64: 1, 16, 5000>}, {transform_indices = @transform_1, window_bounds = array<i64: 1, 5000, 512>}, {transform_indices = @transform_2, window_bounds = array<i64: 1, 1, 512>}, {transform_indices = @transform_3, window_bounds = array<i64: 1, 512, 512>}, {transform_indices = @transform_4, window_bounds = array<i64: 1, 1, 512>}, {transform_indices = @transform_5, window_bounds = array<i64: 1, 512, 128>}, {transform_indices = @transform_6, window_bounds = array<i64: 1, 1, 128>}, {transform_indices = @transform_7, window_bounds = array<i64: 1, 16, 128>}]} {
    %c0 = arith.constant 0 : index
    %c0_0 = arith.constant 0 : index
    %c0_1 = arith.constant 0 : index
    %0 = vector.load %arg1[%c0, %c0_0, %c0_1] : memref<1x16x5000xbf16, #tpu.memory_space<vmem>>, vector<1x16x5000xbf16>
    %1 = vector.shape_cast %0 : vector<1x16x5000xbf16> to vector<16x5000xbf16>
    %c0_2 = arith.constant 0 : index
    %c0_3 = arith.constant 0 : index
    %c0_4 = arith.constant 0 : index
    %2 = vector.load %arg2[%c0_2, %c0_3, %c0_4] : memref<1x5000x512xbf16, #tpu.memory_space<vmem>>, vector<1x5000x512xbf16>
    %3 = vector.shape_cast %2 : vector<1x5000x512xbf16> to vector<5000x512xbf16>
    %cst = arith.constant dense<0.000000e+00> : vector<16x512xf32>
    %4 = tpu.matmul %1, %3, %cst {dimension_numbers = #tpu.dot_dimension_numbers<[1], [0], [0], [1], [0, 0, 1, 1], [], []>} : vector<16x5000xbf16>, vector<5000x512xbf16>, vector<16x512xf32> -> vector<16x512xf32>
    %c0_5 = arith.constant 0 : index
    %c0_6 = arith.constant 0 : index
    %c0_7 = arith.constant 0 : index
    %5 = vector.load %arg3[%c0_5, %c0_6, %c0_7] : memref<1x1x512xf32, #tpu.memory_space<vmem>>, vector<1x1x512xf32>
    %6 = vector.shape_cast %5 : vector<1x1x512xf32> to vector<1x512xf32>
    %7 = vector.broadcast %6 : vector<1x512xf32> to vector<16x512xf32>
    %8 = arith.addf %4, %7 : vector<16x512xf32>
    %cst_8 = arith.constant 0.000000e+00 : f32
    %9 = vector.broadcast %cst_8 : f32 to vector<16x512xf32>
    %10 = arith.maximumf %8, %9 : vector<16x512xf32>
    %11 = arith.truncf %10 : vector<16x512xf32> to vector<16x512xbf16>
    %c0_9 = arith.constant 0 : index
    %c0_10 = arith.constant 0 : index
    %c0_11 = arith.constant 0 : index
    %12 = vector.load %arg4[%c0_9, %c0_10, %c0_11] : memref<1x512x512xbf16, #tpu.memory_space<vmem>>, vector<1x512x512xbf16>
    %13 = vector.shape_cast %12 : vector<1x512x512xbf16> to vector<512x512xbf16>
    %cst_12 = arith.constant dense<0.000000e+00> : vector<16x512xf32>
    %14 = tpu.matmul %11, %13, %cst_12 {dimension_numbers = #tpu.dot_dimension_numbers<[1], [0], [0], [1], [0, 0, 1, 1], [], []>} : vector<16x512xbf16>, vector<512x512xbf16>, vector<16x512xf32> -> vector<16x512xf32>
    %c0_13 = arith.constant 0 : index
    %c0_14 = arith.constant 0 : index
    %c0_15 = arith.constant 0 : index
    %15 = vector.load %arg5[%c0_13, %c0_14, %c0_15] : memref<1x1x512xf32, #tpu.memory_space<vmem>>, vector<1x1x512xf32>
    %16 = vector.shape_cast %15 : vector<1x1x512xf32> to vector<1x512xf32>
    %17 = vector.broadcast %16 : vector<1x512xf32> to vector<16x512xf32>
    %18 = arith.addf %14, %17 : vector<16x512xf32>
    %19 = arith.truncf %18 : vector<16x512xf32> to vector<16x512xbf16>
    %c0_16 = arith.constant 0 : index
    %c0_17 = arith.constant 0 : index
    %c0_18 = arith.constant 0 : index
    %20 = vector.load %arg6[%c0_16, %c0_17, %c0_18] : memref<1x512x128xbf16, #tpu.memory_space<vmem>>, vector<1x512x128xbf16>
    %21 = vector.shape_cast %20 : vector<1x512x128xbf16> to vector<512x128xbf16>
    %cst_19 = arith.constant dense<0.000000e+00> : vector<16x128xf32>
    %22 = tpu.matmul %19, %21, %cst_19 {dimension_numbers = #tpu.dot_dimension_numbers<[1], [0], [0], [1], [0, 0, 1, 1], [], []>} : vector<16x512xbf16>, vector<512x128xbf16>, vector<16x128xf32> -> vector<16x128xf32>
    %c0_20 = arith.constant 0 : index
    %c0_21 = arith.constant 0 : index
    %c0_22 = arith.constant 0 : index
    %23 = vector.load %arg7[%c0_20, %c0_21, %c0_22] : memref<1x1x128xf32, #tpu.memory_space<vmem>>, vector<1x1x128xf32>
    %24 = vector.shape_cast %23 : vector<1x1x128xf32> to vector<1x128xf32>
    %25 = vector.broadcast %24 : vector<1x128xf32> to vector<16x128xf32>
    %26 = arith.addf %22, %25 : vector<16x128xf32>
    %cst_23 = arith.constant dense<0xFF800000> : vector<16xf32>
    %27 = vector.multi_reduction <maximumf>, %26, %cst_23 [1] : vector<16x128xf32> to vector<16xf32>
    %28 = vector.shape_cast %27 : vector<16xf32> to vector<16x1xf32>
    %29 = vector.broadcast %28 : vector<16x1xf32> to vector<16x128xf32>
    %30 = arith.subf %26, %29 : vector<16x128xf32>
    %31 = math.exp %30 : vector<16x128xf32>
    %cst_24 = arith.constant dense<0.000000e+00> : vector<16xf32>
    %32 = vector.multi_reduction <add>, %31, %cst_24 [1] : vector<16x128xf32> to vector<16xf32>
    %33 = vector.shape_cast %32 : vector<16xf32> to vector<16x1xf32>
    %34 = tpu.reciprocal %33 {approx = true} : vector<16x1xf32> -> vector<16x1xf32>
    %35 = vector.broadcast %34 : vector<16x1xf32> to vector<16x128xf32>
    %36 = arith.mulf %31, %35 : vector<16x128xf32>
    %c0_25 = arith.constant 0 : index
    %c0_26 = arith.constant 0 : index
    %c0_27 = arith.constant 0 : index
    %37 = vector.load %arg8[%c0_25, %c0_26, %c0_27] : memref<1x16x128xf32, #tpu.memory_space<vmem>>, vector<1x16x128xf32>
    %38 = vector.shape_cast %37 : vector<1x16x128xf32> to vector<16x128xf32>
    %39 = vector.shape_cast %36 : vector<16x128xf32> to vector<1x16x128xf32>
    tpu.vector_store %arg8[%c0_25, %c0_26, %c0_27], %39 {strides = array<i32>} : memref<1x16x128xf32, #tpu.memory_space<vmem>>, vector<1x16x128xf32>,
    return
  }
  func.func @transform_0(%arg0: i32) -> (i32, i32, i32) {
    %c0_i32 = arith.constant 0 : i32
    %c0_i32_0 = arith.constant 0 : i32
    %c0_i32_1 = arith.constant 0 : i32
    return %arg0, %c0_i32, %c0_i32_0 : i32, i32, i32
  }
  func.func @transform_1(%arg0: i32) -> (i32, i32, i32) {
    %c0_i32 = arith.constant 0 : i32
    %c0_i32_0 = arith.constant 0 : i32
    %c0_i32_1 = arith.constant 0 : i32
    return %arg0, %c0_i32, %c0_i32_0 : i32, i32, i32
  }
  func.func @transform_2(%arg0: i32) -> (i32, i32, i32) {
    %c0_i32 = arith.constant 0 : i32
    %c0_i32_0 = arith.constant 0 : i32
    %c0_i32_1 = arith.constant 0 : i32
    return %arg0, %c0_i32, %c0_i32_0 : i32, i32, i32
  }
  func.func @transform_3(%arg0: i32) -> (i32, i32, i32) {
    %c0_i32 = arith.constant 0 : i32
    %c0_i32_0 = arith.constant 0 : i32
    %c0_i32_1 = arith.constant 0 : i32
    return %arg0, %c0_i32, %c0_i32_0 : i32, i32, i32
  }
  func.func @transform_4(%arg0: i32) -> (i32, i32, i32) {
    %c0_i32 = arith.constant 0 : i32
    %c0_i32_0 = arith.constant 0 : i32
    %c0_i32_1 = arith.constant 0 : i32
    return %arg0, %c0_i32, %c0_i32_0 : i32, i32, i32
  }
  func.func @transform_5(%arg0: i32) -> (i32, i32, i32) {
    %c0_i32 = arith.constant 0 : i32
    %c0_i32_0 = arith.constant 0 : i32
    %c0_i32_1 = arith.constant 0 : i32
    return %arg0, %c0_i32, %c0_i32_0 : i32, i32, i32
  }
  func.func @transform_6(%arg0: i32) -> (i32, i32, i32) {
    %c0_i32 = arith.constant 0 : i32
    %c0_i32_0 = arith.constant 0 : i32
    %c0_i32_1 = arith.constant 0 : i32
    return %arg0, %c0_i32, %c0_i32_0 : i32, i32, i32
  }
  func.func @transform_7(%arg0: i32) -> (i32, i32, i32) {
    %c0_i32 = arith.constant 0 : i32
    %c0_i32_0 = arith.constant 0 : i32
    %c0_i32_1 = arith.constant 0 : i32
    return %arg0, %c0_i32, %c0_i32_0 : i32, i32, i32
  }
}

</mosaic_0001>

<llo_original>
// kernel: tpu_custom_call.1
$region0: #{tpu_custom_call.1}
  #allocation0 [shape = 'u32[]', space=smem, size = 0x4, offset = 0x4, fixed_abs, tag = 'smem constant byte address 0x4 - core index']
  #allocation1 [shape = 'u32[144,128]{1,0:T(1,128)}', space=vmem, size = 0x12000, scoped, tag = 'internal scratch']
  %s0 = inlined_call_operand.hbm [shape: bf16[4,16,5000], index: 0, kind: input, shape index: {}]
  %s1 = inlined_call_operand.hbm [shape: bf16[4,5000,512], index: 1, kind: input, shape index: {}]
  %s2 = inlined_call_operand.hbm [shape: f32[4,1,512], index: 2, kind: input, shape index: {}]
  %s3 = inlined_call_operand.hbm [shape: bf16[4,512,512], index: 3, kind: input, shape index: {}]
  %s4 = inlined_call_operand.hbm [shape: f32[4,1,512], index: 4, kind: input, shape index: {}]
  %s5 = inlined_call_operand.hbm [shape: bf16[4,512,128], index: 5, kind: input, shape index: {}]
  %s6 = inlined_call_operand.hbm [shape: f32[4,1,128], index: 6, kind: input, shape index: {}]
  %s7 = inlined_call_operand.hbm [shape: f32[4,16,128], index: 7, kind: output, shape index: {}]
  %s8 = sld [smem:[#allocation0]]
  $region89: #{tpu_custom_call.1} parent=0
    _
  %s10 = ssub.s32 1, %s8
  %s11 = scalar_select 0, %s10, %s8
  $region1: #{tpu_custom_call.1} parent=0
    #allocation2 [shape = 'u8[327680]{0}', space=vmem, size = 0x50000, scoped, tag = 'input window, operand 0']
    #allocation3 [shape = 's32[2]{0}', space=sflag, size = 0x8, scoped, tag = 'scoped memory for tpu_custom_call.1']
    #allocation4 [shape = 's32[2]{0}', space=sflag, size = 0x8, scoped, tag = 'scoped memory for tpu_custom_call.1']
    #allocation5 [shape = 'u8[10240000]{0}', space=vmem, size = 0x9c4000, scoped, tag = 'input window, operand 1']
    #allocation6 [shape = 's32[2]{0}', space=sflag, size = 0x8, scoped, tag = 'scoped memory for tpu_custom_call.1']
    #allocation7 [shape = 'u8[4096]{0}', space=vmem, size = 0x1000, scoped, tag = 'input window, operand 2']
    #allocation8 [shape = 'u8[1048576]{0}', space=vmem, size = 0x100000, scoped, tag = 'input window, operand 3']
    #allocation9 [shape = 's32[2]{0}', space=sflag, size = 0x8, scoped, tag = 'scoped memory for tpu_custom_call.1']
    #allocation10 [shape = 'u8[4096]{0}', space=vmem, size = 0x1000, scoped, tag = 'input window, operand 4']
    #allocation11 [shape = 'u8[262144]{0}', space=vmem, size = 0x40000, scoped, tag = 'input window, operand 5']
    #allocation12 [shape = 's32[2]{0}', space=sflag, size = 0x8, scoped, tag = 'scoped memory for tpu_custom_call.1']
    #allocation13 [shape = 'u8[1024]{0}', space=vmem, size = 0x400, scoped, tag = 'input window, operand 6']
    #allocation14 [shape = 'u8[16384]{0}', space=vmem, size = 0x4000, scoped, tag = 'output window, operand 0']
    %12 = vsyncpa [#allocation3], 0
    %s13 = scalar_lea.sflag [#allocation3], 1
    %14 = vsyncpa %s13, 0
    %15 = vsyncpa [#allocation6], 0
    %s16 = scalar_lea.sflag [#allocation6], 1
    %17 = vsyncpa %s16, 0
    %18 = vsyncpa [#allocation9], 0
    %s19 = scalar_lea.sflag [#allocation9], 1
    %20 = vsyncpa %s19, 0
    %21 = vsyncpa [#allocation12], 0
    %s22 = scalar_lea.sflag [#allocation12], 1
    %23 = vsyncpa %s22, 0
    %24 = vsyncpa [#allocation4], 0
    %s25 = scalar_lea.sflag [#allocation4], 1
    %26 = vsyncpa %s25, 0
    loop: start=0, step=1, limit=6
    $region2: #{tpu_custom_call.1} parent=1 // loop_pre_header
      _
    $region3: #{tpu_custom_call.1} parent=1 // loop_header
      %s28 = sphi 0, %s32
      %p29 = scmp.ge.s32.totalorder %s28, 6
      %s38 = sphi 0, %s40
      %s41 = sphi 0, %s38
      %s42 = sphi 0, %s41
      %s58 = sphi 0, %s42
      %s64 = sphi 0, %s66
      %s67 = sphi 0, %s64
      %s68 = sphi 0, %s67
      %s84 = sphi 0, %s68
      %s90 = sphi 0, %s92
      %s93 = sphi 0, %s90
      %s94 = sphi 0, %s93
      %s110 = sphi 0, %s94
      %s116 = sphi 0, %s118
      %s119 = sphi 0, %s116
      %s120 = sphi 0, %s119
      %s136 = sphi 0, %s120
      %s142 = sphi 0, %s144
      %s145 = sphi 0, %s142
      %s146 = sphi 0, %s145
      %s162 = sphi 0, %s146
      %s168 = sphi 0, %s170
      %s171 = sphi 0, %s168
      %s172 = sphi 0, %s171
      %s188 = sphi 0, %s172
      %s194 = sphi 0, %s196
      %s197 = sphi 0, %s194
      %s198 = sphi 0, %s197
      %s214 = sphi 0, %s198
      %s220 = sphi 0, %s222
      %s223 = sphi 0, %s220
      %s224 = sphi 0, %s223
      %s240 = sphi 0, %s224
    $region4: #{tpu_custom_call.1} parent=1 // loop_header_branch
      %31 = sbr.rel (%p29) target = $region8
    $region5: #{tpu_custom_call.1} parent=1 // loop_body
      %s33 = ssub.s32 %s28, 1
      %s34 = ssub.s32 %s28, 2
      %s35 = sadd.s32 %s28, 1
      %s36 = ssub.s32 %s28, %s35
      %p37 = scmp.eq.s32.totalorder %s36, 0
      %s39 = sadd.s32 %s38, 1
      %s40 = scalar_select %p37, %s38, %s39
      %p43 = pneg %p37
      %p44 = scmp.eq.s32.totalorder %s28, 3
      %p45 = por %p43, %p44
      %p46 = scmp.ne.s32.totalorder %s38, %s41
      %p47 = scmp.eq.s32.totalorder %s28, 0
      %p48 = por %p46, %p47
      %p49 = scmp.ne.s32.totalorder %s38, %s41
      %p50 = scmp.eq.s32.totalorder %s33, 3
      %p51 = por %p49, %p50
      %p52 = scmp.ne.s32.totalorder %s41, %s42
      %p53 = scmp.eq.s32.totalorder %s33, 0
      %p54 = por %p52, %p53
      %p55 = scmp.ne.s32.totalorder %s41, %s42
      %p56 = scmp.eq.s32.totalorder %s34, 3
      %p57 = por %p55, %p56
      %p59 = scmp.ne.s32.totalorder %s42, %s58
      %p60 = scmp.eq.s32.totalorder %s34, 0
      %p61 = por %p59, %p60
      %s62 = ssub.s32 %s28, %s35
      %p63 = scmp.eq.s32.totalorder %s62, 0
      %s65 = sadd.s32 %s64, 1
      %s66 = scalar_select %p63, %s64, %s65
      %p69 = pneg %p63
      %p70 = scmp.eq.s32.totalorder %s28, 3
      %p71 = por %p69, %p70
      %p72 = scmp.ne.s32.totalorder %s64, %s67
      %p73 = scmp.eq.s32.totalorder %s28, 0
      %p74 = por %p72, %p73
      %p75 = scmp.ne.s32.totalorder %s64, %s67
      %p76 = scmp.eq.s32.totalorder %s33, 3
      %p77 = por %p75, %p76
      %p78 = scmp.ne.s32.totalorder %s67, %s68
      %p79 = scmp.eq.s32.totalorder %s33, 0
      %p80 = por %p78, %p79
      %p81 = scmp.ne.s32.totalorder %s67, %s68
      %p82 = scmp.eq.s32.totalorder %s34, 3
      %p83 = por %p81, %p82
      %p85 = scmp.ne.s32.totalorder %s68, %s84
      %p86 = scmp.eq.s32.totalorder %s34, 0
      %p87 = por %p85, %p86
      %s88 = ssub.s32 %s28, %s35
      %p89 = scmp.eq.s32.totalorder %s88, 0
      %s91 = sadd.s32 %s90, 1
      %s92 = scalar_select %p89, %s90, %s91
      %p95 = pneg %p89
      %p96 = scmp.eq.s32.totalorder %s28, 3
      %p97 = por %p95, %p96
      %p98 = scmp.ne.s32.totalorder %s90, %s93
      %p99 = scmp.eq.s32.totalorder %s28, 0
      %p100 = por %p98, %p99
      %p101 = scmp.ne.s32.totalorder %s90, %s93
      %p102 = scmp.eq.s32.totalorder %s33, 3
      %p103 = por %p101, %p102
      %p104 = scmp.ne.s32.totalorder %s93, %s94
      %p105 = scmp.eq.s32.totalorder %s33, 0
      %p106 = por %p104, %p105
      %p107 = scmp.ne.s32.totalorder %s93, %s94
      %p108 = scmp.eq.s32.totalorder %s34, 3
      %p109 = por %p107, %p108
      %p111 = scmp.ne.s32.totalorder %s94, %s110
      %p112 = scmp.eq.s32.totalorder %s34, 0
      %p113 = por %p111, %p112
      %s114 = ssub.s32 %s28, %s35
      %p115 = scmp.eq.s32.totalorder %s114, 0
      %s117 = sadd.s32 %s116, 1
      %s118 = scalar_select %p115, %s116, %s117
      %p121 = pneg %p115
      %p122 = scmp.eq.s32.totalorder %s28, 3
      %p123 = por %p121, %p122
      %p124 = scmp.ne.s32.totalorder %s116, %s119
      %p125 = scmp.eq.s32.totalorder %s28, 0
      %p126 = por %p124, %p125
      %p127 = scmp.ne.s32.totalorder %s116, %s119
      %p128 = scmp.eq.s32.totalorder %s33, 3
      %p129 = por %p127, %p128
      %p130 = scmp.ne.s32.totalorder %s119, %s120
      %p131 = scmp.eq.s32.totalorder %s33, 0
      %p132 = por %p130, %p131
      %p133 = scmp.ne.s32.totalorder %s119, %s120
      %p134 = scmp.eq.s32.totalorder %s34, 3
      %p135 = por %p133, %p134
      %p137 = scmp.ne.s32.totalorder %s120, %s136
      %p138 = scmp.eq.s32.totalorder %s34, 0
      %p139 = por %p137, %p138
      %s140 = ssub.s32 %s28, %s35
      %p141 = scmp.eq.s32.totalorder %s140, 0
      %s143 = sadd.s32 %s142, 1
      %s144 = scalar_select %p141, %s142, %s143
      %p147 = pneg %p141
      %p148 = scmp.eq.s32.totalorder %s28, 3
      %p149 = por %p147, %p148
      %p150 = scmp.ne.s32.totalorder %s142, %s145
      %p151 = scmp.eq.s32.totalorder %s28, 0
      %p152 = por %p150, %p151
      %p153 = scmp.ne.s32.totalorder %s142, %s145
      %p154 = scmp.eq.s32.totalorder %s33, 3
      %p155 = por %p153, %p154
      %p156 = scmp.ne.s32.totalorder %s145, %s146
      %p157 = scmp.eq.s32.totalorder %s33, 0
      %p158 = por %p156, %p157
      %p159 = scmp.ne.s32.totalorder %s145, %s146
      %p160 = scmp.eq.s32.totalorder %s34, 3
      %p161 = por %p159, %p160
      %p163 = scmp.ne.s32.totalorder %s146, %s162
      %p164 = scmp.eq.s32.totalorder %s34, 0
      %p165 = por %p163, %p164
      %s166 = ssub.s32 %s28, %s35
      %p167 = scmp.eq.s32.totalorder %s166, 0
      %s169 = sadd.s32 %s168, 1
      %s170 = scalar_select %p167, %s168, %s169
      %p173 = pneg %p167
      %p174 = scmp.eq.s32.totalorder %s28, 3
      %p175 = por %p173, %p174
      %p176 = scmp.ne.s32.totalorder %s168, %s171
      %p177 = scmp.eq.s32.totalorder %s28, 0
      %p178 = por %p176, %p177
      %p179 = scmp.ne.s32.totalorder %s168, %s171
      %p180 = scmp.eq.s32.totalorder %s33, 3
      %p181 = por %p179, %p180
      %p182 = scmp.ne.s32.totalorder %s171, %s172
      %p183 = scmp.eq.s32.totalorder %s33, 0
      %p184 = por %p182, %p183
      %p185 = scmp.ne.s32.totalorder %s171, %s172
      %p186 = scmp.eq.s32.totalorder %s34, 3
      %p187 = por %p185, %p186
      %p189 = scmp.ne.s32.totalorder %s172, %s188
      %p190 = scmp.eq.s32.totalorder %s34, 0
      %p191 = por %p189, %p190
      %s192 = ssub.s32 %s28, %s35
      %p193 = scmp.eq.s32.totalorder %s192, 0
      %s195 = sadd.s32 %s194, 1
      %s196 = scalar_select %p193, %s194, %s195
      %p199 = pneg %p193
      %p200 = scmp.eq.s32.totalorder %s28, 3
      %p201 = por %p199, %p200
      %p202 = scmp.ne.s32.totalorder %s194, %s197
      %p203 = scmp.eq.s32.totalorder %s28, 0
      %p204 = por %p202, %p203
      %p205 = scmp.ne.s32.totalorder %s194, %s197
      %p206 = scmp.eq.s32.totalorder %s33, 3
      %p207 = por %p205, %p206
      %p208 = scmp.ne.s32.totalorder %s197, %s198
      %p209 = scmp.eq.s32.totalorder %s33, 0
      %p210 = por %p208, %p209
      %p211 = scmp.ne.s32.totalorder %s197, %s198
      %p212 = scmp.eq.s32.totalorder %s34, 3
      %p213 = por %p211, %p212
      %p215 = scmp.ne.s32.totalorder %s198, %s214
      %p216 = scmp.eq.s32.totalorder %s34, 0
      %p217 = por %p215, %p216
      %s218 = ssub.s32 %s28, %s35
      %p219 = scmp.eq.s32.totalorder %s218, 0
      %s221 = sadd.s32 %s220, 1
      %s222 = scalar_select %p219, %s220, %s221
      %p225 = pneg %p219
      %p226 = scmp.eq.s32.totalorder %s28, 3
      %p227 = por %p225, %p226
      %p228 = scmp.ne.s32.totalorder %s220, %s223
      %p229 = scmp.eq.s32.totalorder %s28, 0
      %p230 = por %p228, %p229
      %p231 = scmp.ne.s32.totalorder %s220, %s223
      %p232 = scmp.eq.s32.totalorder %s33, 3
      %p233 = por %p231, %p232
      %p234 = scmp.ne.s32.totalorder %s223, %s224
      %p235 = scmp.eq.s32.totalorder %s33, 0
      %p236 = por %p234, %p235
      %p237 = scmp.ne.s32.totalorder %s223, %s224
      %p238 = scmp.eq.s32.totalorder %s34, 3
      %p239 = por %p237, %p238
      %p241 = scmp.ne.s32.totalorder %s224, %s240
      %p242 = scmp.eq.s32.totalorder %s34, 0
      %p243 = por %p241, %p242
      %p244 = scmp.le.s32.totalorder 1, %s28
      %p245 = scmp.lt.s32.totalorder %s28, 5
      %p246 = pnand %p244, %p245
      %p247 = pneg %p246
      // Predicated region
      $region9: #{tpu_custom_call.1} parent=5 // pred_check
        _
      $region10: #{tpu_custom_call.1} parent=5 // pred_check_branch
        %249 = sbr.rel (%p246) target = $region12
      $region11: #{tpu_custom_call.1} parent=5 // pred_region
        %s250 = ssub.s32 %s28, 1
      $region12: #{tpu_custom_call.1} parent=5 // pred_fallthru
        _
      %p251 = scmp.lt.s32.totalorder %s28, 4
      // Predicated region
      $region13: #{tpu_custom_call.1} parent=5 // pred_check
        %p252 = pneg %p251
      $region14: #{tpu_custom_call.1} parent=5 // pred_check_branch
        %254 = sbr.rel (%p252) target = $region16
      $region15: #{tpu_custom_call.1} parent=5 // pred_region
        // Predicated region
        $region17: #{tpu_custom_call.1} parent=15 // pred_check
          %p255 = pneg %p48
        $region18: #{tpu_custom_call.1} parent=15 // pred_check_branch
          %257 = sbr.rel (%p255) target = $region20
        $region19: #{tpu_custom_call.1} parent=15 // pred_region
          %s258 = sand.u32 %s38, 1
          %s259 = scalar_lea.sflag [#allocation3], %s258
          %s260 = sand.u32 %s38, 1
          %s261 = smul.addr %s260, 320
          %s262 = scalar_lea.vmem [#allocation2], %s261
          %s264 = ssub.s32 5120, 5120
          %265 = vsyncadd %s259, %s264
          %s266 = smul.addr %s28, 80
          %s267 = smul.addr %s266, 64
          %s268 = scalar_lea.hbm %s0, %s267
          %s269 = sshll.u32 %s262, 4
          %s270 = int_to_ptr.vmem [resolvable:$true] %s269
          %275 = dma.hbm_to_vmem [thread:$0]  %s268, 5120, %s270, %s259, 2560, 2560, 160
        $region20: #{tpu_custom_call.1} parent=15 // pred_fallthru
          _
        // Predicated region
        $region21: #{tpu_custom_call.1} parent=15 // pred_check
          %p276 = pneg %p74
        $region22: #{tpu_custom_call.1} parent=15 // pred_check_branch
          %278 = sbr.rel (%p276) target = $region24
        $region23: #{tpu_custom_call.1} parent=15 // pred_region
          %s279 = sand.u32 %s28, 1
          %s280 = scalar_lea.sflag [#allocation6], %s279
          %s281 = sand.u32 %s64, 1
          %s282 = smul.addr %s281, 10000
          %s283 = scalar_lea.vmem [#allocation5], %s282
          %s285 = ssub.s32 160000, 160000
          %286 = vsyncadd %s280, %s285
          %s287 = smul.addr %s28, 2500
          %s288 = smul.addr %s287, 64
          %s289 = scalar_lea.hbm %s1, %s288
          %s290 = sshll.u32 %s283, 4
          %s291 = int_to_ptr.vmem [resolvable:$true] %s290
          %296 = dma.hbm_to_vmem [thread:$0]  %s289, 160000, %s291, %s280, 256, 256, 16
        $region24: #{tpu_custom_call.1} parent=15 // pred_fallthru
          _
        // Predicated region
        $region25: #{tpu_custom_call.1} parent=15 // pred_check
          %p297 = pneg %p100
        $region26: #{tpu_custom_call.1} parent=15 // pred_check_branch
          %299 = sbr.rel (%p297) target = $region28
        $region27: #{tpu_custom_call.1} parent=15 // pred_region
          %s300 = sand.u32 %s28, 1
          %s301 = scalar_lea.sflag [#allocation6], %s300
          %s302 = sand.u32 %s90, 1
          %s303 = smul.addr %s302, 4
          %s304 = scalar_lea.vmem [#allocation7], %s303
          %s306 = ssub.s32 64, 64
          %307 = vsyncadd %s301, %s306
          %s308 = smul.addr %s28, 4
          %s309 = smul.addr %s308, 16
          %s310 = scalar_lea.hbm %s2, %s309
          %s312 = sshll.u32 %s304, 4
          %s313 = int_to_ptr.vmem [resolvable:$true] %s312
          %315 = dma.hbm_to_vmem [thread:$0]  %s310, 64, %s313, %s301
        $region28: #{tpu_custom_call.1} parent=15 // pred_fallthru
          _
        // Predicated region
        $region29: #{tpu_custom_call.1} parent=15 // pred_check
          %p316 = pneg %p126
        $region30: #{tpu_custom_call.1} parent=15 // pred_check_branch
          %318 = sbr.rel (%p316) target = $region32
        $region31: #{tpu_custom_call.1} parent=15 // pred_region
          %s319 = sand.u32 %s28, 1
          %s320 = scalar_lea.sflag [#allocation9], %s319
          %s321 = sand.u32 %s116, 1
          %s322 = smul.addr %s321, 1024
          %s323 = scalar_lea.vmem [#allocation8], %s322
          %s325 = ssub.s32 16384, 16384
          %326 = vsyncadd %s320, %s325
          %s327 = smul.addr %s28, 256
          %s328 = smul.addr %s327, 64
          %s329 = scalar_lea.hbm %s3, %s328
          %s330 = sshll.u32 %s323, 4
          %s331 = int_to_ptr.vmem [resolvable:$true] %s330
          %336 = dma.hbm_to_vmem [thread:$0]  %s329, 16384, %s331, %s320, 256, 256, 16
        $region32: #{tpu_custom_call.1} parent=15 // pred_fallthru
          _
        // Predicated region
        $region33: #{tpu_custom_call.1} parent=15 // pred_check
          %p337 = pneg %p152
        $region34: #{tpu_custom_call.1} parent=15 // pred_check_branch
          %339 = sbr.rel (%p337) target = $region36
        $region35: #{tpu_custom_call.1} parent=15 // pred_region
          %s340 = sand.u32 %s28, 1
          %s341 = scalar_lea.sflag [#allocation9], %s340
          %s342 = sand.u32 %s142, 1
          %s343 = smul.addr %s342, 4
          %s344 = scalar_lea.vmem [#allocation10], %s343
          %s346 = ssub.s32 64, 64
          %347 = vsyncadd %s341, %s346
          %s348 = smul.addr %s28, 4
          %s349 = smul.addr %s348, 16
          %s350 = scalar_lea.hbm %s4, %s349
          %s352 = sshll.u32 %s344, 4
          %s353 = int_to_ptr.vmem [resolvable:$true] %s352
          %355 = dma.hbm_to_vmem [thread:$0]  %s350, 64, %s353, %s341
        $region36: #{tpu_custom_call.1} parent=15 // pred_fallthru
          _
        // Predicated region
        $region37: #{tpu_custom_call.1} parent=15 // pred_check
          %p356 = pneg %p178
        $region38: #{tpu_custom_call.1} parent=15 // pred_check_branch
          %358 = sbr.rel (%p356) target = $region40
        $region39: #{tpu_custom_call.1} parent=15 // pred_region
          %s359 = sand.u32 %s28, 1
          %s360 = scalar_lea.sflag [#allocation12], %s359
          %s361 = sand.u32 %s168, 1
          %s362 = smul.addr %s361, 256
          %s363 = scalar_lea.vmem [#allocation11], %s362
          %s365 = ssub.s32 4096, 4096
          %366 = vsyncadd %s360, %s365
          %s367 = smul.addr %s28, 64
          %s368 = smul.addr %s367, 64
          %s369 = scalar_lea.hbm %s5, %s368
          %s370 = sshll.u32 %s363, 4
          %s371 = int_to_ptr.vmem [resolvable:$true] %s370
          %376 = dma.hbm_to_vmem [thread:$0]  %s369, 4096, %s371, %s360, 64, 64, 4
        $region40: #{tpu_custom_call.1} parent=15 // pred_fallthru
          _
        // Predicated region
        $region41: #{tpu_custom_call.1} parent=15 // pred_check
          %p377 = pneg %p204
        $region42: #{tpu_custom_call.1} parent=15 // pred_check_branch
          %379 = sbr.rel (%p377) target = $region44
        $region43: #{tpu_custom_call.1} parent=15 // pred_region
          %s380 = sand.u32 %s28, 1
          %s381 = scalar_lea.sflag [#allocation12], %s380
          %s382 = sand.u32 %s194, 1
          %s383 = scalar_lea.vmem [#allocation13], %s382
          %s385 = ssub.s32 16, 16
          %386 = vsyncadd %s381, %s385
          %s387 = smul.addr %s28, 16
          %s388 = scalar_lea.hbm %s6, %s387
          %s390 = sshll.u32 %s383, 4
          %s391 = int_to_ptr.vmem [resolvable:$true] %s390
          %393 = dma.hbm_to_vmem [thread:$0]  %s388, 16, %s391, %s381
        $region44: #{tpu_custom_call.1} parent=15 // pred_fallthru
          _
      $region16: #{tpu_custom_call.1} parent=5 // pred_fallthru
        _
      %p394 = scmp.le.s32.totalorder 1, %s28
      %p395 = scmp.lt.s32.totalorder %s28, 5
      %p396 = pnand %p394, %p395
      %p397 = pneg %p396
      // Predicated region
      $region45: #{tpu_custom_call.1} parent=5 // pred_check
        _
      $region46: #{tpu_custom_call.1} parent=5 // pred_check_branch
        %399 = sbr.rel (%p396) target = $region48
      $region47: #{tpu_custom_call.1} parent=5 // pred_region
        %s400 = ssub.s32 %s28, 1
        %s401 = sand.u32 %s41, 1
        %s402 = scalar_lea.sflag [#allocation3], %s401
        %s403 = sand.u32 %s41, 1
        %s404 = smul.addr %s403, 320
        %s405 = scalar_lea.vmem [#allocation2], %s404
        // Predicated region
        $region49: #{tpu_custom_call.1} parent=47 // pred_check
          %p406 = pneg %p54
        $region50: #{tpu_custom_call.1} parent=47 // pred_check_branch
          %408 = sbr.rel (%p406) target = $region52
        $region51: #{tpu_custom_call.1} parent=47 // pred_region
          %409 = dma.done %s402, 5120
        $region52: #{tpu_custom_call.1} parent=47 // pred_fallthru
          _
        %s410 = sand.u32 %s33, 1
        %s411 = scalar_lea.sflag [#allocation6], %s410
        %s412 = sand.u32 %s67, 1
        %s413 = smul.addr %s412, 10000
        %s414 = scalar_lea.vmem [#allocation5], %s413
        // Predicated region
        $region53: #{tpu_custom_call.1} parent=47 // pred_check
          %p415 = pneg %p80
        $region54: #{tpu_custom_call.1} parent=47 // pred_check_branch
          %417 = sbr.rel (%p415) target = $region56
        $region55: #{tpu_custom_call.1} parent=47 // pred_region
          %418 = dma.done %s411, 160000
        $region56: #{tpu_custom_call.1} parent=47 // pred_fallthru
          _
        %s419 = sand.u32 %s33, 1
        %s420 = scalar_lea.sflag [#allocation6], %s419
        %s421 = sand.u32 %s93, 1
        %s422 = smul.addr %s421, 4
        %s423 = scalar_lea.vmem [#allocation7], %s422
        // Predicated region
        $region57: #{tpu_custom_call.1} parent=47 // pred_check
          %p424 = pneg %p106
        $region58: #{tpu_custom_call.1} parent=47 // pred_check_branch
          %426 = sbr.rel (%p424) target = $region60
        $region59: #{tpu_custom_call.1} parent=47 // pred_region
          %427 = dma.done %s420, 64
        $region60: #{tpu_custom_call.1} parent=47 // pred_fallthru
          _
        %s428 = sand.u32 %s33, 1
        %s429 = scalar_lea.sflag [#allocation9], %s428
        %s430 = sand.u32 %s119, 1
        %s431 = smul.addr %s430, 1024
        %s432 = scalar_lea.vmem [#allocation8], %s431
        // Predicated region
        $region61: #{tpu_custom_call.1} parent=47 // pred_check
          %p433 = pneg %p132
        $region62: #{tpu_custom_call.1} parent=47 // pred_check_branch
          %435 = sbr.rel (%p433) target = $region64
        $region63: #{tpu_custom_call.1} parent=47 // pred_region
          %436 = dma.done %s429, 16384
        $region64: #{tpu_custom_call.1} parent=47 // pred_fallthru
          _
        %s437 = sand.u32 %s33, 1
        %s438 = scalar_lea.sflag [#allocation9], %s437
        %s439 = sand.u32 %s145, 1
        %s440 = smul.addr %s439, 4
        %s441 = scalar_lea.vmem [#allocation10], %s440
        // Predicated region
        $region65: #{tpu_custom_call.1} parent=47 // pred_check
          %p442 = pneg %p158
        $region66: #{tpu_custom_call.1} parent=47 // pred_check_branch
          %444 = sbr.rel (%p442) target = $region68
        $region67: #{tpu_custom_call.1} parent=47 // pred_region
          %445 = dma.done %s438, 64
        $region68: #{tpu_custom_call.1} parent=47 // pred_fallthru
          _
        %s446 = sand.u32 %s33, 1
        %s447 = scalar_lea.sflag [#allocation12], %s446
        %s448 = sand.u32 %s171, 1
        %s449 = smul.addr %s448, 256
        %s450 = scalar_lea.vmem [#allocation11], %s449
        // Predicated region
        $region69: #{tpu_custom_call.1} parent=47 // pred_check
          %p451 = pneg %p184
        $region70: #{tpu_custom_call.1} parent=47 // pred_check_branch
          %453 = sbr.rel (%p451) target = $region72
        $region71: #{tpu_custom_call.1} parent=47 // pred_region
          %454 = dma.done %s447, 4096
        $region72: #{tpu_custom_call.1} parent=47 // pred_fallthru
          _
        %s455 = sand.u32 %s33, 1
        %s456 = scalar_lea.sflag [#allocation12], %s455
        %s457 = sand.u32 %s197, 1
        %s458 = scalar_lea.vmem [#allocation13], %s457
        // Predicated region
        $region73: #{tpu_custom_call.1} parent=47 // pred_check
          %p459 = pneg %p210
        $region74: #{tpu_custom_call.1} parent=47 // pred_check_branch
          %461 = sbr.rel (%p459) target = $region76
        $region75: #{tpu_custom_call.1} parent=47 // pred_region
          %462 = dma.done %s456, 16
        $region76: #{tpu_custom_call.1} parent=47 // pred_fallthru
          _
        %s463 = sand.u32 %s41, 1
        %s464 = scalar_lea.sflag [#allocation3], %s463
        %s465 = sand.u32 %s41, 1
        %s466 = smul.addr %s465, 320
        %s467 = scalar_lea.vmem [#allocation2], %s466
        %p468 = pneg %p54
        %p469 = pneg %p51
        %s470 = sand.u32 %s33, 1
        %s471 = scalar_lea.sflag [#allocation6], %s470
        %s472 = sand.u32 %s67, 1
        %s473 = smul.addr %s472, 10000
        %s474 = scalar_lea.vmem [#allocation5], %s473
        %p475 = pneg %p80
        %p476 = pneg %p77
        %s477 = sand.u32 %s33, 1
        %s478 = scalar_lea.sflag [#allocation6], %s477
        %s479 = sand.u32 %s93, 1
        %s480 = smul.addr %s479, 4
        %s481 = scalar_lea.vmem [#allocation7], %s480
        %p482 = pneg %p106
        %p483 = pneg %p103
        %s484 = sand.u32 %s33, 1
        %s485 = scalar_lea.sflag [#allocation9], %s484
        %s486 = sand.u32 %s119, 1
        %s487 = smul.addr %s486, 1024
        %s488 = scalar_lea.vmem [#allocation8], %s487
        %p489 = pneg %p132
        %p490 = pneg %p129
        %s491 = sand.u32 %s33, 1
        %s492 = scalar_lea.sflag [#allocation9], %s491
        %s493 = sand.u32 %s145, 1
        %s494 = smul.addr %s493, 4
        %s495 = scalar_lea.vmem [#allocation10], %s494
        %p496 = pneg %p158
        %p497 = pneg %p155
        %s498 = sand.u32 %s33, 1
        %s499 = scalar_lea.sflag [#allocation12], %s498
        %s500 = sand.u32 %s171, 1
        %s501 = smul.addr %s500, 256
        %s502 = scalar_lea.vmem [#allocation11], %s501
        %p503 = pneg %p184
        %p504 = pneg %p181
        %s505 = sand.u32 %s33, 1
        %s506 = scalar_lea.sflag [#allocation12], %s505
        %s507 = sand.u32 %s197, 1
        %s508 = scalar_lea.vmem [#allocation13], %s507
        %p509 = pneg %p210
        %p510 = pneg %p207
        %p511 = pneg %p236
        %p512 = pneg %p233
        %s513 = sand.u32 %s223, 1
        %s514 = scalar_lea.sflag [#allocation4], %s513
        %s515 = sand.u32 %s223, 1
        %s516 = smul.addr %s515, 16
        %s517 = scalar_lea.vmem [#allocation14], %s516
        %v519 = vld [vmem:[%s405] sm:$0xff]
        %v520 = vld [vmem:[%s405 + $0x8] sm:$0xff]
        %v521 = vld [vmem:[%s405 + $0x10] sm:$0xff]
        %v522 = vld [vmem:[%s405 + $0x18] sm:$0xff]
        %v523 = vld [vmem:[%s405 + $0x20] sm:$0xff]
        %v524 = vld [vmem:[%s405 + $0x28] sm:$0xff]
        %v525 = vld [vmem:[%s405 + $0x30] sm:$0xff]
        %v526 = vld [vmem:[%s405 + $0x38] sm:$0xff]
        %v527 = vld [vmem:[%s405 + $0x40] sm:$0xff]
        %v528 = vld [vmem:[%s405 + $0x48] sm:$0xff]
        %v529 = vld [vmem:[%s405 + $0x50] sm:$0xff]
        %v530 = vld [vmem:[%s405 + $0x58] sm:$0xff]
        %v531 = vld [vmem:[%s405 + $0x60] sm:$0xff]
        %v532 = vld [vmem:[%s405 + $0x68] sm:$0xff]
        %v533 = vld [vmem:[%s405 + $0x70] sm:$0xff]
        %v534 = vld [vmem:[%s405 + $0x78] sm:$0xff]
        %v535 = vld [vmem:[%s405 + $0x80] sm:$0xff]
        %v536 = vld [vmem:[%s405 + $0x88] sm:$0xff]
        %v537 = vld [vmem:[%s405 + $0x90] sm:$0xff]
        %v538 = vld [vmem:[%s405 + $0x98] sm:$0xff]
        %v539 = vld [vmem:[%s405 + $0xa0] sm:$0xff]
        %v540 = vld [vmem:[%s405 + $0xa8] sm:$0xff]
        %v541 = vld [vmem:[%s405 + $0xb0] sm:$0xff]
        %v542 = vld [vmem:[%s405 + $0xb8] sm:$0xff]
        %v543 = vld [vmem:[%s405 + $0xc0] sm:$0xff]
        %v544 = vld [vmem:[%s405 + $0xc8] sm:$0xff]
        %v545 = vld [vmem:[%s405 + $0xd0] sm:$0xff]
        %v546 = vld [vmem:[%s405 + $0xd8] sm:$0xff]
        %v547 = vld [vmem:[%s405 + $0xe0] sm:$0xff]
        %v548 = vld [vmem:[%s405 + $0xe8] sm:$0xff]
        %v549 = vld [vmem:[%s405 + $0xf0] sm:$0xff]
        %v550 = vld [vmem:[%s405 + $0xf8] sm:$0xff]
        %v551 = vld [vmem:[%s405 + $0x100] sm:$0xff]
        %v552 = vld [vmem:[%s405 + $0x108] sm:$0xff]
        %v553 = vld [vmem:[%s405 + $0x110] sm:$0xff]
        %v554 = vld [vmem:[%s405 + $0x118] sm:$0xff]
        %v555 = vld [vmem:[%s405 + $0x120] sm:$0xff]
        %v556 = vld [vmem:[%s405 + $0x128] sm:$0xff]
        %v557 = vld [vmem:[%s405 + $0x130] sm:$0xff]
        %v558 = vld [vmem:[%s405 + $0x138] sm:$0xff]
        %v559 = vld [vmem:[%s414] sm:$0xff]
        %v560 = vld [vmem:[%s414 + $0x8] sm:$0xff]
        %v561 = vld [vmem:[%s414 + $0x10] sm:$0xff]
        %v562 = vld [vmem:[%s414 + $0x18] sm:$0xff]
        %v563 = vld [vmem:[%s414 + $0x20] sm:$0xff]
        %v564 = vld [vmem:[%s414 + $0x28] sm:$0xff]
        %v565 = vld [vmem:[%s414 + $0x30] sm:$0xff]
        %v566 = vld [vmem:[%s414 + $0x38] sm:$0xff]
        %v567 = vld [vmem:[%s414 + $0x40] sm:$0xff]
        %v568 = vld [vmem:[%s414 + $0x48] sm:$0xff]
        %v569 = vld [vmem:[%s414 + $0x50] sm:$0xff]
        %v570 = vld [vmem:[%s414 + $0x58] sm:$0xff]
        %v571 = vld [vmem:[%s414 + $0x60] sm:$0xff]
        %v572 = vld [vmem:[%s414 + $0x68] sm:$0xff]
        %v573 = vld [vmem:[%s414 + $0x70] sm:$0xff]
        %v574 = vld [vmem:[%s414 + $0x78] sm:$0xff]
        %v575 = vld [vmem:[%s414 + $0x80] sm:$0xff]
        %v576 = vld [vmem:[%s414 + $0x88] sm:$0xff]
        %v577 = vld [vmem:[%s414 + $0x90] sm:$0xff]
        %v578 = vld [vmem:[%s414 + $0x98] sm:$0xff]
        %v579 = vld [vmem:[%s414 + $0xa0] sm:$0xff]
        %v580 = vld [vmem:[%s414 + $0xa8] sm:$0xff]
        %v581 = vld [vmem:[%s414 + $0xb0] sm:$0xff]
        %v582 = vld [vmem:[%s414 + $0xb8] sm:$0xff]
        %v583 = vld [vmem:[%s414 + $0xc0] sm:$0xff]
        %v584 = vld [vmem:[%s414 + $0xc8] sm:$0xff]
        %v585 = vld [vmem:[%s414 + $0xd0] sm:$0xff]
        %v586 = vld [vmem:[%s414 + $0xd8] sm:$0xff]
        %v587 = vld [vmem:[%s414 + $0xe0] sm:$0xff]
        %v588 = vld [vmem:[%s414 + $0xe8] sm:$0xff]
        %v589 = vld [vmem:[%s414 + $0xf0] sm:$0xff]
        %v590 = vld [vmem:[%s414 + $0xf8] sm:$0xff]
        %v591 = vld [vmem:[%s414 + $0x100] sm:$0xff]
        %v592 = vld [vmem:[%s414 + $0x108] sm:$0xff]
        %v593 = vld [vmem:[%s414 + $0x110] sm:$0xff]
        %v594 = vld [vmem:[%s414 + $0x118] sm:$0xff]
        %v595 = vld [vmem:[%s414 + $0x120] sm:$0xff]
        %v596 = vld [vmem:[%s414 + $0x128] sm:$0xff]
        %v597 = vld [vmem:[%s414 + $0x130] sm:$0xff]
        %v598 = vld [vmem:[%s414 + $0x138] sm:$0xff]
        %v599 = vld [vmem:[%s414 + $0x140] sm:$0xff]
        %v600 = vld [vmem:[%s414 + $0x148] sm:$0xff]
        %v601 = vld [vmem:[%s414 + $0x150] sm:$0xff]
        %v602 = vld [vmem:[%s414 + $0x158] sm:$0xff]
        %v603 = vld [vmem:[%s414 + $0x160] sm:$0xff]
        %v604 = vld [vmem:[%s414 + $0x168] sm:$0xff]
        %v605 = vld [vmem:[%s414 + $0x170] sm:$0xff]
        %v606 = vld [vmem:[%s414 + $0x178] sm:$0xff]
        %v607 = vld [vmem:[%s414 + $0x180] sm:$0xff]
        %v608 = vld [vmem:[%s414 + $0x188] sm:$0xff]
        %v609 = vld [vmem:[%s414 + $0x190] sm:$0xff]
        %v610 = vld [vmem:[%s414 + $0x198] sm:$0xff]
        %v611 = vld [vmem:[%s414 + $0x1a0] sm:$0xff]
        %v612 = vld [vmem:[%s414 + $0x1a8] sm:$0xff]
        %v613 = vld [vmem:[%s414 + $0x1b0] sm:$0xff]
        %v614 = vld [vmem:[%s414 + $0x1b8] sm:$0xff]
        %v615 = vld [vmem:[%s414 + $0x1c0] sm:$0xff]
        %v616 = vld [vmem:[%s414 + $0x1c8] sm:$0xff]
        %v617 = vld [vmem:[%s414 + $0x1d0] sm:$0xff]
        %v618 = vld [vmem:[%s414 + $0x1d8] sm:$0xff]
        %v619 = vld [vmem:[%s414 + $0x1e0] sm:$0xff]
        %v620 = vld [vmem:[%s414 + $0x1e8] sm:$0xff]
        %v621 = vld [vmem:[%s414 + $0x1f0] sm:$0xff]
        %v622 = vld [vmem:[%s414 + $0x1f8] sm:$0xff]
        %v623 = vld [vmem:[%s414 + $0x200] sm:$0xff]
        %v624 = vld [vmem:[%s414 + $0x208] sm:$0xff]
        %v625 = vld [vmem:[%s414 + $0x210] sm:$0xff]
        %v626 = vld [vmem:[%s414 + $0x218] sm:$0xff]
        %v627 = vld [vmem:[%s414 + $0x220] sm:$0xff]
        %v628 = vld [vmem:[%s414 + $0x228] sm:$0xff]
        %v629 = vld [vmem:[%s414 + $0x230] sm:$0xff]
        %v630 = vld [vmem:[%s414 + $0x238] sm:$0xff]
        %v631 = vld [vmem:[%s414 + $0x240] sm:$0xff]
        %v632 = vld [vmem:[%s414 + $0x248] sm:$0xff]
        %v633 = vld [vmem:[%s414 + $0x250] sm:$0xff]
        %v634 = vld [vmem:[%s414 + $0x258] sm:$0xff]
        %v635 = vld [vmem:[%s414 + $0x260] sm:$0xff]
        %v636 = vld [vmem:[%s414 + $0x268] sm:$0xff]
        %v637 = vld [vmem:[%s414 + $0x270] sm:$0xff]
        %v638 = vld [vmem:[%s414 + $0x278] sm:$0xff]
        %v639 = vld [vmem:[%s414 + $0x280] sm:$0xff]
        %v640 = vld [vmem:[%s414 + $0x288] sm:$0xff]
        %v641 = vld [vmem:[%s414 + $0x290] sm:$0xff]
        %v642 = vld [vmem:[%s414 + $0x298] sm:$0xff]
        %v643 = vld [vmem:[%s414 + $0x2a0] sm:$0xff]
        %v644 = vld [vmem:[%s414 + $0x2a8] sm:$0xff]
        %v645 = vld [vmem:[%s414 + $0x2b0] sm:$0xff]
        %v646 = vld [vmem:[%s414 + $0x2b8] sm:$0xff]
        %v647 = vld [vmem:[%s414 + $0x2c0] sm:$0xff]
        %v648 = vld [vmem:[%s414 + $0x2c8] sm:$0xff]
        %v649 = vld [vmem:[%s414 + $0x2d0] sm:$0xff]
        %v650 = vld [vmem:[%s414 + $0x2d8] sm:$0xff]
        %v651 = vld [vmem:[%s414 + $0x2e0] sm:$0xff]
        %v652 = vld [vmem:[%s414 + $0x2e8] sm:$0xff]
        %v653 = vld [vmem:[%s414 + $0x2f0] sm:$0xff]
        %v654 = vld [vmem:[%s414 + $0x2f8] sm:$0xff]
        %v655 = vld [vmem:[%s414 + $0x300] sm:$0xff]
        %v656 = vld [vmem:[%s414 + $0x308] sm:$0xff]
        %v657 = vld [vmem:[%s414 + $0x310] sm:$0xff]
        %v658 = vld [vmem:[%s414 + $0x318] sm:$0xff]
        %v659 = vld [vmem:[%s414 + $0x320] sm:$0xff]
        %v660 = vld [vmem:[%s414 + $0x328] sm:$0xff]
        %v661 = vld [vmem:[%s414 + $0x330] sm:$0xff]
        %v662 = vld [vmem:[%s414 + $0x338] sm:$0xff]
        %v663 = vld [vmem:[%s414 + $0x340] sm:$0xff]
        %v664 = vld [vmem:[%s414 + $0x348] sm:$0xff]
        %v665 = vld [vmem:[%s414 + $0x350] sm:$0xff]
        %v666 = vld [vmem:[%s414 + $0x358] sm:$0xff]
        %v667 = vld [vmem:[%s414 + $0x360] sm:$0xff]
        %v668 = vld [vmem:[%s414 + $0x368] sm:$0xff]
        %v669 = vld [vmem:[%s414 + $0x370] sm:$0xff]
        %v670 = vld [vmem:[%s414 + $0x378] sm:$0xff]
        %v671 = vld [vmem:[%s414 + $0x380] sm:$0xff]
        %v672 = vld [vmem:[%s414 + $0x388] sm:$0xff]
        %v673 = vld [vmem:[%s414 + $0x390] sm:$0xff]
        %v674 = vld [vmem:[%s414 + $0x398] sm:$0xff]
        %v675 = vld [vmem:[%s414 + $0x3a0] sm:$0xff]
        %v676 = vld [vmem:[%s414 + $0x3a8] sm:$0xff]
        %v677 = vld [vmem:[%s414 + $0x3b0] sm:$0xff]
        %v678 = vld [vmem:[%s414 + $0x3b8] sm:$0xff]
        %v679 = vld [vmem:[%s414 + $0x3c0] sm:$0xff]
        %v680 = vld [vmem:[%s414 + $0x3c8] sm:$0xff]
        %v681 = vld [vmem:[%s414 + $0x3d0] sm:$0xff]
        %v682 = vld [vmem:[%s414 + $0x3d8] sm:$0xff]
        %v683 = vld [vmem:[%s414 + $0x3e0] sm:$0xff]
        %v684 = vld [vmem:[%s414 + $0x3e8] sm:$0xff]
        %v685 = vld [vmem:[%s414 + $0x3f0] sm:$0xff]
        %v686 = vld [vmem:[%s414 + $0x3f8] sm:$0xff]
        %v687 = vld [vmem:[%s414 + $0x400] sm:$0xff]
        %v688 = vld [vmem:[%s414 + $0x408] sm:$0xff]
        %v689 = vld [vmem:[%s414 + $0x410] sm:$0xff]
        %v690 = vld [vmem:[%s414 + $0x418] sm:$0xff]
        %v691 = vld [vmem:[%s414 + $0x420] sm:$0xff]
        %v692 = vld [vmem:[%s414 + $0x428] sm:$0xff]
        %v693 = vld [vmem:[%s414 + $0x430] sm:$0xff]
        %v694 = vld [vmem:[%s414 + $0x438] sm:$0xff]
        %v695 = vld [vmem:[%s414 + $0x440] sm:$0xff]
        %v696 = vld [vmem:[%s414 + $0x448] sm:$0xff]
        %v697 = vld [vmem:[%s414 + $0x450] sm:$0xff]
        %v698 = vld [vmem:[%s414 + $0x458] sm:$0xff]
        %v699 = vld [vmem:[%s414 + $0x460] sm:$0xff]
        %v700 = vld [vmem:[%s414 + $0x468] sm:$0xff]
        %v701 = vld [vmem:[%s414 + $0x470] sm:$0xff]
        %v702 = vld [vmem:[%s414 + $0x478] sm:$0xff]
        %v703 = vld [vmem:[%s414 + $0x480] sm:$0xff]
        %v704 = vld [vmem:[%s414 + $0x488] sm:$0xff]
        %v705 = vld [vmem:[%s414 + $0x490] sm:$0xff]
        %v706 = vld [vmem:[%s414 + $0x498] sm:$0xff]
        %v707 = vld [vmem:[%s414 + $0x4a0] sm:$0xff]
        %v708 = vld [vmem:[%s414 + $0x4a8] sm:$0xff]
        %v709 = vld [vmem:[%s414 + $0x4b0] sm:$0xff]
        %v710 = vld [vmem:[%s414 + $0x4b8] sm:$0xff]
        %v711 = vld [vmem:[%s414 + $0x4c0] sm:$0xff]
        %v712 = vld [vmem:[%s414 + $0x4c8] sm:$0xff]
        %v713 = vld [vmem:[%s414 + $0x4d0] sm:$0xff]
        %v714 = vld [vmem:[%s414 + $0x4d8] sm:$0xff]
        %v715 = vld [vmem:[%s414 + $0x4e0] sm:$0xff]
        %v716 = vld [vmem:[%s414 + $0x4e8] sm:$0xff]
        %v717 = vld [vmem:[%s414 + $0x4f0] sm:$0xff]
        %v718 = vld [vmem:[%s414 + $0x4f8] sm:$0xff]
        %v719 = vld [vmem:[%s414 + $0x500] sm:$0xff]
        %v720 = vld [vmem:[%s414 + $0x508] sm:$0xff]
        %v721 = vld [vmem:[%s414 + $0x510] sm:$0xff]
        %v722 = vld [vmem:[%s414 + $0x518] sm:$0xff]
        %v723 = vld [vmem:[%s414 + $0x520] sm:$0xff]
        %v724 = vld [vmem:[%s414 + $0x528] sm:$0xff]
        %v725 = vld [vmem:[%s414 + $0x530] sm:$0xff]
        %v726 = vld [vmem:[%s414 + $0x538] sm:$0xff]
        %v727 = vld [vmem:[%s414 + $0x540] sm:$0xff]
        %v728 = vld [vmem:[%s414 + $0x548] sm:$0xff]
        %v729 = vld [vmem:[%s414 + $0x550] sm:$0xff]
        %v730 = vld [vmem:[%s414 + $0x558] sm:$0xff]
        %v731 = vld [vmem:[%s414 + $0x560] sm:$0xff]
        %v732 = vld [vmem:[%s414 + $0x568] sm:$0xff]
        %v733 = vld [vmem:[%s414 + $0x570] sm:$0xff]
        %v734 = vld [vmem:[%s414 + $0x578] sm:$0xff]
        %v735 = vld [vmem:[%s414 + $0x580] sm:$0xff]
        %v736 = vld [vmem:[%s414 + $0x588] sm:$0xff]
        %v737 = vld [vmem:[%s414 + $0x590] sm:$0xff]
        %v738 = vld [vmem:[%s414 + $0x598] sm:$0xff]
        %v739 = vld [vmem:[%s414 + $0x5a0] sm:$0xff]
        %v740 = vld [vmem:[%s414 + $0x5a8] sm:$0xff]
        %v741 = vld [vmem:[%s414 + $0x5b0] sm:$0xff]
        %v742 = vld [vmem:[%s414 + $0x5b8] sm:$0xff]
        %v743 = vld [vmem:[%s414 + $0x5c0] sm:$0xff]
        %v744 = vld [vmem:[%s414 + $0x5c8] sm:$0xff]
        %v745 = vld [vmem:[%s414 + $0x5d0] sm:$0xff]
        %v746 = vld [vmem:[%s414 + $0x5d8] sm:$0xff]
        %v747 = vld [vmem:[%s414 + $0x5e0] sm:$0xff]
        %v748 = vld [vmem:[%s414 + $0x5e8] sm:$0xff]
        %v749 = vld [vmem:[%s414 + $0x5f0] sm:$0xff]
        %v750 = vld [vmem:[%s414 + $0x5f8] sm:$0xff]
        %v751 = vld [vmem:[%s414 + $0x600] sm:$0xff]
        %v752 = vld [vmem:[%s414 + $0x608] sm:$0xff]
        %v753 = vld [vmem:[%s414 + $0x610] sm:$0xff]
        %v754 = vld [vmem:[%s414 + $0x618] sm:$0xff]
        %v755 = vld [vmem:[%s414 + $0x620] sm:$0xff]
        %v756 = vld [vmem:[%s414 + $0x628] sm:$0xff]
        %v757 = vld [vmem:[%s414 + $0x630] sm:$0xff]
        %v758 = vld [vmem:[%s414 + $0x638] sm:$0xff]
        %v759 = vld [vmem:[%s414 + $0x640] sm:$0xff]
        %v760 = vld [vmem:[%s414 + $0x648] sm:$0xff]
        %v761 = vld [vmem:[%s414 + $0x650] sm:$0xff]
        %v762 = vld [vmem:[%s414 + $0x658] sm:$0xff]
        %v763 = vld [vmem:[%s414 + $0x660] sm:$0xff]
        %v764 = vld [vmem:[%s414 + $0x668] sm:$0xff]
        %v765 = vld [vmem:[%s414 + $0x670] sm:$0xff]
        %v766 = vld [vmem:[%s414 + $0x678] sm:$0xff]
        %v767 = vld [vmem:[%s414 + $0x680] sm:$0xff]
        %v768 = vld [vmem:[%s414 + $0x688] sm:$0xff]
        %v769 = vld [vmem:[%s414 + $0x690] sm:$0xff]
        %v770 = vld [vmem:[%s414 + $0x698] sm:$0xff]
        %v771 = vld [vmem:[%s414 + $0x6a0] sm:$0xff]
        %v772 = vld [vmem:[%s414 + $0x6a8] sm:$0xff]
        %v773 = vld [vmem:[%s414 + $0x6b0] sm:$0xff]
        %v774 = vld [vmem:[%s414 + $0x6b8] sm:$0xff]
        %v775 = vld [vmem:[%s414 + $0x6c0] sm:$0xff]
        %v776 = vld [vmem:[%s414 + $0x6c8] sm:$0xff]
        %v777 = vld [vmem:[%s414 + $0x6d0] sm:$0xff]
        %v778 = vld [vmem:[%s414 + $0x6d8] sm:$0xff]
        %v779 = vld [vmem:[%s414 + $0x6e0] sm:$0xff]
        %v780 = vld [vmem:[%s414 + $0x6e8] sm:$0xff]
        %v781 = vld [vmem:[%s414 + $0x6f0] sm:$0xff]
        %v782 = vld [vmem:[%s414 + $0x6f8] sm:$0xff]
        %v783 = vld [vmem:[%s414 + $0x700] sm:$0xff]
        %v784 = vld [vmem:[%s414 + $0x708] sm:$0xff]
        %v785 = vld [vmem:[%s414 + $0x710] sm:$0xff]
        %v786 = vld [vmem:[%s414 + $0x718] sm:$0xff]
        %v787 = vld [vmem:[%s414 + $0x720] sm:$0xff]
        %v788 = vld [vmem:[%s414 + $0x728] sm:$0xff]
        %v789 = vld [vmem:[%s414 + $0x730] sm:$0xff]
        %v790 = vld [vmem:[%s414 + $0x738] sm:$0xff]
        %v791 = vld [vmem:[%s414 + $0x740] sm:$0xff]
        %v792 = vld [vmem:[%s414 + $0x748] sm:$0xff]
        %v793 = vld [vmem:[%s414 + $0x750] sm:$0xff]
        %v794 = vld [vmem:[%s414 + $0x758] sm:$0xff]
        %v795 = vld [vmem:[%s414 + $0x760] sm:$0xff]
        %v796 = vld [vmem:[%s414 + $0x768] sm:$0xff]
        %v797 = vld [vmem:[%s414 + $0x770] sm:$0xff]
        %v798 = vld [vmem:[%s414 + $0x778] sm:$0xff]
        %v799 = vld [vmem:[%s414 + $0x780] sm:$0xff]
        %v800 = vld [vmem:[%s414 + $0x788] sm:$0xff]
        %v801 = vld [vmem:[%s414 + $0x790] sm:$0xff]
        %v802 = vld [vmem:[%s414 + $0x798] sm:$0xff]
        %v803 = vld [vmem:[%s414 + $0x7a0] sm:$0xff]
        %v804 = vld [vmem:[%s414 + $0x7a8] sm:$0xff]
        %v805 = vld [vmem:[%s414 + $0x7b0] sm:$0xff]
        %v806 = vld [vmem:[%s414 + $0x7b8] sm:$0xff]
        %v807 = vld [vmem:[%s414 + $0x7c0] sm:$0xff]
        %v808 = vld [vmem:[%s414 + $0x7c8] sm:$0xff]
        %v809 = vld [vmem:[%s414 + $0x7d0] sm:$0xff]
        %v810 = vld [vmem:[%s414 + $0x7d8] sm:$0xff]
        %v811 = vld [vmem:[%s414 + $0x7e0] sm:$0xff]
        %v812 = vld [vmem:[%s414 + $0x7e8] sm:$0xff]
        %v813 = vld [vmem:[%s414 + $0x7f0] sm:$0xff]
        %v814 = vld [vmem:[%s414 + $0x7f8] sm:$0xff]
        %v815 = vld [vmem:[%s414 + $0x800] sm:$0xff]
        %v816 = vld [vmem:[%s414 + $0x808] sm:$0xff]
        %v817 = vld [vmem:[%s414 + $0x810] sm:$0xff]
        %v818 = vld [vmem:[%s414 + $0x818] sm:$0xff]
        %v819 = vld [vmem:[%s414 + $0x820] sm:$0xff]
        %v820 = vld [vmem:[%s414 + $0x828] sm:$0xff]
        %v821 = vld [vmem:[%s414 + $0x830] sm:$0xff]
        %v822 = vld [vmem:[%s414 + $0x838] sm:$0xff]
        %v823 = vld [vmem:[%s414 + $0x840] sm:$0xff]
        %v824 = vld [vmem:[%s414 + $0x848] sm:$0xff]
        %v825 = vld [vmem:[%s414 + $0x850] sm:$0xff]
        %v826 = vld [vmem:[%s414 + $0x858] sm:$0xff]
        %v827 = vld [vmem:[%s414 + $0x860] sm:$0xff]
        %v828 = vld [vmem:[%s414 + $0x868] sm:$0xff]
        %v829 = vld [vmem:[%s414 + $0x870] sm:$0xff]
        %v830 = vld [vmem:[%s414 + $0x878] sm:$0xff]
        %v831 = vld [vmem:[%s414 + $0x880] sm:$0xff]
        %v832 = vld [vmem:[%s414 + $0x888] sm:$0xff]
        %v833 = vld [vmem:[%s414 + $0x890] sm:$0xff]
        %v834 = vld [vmem:[%s414 + $0x898] sm:$0xff]
        %v835 = vld [vmem:[%s414 + $0x8a0] sm:$0xff]
        %v836 = vld [vmem:[%s414 + $0x8a8] sm:$0xff]
        %v837 = vld [vmem:[%s414 + $0x8b0] sm:$0xff]
        %v838 = vld [vmem:[%s414 + $0x8b8] sm:$0xff]
        %v839 = vld [vmem:[%s414 + $0x8c0] sm:$0xff]
        %v840 = vld [vmem:[%s414 + $0x8c8] sm:$0xff]
        %v841 = vld [vmem:[%s414 + $0x8d0] sm:$0xff]
        %v842 = vld [vmem:[%s414 + $0x8d8] sm:$0xff]
        %v843 = vld [vmem:[%s414 + $0x8e0] sm:$0xff]
        %v844 = vld [vmem:[%s414 + $0x8e8] sm:$0xff]
        %v845 = vld [vmem:[%s414 + $0x8f0] sm:$0xff]
        %v846 = vld [vmem:[%s414 + $0x8f8] sm:$0xff]
        %v847 = vld [vmem:[%s414 + $0x900] sm:$0xff]
        %v848 = vld [vmem:[%s414 + $0x908] sm:$0xff]
        %v849 = vld [vmem:[%s414 + $0x910] sm:$0xff]
        %v850 = vld [vmem:[%s414 + $0x918] sm:$0xff]
        %v851 = vld [vmem:[%s414 + $0x920] sm:$0xff]
        %v852 = vld [vmem:[%s414 + $0x928] sm:$0xff]
        %v853 = vld [vmem:[%s414 + $0x930] sm:$0xff]
        %v854 = vld [vmem:[%s414 + $0x938] sm:$0xff]
        %v855 = vld [vmem:[%s414 + $0x940] sm:$0xff]
        %v856 = vld [vmem:[%s414 + $0x948] sm:$0xff]
        %v857 = vld [vmem:[%s414 + $0x950] sm:$0xff]
        %v858 = vld [vmem:[%s414 + $0x958] sm:$0xff]
        %v859 = vld [vmem:[%s414 + $0x960] sm:$0xff]
        %v860 = vld [vmem:[%s414 + $0x968] sm:$0xff]
        %v861 = vld [vmem:[%s414 + $0x970] sm:$0xff]
        %v862 = vld [vmem:[%s414 + $0x978] sm:$0xff]
        %v863 = vld [vmem:[%s414 + $0x980] sm:$0xff]
        %v864 = vld [vmem:[%s414 + $0x988] sm:$0xff]
        %v865 = vld [vmem:[%s414 + $0x990] sm:$0xff]
        %v866 = vld [vmem:[%s414 + $0x998] sm:$0xff]
        %v867 = vld [vmem:[%s414 + $0x9a0] sm:$0xff]
        %v868 = vld [vmem:[%s414 + $0x9a8] sm:$0xff]
        %v869 = vld [vmem:[%s414 + $0x9b0] sm:$0xff]
        %v870 = vld [vmem:[%s414 + $0x9b8] sm:$0xff]
        %v871 = vld [vmem:[%s414 + $0x9c0] sm:$0xff]
        %v872 = vld [vmem:[%s414 + $0x9c8] sm:$0xff]
        %v873 = vld [vmem:[%s414 + $0x9d0] sm:$0xff]
        %v874 = vld [vmem:[%s414 + $0x9d8] sm:$0xff]
        %v875 = vld [vmem:[%s414 + $0x9e0] sm:$0xff]
        %v876 = vld [vmem:[%s414 + $0x9e8] sm:$0xff]
        %v877 = vld [vmem:[%s414 + $0x9f0] sm:$0xff]
        %v878 = vld [vmem:[%s414 + $0x9f8] sm:$0xff]
        %v879 = vld [vmem:[%s414 + $0xa00] sm:$0xff]
        %v880 = vld [vmem:[%s414 + $0xa08] sm:$0xff]
        %v881 = vld [vmem:[%s414 + $0xa10] sm:$0xff]
        %v882 = vld [vmem:[%s414 + $0xa18] sm:$0xff]
        %v883 = vld [vmem:[%s414 + $0xa20] sm:$0xff]
        %v884 = vld [vmem:[%s414 + $0xa28] sm:$0xff]
        %v885 = vld [vmem:[%s414 + $0xa30] sm:$0xff]
        %v886 = vld [vmem:[%s414 + $0xa38] sm:$0xff]
        %v887 = vld [vmem:[%s414 + $0xa40] sm:$0xff]
        %v888 = vld [vmem:[%s414 + $0xa48] sm:$0xff]
        %v889 = vld [vmem:[%s414 + $0xa50] sm:$0xff]
        %v890 = vld [vmem:[%s414 + $0xa58] sm:$0xff]
        %v891 = vld [vmem:[%s414 + $0xa60] sm:$0xff]
        %v892 = vld [vmem:[%s414 + $0xa68] sm:$0xff]
        %v893 = vld [vmem:[%s414 + $0xa70] sm:$0xff]
        %v894 = vld [vmem:[%s414 + $0xa78] sm:$0xff]
        %v895 = vld [vmem:[%s414 + $0xa80] sm:$0xff]
        %v896 = vld [vmem:[%s414 + $0xa88] sm:$0xff]
        %v897 = vld [vmem:[%s414 + $0xa90] sm:$0xff]
        %v898 = vld [vmem:[%s414 + $0xa98] sm:$0xff]
        %v899 = vld [vmem:[%s414 + $0xaa0] sm:$0xff]
        %v900 = vld [vmem:[%s414 + $0xaa8] sm:$0xff]
        %v901 = vld [vmem:[%s414 + $0xab0] sm:$0xff]
        %v902 = vld [vmem:[%s414 + $0xab8] sm:$0xff]
        %v903 = vld [vmem:[%s414 + $0xac0] sm:$0xff]
        %v904 = vld [vmem:[%s414 + $0xac8] sm:$0xff]
        %v905 = vld [vmem:[%s414 + $0xad0] sm:$0xff]
        %v906 = vld [vmem:[%s414 + $0xad8] sm:$0xff]
        %v907 = vld [vmem:[%s414 + $0xae0] sm:$0xff]
        %v908 = vld [vmem:[%s414 + $0xae8] sm:$0xff]
        %v909 = vld [vmem:[%s414 + $0xaf0] sm:$0xff]
        %v910 = vld [vmem:[%s414 + $0xaf8] sm:$0xff]
        %v911 = vld [vmem:[%s414 + $0xb00] sm:$0xff]
        %v912 = vld [vmem:[%s414 + $0xb08] sm:$0xff]
        %v913 = vld [vmem:[%s414 + $0xb10] sm:$0xff]
        %v914 = vld [vmem:[%s414 + $0xb18] sm:$0xff]
        %v915 = vld [vmem:[%s414 + $0xb20] sm:$0xff]
        %v916 = vld [vmem:[%s414 + $0xb28] sm:$0xff]
        %v917 = vld [vmem:[%s414 + $0xb30] sm:$0xff]
        %v918 = vld [vmem:[%s414 + $0xb38] sm:$0xff]
        %v919 = vld [vmem:[%s414 + $0xb40] sm:$0xff]
        %v920 = vld [vmem:[%s414 + $0xb48] sm:$0xff]
        %v921 = vld [vmem:[%s414 + $0xb50] sm:$0xff]
        %v922 = vld [vmem:[%s414 + $0xb58] sm:$0xff]
        %v923 = vld [vmem:[%s414 + $0xb60] sm:$0xff]
        %v924 = vld [vmem:[%s414 + $0xb68] sm:$0xff]
        %v925 = vld [vmem:[%s414 + $0xb70] sm:$0xff]
        %v926 = vld [vmem:[%s414 + $0xb78] sm:$0xff]
        %v927 = vld [vmem:[%s414 + $0xb80] sm:$0xff]
        %v928 = vld [vmem:[%s414 + $0xb88] sm:$0xff]
        %v929 = vld [vmem:[%s414 + $0xb90] sm:$0xff]
        %v930 = vld [vmem:[%s414 + $0xb98] sm:$0xff]
        %v931 = vld [vmem:[%s414 + $0xba0] sm:$0xff]
        %v932 = vld [vmem:[%s414 + $0xba8] sm:$0xff]
        %v933 = vld [vmem:[%s414 + $0xbb0] sm:$0xff]
        %v934 = vld [vmem:[%s414 + $0xbb8] sm:$0xff]
        %v935 = vld [vmem:[%s414 + $0xbc0] sm:$0xff]
        %v936 = vld [vmem:[%s414 + $0xbc8] sm:$0xff]
        %v937 = vld [vmem:[%s414 + $0xbd0] sm:$0xff]
        %v938 = vld [vmem:[%s414 + $0xbd8] sm:$0xff]
        %v939 = vld [vmem:[%s414 + $0xbe0] sm:$0xff]
        %v940 = vld [vmem:[%s414 + $0xbe8] sm:$0xff]
        %v941 = vld [vmem:[%s414 + $0xbf0] sm:$0xff]
        %v942 = vld [vmem:[%s414 + $0xbf8] sm:$0xff]
        %v943 = vld [vmem:[%s414 + $0xc00] sm:$0xff]
        %v944 = vld [vmem:[%s414 + $0xc08] sm:$0xff]
        %v945 = vld [vmem:[%s414 + $0xc10] sm:$0xff]
        %v946 = vld [vmem:[%s414 + $0xc18] sm:$0xff]
        %v947 = vld [vmem:[%s414 + $0xc20] sm:$0xff]
        %v948 = vld [vmem:[%s414 + $0xc28] sm:$0xff]
        %v949 = vld [vmem:[%s414 + $0xc30] sm:$0xff]
        %v950 = vld [vmem:[%s414 + $0xc38] sm:$0xff]
        %v951 = vld [vmem:[%s414 + $0xc40] sm:$0xff]
        %v952 = vld [vmem:[%s414 + $0xc48] sm:$0xff]
        %v953 = vld [vmem:[%s414 + $0xc50] sm:$0xff]
        %v954 = vld [vmem:[%s414 + $0xc58] sm:$0xff]
        %v955 = vld [vmem:[%s414 + $0xc60] sm:$0xff]
        %v956 = vld [vmem:[%s414 + $0xc68] sm:$0xff]
        %v957 = vld [vmem:[%s414 + $0xc70] sm:$0xff]
        %v958 = vld [vmem:[%s414 + $0xc78] sm:$0xff]
        %v959 = vld [vmem:[%s414 + $0xc80] sm:$0xff]
        %v960 = vld [vmem:[%s414 + $0xc88] sm:$0xff]
        %v961 = vld [vmem:[%s414 + $0xc90] sm:$0xff]
        %v962 = vld [vmem:[%s414 + $0xc98] sm:$0xff]
        %v963 = vld [vmem:[%s414 + $0xca0] sm:$0xff]
        %v964 = vld [vmem:[%s414 + $0xca8] sm:$0xff]
        %v965 = vld [vmem:[%s414 + $0xcb0] sm:$0xff]
        %v966 = vld [vmem:[%s414 + $0xcb8] sm:$0xff]
        %v967 = vld [vmem:[%s414 + $0xcc0] sm:$0xff]
        %v968 = vld [vmem:[%s414 + $0xcc8] sm:$0xff]
        %v969 = vld [vmem:[%s414 + $0xcd0] sm:$0xff]
        %v970 = vld [vmem:[%s414 + $0xcd8] sm:$0xff]
        %v971 = vld [vmem:[%s414 + $0xce0] sm:$0xff]
        %v972 = vld [vmem:[%s414 + $0xce8] sm:$0xff]
        %v973 = vld [vmem:[%s414 + $0xcf0] sm:$0xff]
        %v974 = vld [vmem:[%s414 + $0xcf8] sm:$0xff]
        %v975 = vld [vmem:[%s414 + $0xd00] sm:$0xff]
        %v976 = vld [vmem:[%s414 + $0xd08] sm:$0xff]
        %v977 = vld [vmem:[%s414 + $0xd10] sm:$0xff]
        %v978 = vld [vmem:[%s414 + $0xd18] sm:$0xff]
        %v979 = vld [vmem:[%s414 + $0xd20] sm:$0xff]
        %v980 = vld [vmem:[%s414 + $0xd28] sm:$0xff]
        %v981 = vld [vmem:[%s414 + $0xd30] sm:$0xff]
        %v982 = vld [vmem:[%s414 + $0xd38] sm:$0xff]
        %v983 = vld [vmem:[%s414 + $0xd40] sm:$0xff]
        %v984 = vld [vmem:[%s414 + $0xd48] sm:$0xff]
        %v985 = vld [vmem:[%s414 + $0xd50] sm:$0xff]
        %v986 = vld [vmem:[%s414 + $0xd58] sm:$0xff]
        %v987 = vld [vmem:[%s414 + $0xd60] sm:$0xff]
        %v988 = vld [vmem:[%s414 + $0xd68] sm:$0xff]
        %v989 = vld [vmem:[%s414 + $0xd70] sm:$0xff]
        %v990 = vld [vmem:[%s414 + $0xd78] sm:$0xff]
        %v991 = vld [vmem:[%s414 + $0xd80] sm:$0xff]
        %v992 = vld [vmem:[%s414 + $0xd88] sm:$0xff]
        %v993 = vld [vmem:[%s414 + $0xd90] sm:$0xff]
        %v994 = vld [vmem:[%s414 + $0xd98] sm:$0xff]
        %v995 = vld [vmem:[%s414 + $0xda0] sm:$0xff]
        %v996 = vld [vmem:[%s414 + $0xda8] sm:$0xff]
        %v997 = vld [vmem:[%s414 + $0xdb0] sm:$0xff]
        %v998 = vld [vmem:[%s414 + $0xdb8] sm:$0xff]
        %v999 = vld [vmem:[%s414 + $0xdc0] sm:$0xff]
        %v1000 = vld [vmem:[%s414 + $0xdc8] sm:$0xff]
        %v1001 = vld [vmem:[%s414 + $0xdd0] sm:$0xff]
        %v1002 = vld [vmem:[%s414 + $0xdd8] sm:$0xff]
        %v1003 = vld [vmem:[%s414 + $0xde0] sm:$0xff]
        %v1004 = vld [vmem:[%s414 + $0xde8] sm:$0xff]
        %v1005 = vld [vmem:[%s414 + $0xdf0] sm:$0xff]
        %v1006 = vld [vmem:[%s414 + $0xdf8] sm:$0xff]
        %v1007 = vld [vmem:[%s414 + $0xe00] sm:$0xff]
        %v1008 = vld [vmem:[%s414 + $0xe08] sm:$0xff]
        %v1009 = vld [vmem:[%s414 + $0xe10] sm:$0xff]
        %v1010 = vld [vmem:[%s414 + $0xe18] sm:$0xff]
        %v1011 = vld [vmem:[%s414 + $0xe20] sm:$0xff]
        %v1012 = vld [vmem:[%s414 + $0xe28] sm:$0xff]
        %v1013 = vld [vmem:[%s414 + $0xe30] sm:$0xff]
        %v1014 = vld [vmem:[%s414 + $0xe38] sm:$0xff]
        %v1015 = vld [vmem:[%s414 + $0xe40] sm:$0xff]
        %v1016 = vld [vmem:[%s414 + $0xe48] sm:$0xff]
        %v1017 = vld [vmem:[%s414 + $0xe50] sm:$0xff]
        %v1018 = vld [vmem:[%s414 + $0xe58] sm:$0xff]
        %v1019 = vld [vmem:[%s414 + $0xe60] sm:$0xff]
        %v1020 = vld [vmem:[%s414 + $0xe68] sm:$0xff]
        %v1021 = vld [vmem:[%s414 + $0xe70] sm:$0xff]
        %v1022 = vld [vmem:[%s414 + $0xe78] sm:$0xff]
        %v1023 = vld [vmem:[%s414 + $0xe80] sm:$0xff]
        %v1024 = vld [vmem:[%s414 + $0xe88] sm:$0xff]
        %v1025 = vld [vmem:[%s414 + $0xe90] sm:$0xff]
        %v1026 = vld [vmem:[%s414 + $0xe98] sm:$0xff]
        %v1027 = vld [vmem:[%s414 + $0xea0] sm:$0xff]
        %v1028 = vld [vmem:[%s414 + $0xea8] sm:$0xff]
        %v1029 = vld [vmem:[%s414 + $0xeb0] sm:$0xff]
        %v1030 = vld [vmem:[%s414 + $0xeb8] sm:$0xff]
        %v1031 = vld [vmem:[%s414 + $0xec0] sm:$0xff]
        %v1032 = vld [vmem:[%s414 + $0xec8] sm:$0xff]
        %v1033 = vld [vmem:[%s414 + $0xed0] sm:$0xff]
        %v1034 = vld [vmem:[%s414 + $0xed8] sm:$0xff]
        %v1035 = vld [vmem:[%s414 + $0xee0] sm:$0xff]
        %v1036 = vld [vmem:[%s414 + $0xee8] sm:$0xff]
        %v1037 = vld [vmem:[%s414 + $0xef0] sm:$0xff]
        %v1038 = vld [vmem:[%s414 + $0xef8] sm:$0xff]
        %v1039 = vld [vmem:[%s414 + $0xf00] sm:$0xff]
        %v1040 = vld [vmem:[%s414 + $0xf08] sm:$0xff]
        %v1041 = vld [vmem:[%s414 + $0xf10] sm:$0xff]
        %v1042 = vld [vmem:[%s414 + $0xf18] sm:$0xff]
        %v1043 = vld [vmem:[%s414 + $0xf20] sm:$0xff]
        %v1044 = vld [vmem:[%s414 + $0xf28] sm:$0xff]
        %v1045 = vld [vmem:[%s414 + $0xf30] sm:$0xff]
        %v1046 = vld [vmem:[%s414 + $0xf38] sm:$0xff]
        %v1047 = vld [vmem:[%s414 + $0xf40] sm:$0xff]
        %v1048 = vld [vmem:[%s414 + $0xf48] sm:$0xff]
        %v1049 = vld [vmem:[%s414 + $0xf50] sm:$0xff]
        %v1050 = vld [vmem:[%s414 + $0xf58] sm:$0xff]
        %v1051 = vld [vmem:[%s414 + $0xf60] sm:$0xff]
        %v1052 = vld [vmem:[%s414 + $0xf68] sm:$0xff]
        %v1053 = vld [vmem:[%s414 + $0xf70] sm:$0xff]
        %v1054 = vld [vmem:[%s414 + $0xf78] sm:$0xff]
        %v1055 = vld [vmem:[%s414 + $0xf80] sm:$0xff]
        %v1056 = vld [vmem:[%s414 + $0xf88] sm:$0xff]
        %v1057 = vld [vmem:[%s414 + $0xf90] sm:$0xff]
        %v1058 = vld [vmem:[%s414 + $0xf98] sm:$0xff]
        %v1059 = vld [vmem:[%s414 + $0xfa0] sm:$0xff]
        %v1060 = vld [vmem:[%s414 + $0xfa8] sm:$0xff]
        %v1061 = vld [vmem:[%s414 + $0xfb0] sm:$0xff]
        %v1062 = vld [vmem:[%s414 + $0xfb8] sm:$0xff]
        %v1063 = vld [vmem:[%s414 + $0xfc0] sm:$0xff]
        %v1064 = vld [vmem:[%s414 + $0xfc8] sm:$0xff]
        %v1065 = vld [vmem:[%s414 + $0xfd0] sm:$0xff]
        %v1066 = vld [vmem:[%s414 + $0xfd8] sm:$0xff]
        %v1067 = vld [vmem:[%s414 + $0xfe0] sm:$0xff]
        %v1068 = vld [vmem:[%s414 + $0xfe8] sm:$0xff]
        %v1069 = vld [vmem:[%s414 + $0xff0] sm:$0xff]
        %v1070 = vld [vmem:[%s414 + $0xff8] sm:$0xff]
        %v1071 = vld [vmem:[%s414 + $0x1000] sm:$0xff]
        %v1072 = vld [vmem:[%s414 + $0x1008] sm:$0xff]
        %v1073 = vld [vmem:[%s414 + $0x1010] sm:$0xff]
        %v1074 = vld [vmem:[%s414 + $0x1018] sm:$0xff]
        %v1075 = vld [vmem:[%s414 + $0x1020] sm:$0xff]
        %v1076 = vld [vmem:[%s414 + $0x1028] sm:$0xff]
        %v1077 = vld [vmem:[%s414 + $0x1030] sm:$0xff]
        %v1078 = vld [vmem:[%s414 + $0x1038] sm:$0xff]
        %v1079 = vld [vmem:[%s414 + $0x1040] sm:$0xff]
        %v1080 = vld [vmem:[%s414 + $0x1048] sm:$0xff]
        %v1081 = vld [vmem:[%s414 + $0x1050] sm:$0xff]
        %v1082 = vld [vmem:[%s414 + $0x1058] sm:$0xff]
        %v1083 = vld [vmem:[%s414 + $0x1060] sm:$0xff]
        %v1084 = vld [vmem:[%s414 + $0x1068] sm:$0xff]
        %v1085 = vld [vmem:[%s414 + $0x1070] sm:$0xff]
        %v1086 = vld [vmem:[%s414 + $0x1078] sm:$0xff]
        %v1087 = vld [vmem:[%s414 + $0x1080] sm:$0xff]
        %v1088 = vld [vmem:[%s414 + $0x1088] sm:$0xff]
        %v1089 = vld [vmem:[%s414 + $0x1090] sm:$0xff]
        %v1090 = vld [vmem:[%s414 + $0x1098] sm:$0xff]
        %v1091 = vld [vmem:[%s414 + $0x10a0] sm:$0xff]
        %v1092 = vld [vmem:[%s414 + $0x10a8] sm:$0xff]
        %v1093 = vld [vmem:[%s414 + $0x10b0] sm:$0xff]
        %v1094 = vld [vmem:[%s414 + $0x10b8] sm:$0xff]
        %v1095 = vld [vmem:[%s414 + $0x10c0] sm:$0xff]
        %v1096 = vld [vmem:[%s414 + $0x10c8] sm:$0xff]
        %v1097 = vld [vmem:[%s414 + $0x10d0] sm:$0xff]
        %v1098 = vld [vmem:[%s414 + $0x10d8] sm:$0xff]
        %v1099 = vld [vmem:[%s414 + $0x10e0] sm:$0xff]
        %v1100 = vld [vmem:[%s414 + $0x10e8] sm:$0xff]
        %v1101 = vld [vmem:[%s414 + $0x10f0] sm:$0xff]
        %v1102 = vld [vmem:[%s414 + $0x10f8] sm:$0xff]
        %v1103 = vld [vmem:[%s414 + $0x1100] sm:$0xff]
        %v1104 = vld [vmem:[%s414 + $0x1108] sm:$0xff]
        %v1105 = vld [vmem:[%s414 + $0x1110] sm:$0xff]
        %v1106 = vld [vmem:[%s414 + $0x1118] sm:$0xff]
        %v1107 = vld [vmem:[%s414 + $0x1120] sm:$0xff]
        %v1108 = vld [vmem:[%s414 + $0x1128] sm:$0xff]
        %v1109 = vld [vmem:[%s414 + $0x1130] sm:$0xff]
        %v1110 = vld [vmem:[%s414 + $0x1138] sm:$0xff]
        %v1111 = vld [vmem:[%s414 + $0x1140] sm:$0xff]
        %v1112 = vld [vmem:[%s414 + $0x1148] sm:$0xff]
        %v1113 = vld [vmem:[%s414 + $0x1150] sm:$0xff]
        %v1114 = vld [vmem:[%s414 + $0x1158] sm:$0xff]
        %v1115 = vld [vmem:[%s414 + $0x1160] sm:$0xff]
        %v1116 = vld [vmem:[%s414 + $0x1168] sm:$0xff]
        %v1117 = vld [vmem:[%s414 + $0x1170] sm:$0xff]
        %v1118 = vld [vmem:[%s414 + $0x1178] sm:$0xff]
        %v1119 = vld [vmem:[%s414 + $0x1180] sm:$0xff]
        %v1120 = vld [vmem:[%s414 + $0x1188] sm:$0xff]
        %v1121 = vld [vmem:[%s414 + $0x1190] sm:$0xff]
        %v1122 = vld [vmem:[%s414 + $0x1198] sm:$0xff]
        %v1123 = vld [vmem:[%s414 + $0x11a0] sm:$0xff]
        %v1124 = vld [vmem:[%s414 + $0x11a8] sm:$0xff]
        %v1125 = vld [vmem:[%s414 + $0x11b0] sm:$0xff]
        %v1126 = vld [vmem:[%s414 + $0x11b8] sm:$0xff]
        %v1127 = vld [vmem:[%s414 + $0x11c0] sm:$0xff]
        %v1128 = vld [vmem:[%s414 + $0x11c8] sm:$0xff]
        %v1129 = vld [vmem:[%s414 + $0x11d0] sm:$0xff]
        %v1130 = vld [vmem:[%s414 + $0x11d8] sm:$0xff]
        %v1131 = vld [vmem:[%s414 + $0x11e0] sm:$0xff]
        %v1132 = vld [vmem:[%s414 + $0x11e8] sm:$0xff]
        %v1133 = vld [vmem:[%s414 + $0x11f0] sm:$0xff]
        %v1134 = vld [vmem:[%s414 + $0x11f8] sm:$0xff]
        %v1135 = vld [vmem:[%s414 + $0x1200] sm:$0xff]
        %v1136 = vld [vmem:[%s414 + $0x1208] sm:$0xff]
        %v1137 = vld [vmem:[%s414 + $0x1210] sm:$0xff]
        %v1138 = vld [vmem:[%s414 + $0x1218] sm:$0xff]
        %v1139 = vld [vmem:[%s414 + $0x1220] sm:$0xff]
        %v1140 = vld [vmem:[%s414 + $0x1228] sm:$0xff]
        %v1141 = vld [vmem:[%s414 + $0x1230] sm:$0xff]
        %v1142 = vld [vmem:[%s414 + $0x1238] sm:$0xff]
        %v1143 = vld [vmem:[%s414 + $0x1240] sm:$0xff]
        %v1144 = vld [vmem:[%s414 + $0x1248] sm:$0xff]
        %v1145 = vld [vmem:[%s414 + $0x1250] sm:$0xff]
        %v1146 = vld [vmem:[%s414 + $0x1258] sm:$0xff]
        %v1147 = vld [vmem:[%s414 + $0x1260] sm:$0xff]
        %v1148 = vld [vmem:[%s414 + $0x1268] sm:$0xff]
        %v1149 = vld [vmem:[%s414 + $0x1270] sm:$0xff]
        %v1150 = vld [vmem:[%s414 + $0x1278] sm:$0xff]
        %v1151 = vld [vmem:[%s414 + $0x1280] sm:$0xff]
        %v1152 = vld [vmem:[%s414 + $0x1288] sm:$0xff]
        %v1153 = vld [vmem:[%s414 + $0x1290] sm:$0xff]
        %v1154 = vld [vmem:[%s414 + $0x1298] sm:$0xff]
        %v1155 = vld [vmem:[%s414 + $0x12a0] sm:$0xff]
        %v1156 = vld [vmem:[%s414 + $0x12a8] sm:$0xff]
        %v1157 = vld [vmem:[%s414 + $0x12b0] sm:$0xff]
        %v1158 = vld [vmem:[%s414 + $0x12b8] sm:$0xff]
        %v1159 = vld [vmem:[%s414 + $0x12c0] sm:$0xff]
        %v1160 = vld [vmem:[%s414 + $0x12c8] sm:$0xff]
        %v1161 = vld [vmem:[%s414 + $0x12d0] sm:$0xff]
        %v1162 = vld [vmem:[%s414 + $0x12d8] sm:$0xff]
        %v1163 = vld [vmem:[%s414 + $0x12e0] sm:$0xff]
        %v1164 = vld [vmem:[%s414 + $0x12e8] sm:$0xff]
        %v1165 = vld [vmem:[%s414 + $0x12f0] sm:$0xff]
        %v1166 = vld [vmem:[%s414 + $0x12f8] sm:$0xff]
        %v1167 = vld [vmem:[%s414 + $0x1300] sm:$0xff]
        %v1168 = vld [vmem:[%s414 + $0x1308] sm:$0xff]
        %v1169 = vld [vmem:[%s414 + $0x1310] sm:$0xff]
        %v1170 = vld [vmem:[%s414 + $0x1318] sm:$0xff]
        %v1171 = vld [vmem:[%s414 + $0x1320] sm:$0xff]
        %v1172 = vld [vmem:[%s414 + $0x1328] sm:$0xff]
        %v1173 = vld [vmem:[%s414 + $0x1330] sm:$0xff]
        %v1174 = vld [vmem:[%s414 + $0x1338] sm:$0xff]
        %v1175 = vld [vmem:[%s414 + $0x1340] sm:$0xff]
        %v1176 = vld [vmem:[%s414 + $0x1348] sm:$0xff]
        %v1177 = vld [vmem:[%s414 + $0x1350] sm:$0xff]
        %v1178 = vld [vmem:[%s414 + $0x1358] sm:$0xff]
        %v1179 = vld [vmem:[%s414 + $0x1360] sm:$0xff]
        %v1180 = vld [vmem:[%s414 + $0x1368] sm:$0xff]
        %v1181 = vld [vmem:[%s414 + $0x1370] sm:$0xff]
        %v1182 = vld [vmem:[%s414 + $0x1378] sm:$0xff]
        %v1183 = vld [vmem:[%s414 + $0x1380] sm:$0xff]
        %v1184 = vld [vmem:[%s414 + $0x1388] sm:$0xff]
        %v1185 = vld [vmem:[%s414 + $0x1390] sm:$0xff]
        %v1186 = vld [vmem:[%s414 + $0x1398] sm:$0xff]
        %v1187 = vld [vmem:[%s414 + $0x13a0] sm:$0xff]
        %v1188 = vld [vmem:[%s414 + $0x13a8] sm:$0xff]
        %v1189 = vld [vmem:[%s414 + $0x13b0] sm:$0xff]
        %v1190 = vld [vmem:[%s414 + $0x13b8] sm:$0xff]
        %v1191 = vld [vmem:[%s414 + $0x13c0] sm:$0xff]
        %v1192 = vld [vmem:[%s414 + $0x13c8] sm:$0xff]
        %v1193 = vld [vmem:[%s414 + $0x13d0] sm:$0xff]
        %v1194 = vld [vmem:[%s414 + $0x13d8] sm:$0xff]
        %v1195 = vld [vmem:[%s414 + $0x13e0] sm:$0xff]
        %v1196 = vld [vmem:[%s414 + $0x13e8] sm:$0xff]
        %v1197 = vld [vmem:[%s414 + $0x13f0] sm:$0xff]
        %v1198 = vld [vmem:[%s414 + $0x13f8] sm:$0xff]
        %v1199 = vld [vmem:[%s414 + $0x1400] sm:$0xff]
        %v1200 = vld [vmem:[%s414 + $0x1408] sm:$0xff]
        %v1201 = vld [vmem:[%s414 + $0x1410] sm:$0xff]
        %v1202 = vld [vmem:[%s414 + $0x1418] sm:$0xff]
        %v1203 = vld [vmem:[%s414 + $0x1420] sm:$0xff]
        %v1204 = vld [vmem:[%s414 + $0x1428] sm:$0xff]
        %v1205 = vld [vmem:[%s414 + $0x1430] sm:$0xff]
        %v1206 = vld [vmem:[%s414 + $0x1438] sm:$0xff]
        %v1207 = vld [vmem:[%s414 + $0x1440] sm:$0xff]
        %v1208 = vld [vmem:[%s414 + $0x1448] sm:$0xff]
        %v1209 = vld [vmem:[%s414 + $0x1450] sm:$0xff]
        %v1210 = vld [vmem:[%s414 + $0x1458] sm:$0xff]
        %v1211 = vld [vmem:[%s414 + $0x1460] sm:$0xff]
        %v1212 = vld [vmem:[%s414 + $0x1468] sm:$0xff]
        %v1213 = vld [vmem:[%s414 + $0x1470] sm:$0xff]
        %v1214 = vld [vmem:[%s414 + $0x1478] sm:$0xff]
        %v1215 = vld [vmem:[%s414 + $0x1480] sm:$0xff]
        %v1216 = vld [vmem:[%s414 + $0x1488] sm:$0xff]
        %v1217 = vld [vmem:[%s414 + $0x1490] sm:$0xff]
        %v1218 = vld [vmem:[%s414 + $0x1498] sm:$0xff]
        %v1219 = vld [vmem:[%s414 + $0x14a0] sm:$0xff]
        %v1220 = vld [vmem:[%s414 + $0x14a8] sm:$0xff]
        %v1221 = vld [vmem:[%s414 + $0x14b0] sm:$0xff]
        %v1222 = vld [vmem:[%s414 + $0x14b8] sm:$0xff]
        %v1223 = vld [vmem:[%s414 + $0x14c0] sm:$0xff]
        %v1224 = vld [vmem:[%s414 + $0x14c8] sm:$0xff]
        %v1225 = vld [vmem:[%s414 + $0x14d0] sm:$0xff]
        %v1226 = vld [vmem:[%s414 + $0x14d8] sm:$0xff]
        %v1227 = vld [vmem:[%s414 + $0x14e0] sm:$0xff]
        %v1228 = vld [vmem:[%s414 + $0x14e8] sm:$0xff]
        %v1229 = vld [vmem:[%s414 + $0x14f0] sm:$0xff]
        %v1230 = vld [vmem:[%s414 + $0x14f8] sm:$0xff]
        %v1231 = vld [vmem:[%s414 + $0x1500] sm:$0xff]
        %v1232 = vld [vmem:[%s414 + $0x1508] sm:$0xff]
        %v1233 = vld [vmem:[%s414 + $0x1510] sm:$0xff]
        %v1234 = vld [vmem:[%s414 + $0x1518] sm:$0xff]
        %v1235 = vld [vmem:[%s414 + $0x1520] sm:$0xff]
        %v1236 = vld [vmem:[%s414 + $0x1528] sm:$0xff]
        %v1237 = vld [vmem:[%s414 + $0x1530] sm:$0xff]
        %v1238 = vld [vmem:[%s414 + $0x1538] sm:$0xff]
        %v1239 = vld [vmem:[%s414 + $0x1540] sm:$0xff]
        %v1240 = vld [vmem:[%s414 + $0x1548] sm:$0xff]
        %v1241 = vld [vmem:[%s414 + $0x1550] sm:$0xff]
        %v1242 = vld [vmem:[%s414 + $0x1558] sm:$0xff]
        %v1243 = vld [vmem:[%s414 + $0x1560] sm:$0xff]
        %v1244 = vld [vmem:[%s414 + $0x1568] sm:$0xff]
        %v1245 = vld [vmem:[%s414 + $0x1570] sm:$0xff]
        %v1246 = vld [vmem:[%s414 + $0x1578] sm:$0xff]
        %v1247 = vld [vmem:[%s414 + $0x1580] sm:$0xff]
        %v1248 = vld [vmem:[%s414 + $0x1588] sm:$0xff]
        %v1249 = vld [vmem:[%s414 + $0x1590] sm:$0xff]
        %v1250 = vld [vmem:[%s414 + $0x1598] sm:$0xff]
        %v1251 = vld [vmem:[%s414 + $0x15a0] sm:$0xff]
        %v1252 = vld [vmem:[%s414 + $0x15a8] sm:$0xff]
        %v1253 = vld [vmem:[%s414 + $0x15b0] sm:$0xff]
        %v1254 = vld [vmem:[%s414 + $0x15b8] sm:$0xff]
        %v1255 = vld [vmem:[%s414 + $0x15c0] sm:$0xff]
        %v1256 = vld [vmem:[%s414 + $0x15c8] sm:$0xff]
        %v1257 = vld [vmem:[%s414 + $0x15d0] sm:$0xff]
        %v1258 = vld [vmem:[%s414 + $0x15d8] sm:$0xff]
        %v1259 = vld [vmem:[%s414 + $0x15e0] sm:$0xff]
        %v1260 = vld [vmem:[%s414 + $0x15e8] sm:$0xff]
        %v1261 = vld [vmem:[%s414 + $0x15f0] sm:$0xff]
        %v1262 = vld [vmem:[%s414 + $0x15f8] sm:$0xff]
        %v1263 = vld [vmem:[%s414 + $0x1600] sm:$0xff]
        %v1264 = vld [vmem:[%s414 + $0x1608] sm:$0xff]
        %v1265 = vld [vmem:[%s414 + $0x1610] sm:$0xff]
        %v1266 = vld [vmem:[%s414 + $0x1618] sm:$0xff]
        %v1267 = vld [vmem:[%s414 + $0x1620] sm:$0xff]
        %v1268 = vld [vmem:[%s414 + $0x1628] sm:$0xff]
        %v1269 = vld [vmem:[%s414 + $0x1630] sm:$0xff]
        %v1270 = vld [vmem:[%s414 + $0x1638] sm:$0xff]
        %v1271 = vld [vmem:[%s414 + $0x1640] sm:$0xff]
        %v1272 = vld [vmem:[%s414 + $0x1648] sm:$0xff]
        %v1273 = vld [vmem:[%s414 + $0x1650] sm:$0xff]
        %v1274 = vld [vmem:[%s414 + $0x1658] sm:$0xff]
        %v1275 = vld [vmem:[%s414 + $0x1660] sm:$0xff]
        %v1276 = vld [vmem:[%s414 + $0x1668] sm:$0xff]
        %v1277 = vld [vmem:[%s414 + $0x1670] sm:$0xff]
        %v1278 = vld [vmem:[%s414 + $0x1678] sm:$0xff]
        %v1279 = vld [vmem:[%s414 + $0x1680] sm:$0xff]
        %v1280 = vld [vmem:[%s414 + $0x1688] sm:$0xff]
        %v1281 = vld [vmem:[%s414 + $0x1690] sm:$0xff]
        %v1282 = vld [vmem:[%s414 + $0x1698] sm:$0xff]
        %v1283 = vld [vmem:[%s414 + $0x16a0] sm:$0xff]
        %v1284 = vld [vmem:[%s414 + $0x16a8] sm:$0xff]
        %v1285 = vld [vmem:[%s414 + $0x16b0] sm:$0xff]
        %v1286 = vld [vmem:[%s414 + $0x16b8] sm:$0xff]
        %v1287 = vld [vmem:[%s414 + $0x16c0] sm:$0xff]
        %v1288 = vld [vmem:[%s414 + $0x16c8] sm:$0xff]
        %v1289 = vld [vmem:[%s414 + $0x16d0] sm:$0xff]
        %v1290 = vld [vmem:[%s414 + $0x16d8] sm:$0xff]
        %v1291 = vld [vmem:[%s414 + $0x16e0] sm:$0xff]
        %v1292 = vld [vmem:[%s414 + $0x16e8] sm:$0xff]
        %v1293 = vld [vmem:[%s414 + $0x16f0] sm:$0xff]
        %v1294 = vld [vmem:[%s414 + $0x16f8] sm:$0xff]
        %v1295 = vld [vmem:[%s414 + $0x1700] sm:$0xff]
        %v1296 = vld [vmem:[%s414 + $0x1708] sm:$0xff]
        %v1297 = vld [vmem:[%s414 + $0x1710] sm:$0xff]
        %v1298 = vld [vmem:[%s414 + $0x1718] sm:$0xff]
        %v1299 = vld [vmem:[%s414 + $0x1720] sm:$0xff]
        %v1300 = vld [vmem:[%s414 + $0x1728] sm:$0xff]
        %v1301 = vld [vmem:[%s414 + $0x1730] sm:$0xff]
        %v1302 = vld [vmem:[%s414 + $0x1738] sm:$0xff]
        %v1303 = vld [vmem:[%s414 + $0x1740] sm:$0xff]
        %v1304 = vld [vmem:[%s414 + $0x1748] sm:$0xff]
        %v1305 = vld [vmem:[%s414 + $0x1750] sm:$0xff]
        %v1306 = vld [vmem:[%s414 + $0x1758] sm:$0xff]
        %v1307 = vld [vmem:[%s414 + $0x1760] sm:$0xff]
        %v1308 = vld [vmem:[%s414 + $0x1768] sm:$0xff]
        %v1309 = vld [vmem:[%s414 + $0x1770] sm:$0xff]
        %v1310 = vld [vmem:[%s414 + $0x1778] sm:$0xff]
        %v1311 = vld [vmem:[%s414 + $0x1780] sm:$0xff]
        %v1312 = vld [vmem:[%s414 + $0x1788] sm:$0xff]
        %v1313 = vld [vmem:[%s414 + $0x1790] sm:$0xff]
        %v1314 = vld [vmem:[%s414 + $0x1798] sm:$0xff]
        %v1315 = vld [vmem:[%s414 + $0x17a0] sm:$0xff]
        %v1316 = vld [vmem:[%s414 + $0x17a8] sm:$0xff]
        %v1317 = vld [vmem:[%s414 + $0x17b0] sm:$0xff]
        %v1318 = vld [vmem:[%s414 + $0x17b8] sm:$0xff]
        %v1319 = vld [vmem:[%s414 + $0x17c0] sm:$0xff]
        %v1320 = vld [vmem:[%s414 + $0x17c8] sm:$0xff]
        %v1321 = vld [vmem:[%s414 + $0x17d0] sm:$0xff]
        %v1322 = vld [vmem:[%s414 + $0x17d8] sm:$0xff]
        %v1323 = vld [vmem:[%s414 + $0x17e0] sm:$0xff]
        %v1324 = vld [vmem:[%s414 + $0x17e8] sm:$0xff]
        %v1325 = vld [vmem:[%s414 + $0x17f0] sm:$0xff]
        %v1326 = vld [vmem:[%s414 + $0x17f8] sm:$0xff]
        %v1327 = vld [vmem:[%s414 + $0x1800] sm:$0xff]
        %v1328 = vld [vmem:[%s414 + $0x1808] sm:$0xff]
        %v1329 = vld [vmem:[%s414 + $0x1810] sm:$0xff]
        %v1330 = vld [vmem:[%s414 + $0x1818] sm:$0xff]
        %v1331 = vld [vmem:[%s414 + $0x1820] sm:$0xff]
        %v1332 = vld [vmem:[%s414 + $0x1828] sm:$0xff]
        %v1333 = vld [vmem:[%s414 + $0x1830] sm:$0xff]
        %v1334 = vld [vmem:[%s414 + $0x1838] sm:$0xff]
        %v1335 = vld [vmem:[%s414 + $0x1840] sm:$0xff]
        %v1336 = vld [vmem:[%s414 + $0x1848] sm:$0xff]
        %v1337 = vld [vmem:[%s414 + $0x1850] sm:$0xff]
        %v1338 = vld [vmem:[%s414 + $0x1858] sm:$0xff]
        %v1339 = vld [vmem:[%s414 + $0x1860] sm:$0xff]
        %v1340 = vld [vmem:[%s414 + $0x1868] sm:$0xff]
        %v1341 = vld [vmem:[%s414 + $0x1870] sm:$0xff]
        %v1342 = vld [vmem:[%s414 + $0x1878] sm:$0xff]
        %v1343 = vld [vmem:[%s414 + $0x1880] sm:$0xff]
        %v1344 = vld [vmem:[%s414 + $0x1888] sm:$0xff]
        %v1345 = vld [vmem:[%s414 + $0x1890] sm:$0xff]
        %v1346 = vld [vmem:[%s414 + $0x1898] sm:$0xff]
        %v1347 = vld [vmem:[%s414 + $0x18a0] sm:$0xff]
        %v1348 = vld [vmem:[%s414 + $0x18a8] sm:$0xff]
        %v1349 = vld [vmem:[%s414 + $0x18b0] sm:$0xff]
        %v1350 = vld [vmem:[%s414 + $0x18b8] sm:$0xff]
        %v1351 = vld [vmem:[%s414 + $0x18c0] sm:$0xff]
        %v1352 = vld [vmem:[%s414 + $0x18c8] sm:$0xff]
        %v1353 = vld [vmem:[%s414 + $0x18d0] sm:$0xff]
        %v1354 = vld [vmem:[%s414 + $0x18d8] sm:$0xff]
        %v1355 = vld [vmem:[%s414 + $0x18e0] sm:$0xff]
        %v1356 = vld [vmem:[%s414 + $0x18e8] sm:$0xff]
        %v1357 = vld [vmem:[%s414 + $0x18f0] sm:$0xff]
        %v1358 = vld [vmem:[%s414 + $0x18f8] sm:$0xff]
        %v1359 = vld [vmem:[%s414 + $0x1900] sm:$0xff]
        %v1360 = vld [vmem:[%s414 + $0x1908] sm:$0xff]
        %v1361 = vld [vmem:[%s414 + $0x1910] sm:$0xff]
        %v1362 = vld [vmem:[%s414 + $0x1918] sm:$0xff]
        %v1363 = vld [vmem:[%s414 + $0x1920] sm:$0xff]
        %v1364 = vld [vmem:[%s414 + $0x1928] sm:$0xff]
        %v1365 = vld [vmem:[%s414 + $0x1930] sm:$0xff]
        %v1366 = vld [vmem:[%s414 + $0x1938] sm:$0xff]
        %v1367 = vld [vmem:[%s414 + $0x1940] sm:$0xff]
        %v1368 = vld [vmem:[%s414 + $0x1948] sm:$0xff]
        %v1369 = vld [vmem:[%s414 + $0x1950] sm:$0xff]
        %v1370 = vld [vmem:[%s414 + $0x1958] sm:$0xff]
        %v1371 = vld [vmem:[%s414 + $0x1960] sm:$0xff]
        %v1372 = vld [vmem:[%s414 + $0x1968] sm:$0xff]
        %v1373 = vld [vmem:[%s414 + $0x1970] sm:$0xff]
        %v1374 = vld [vmem:[%s414 + $0x1978] sm:$0xff]
        %v1375 = vld [vmem:[%s414 + $0x1980] sm:$0xff]
        %v1376 = vld [vmem:[%s414 + $0x1988] sm:$0xff]
        %v1377 = vld [vmem:[%s414 + $0x1990] sm:$0xff]
        %v1378 = vld [vmem:[%s414 + $0x1998] sm:$0xff]
        %v1379 = vld [vmem:[%s414 + $0x19a0] sm:$0xff]
        %v1380 = vld [vmem:[%s414 + $0x19a8] sm:$0xff]
        %v1381 = vld [vmem:[%s414 + $0x19b0] sm:$0xff]
        %v1382 = vld [vmem:[%s414 + $0x19b8] sm:$0xff]
        %v1383 = vld [vmem:[%s414 + $0x19c0] sm:$0xff]
        %v1384 = vld [vmem:[%s414 + $0x19c8] sm:$0xff]
        %v1385 = vld [vmem:[%s414 + $0x19d0] sm:$0xff]
        %v1386 = vld [vmem:[%s414 + $0x19d8] sm:$0xff]
        %v1387 = vld [vmem:[%s414 + $0x19e0] sm:$0xff]
        %v1388 = vld [vmem:[%s414 + $0x19e8] sm:$0xff]
        %v1389 = vld [vmem:[%s414 + $0x19f0] sm:$0xff]
        %v1390 = vld [vmem:[%s414 + $0x19f8] sm:$0xff]
        %v1391 = vld [vmem:[%s414 + $0x1a00] sm:$0xff]
        %v1392 = vld [vmem:[%s414 + $0x1a08] sm:$0xff]
        %v1393 = vld [vmem:[%s414 + $0x1a10] sm:$0xff]
        %v1394 = vld [vmem:[%s414 + $0x1a18] sm:$0xff]
        %v1395 = vld [vmem:[%s414 + $0x1a20] sm:$0xff]
        %v1396 = vld [vmem:[%s414 + $0x1a28] sm:$0xff]
        %v1397 = vld [vmem:[%s414 + $0x1a30] sm:$0xff]
        %v1398 = vld [vmem:[%s414 + $0x1a38] sm:$0xff]
        %v1399 = vld [vmem:[%s414 + $0x1a40] sm:$0xff]
        %v1400 = vld [vmem:[%s414 + $0x1a48] sm:$0xff]
        %v1401 = vld [vmem:[%s414 + $0x1a50] sm:$0xff]
        %v1402 = vld [vmem:[%s414 + $0x1a58] sm:$0xff]
        %v1403 = vld [vmem:[%s414 + $0x1a60] sm:$0xff]
        %v1404 = vld [vmem:[%s414 + $0x1a68] sm:$0xff]
        %v1405 = vld [vmem:[%s414 + $0x1a70] sm:$0xff]
        %v1406 = vld [vmem:[%s414 + $0x1a78] sm:$0xff]
        %v1407 = vld [vmem:[%s414 + $0x1a80] sm:$0xff]
        %v1408 = vld [vmem:[%s414 + $0x1a88] sm:$0xff]
        %v1409 = vld [vmem:[%s414 + $0x1a90] sm:$0xff]
        %v1410 = vld [vmem:[%s414 + $0x1a98] sm:$0xff]
        %v1411 = vld [vmem:[%s414 + $0x1aa0] sm:$0xff]
        %v1412 = vld [vmem:[%s414 + $0x1aa8] sm:$0xff]
        %v1413 = vld [vmem:[%s414 + $0x1ab0] sm:$0xff]
        %v1414 = vld [vmem:[%s414 + $0x1ab8] sm:$0xff]
        %v1415 = vld [vmem:[%s414 + $0x1ac0] sm:$0xff]
        %v1416 = vld [vmem:[%s414 + $0x1ac8] sm:$0xff]
        %v1417 = vld [vmem:[%s414 + $0x1ad0] sm:$0xff]
        %v1418 = vld [vmem:[%s414 + $0x1ad8] sm:$0xff]
        %v1419 = vld [vmem:[%s414 + $0x1ae0] sm:$0xff]
        %v1420 = vld [vmem:[%s414 + $0x1ae8] sm:$0xff]
        %v1421 = vld [vmem:[%s414 + $0x1af0] sm:$0xff]
        %v1422 = vld [vmem:[%s414 + $0x1af8] sm:$0xff]
        %v1423 = vld [vmem:[%s414 + $0x1b00] sm:$0xff]
        %v1424 = vld [vmem:[%s414 + $0x1b08] sm:$0xff]
        %v1425 = vld [vmem:[%s414 + $0x1b10] sm:$0xff]
        %v1426 = vld [vmem:[%s414 + $0x1b18] sm:$0xff]
        %v1427 = vld [vmem:[%s414 + $0x1b20] sm:$0xff]
        %v1428 = vld [vmem:[%s414 + $0x1b28] sm:$0xff]
        %v1429 = vld [vmem:[%s414 + $0x1b30] sm:$0xff]
        %v1430 = vld [vmem:[%s414 + $0x1b38] sm:$0xff]
        %v1431 = vld [vmem:[%s414 + $0x1b40] sm:$0xff]
        %v1432 = vld [vmem:[%s414 + $0x1b48] sm:$0xff]
        %v1433 = vld [vmem:[%s414 + $0x1b50] sm:$0xff]
        %v1434 = vld [vmem:[%s414 + $0x1b58] sm:$0xff]
        %v1435 = vld [vmem:[%s414 + $0x1b60] sm:$0xff]
        %v1436 = vld [vmem:[%s414 + $0x1b68] sm:$0xff]
        %v1437 = vld [vmem:[%s414 + $0x1b70] sm:$0xff]
        %v1438 = vld [vmem:[%s414 + $0x1b78] sm:$0xff]
        %v1439 = vld [vmem:[%s414 + $0x1b80] sm:$0xff]
        %v1440 = vld [vmem:[%s414 + $0x1b88] sm:$0xff]
        %v1441 = vld [vmem:[%s414 + $0x1b90] sm:$0xff]
        %v1442 = vld [vmem:[%s414 + $0x1b98] sm:$0xff]
        %v1443 = vld [vmem:[%s414 + $0x1ba0] sm:$0xff]
        %v1444 = vld [vmem:[%s414 + $0x1ba8] sm:$0xff]
        %v1445 = vld [vmem:[%s414 + $0x1bb0] sm:$0xff]
        %v1446 = vld [vmem:[%s414 + $0x1bb8] sm:$0xff]
        %v1447 = vld [vmem:[%s414 + $0x1bc0] sm:$0xff]
        %v1448 = vld [vmem:[%s414 + $0x1bc8] sm:$0xff]
        %v1449 = vld [vmem:[%s414 + $0x1bd0] sm:$0xff]
        %v1450 = vld [vmem:[%s414 + $0x1bd8] sm:$0xff]
        %v1451 = vld [vmem:[%s414 + $0x1be0] sm:$0xff]
        %v1452 = vld [vmem:[%s414 + $0x1be8] sm:$0xff]
        %v1453 = vld [vmem:[%s414 + $0x1bf0] sm:$0xff]
        %v1454 = vld [vmem:[%s414 + $0x1bf8] sm:$0xff]
        %v1455 = vld [vmem:[%s414 + $0x1c00] sm:$0xff]
        %v1456 = vld [vmem:[%s414 + $0x1c08] sm:$0xff]
        %v1457 = vld [vmem:[%s414 + $0x1c10] sm:$0xff]
        %v1458 = vld [vmem:[%s414 + $0x1c18] sm:$0xff]
        %v1459 = vld [vmem:[%s414 + $0x1c20] sm:$0xff]
        %v1460 = vld [vmem:[%s414 + $0x1c28] sm:$0xff]
        %v1461 = vld [vmem:[%s414 + $0x1c30] sm:$0xff]
        %v1462 = vld [vmem:[%s414 + $0x1c38] sm:$0xff]
        %v1463 = vld [vmem:[%s414 + $0x1c40] sm:$0xff]
        %v1464 = vld [vmem:[%s414 + $0x1c48] sm:$0xff]
        %v1465 = vld [vmem:[%s414 + $0x1c50] sm:$0xff]
        %v1466 = vld [vmem:[%s414 + $0x1c58] sm:$0xff]
        %v1467 = vld [vmem:[%s414 + $0x1c60] sm:$0xff]
        %v1468 = vld [vmem:[%s414 + $0x1c68] sm:$0xff]
        %v1469 = vld [vmem:[%s414 + $0x1c70] sm:$0xff]
        %v1470 = vld [vmem:[%s414 + $0x1c78] sm:$0xff]
        %v1471 = vld [vmem:[%s414 + $0x1c80] sm:$0xff]
        %v1472 = vld [vmem:[%s414 + $0x1c88] sm:$0xff]
        %v1473 = vld [vmem:[%s414 + $0x1c90] sm:$0xff]
        %v1474 = vld [vmem:[%s414 + $0x1c98] sm:$0xff]
        %v1475 = vld [vmem:[%s414 + $0x1ca0] sm:$0xff]
        %v1476 = vld [vmem:[%s414 + $0x1ca8] sm:$0xff]
        %v1477 = vld [vmem:[%s414 + $0x1cb0] sm:$0xff]
        %v1478 = vld [vmem:[%s414 + $0x1cb8] sm:$0xff]
        %v1479 = vld [vmem:[%s414 + $0x1cc0] sm:$0xff]
        %v1480 = vld [vmem:[%s414 + $0x1cc8] sm:$0xff]
        %v1481 = vld [vmem:[%s414 + $0x1cd0] sm:$0xff]
        %v1482 = vld [vmem:[%s414 + $0x1cd8] sm:$0xff]
        %v1483 = vld [vmem:[%s414 + $0x1ce0] sm:$0xff]
        %v1484 = vld [vmem:[%s414 + $0x1ce8] sm:$0xff]
        %v1485 = vld [vmem:[%s414 + $0x1cf0] sm:$0xff]
        %v1486 = vld [vmem:[%s414 + $0x1cf8] sm:$0xff]
        %v1487 = vld [vmem:[%s414 + $0x1d00] sm:$0xff]
        %v1488 = vld [vmem:[%s414 + $0x1d08] sm:$0xff]
        %v1489 = vld [vmem:[%s414 + $0x1d10] sm:$0xff]
        %v1490 = vld [vmem:[%s414 + $0x1d18] sm:$0xff]
        %v1491 = vld [vmem:[%s414 + $0x1d20] sm:$0xff]
        %v1492 = vld [vmem:[%s414 + $0x1d28] sm:$0xff]
        %v1493 = vld [vmem:[%s414 + $0x1d30] sm:$0xff]
        %v1494 = vld [vmem:[%s414 + $0x1d38] sm:$0xff]
        %v1495 = vld [vmem:[%s414 + $0x1d40] sm:$0xff]
        %v1496 = vld [vmem:[%s414 + $0x1d48] sm:$0xff]
        %v1497 = vld [vmem:[%s414 + $0x1d50] sm:$0xff]
        %v1498 = vld [vmem:[%s414 + $0x1d58] sm:$0xff]
        %v1499 = vld [vmem:[%s414 + $0x1d60] sm:$0xff]
        %v1500 = vld [vmem:[%s414 + $0x1d68] sm:$0xff]
        %v1501 = vld [vmem:[%s414 + $0x1d70] sm:$0xff]
        %v1502 = vld [vmem:[%s414 + $0x1d78] sm:$0xff]
        %v1503 = vld [vmem:[%s414 + $0x1d80] sm:$0xff]
        %v1504 = vld [vmem:[%s414 + $0x1d88] sm:$0xff]
        %v1505 = vld [vmem:[%s414 + $0x1d90] sm:$0xff]
        %v1506 = vld [vmem:[%s414 + $0x1d98] sm:$0xff]
        %v1507 = vld [vmem:[%s414 + $0x1da0] sm:$0xff]
        %v1508 = vld [vmem:[%s414 + $0x1da8] sm:$0xff]
        %v1509 = vld [vmem:[%s414 + $0x1db0] sm:$0xff]
        %v1510 = vld [vmem:[%s414 + $0x1db8] sm:$0xff]
        %v1511 = vld [vmem:[%s414 + $0x1dc0] sm:$0xff]
        %v1512 = vld [vmem:[%s414 + $0x1dc8] sm:$0xff]
        %v1513 = vld [vmem:[%s414 + $0x1dd0] sm:$0xff]
        %v1514 = vld [vmem:[%s414 + $0x1dd8] sm:$0xff]
        %v1515 = vld [vmem:[%s414 + $0x1de0] sm:$0xff]
        %v1516 = vld [vmem:[%s414 + $0x1de8] sm:$0xff]
        %v1517 = vld [vmem:[%s414 + $0x1df0] sm:$0xff]
        %v1518 = vld [vmem:[%s414 + $0x1df8] sm:$0xff]
        %v1519 = vld [vmem:[%s414 + $0x1e00] sm:$0xff]
        %v1520 = vld [vmem:[%s414 + $0x1e08] sm:$0xff]
        %v1521 = vld [vmem:[%s414 + $0x1e10] sm:$0xff]
        %v1522 = vld [vmem:[%s414 + $0x1e18] sm:$0xff]
        %v1523 = vld [vmem:[%s414 + $0x1e20] sm:$0xff]
        %v1524 = vld [vmem:[%s414 + $0x1e28] sm:$0xff]
        %v1525 = vld [vmem:[%s414 + $0x1e30] sm:$0xff]
        %v1526 = vld [vmem:[%s414 + $0x1e38] sm:$0xff]
        %v1527 = vld [vmem:[%s414 + $0x1e40] sm:$0xff]
        %v1528 = vld [vmem:[%s414 + $0x1e48] sm:$0xff]
        %v1529 = vld [vmem:[%s414 + $0x1e50] sm:$0xff]
        %v1530 = vld [vmem:[%s414 + $0x1e58] sm:$0xff]
        %v1531 = vld [vmem:[%s414 + $0x1e60] sm:$0xff]
        %v1532 = vld [vmem:[%s414 + $0x1e68] sm:$0xff]
        %v1533 = vld [vmem:[%s414 + $0x1e70] sm:$0xff]
        %v1534 = vld [vmem:[%s414 + $0x1e78] sm:$0xff]
        %v1535 = vld [vmem:[%s414 + $0x1e80] sm:$0xff]
        %v1536 = vld [vmem:[%s414 + $0x1e88] sm:$0xff]
        %v1537 = vld [vmem:[%s414 + $0x1e90] sm:$0xff]
        %v1538 = vld [vmem:[%s414 + $0x1e98] sm:$0xff]
        %v1539 = vld [vmem:[%s414 + $0x1ea0] sm:$0xff]
        %v1540 = vld [vmem:[%s414 + $0x1ea8] sm:$0xff]
        %v1541 = vld [vmem:[%s414 + $0x1eb0] sm:$0xff]
        %v1542 = vld [vmem:[%s414 + $0x1eb8] sm:$0xff]
        %v1543 = vld [vmem:[%s414 + $0x1ec0] sm:$0xff]
        %v1544 = vld [vmem:[%s414 + $0x1ec8] sm:$0xff]
        %v1545 = vld [vmem:[%s414 + $0x1ed0] sm:$0xff]
        %v1546 = vld [vmem:[%s414 + $0x1ed8] sm:$0xff]
        %v1547 = vld [vmem:[%s414 + $0x1ee0] sm:$0xff]
        %v1548 = vld [vmem:[%s414 + $0x1ee8] sm:$0xff]
        %v1549 = vld [vmem:[%s414 + $0x1ef0] sm:$0xff]
        %v1550 = vld [vmem:[%s414 + $0x1ef8] sm:$0xff]
        %v1551 = vld [vmem:[%s414 + $0x1f00] sm:$0xff]
        %v1552 = vld [vmem:[%s414 + $0x1f08] sm:$0xff]
        %v1553 = vld [vmem:[%s414 + $0x1f10] sm:$0xff]
        %v1554 = vld [vmem:[%s414 + $0x1f18] sm:$0xff]
        %v1555 = vld [vmem:[%s414 + $0x1f20] sm:$0xff]
        %v1556 = vld [vmem:[%s414 + $0x1f28] sm:$0xff]
        %v1557 = vld [vmem:[%s414 + $0x1f30] sm:$0xff]
        %v1558 = vld [vmem:[%s414 + $0x1f38] sm:$0xff]
        %v1559 = vld [vmem:[%s414 + $0x1f40] sm:$0xff]
        %v1560 = vld [vmem:[%s414 + $0x1f48] sm:$0xff]
        %v1561 = vld [vmem:[%s414 + $0x1f50] sm:$0xff]
        %v1562 = vld [vmem:[%s414 + $0x1f58] sm:$0xff]
        %v1563 = vld [vmem:[%s414 + $0x1f60] sm:$0xff]
        %v1564 = vld [vmem:[%s414 + $0x1f68] sm:$0xff]
        %v1565 = vld [vmem:[%s414 + $0x1f70] sm:$0xff]
        %v1566 = vld [vmem:[%s414 + $0x1f78] sm:$0xff]
        %v1567 = vld [vmem:[%s414 + $0x1f80] sm:$0xff]
        %v1568 = vld [vmem:[%s414 + $0x1f88] sm:$0xff]
        %v1569 = vld [vmem:[%s414 + $0x1f90] sm:$0xff]
        %v1570 = vld [vmem:[%s414 + $0x1f98] sm:$0xff]
        %v1571 = vld [vmem:[%s414 + $0x1fa0] sm:$0xff]
        %v1572 = vld [vmem:[%s414 + $0x1fa8] sm:$0xff]
        %v1573 = vld [vmem:[%s414 + $0x1fb0] sm:$0xff]
        %v1574 = vld [vmem:[%s414 + $0x1fb8] sm:$0xff]
        %v1575 = vld [vmem:[%s414 + $0x1fc0] sm:$0xff]
        %v1576 = vld [vmem:[%s414 + $0x1fc8] sm:$0xff]
        %v1577 = vld [vmem:[%s414 + $0x1fd0] sm:$0xff]
        %v1578 = vld [vmem:[%s414 + $0x1fd8] sm:$0xff]
        %v1579 = vld [vmem:[%s414 + $0x1fe0] sm:$0xff]
        %v1580 = vld [vmem:[%s414 + $0x1fe8] sm:$0xff]
        %v1581 = vld [vmem:[%s414 + $0x1ff0] sm:$0xff]
        %v1582 = vld [vmem:[%s414 + $0x1ff8] sm:$0xff]
        %v1583 = vld [vmem:[%s414 + $0x2000] sm:$0xff]
        %v1584 = vld [vmem:[%s414 + $0x2008] sm:$0xff]
        %v1585 = vld [vmem:[%s414 + $0x2010] sm:$0xff]
        %v1586 = vld [vmem:[%s414 + $0x2018] sm:$0xff]
        %v1587 = vld [vmem:[%s414 + $0x2020] sm:$0xff]
        %v1588 = vld [vmem:[%s414 + $0x2028] sm:$0xff]
        %v1589 = vld [vmem:[%s414 + $0x2030] sm:$0xff]
        %v1590 = vld [vmem:[%s414 + $0x2038] sm:$0xff]
        %v1591 = vld [vmem:[%s414 + $0x2040] sm:$0xff]
        %v1592 = vld [vmem:[%s414 + $0x2048] sm:$0xff]
        %v1593 = vld [vmem:[%s414 + $0x2050] sm:$0xff]
        %v1594 = vld [vmem:[%s414 + $0x2058] sm:$0xff]
        %v1595 = vld [vmem:[%s414 + $0x2060] sm:$0xff]
        %v1596 = vld [vmem:[%s414 + $0x2068] sm:$0xff]
        %v1597 = vld [vmem:[%s414 + $0x2070] sm:$0xff]
        %v1598 = vld [vmem:[%s414 + $0x2078] sm:$0xff]
        %v1599 = vld [vmem:[%s414 + $0x2080] sm:$0xff]
        %v1600 = vld [vmem:[%s414 + $0x2088] sm:$0xff]
        %v1601 = vld [vmem:[%s414 + $0x2090] sm:$0xff]
        %v1602 = vld [vmem:[%s414 + $0x2098] sm:$0xff]
        %v1603 = vld [vmem:[%s414 + $0x20a0] sm:$0xff]
        %v1604 = vld [vmem:[%s414 + $0x20a8] sm:$0xff]
        %v1605 = vld [vmem:[%s414 + $0x20b0] sm:$0xff]
        %v1606 = vld [vmem:[%s414 + $0x20b8] sm:$0xff]
        %v1607 = vld [vmem:[%s414 + $0x20c0] sm:$0xff]
        %v1608 = vld [vmem:[%s414 + $0x20c8] sm:$0xff]
        %v1609 = vld [vmem:[%s414 + $0x20d0] sm:$0xff]
        %v1610 = vld [vmem:[%s414 + $0x20d8] sm:$0xff]
        %v1611 = vld [vmem:[%s414 + $0x20e0] sm:$0xff]
        %v1612 = vld [vmem:[%s414 + $0x20e8] sm:$0xff]
        %v1613 = vld [vmem:[%s414 + $0x20f0] sm:$0xff]
        %v1614 = vld [vmem:[%s414 + $0x20f8] sm:$0xff]
        %v1615 = vld [vmem:[%s414 + $0x2100] sm:$0xff]
        %v1616 = vld [vmem:[%s414 + $0x2108] sm:$0xff]
        %v1617 = vld [vmem:[%s414 + $0x2110] sm:$0xff]
        %v1618 = vld [vmem:[%s414 + $0x2118] sm:$0xff]
        %v1619 = vld [vmem:[%s414 + $0x2120] sm:$0xff]
        %v1620 = vld [vmem:[%s414 + $0x2128] sm:$0xff]
        %v1621 = vld [vmem:[%s414 + $0x2130] sm:$0xff]
        %v1622 = vld [vmem:[%s414 + $0x2138] sm:$0xff]
        %v1623 = vld [vmem:[%s414 + $0x2140] sm:$0xff]
        %v1624 = vld [vmem:[%s414 + $0x2148] sm:$0xff]
        %v1625 = vld [vmem:[%s414 + $0x2150] sm:$0xff]
        %v1626 = vld [vmem:[%s414 + $0x2158] sm:$0xff]
        %v1627 = vld [vmem:[%s414 + $0x2160] sm:$0xff]
        %v1628 = vld [vmem:[%s414 + $0x2168] sm:$0xff]
        %v1629 = vld [vmem:[%s414 + $0x2170] sm:$0xff]
        %v1630 = vld [vmem:[%s414 + $0x2178] sm:$0xff]
        %v1631 = vld [vmem:[%s414 + $0x2180] sm:$0xff]
        %v1632 = vld [vmem:[%s414 + $0x2188] sm:$0xff]
        %v1633 = vld [vmem:[%s414 + $0x2190] sm:$0xff]
        %v1634 = vld [vmem:[%s414 + $0x2198] sm:$0xff]
        %v1635 = vld [vmem:[%s414 + $0x21a0] sm:$0xff]
        %v1636 = vld [vmem:[%s414 + $0x21a8] sm:$0xff]
        %v1637 = vld [vmem:[%s414 + $0x21b0] sm:$0xff]
        %v1638 = vld [vmem:[%s414 + $0x21b8] sm:$0xff]
        %v1639 = vld [vmem:[%s414 + $0x21c0] sm:$0xff]
        %v1640 = vld [vmem:[%s414 + $0x21c8] sm:$0xff]
        %v1641 = vld [vmem:[%s414 + $0x21d0] sm:$0xff]
        %v1642 = vld [vmem:[%s414 + $0x21d8] sm:$0xff]
        %v1643 = vld [vmem:[%s414 + $0x21e0] sm:$0xff]
        %v1644 = vld [vmem:[%s414 + $0x21e8] sm:$0xff]
        %v1645 = vld [vmem:[%s414 + $0x21f0] sm:$0xff]
        %v1646 = vld [vmem:[%s414 + $0x21f8] sm:$0xff]
        %v1647 = vld [vmem:[%s414 + $0x2200] sm:$0xff]
        %v1648 = vld [vmem:[%s414 + $0x2208] sm:$0xff]
        %v1649 = vld [vmem:[%s414 + $0x2210] sm:$0xff]
        %v1650 = vld [vmem:[%s414 + $0x2218] sm:$0xff]
        %v1651 = vld [vmem:[%s414 + $0x2220] sm:$0xff]
        %v1652 = vld [vmem:[%s414 + $0x2228] sm:$0xff]
        %v1653 = vld [vmem:[%s414 + $0x2230] sm:$0xff]
        %v1654 = vld [vmem:[%s414 + $0x2238] sm:$0xff]
        %v1655 = vld [vmem:[%s414 + $0x2240] sm:$0xff]
        %v1656 = vld [vmem:[%s414 + $0x2248] sm:$0xff]
        %v1657 = vld [vmem:[%s414 + $0x2250] sm:$0xff]
        %v1658 = vld [vmem:[%s414 + $0x2258] sm:$0xff]
        %v1659 = vld [vmem:[%s414 + $0x2260] sm:$0xff]
        %v1660 = vld [vmem:[%s414 + $0x2268] sm:$0xff]
        %v1661 = vld [vmem:[%s414 + $0x2270] sm:$0xff]
        %v1662 = vld [vmem:[%s414 + $0x2278] sm:$0xff]
        %v1663 = vld [vmem:[%s414 + $0x2280] sm:$0xff]
        %v1664 = vld [vmem:[%s414 + $0x2288] sm:$0xff]
        %v1665 = vld [vmem:[%s414 + $0x2290] sm:$0xff]
        %v1666 = vld [vmem:[%s414 + $0x2298] sm:$0xff]
        %v1667 = vld [vmem:[%s414 + $0x22a0] sm:$0xff]
        %v1668 = vld [vmem:[%s414 + $0x22a8] sm:$0xff]
        %v1669 = vld [vmem:[%s414 + $0x22b0] sm:$0xff]
        %v1670 = vld [vmem:[%s414 + $0x22b8] sm:$0xff]
        %v1671 = vld [vmem:[%s414 + $0x22c0] sm:$0xff]
        %v1672 = vld [vmem:[%s414 + $0x22c8] sm:$0xff]
        %v1673 = vld [vmem:[%s414 + $0x22d0] sm:$0xff]
        %v1674 = vld [vmem:[%s414 + $0x22d8] sm:$0xff]
        %v1675 = vld [vmem:[%s414 + $0x22e0] sm:$0xff]
        %v1676 = vld [vmem:[%s414 + $0x22e8] sm:$0xff]
        %v1677 = vld [vmem:[%s414 + $0x22f0] sm:$0xff]
        %v1678 = vld [vmem:[%s414 + $0x22f8] sm:$0xff]
        %v1679 = vld [vmem:[%s414 + $0x2300] sm:$0xff]
        %v1680 = vld [vmem:[%s414 + $0x2308] sm:$0xff]
        %v1681 = vld [vmem:[%s414 + $0x2310] sm:$0xff]
        %v1682 = vld [vmem:[%s414 + $0x2318] sm:$0xff]
        %v1683 = vld [vmem:[%s414 + $0x2320] sm:$0xff]
        %v1684 = vld [vmem:[%s414 + $0x2328] sm:$0xff]
        %v1685 = vld [vmem:[%s414 + $0x2330] sm:$0xff]
        %v1686 = vld [vmem:[%s414 + $0x2338] sm:$0xff]
        %v1687 = vld [vmem:[%s414 + $0x2340] sm:$0xff]
        %v1688 = vld [vmem:[%s414 + $0x2348] sm:$0xff]
        %v1689 = vld [vmem:[%s414 + $0x2350] sm:$0xff]
        %v1690 = vld [vmem:[%s414 + $0x2358] sm:$0xff]
        %v1691 = vld [vmem:[%s414 + $0x2360] sm:$0xff]
        %v1692 = vld [vmem:[%s414 + $0x2368] sm:$0xff]
        %v1693 = vld [vmem:[%s414 + $0x2370] sm:$0xff]
        %v1694 = vld [vmem:[%s414 + $0x2378] sm:$0xff]
        %v1695 = vld [vmem:[%s414 + $0x2380] sm:$0xff]
        %v1696 = vld [vmem:[%s414 + $0x2388] sm:$0xff]
        %v1697 = vld [vmem:[%s414 + $0x2390] sm:$0xff]
        %v1698 = vld [vmem:[%s414 + $0x2398] sm:$0xff]
        %v1699 = vld [vmem:[%s414 + $0x23a0] sm:$0xff]
        %v1700 = vld [vmem:[%s414 + $0x23a8] sm:$0xff]
        %v1701 = vld [vmem:[%s414 + $0x23b0] sm:$0xff]
        %v1702 = vld [vmem:[%s414 + $0x23b8] sm:$0xff]
        %v1703 = vld [vmem:[%s414 + $0x23c0] sm:$0xff]
        %v1704 = vld [vmem:[%s414 + $0x23c8] sm:$0xff]
        %v1705 = vld [vmem:[%s414 + $0x23d0] sm:$0xff]
        %v1706 = vld [vmem:[%s414 + $0x23d8] sm:$0xff]
        %v1707 = vld [vmem:[%s414 + $0x23e0] sm:$0xff]
        %v1708 = vld [vmem:[%s414 + $0x23e8] sm:$0xff]
        %v1709 = vld [vmem:[%s414 + $0x23f0] sm:$0xff]
        %v1710 = vld [vmem:[%s414 + $0x23f8] sm:$0xff]
        %v1711 = vld [vmem:[%s414 + $0x2400] sm:$0xff]
        %v1712 = vld [vmem:[%s414 + $0x2408] sm:$0xff]
        %v1713 = vld [vmem:[%s414 + $0x2410] sm:$0xff]
        %v1714 = vld [vmem:[%s414 + $0x2418] sm:$0xff]
        %v1715 = vld [vmem:[%s414 + $0x2420] sm:$0xff]
        %v1716 = vld [vmem:[%s414 + $0x2428] sm:$0xff]
        %v1717 = vld [vmem:[%s414 + $0x2430] sm:$0xff]
        %v1718 = vld [vmem:[%s414 + $0x2438] sm:$0xff]
        %v1719 = vld [vmem:[%s414 + $0x2440] sm:$0xff]
        %v1720 = vld [vmem:[%s414 + $0x2448] sm:$0xff]
        %v1721 = vld [vmem:[%s414 + $0x2450] sm:$0xff]
        %v1722 = vld [vmem:[%s414 + $0x2458] sm:$0xff]
        %v1723 = vld [vmem:[%s414 + $0x2460] sm:$0xff]
        %v1724 = vld [vmem:[%s414 + $0x2468] sm:$0xff]
        %v1725 = vld [vmem:[%s414 + $0x2470] sm:$0xff]
        %v1726 = vld [vmem:[%s414 + $0x2478] sm:$0xff]
        %v1727 = vld [vmem:[%s414 + $0x2480] sm:$0xff]
        %v1728 = vld [vmem:[%s414 + $0x2488] sm:$0xff]
        %v1729 = vld [vmem:[%s414 + $0x2490] sm:$0xff]
        %v1730 = vld [vmem:[%s414 + $0x2498] sm:$0xff]
        %v1731 = vld [vmem:[%s414 + $0x24a0] sm:$0xff]
        %v1732 = vld [vmem:[%s414 + $0x24a8] sm:$0xff]
        %v1733 = vld [vmem:[%s414 + $0x24b0] sm:$0xff]
        %v1734 = vld [vmem:[%s414 + $0x24b8] sm:$0xff]
        %v1735 = vld [vmem:[%s414 + $0x24c0] sm:$0xff]
        %v1736 = vld [vmem:[%s414 + $0x24c8] sm:$0xff]
        %v1737 = vld [vmem:[%s414 + $0x24d0] sm:$0xff]
        %v1738 = vld [vmem:[%s414 + $0x24d8] sm:$0xff]
        %v1739 = vld [vmem:[%s414 + $0x24e0] sm:$0xff]
        %v1740 = vld [vmem:[%s414 + $0x24e8] sm:$0xff]
        %v1741 = vld [vmem:[%s414 + $0x24f0] sm:$0xff]
        %v1742 = vld [vmem:[%s414 + $0x24f8] sm:$0xff]
        %v1743 = vld [vmem:[%s414 + $0x2500] sm:$0xff]
        %v1744 = vld [vmem:[%s414 + $0x2508] sm:$0xff]
        %v1745 = vld [vmem:[%s414 + $0x2510] sm:$0xff]
        %v1746 = vld [vmem:[%s414 + $0x2518] sm:$0xff]
        %v1747 = vld [vmem:[%s414 + $0x2520] sm:$0xff]
        %v1748 = vld [vmem:[%s414 + $0x2528] sm:$0xff]
        %v1749 = vld [vmem:[%s414 + $0x2530] sm:$0xff]
        %v1750 = vld [vmem:[%s414 + $0x2538] sm:$0xff]
        %v1751 = vld [vmem:[%s414 + $0x2540] sm:$0xff]
        %v1752 = vld [vmem:[%s414 + $0x2548] sm:$0xff]
        %v1753 = vld [vmem:[%s414 + $0x2550] sm:$0xff]
        %v1754 = vld [vmem:[%s414 + $0x2558] sm:$0xff]
        %v1755 = vld [vmem:[%s414 + $0x2560] sm:$0xff]
        %v1756 = vld [vmem:[%s414 + $0x2568] sm:$0xff]
        %v1757 = vld [vmem:[%s414 + $0x2570] sm:$0xff]
        %v1758 = vld [vmem:[%s414 + $0x2578] sm:$0xff]
        %v1759 = vld [vmem:[%s414 + $0x2580] sm:$0xff]
        %v1760 = vld [vmem:[%s414 + $0x2588] sm:$0xff]
        %v1761 = vld [vmem:[%s414 + $0x2590] sm:$0xff]
        %v1762 = vld [vmem:[%s414 + $0x2598] sm:$0xff]
        %v1763 = vld [vmem:[%s414 + $0x25a0] sm:$0xff]
        %v1764 = vld [vmem:[%s414 + $0x25a8] sm:$0xff]
        %v1765 = vld [vmem:[%s414 + $0x25b0] sm:$0xff]
        %v1766 = vld [vmem:[%s414 + $0x25b8] sm:$0xff]
        %v1767 = vld [vmem:[%s414 + $0x25c0] sm:$0xff]
        %v1768 = vld [vmem:[%s414 + $0x25c8] sm:$0xff]
        %v1769 = vld [vmem:[%s414 + $0x25d0] sm:$0xff]
        %v1770 = vld [vmem:[%s414 + $0x25d8] sm:$0xff]
        %v1771 = vld [vmem:[%s414 + $0x25e0] sm:$0xff]
        %v1772 = vld [vmem:[%s414 + $0x25e8] sm:$0xff]
        %v1773 = vld [vmem:[%s414 + $0x25f0] sm:$0xff]
        %v1774 = vld [vmem:[%s414 + $0x25f8] sm:$0xff]
        %v1775 = vld [vmem:[%s414 + $0x2600] sm:$0xff]
        %v1776 = vld [vmem:[%s414 + $0x2608] sm:$0xff]
        %v1777 = vld [vmem:[%s414 + $0x2610] sm:$0xff]
        %v1778 = vld [vmem:[%s414 + $0x2618] sm:$0xff]
        %v1779 = vld [vmem:[%s414 + $0x2620] sm:$0xff]
        %v1780 = vld [vmem:[%s414 + $0x2628] sm:$0xff]
        %v1781 = vld [vmem:[%s414 + $0x2630] sm:$0xff]
        %v1782 = vld [vmem:[%s414 + $0x2638] sm:$0xff]
        %v1783 = vld [vmem:[%s414 + $0x2640] sm:$0xff]
        %v1784 = vld [vmem:[%s414 + $0x2648] sm:$0xff]
        %v1785 = vld [vmem:[%s414 + $0x2650] sm:$0xff]
        %v1786 = vld [vmem:[%s414 + $0x2658] sm:$0xff]
        %v1787 = vld [vmem:[%s414 + $0x2660] sm:$0xff]
        %v1788 = vld [vmem:[%s414 + $0x2668] sm:$0xff]
        %v1789 = vld [vmem:[%s414 + $0x2670] sm:$0xff]
        %v1790 = vld [vmem:[%s414 + $0x2678] sm:$0xff]
        %v1791 = vld [vmem:[%s414 + $0x2680] sm:$0xff]
        %v1792 = vld [vmem:[%s414 + $0x2688] sm:$0xff]
        %v1793 = vld [vmem:[%s414 + $0x2690] sm:$0xff]
        %v1794 = vld [vmem:[%s414 + $0x2698] sm:$0xff]
        %v1795 = vld [vmem:[%s414 + $0x26a0] sm:$0xff]
        %v1796 = vld [vmem:[%s414 + $0x26a8] sm:$0xff]
        %v1797 = vld [vmem:[%s414 + $0x26b0] sm:$0xff]
        %v1798 = vld [vmem:[%s414 + $0x26b8] sm:$0xff]
        %v1799 = vld [vmem:[%s414 + $0x26c0] sm:$0xff]
        %v1800 = vld [vmem:[%s414 + $0x26c8] sm:$0xff]
        %v1801 = vld [vmem:[%s414 + $0x26d0] sm:$0xff]
        %v1802 = vld [vmem:[%s414 + $0x26d8] sm:$0xff]
        %v1803 = vld [vmem:[%s414 + $0x26e0] sm:$0xff]
        %v1804 = vld [vmem:[%s414 + $0x26e8] sm:$0xff]
        %v1805 = vld [vmem:[%s414 + $0x26f0] sm:$0xff]
        %v1806 = vld [vmem:[%s414 + $0x26f8] sm:$0xff]
        %v1807 = vld [vmem:[%s414 + $0x2700] sm:$0xff]
        %v1808 = vld [vmem:[%s414 + $0x2708] sm:$0xff]
        %v1809 = vld [vmem:[%s423] sm:$0xf]
        %v1811 = vlaneseq
        %v1812 = vshrl.u32 %v1811, 7
        %v1813 = vsub.s32 0, %v1812
        %v1814 = vrot.slane %v1809, %v1813
        %v1815 = vlaneseq
        %v1816 = vshrl.u32 %v1815, 7
        %v1817 = vsub.s32 1, %v1816
        %v1818 = vrot.slane %v1809, %v1817
        %v1819 = vlaneseq
        %v1820 = vshrl.u32 %v1819, 7
        %v1821 = vsub.s32 2, %v1820
        %v1822 = vrot.slane %v1809, %v1821
        %v1823 = vlaneseq
        %v1824 = vshrl.u32 %v1823, 7
        %v1825 = vsub.s32 3, %v1824
        %v1826 = vrot.slane %v1809, %v1825
        %v1871 = vunpack.c.l.b16 %v519
        %v1872 = vunpack.c.h.b16 %v519
        %v1873 = vunpack.c.l.b16 %v520
        %v1874 = vunpack.c.h.b16 %v520
        %v1875 = vunpack.c.l.b16 %v521
        %v1876 = vunpack.c.h.b16 %v521
        %v1877 = vunpack.c.l.b16 %v522
        %v1878 = vunpack.c.h.b16 %v522
        %v1879 = vunpack.c.l.b16 %v523
        %v1880 = vunpack.c.h.b16 %v523
        %v1881 = vunpack.c.l.b16 %v524
        %v1882 = vunpack.c.h.b16 %v524
        %v1883 = vunpack.c.l.b16 %v525
        %v1884 = vunpack.c.h.b16 %v525
        %v1885 = vunpack.c.l.b16 %v526
        %v1886 = vunpack.c.h.b16 %v526
        %v1887 = vunpack.c.l.b16 %v527
        %v1888 = vunpack.c.h.b16 %v527
        %v1889 = vunpack.c.l.b16 %v528
        %v1890 = vunpack.c.h.b16 %v528
        %v1891 = vunpack.c.l.b16 %v529
        %v1892 = vunpack.c.h.b16 %v529
        %v1893 = vunpack.c.l.b16 %v530
        %v1894 = vunpack.c.h.b16 %v530
        %v1895 = vunpack.c.l.b16 %v531
        %v1896 = vunpack.c.h.b16 %v531
        %v1897 = vunpack.c.l.b16 %v532
        %v1898 = vunpack.c.h.b16 %v532
        %v1899 = vunpack.c.l.b16 %v533
        %v1900 = vunpack.c.h.b16 %v533
        %v1901 = vunpack.c.l.b16 %v534
        %v1902 = vunpack.c.h.b16 %v534
        %v1903 = vunpack.c.l.b16 %v535
        %v1904 = vunpack.c.h.b16 %v535
        %v1905 = vunpack.c.l.b16 %v536
        %v1906 = vunpack.c.h.b16 %v536
        %v1907 = vunpack.c.l.b16 %v537
        %v1908 = vunpack.c.h.b16 %v537
        %v1909 = vunpack.c.l.b16 %v538
        %v1910 = vunpack.c.h.b16 %v538
        %v1911 = vunpack.c.l.b16 %v539
        %v1912 = vunpack.c.h.b16 %v539
        %v1913 = vunpack.c.l.b16 %v540
        %v1914 = vunpack.c.h.b16 %v540
        %v1915 = vunpack.c.l.b16 %v541
        %v1916 = vunpack.c.h.b16 %v541
        %v1917 = vunpack.c.l.b16 %v542
        %v1918 = vunpack.c.h.b16 %v542
        %v1919 = vunpack.c.l.b16 %v543
        %v1920 = vunpack.c.h.b16 %v543
        %v1921 = vunpack.c.l.b16 %v544
        %v1922 = vunpack.c.h.b16 %v544
        %v1923 = vunpack.c.l.b16 %v545
        %v1924 = vunpack.c.h.b16 %v545
        %v1925 = vunpack.c.l.b16 %v546
        %v1926 = vunpack.c.h.b16 %v546
        %v1927 = vunpack.c.l.b16 %v547
        %v1928 = vunpack.c.h.b16 %v547
        %v1929 = vunpack.c.l.b16 %v548
        %v1930 = vunpack.c.h.b16 %v548
        %v1931 = vunpack.c.l.b16 %v549
        %v1932 = vunpack.c.h.b16 %v549
        %v1933 = vunpack.c.l.b16 %v550
        %v1934 = vunpack.c.h.b16 %v550
        %v1935 = vunpack.c.l.b16 %v551
        %v1936 = vunpack.c.h.b16 %v551
        %v1937 = vunpack.c.l.b16 %v552
        %v1938 = vunpack.c.h.b16 %v552
        %v1939 = vunpack.c.l.b16 %v553
        %v1940 = vunpack.c.h.b16 %v553
        %v1941 = vunpack.c.l.b16 %v554
        %v1942 = vunpack.c.h.b16 %v554
        %v1943 = vunpack.c.l.b16 %v555
        %v1944 = vunpack.c.h.b16 %v555
        %v1945 = vunpack.c.l.b16 %v556
        %v1946 = vunpack.c.h.b16 %v556
        %v1947 = vunpack.c.l.b16 %v557
        %v1948 = vunpack.c.h.b16 %v557
        %v1949 = vunpack.c.l.b16 %v558
        %v1950 = vunpack.c.h.b16 %v558
        %v1951 = vpack.c.b16 %v1911, %v1871
        %v1952 = vpack.c.b16 %v1912, %v1872
        %v1953 = vpack.c.b16 %v1913, %v1873
        %v1954 = vpack.c.b16 %v1914, %v1874
        %v1955 = vpack.c.b16 %v1915, %v1875
        %v1956 = vpack.c.b16 %v1916, %v1876
        %v1957 = vpack.c.b16 %v1917, %v1877
        %v1958 = vpack.c.b16 %v1918, %v1878
        %v1959 = vpack.c.b16 %v1919, %v1879
        %v1960 = vpack.c.b16 %v1920, %v1880
        %v1961 = vpack.c.b16 %v1921, %v1881
        %v1962 = vpack.c.b16 %v1922, %v1882
        %v1963 = vpack.c.b16 %v1923, %v1883
        %v1964 = vpack.c.b16 %v1924, %v1884
        %v1965 = vpack.c.b16 %v1925, %v1885
        %v1966 = vpack.c.b16 %v1926, %v1886
        %v1967 = vpack.c.b16 %v1927, %v1887
        %v1968 = vpack.c.b16 %v1928, %v1888
        %v1969 = vpack.c.b16 %v1929, %v1889
        %v1970 = vpack.c.b16 %v1930, %v1890
        %v1971 = vpack.c.b16 %v1931, %v1891
        %v1972 = vpack.c.b16 %v1932, %v1892
        %v1973 = vpack.c.b16 %v1933, %v1893
        %v1974 = vpack.c.b16 %v1934, %v1894
        %v1975 = vpack.c.b16 %v1935, %v1895
        %v1976 = vpack.c.b16 %v1936, %v1896
        %v1977 = vpack.c.b16 %v1937, %v1897
        %v1978 = vpack.c.b16 %v1938, %v1898
        %v1979 = vpack.c.b16 %v1939, %v1899
        %v1980 = vpack.c.b16 %v1940, %v1900
        %v1981 = vpack.c.b16 %v1941, %v1901
        %v1982 = vpack.c.b16 %v1942, %v1902
        %v1983 = vpack.c.b16 %v1943, %v1903
        %v1984 = vpack.c.b16 %v1944, %v1904
        %v1985 = vpack.c.b16 %v1945, %v1905
        %v1986 = vpack.c.b16 %v1946, %v1906
        %v1987 = vpack.c.b16 %v1947, %v1907
        %v1988 = vpack.c.b16 %v1948, %v1908
        %v1989 = vpack.c.b16 %v1949, %v1909
        %v1990 = vpack.c.b16 %v1950, %v1910
        %v3280 = vunpack.c.l.b16 %v559
        %v3281 = vunpack.c.h.b16 %v559
        %v3282 = vunpack.c.l.b16 %v560
        %v3283 = vunpack.c.h.b16 %v560
        %v3284 = vunpack.c.l.b16 %v561
        %v3285 = vunpack.c.h.b16 %v561
        %v3286 = vunpack.c.l.b16 %v562
        %v3287 = vunpack.c.h.b16 %v562
        %v3288 = vunpack.c.l.b16 %v563
        %v3289 = vunpack.c.h.b16 %v563
        %v3290 = vunpack.c.l.b16 %v564
        %v3291 = vunpack.c.h.b16 %v564
        %v3292 = vunpack.c.l.b16 %v565
        %v3293 = vunpack.c.h.b16 %v565
        %v3294 = vunpack.c.l.b16 %v566
        %v3295 = vunpack.c.h.b16 %v566
        %v3296 = vunpack.c.l.b16 %v567
        %v3297 = vunpack.c.h.b16 %v567
        %v3298 = vunpack.c.l.b16 %v568
        %v3299 = vunpack.c.h.b16 %v568
        %v3300 = vunpack.c.l.b16 %v569
        %v3301 = vunpack.c.h.b16 %v569
        %v3302 = vunpack.c.l.b16 %v570
        %v3303 = vunpack.c.h.b16 %v570
        %v3304 = vunpack.c.l.b16 %v571
        %v3305 = vunpack.c.h.b16 %v571
        %v3306 = vunpack.c.l.b16 %v572
        %v3307 = vunpack.c.h.b16 %v572
        %v3308 = vunpack.c.l.b16 %v573
        %v3309 = vunpack.c.h.b16 %v573
        %v3310 = vunpack.c.l.b16 %v574
        %v3311 = vunpack.c.h.b16 %v574
        %v3312 = vunpack.c.l.b16 %v575
        %v3313 = vunpack.c.h.b16 %v575
        %v3314 = vunpack.c.l.b16 %v576
        %v3315 = vunpack.c.h.b16 %v576
        %v3316 = vunpack.c.l.b16 %v577
        %v3317 = vunpack.c.h.b16 %v577
        %v3318 = vunpack.c.l.b16 %v578
        %v3319 = vunpack.c.h.b16 %v578
        %v3320 = vunpack.c.l.b16 %v579
        %v3321 = vunpack.c.h.b16 %v579
        %v3322 = vunpack.c.l.b16 %v580
        %v3323 = vunpack.c.h.b16 %v580
        %v3324 = vunpack.c.l.b16 %v581
        %v3325 = vunpack.c.h.b16 %v581
        %v3326 = vunpack.c.l.b16 %v582
        %v3327 = vunpack.c.h.b16 %v582
        %v3328 = vunpack.c.l.b16 %v583
        %v3329 = vunpack.c.h.b16 %v583
        %v3330 = vunpack.c.l.b16 %v584
        %v3331 = vunpack.c.h.b16 %v584
        %v3332 = vunpack.c.l.b16 %v585
        %v3333 = vunpack.c.h.b16 %v585
        %v3334 = vunpack.c.l.b16 %v586
        %v3335 = vunpack.c.h.b16 %v586
        %v3336 = vunpack.c.l.b16 %v587
        %v3337 = vunpack.c.h.b16 %v587
        %v3338 = vunpack.c.l.b16 %v588
        %v3339 = vunpack.c.h.b16 %v588
        %v3340 = vunpack.c.l.b16 %v589
        %v3341 = vunpack.c.h.b16 %v589
        %v3342 = vunpack.c.l.b16 %v590
        %v3343 = vunpack.c.h.b16 %v590
        %v3344 = vunpack.c.l.b16 %v591
        %v3345 = vunpack.c.h.b16 %v591
        %v3346 = vunpack.c.l.b16 %v592
        %v3347 = vunpack.c.h.b16 %v592
        %v3348 = vunpack.c.l.b16 %v593
        %v3349 = vunpack.c.h.b16 %v593
        %v3350 = vunpack.c.l.b16 %v594
        %v3351 = vunpack.c.h.b16 %v594
        %v3352 = vunpack.c.l.b16 %v595
        %v3353 = vunpack.c.h.b16 %v595
        %v3354 = vunpack.c.l.b16 %v596
        %v3355 = vunpack.c.h.b16 %v596
        %v3356 = vunpack.c.l.b16 %v597
        %v3357 = vunpack.c.h.b16 %v597
        %v3358 = vunpack.c.l.b16 %v598
        %v3359 = vunpack.c.h.b16 %v598
        %v3360 = vunpack.c.l.b16 %v599
        %v3361 = vunpack.c.h.b16 %v599
        %v3362 = vunpack.c.l.b16 %v600
        %v3363 = vunpack.c.h.b16 %v600
        %v3364 = vunpack.c.l.b16 %v601
        %v3365 = vunpack.c.h.b16 %v601
        %v3366 = vunpack.c.l.b16 %v602
        %v3367 = vunpack.c.h.b16 %v602
        %v3368 = vunpack.c.l.b16 %v603
        %v3369 = vunpack.c.h.b16 %v603
        %v3370 = vunpack.c.l.b16 %v604
        %v3371 = vunpack.c.h.b16 %v604
        %v3372 = vunpack.c.l.b16 %v605
        %v3373 = vunpack.c.h.b16 %v605
        %v3374 = vunpack.c.l.b16 %v606
        %v3375 = vunpack.c.h.b16 %v606
        %v3376 = vunpack.c.l.b16 %v607
        %v3377 = vunpack.c.h.b16 %v607
        %v3378 = vunpack.c.l.b16 %v608
        %v3379 = vunpack.c.h.b16 %v608
        %v3380 = vunpack.c.l.b16 %v609
        %v3381 = vunpack.c.h.b16 %v609
        %v3382 = vunpack.c.l.b16 %v610
        %v3383 = vunpack.c.h.b16 %v610
        %v3384 = vunpack.c.l.b16 %v611
        %v3385 = vunpack.c.h.b16 %v611
        %v3386 = vunpack.c.l.b16 %v612
        %v3387 = vunpack.c.h.b16 %v612
        %v3388 = vunpack.c.l.b16 %v613
        %v3389 = vunpack.c.h.b16 %v613
        %v3390 = vunpack.c.l.b16 %v614
        %v3391 = vunpack.c.h.b16 %v614
        %v3392 = vunpack.c.l.b16 %v615
        %v3393 = vunpack.c.h.b16 %v615
        %v3394 = vunpack.c.l.b16 %v616
        %v3395 = vunpack.c.h.b16 %v616
        %v3396 = vunpack.c.l.b16 %v617
        %v3397 = vunpack.c.h.b16 %v617
        %v3398 = vunpack.c.l.b16 %v618
        %v3399 = vunpack.c.h.b16 %v618
        %v3400 = vunpack.c.l.b16 %v619
        %v3401 = vunpack.c.h.b16 %v619
        %v3402 = vunpack.c.l.b16 %v620
        %v3403 = vunpack.c.h.b16 %v620
        %v3404 = vunpack.c.l.b16 %v621
        %v3405 = vunpack.c.h.b16 %v621
        %v3406 = vunpack.c.l.b16 %v622
        %v3407 = vunpack.c.h.b16 %v622
        %v3408 = vunpack.c.l.b16 %v623
        %v3409 = vunpack.c.h.b16 %v623
        %v3410 = vunpack.c.l.b16 %v624
        %v3411 = vunpack.c.h.b16 %v624
        %v3412 = vunpack.c.l.b16 %v625
        %v3413 = vunpack.c.h.b16 %v625
        %v3414 = vunpack.c.l.b16 %v626
        %v3415 = vunpack.c.h.b16 %v626
        %v3416 = vunpack.c.l.b16 %v627
        %v3417 = vunpack.c.h.b16 %v627
        %v3418 = vunpack.c.l.b16 %v628
        %v3419 = vunpack.c.h.b16 %v628
        %v3420 = vunpack.c.l.b16 %v629
        %v3421 = vunpack.c.h.b16 %v629
        %v3422 = vunpack.c.l.b16 %v630
        %v3423 = vunpack.c.h.b16 %v630
        %v3424 = vunpack.c.l.b16 %v631
        %v3425 = vunpack.c.h.b16 %v631
        %v3426 = vunpack.c.l.b16 %v632
        %v3427 = vunpack.c.h.b16 %v632
        %v3428 = vunpack.c.l.b16 %v633
        %v3429 = vunpack.c.h.b16 %v633
        %v3430 = vunpack.c.l.b16 %v634
        %v3431 = vunpack.c.h.b16 %v634
        %v3432 = vunpack.c.l.b16 %v635
        %v3433 = vunpack.c.h.b16 %v635
        %v3434 = vunpack.c.l.b16 %v636
        %v3435 = vunpack.c.h.b16 %v636
        %v3436 = vunpack.c.l.b16 %v637
        %v3437 = vunpack.c.h.b16 %v637
        %v3438 = vunpack.c.l.b16 %v638
        %v3439 = vunpack.c.h.b16 %v638
        %v3440 = vunpack.c.l.b16 %v639
        %v3441 = vunpack.c.h.b16 %v639
        %v3442 = vunpack.c.l.b16 %v640
        %v3443 = vunpack.c.h.b16 %v640
        %v3444 = vunpack.c.l.b16 %v641
        %v3445 = vunpack.c.h.b16 %v641
        %v3446 = vunpack.c.l.b16 %v642
        %v3447 = vunpack.c.h.b16 %v642
        %v3448 = vunpack.c.l.b16 %v643
        %v3449 = vunpack.c.h.b16 %v643
        %v3450 = vunpack.c.l.b16 %v644
        %v3451 = vunpack.c.h.b16 %v644
        %v3452 = vunpack.c.l.b16 %v645
        %v3453 = vunpack.c.h.b16 %v645
        %v3454 = vunpack.c.l.b16 %v646
        %v3455 = vunpack.c.h.b16 %v646
        %v3456 = vunpack.c.l.b16 %v647
        %v3457 = vunpack.c.h.b16 %v647
        %v3458 = vunpack.c.l.b16 %v648
        %v3459 = vunpack.c.h.b16 %v648
        %v3460 = vunpack.c.l.b16 %v649
        %v3461 = vunpack.c.h.b16 %v649
        %v3462 = vunpack.c.l.b16 %v650
        %v3463 = vunpack.c.h.b16 %v650
        %v3464 = vunpack.c.l.b16 %v651
        %v3465 = vunpack.c.h.b16 %v651
        %v3466 = vunpack.c.l.b16 %v652
        %v3467 = vunpack.c.h.b16 %v652
        %v3468 = vunpack.c.l.b16 %v653
        %v3469 = vunpack.c.h.b16 %v653
        %v3470 = vunpack.c.l.b16 %v654
        %v3471 = vunpack.c.h.b16 %v654
        %v3472 = vunpack.c.l.b16 %v655
        %v3473 = vunpack.c.h.b16 %v655
        %v3474 = vunpack.c.l.b16 %v656
        %v3475 = vunpack.c.h.b16 %v656
        %v3476 = vunpack.c.l.b16 %v657
        %v3477 = vunpack.c.h.b16 %v657
        %v3478 = vunpack.c.l.b16 %v658
        %v3479 = vunpack.c.h.b16 %v658
        %v3480 = vunpack.c.l.b16 %v659
        %v3481 = vunpack.c.h.b16 %v659
        %v3482 = vunpack.c.l.b16 %v660
        %v3483 = vunpack.c.h.b16 %v660
        %v3484 = vunpack.c.l.b16 %v661
        %v3485 = vunpack.c.h.b16 %v661
        %v3486 = vunpack.c.l.b16 %v662
        %v3487 = vunpack.c.h.b16 %v662
        %v3488 = vunpack.c.l.b16 %v663
        %v3489 = vunpack.c.h.b16 %v663
        %v3490 = vunpack.c.l.b16 %v664
        %v3491 = vunpack.c.h.b16 %v664
        %v3492 = vunpack.c.l.b16 %v665
        %v3493 = vunpack.c.h.b16 %v665
        %v3494 = vunpack.c.l.b16 %v666
        %v3495 = vunpack.c.h.b16 %v666
        %v3496 = vunpack.c.l.b16 %v667
        %v3497 = vunpack.c.h.b16 %v667
        %v3498 = vunpack.c.l.b16 %v668
        %v3499 = vunpack.c.h.b16 %v668
        %v3500 = vunpack.c.l.b16 %v669
        %v3501 = vunpack.c.h.b16 %v669
        %v3502 = vunpack.c.l.b16 %v670
        %v3503 = vunpack.c.h.b16 %v670
        %v3504 = vunpack.c.l.b16 %v671
        %v3505 = vunpack.c.h.b16 %v671
        %v3506 = vunpack.c.l.b16 %v672
        %v3507 = vunpack.c.h.b16 %v672
        %v3508 = vunpack.c.l.b16 %v673
        %v3509 = vunpack.c.h.b16 %v673
        %v3510 = vunpack.c.l.b16 %v674
        %v3511 = vunpack.c.h.b16 %v674
        %v3512 = vunpack.c.l.b16 %v675
        %v3513 = vunpack.c.h.b16 %v675
        %v3514 = vunpack.c.l.b16 %v676
        %v3515 = vunpack.c.h.b16 %v676
        %v3516 = vunpack.c.l.b16 %v677
        %v3517 = vunpack.c.h.b16 %v677
        %v3518 = vunpack.c.l.b16 %v678
        %v3519 = vunpack.c.h.b16 %v678
        %v3520 = vunpack.c.l.b16 %v679
        %v3521 = vunpack.c.h.b16 %v679
        %v3522 = vunpack.c.l.b16 %v680
        %v3523 = vunpack.c.h.b16 %v680
        %v3524 = vunpack.c.l.b16 %v681
        %v3525 = vunpack.c.h.b16 %v681
        %v3526 = vunpack.c.l.b16 %v682
        %v3527 = vunpack.c.h.b16 %v682
        %v3528 = vunpack.c.l.b16 %v683
        %v3529 = vunpack.c.h.b16 %v683
        %v3530 = vunpack.c.l.b16 %v684
        %v3531 = vunpack.c.h.b16 %v684
        %v3532 = vunpack.c.l.b16 %v685
        %v3533 = vunpack.c.h.b16 %v685
        %v3534 = vunpack.c.l.b16 %v686
        %v3535 = vunpack.c.h.b16 %v686
        %v3536 = vunpack.c.l.b16 %v687
        %v3537 = vunpack.c.h.b16 %v687
        %v3538 = vunpack.c.l.b16 %v688
        %v3539 = vunpack.c.h.b16 %v688
        %v3540 = vunpack.c.l.b16 %v689
        %v3541 = vunpack.c.h.b16 %v689
        %v3542 = vunpack.c.l.b16 %v690
        %v3543 = vunpack.c.h.b16 %v690
        %v3544 = vunpack.c.l.b16 %v691
        %v3545 = vunpack.c.h.b16 %v691
        %v3546 = vunpack.c.l.b16 %v692
        %v3547 = vunpack.c.h.b16 %v692
        %v3548 = vunpack.c.l.b16 %v693
        %v3549 = vunpack.c.h.b16 %v693
        %v3550 = vunpack.c.l.b16 %v694
        %v3551 = vunpack.c.h.b16 %v694
        %v3552 = vunpack.c.l.b16 %v695
        %v3553 = vunpack.c.h.b16 %v695
        %v3554 = vunpack.c.l.b16 %v696
        %v3555 = vunpack.c.h.b16 %v696
        %v3556 = vunpack.c.l.b16 %v697
        %v3557 = vunpack.c.h.b16 %v697
        %v3558 = vunpack.c.l.b16 %v698
        %v3559 = vunpack.c.h.b16 %v698
        %v3560 = vunpack.c.l.b16 %v699
        %v3561 = vunpack.c.h.b16 %v699
        %v3562 = vunpack.c.l.b16 %v700
        %v3563 = vunpack.c.h.b16 %v700
        %v3564 = vunpack.c.l.b16 %v701
        %v3565 = vunpack.c.h.b16 %v701
        %v3566 = vunpack.c.l.b16 %v702
        %v3567 = vunpack.c.h.b16 %v702
        %v3568 = vunpack.c.l.b16 %v703
        %v3569 = vunpack.c.h.b16 %v703
        %v3570 = vunpack.c.l.b16 %v704
        %v3571 = vunpack.c.h.b16 %v704
        %v3572 = vunpack.c.l.b16 %v705
        %v3573 = vunpack.c.h.b16 %v705
        %v3574 = vunpack.c.l.b16 %v706
        %v3575 = vunpack.c.h.b16 %v706
        %v3576 = vunpack.c.l.b16 %v707
        %v3577 = vunpack.c.h.b16 %v707
        %v3578 = vunpack.c.l.b16 %v708
        %v3579 = vunpack.c.h.b16 %v708
        %v3580 = vunpack.c.l.b16 %v709
        %v3581 = vunpack.c.h.b16 %v709
        %v3582 = vunpack.c.l.b16 %v710
        %v3583 = vunpack.c.h.b16 %v710
        %v3584 = vunpack.c.l.b16 %v711
        %v3585 = vunpack.c.h.b16 %v711
        %v3586 = vunpack.c.l.b16 %v712
        %v3587 = vunpack.c.h.b16 %v712
        %v3588 = vunpack.c.l.b16 %v713
        %v3589 = vunpack.c.h.b16 %v713
        %v3590 = vunpack.c.l.b16 %v714
        %v3591 = vunpack.c.h.b16 %v714
        %v3592 = vunpack.c.l.b16 %v715
        %v3593 = vunpack.c.h.b16 %v715
        %v3594 = vunpack.c.l.b16 %v716
        %v3595 = vunpack.c.h.b16 %v716
        %v3596 = vunpack.c.l.b16 %v717
        %v3597 = vunpack.c.h.b16 %v717
        %v3598 = vunpack.c.l.b16 %v718
        %v3599 = vunpack.c.h.b16 %v718
        %v3600 = vunpack.c.l.b16 %v719
        %v3601 = vunpack.c.h.b16 %v719
        %v3602 = vunpack.c.l.b16 %v720
        %v3603 = vunpack.c.h.b16 %v720
        %v3604 = vunpack.c.l.b16 %v721
        %v3605 = vunpack.c.h.b16 %v721
        %v3606 = vunpack.c.l.b16 %v722
        %v3607 = vunpack.c.h.b16 %v722
        %v3608 = vunpack.c.l.b16 %v723
        %v3609 = vunpack.c.h.b16 %v723
        %v3610 = vunpack.c.l.b16 %v724
        %v3611 = vunpack.c.h.b16 %v724
        %v3612 = vunpack.c.l.b16 %v725
        %v3613 = vunpack.c.h.b16 %v725
        %v3614 = vunpack.c.l.b16 %v726
        %v3615 = vunpack.c.h.b16 %v726
        %v3616 = vunpack.c.l.b16 %v727
        %v3617 = vunpack.c.h.b16 %v727
        %v3618 = vunpack.c.l.b16 %v728
        %v3619 = vunpack.c.h.b16 %v728
        %v3620 = vunpack.c.l.b16 %v729
        %v3621 = vunpack.c.h.b16 %v729
        %v3622 = vunpack.c.l.b16 %v730
        %v3623 = vunpack.c.h.b16 %v730
        %v3624 = vunpack.c.l.b16 %v731
        %v3625 = vunpack.c.h.b16 %v731
        %v3626 = vunpack.c.l.b16 %v732
        %v3627 = vunpack.c.h.b16 %v732
        %v3628 = vunpack.c.l.b16 %v733
        %v3629 = vunpack.c.h.b16 %v733
        %v3630 = vunpack.c.l.b16 %v734
        %v3631 = vunpack.c.h.b16 %v734
        %v3632 = vunpack.c.l.b16 %v735
        %v3633 = vunpack.c.h.b16 %v735
        %v3634 = vunpack.c.l.b16 %v736
        %v3635 = vunpack.c.h.b16 %v736
        %v3636 = vunpack.c.l.b16 %v737
        %v3637 = vunpack.c.h.b16 %v737
        %v3638 = vunpack.c.l.b16 %v738
        %v3639 = vunpack.c.h.b16 %v738
        %v3640 = vunpack.c.l.b16 %v739
        %v3641 = vunpack.c.h.b16 %v739
        %v3642 = vunpack.c.l.b16 %v740
        %v3643 = vunpack.c.h.b16 %v740
        %v3644 = vunpack.c.l.b16 %v741
        %v3645 = vunpack.c.h.b16 %v741
        %v3646 = vunpack.c.l.b16 %v742
        %v3647 = vunpack.c.h.b16 %v742
        %v3648 = vunpack.c.l.b16 %v743
        %v3649 = vunpack.c.h.b16 %v743
        %v3650 = vunpack.c.l.b16 %v744
        %v3651 = vunpack.c.h.b16 %v744
        %v3652 = vunpack.c.l.b16 %v745
        %v3653 = vunpack.c.h.b16 %v745
        %v3654 = vunpack.c.l.b16 %v746
        %v3655 = vunpack.c.h.b16 %v746
        %v3656 = vunpack.c.l.b16 %v747
        %v3657 = vunpack.c.h.b16 %v747
        %v3658 = vunpack.c.l.b16 %v748
        %v3659 = vunpack.c.h.b16 %v748
        %v3660 = vunpack.c.l.b16 %v749
        %v3661 = vunpack.c.h.b16 %v749
        %v3662 = vunpack.c.l.b16 %v750
        %v3663 = vunpack.c.h.b16 %v750
        %v3664 = vunpack.c.l.b16 %v751
        %v3665 = vunpack.c.h.b16 %v751
        %v3666 = vunpack.c.l.b16 %v752
        %v3667 = vunpack.c.h.b16 %v752
        %v3668 = vunpack.c.l.b16 %v753
        %v3669 = vunpack.c.h.b16 %v753
        %v3670 = vunpack.c.l.b16 %v754
        %v3671 = vunpack.c.h.b16 %v754
        %v3672 = vunpack.c.l.b16 %v755
        %v3673 = vunpack.c.h.b16 %v755
        %v3674 = vunpack.c.l.b16 %v756
        %v3675 = vunpack.c.h.b16 %v756
        %v3676 = vunpack.c.l.b16 %v757
        %v3677 = vunpack.c.h.b16 %v757
        %v3678 = vunpack.c.l.b16 %v758
        %v3679 = vunpack.c.h.b16 %v758
        %v3680 = vunpack.c.l.b16 %v759
        %v3681 = vunpack.c.h.b16 %v759
        %v3682 = vunpack.c.l.b16 %v760
        %v3683 = vunpack.c.h.b16 %v760
        %v3684 = vunpack.c.l.b16 %v761
        %v3685 = vunpack.c.h.b16 %v761
        %v3686 = vunpack.c.l.b16 %v762
        %v3687 = vunpack.c.h.b16 %v762
        %v3688 = vunpack.c.l.b16 %v763
        %v3689 = vunpack.c.h.b16 %v763
        %v3690 = vunpack.c.l.b16 %v764
        %v3691 = vunpack.c.h.b16 %v764
        %v3692 = vunpack.c.l.b16 %v765
        %v3693 = vunpack.c.h.b16 %v765
        %v3694 = vunpack.c.l.b16 %v766
        %v3695 = vunpack.c.h.b16 %v766
        %v3696 = vunpack.c.l.b16 %v767
        %v3697 = vunpack.c.h.b16 %v767
        %v3698 = vunpack.c.l.b16 %v768
        %v3699 = vunpack.c.h.b16 %v768
        %v3700 = vunpack.c.l.b16 %v769
        %v3701 = vunpack.c.h.b16 %v769
        %v3702 = vunpack.c.l.b16 %v770
        %v3703 = vunpack.c.h.b16 %v770
        %v3704 = vunpack.c.l.b16 %v771
        %v3705 = vunpack.c.h.b16 %v771
        %v3706 = vunpack.c.l.b16 %v772
        %v3707 = vunpack.c.h.b16 %v772
        %v3708 = vunpack.c.l.b16 %v773
        %v3709 = vunpack.c.h.b16 %v773
        %v3710 = vunpack.c.l.b16 %v774
        %v3711 = vunpack.c.h.b16 %v774
        %v3712 = vunpack.c.l.b16 %v775
        %v3713 = vunpack.c.h.b16 %v775
        %v3714 = vunpack.c.l.b16 %v776
        %v3715 = vunpack.c.h.b16 %v776
        %v3716 = vunpack.c.l.b16 %v777
        %v3717 = vunpack.c.h.b16 %v777
        %v3718 = vunpack.c.l.b16 %v778
        %v3719 = vunpack.c.h.b16 %v778
        %v3720 = vunpack.c.l.b16 %v779
        %v3721 = vunpack.c.h.b16 %v779
        %v3722 = vunpack.c.l.b16 %v780
        %v3723 = vunpack.c.h.b16 %v780
        %v3724 = vunpack.c.l.b16 %v781
        %v3725 = vunpack.c.h.b16 %v781
        %v3726 = vunpack.c.l.b16 %v782
        %v3727 = vunpack.c.h.b16 %v782
        %v3728 = vunpack.c.l.b16 %v783
        %v3729 = vunpack.c.h.b16 %v783
        %v3730 = vunpack.c.l.b16 %v784
        %v3731 = vunpack.c.h.b16 %v784
        %v3732 = vunpack.c.l.b16 %v785
        %v3733 = vunpack.c.h.b16 %v785
        %v3734 = vunpack.c.l.b16 %v786
        %v3735 = vunpack.c.h.b16 %v786
        %v3736 = vunpack.c.l.b16 %v787
        %v3737 = vunpack.c.h.b16 %v787
        %v3738 = vunpack.c.l.b16 %v788
        %v3739 = vunpack.c.h.b16 %v788
        %v3740 = vunpack.c.l.b16 %v789
        %v3741 = vunpack.c.h.b16 %v789
        %v3742 = vunpack.c.l.b16 %v790
        %v3743 = vunpack.c.h.b16 %v790
        %v3744 = vunpack.c.l.b16 %v791
        %v3745 = vunpack.c.h.b16 %v791
        %v3746 = vunpack.c.l.b16 %v792
        %v3747 = vunpack.c.h.b16 %v792
        %v3748 = vunpack.c.l.b16 %v793
        %v3749 = vunpack.c.h.b16 %v793
        %v3750 = vunpack.c.l.b16 %v794
        %v3751 = vunpack.c.h.b16 %v794
        %v3752 = vunpack.c.l.b16 %v795
        %v3753 = vunpack.c.h.b16 %v795
        %v3754 = vunpack.c.l.b16 %v796
        %v3755 = vunpack.c.h.b16 %v796
        %v3756 = vunpack.c.l.b16 %v797
        %v3757 = vunpack.c.h.b16 %v797
        %v3758 = vunpack.c.l.b16 %v798
        %v3759 = vunpack.c.h.b16 %v798
        %v3760 = vunpack.c.l.b16 %v799
        %v3761 = vunpack.c.h.b16 %v799
        %v3762 = vunpack.c.l.b16 %v800
        %v3763 = vunpack.c.h.b16 %v800
        %v3764 = vunpack.c.l.b16 %v801
        %v3765 = vunpack.c.h.b16 %v801
        %v3766 = vunpack.c.l.b16 %v802
        %v3767 = vunpack.c.h.b16 %v802
        %v3768 = vunpack.c.l.b16 %v803
        %v3769 = vunpack.c.h.b16 %v803
        %v3770 = vunpack.c.l.b16 %v804
        %v3771 = vunpack.c.h.b16 %v804
        %v3772 = vunpack.c.l.b16 %v805
        %v3773 = vunpack.c.h.b16 %v805
        %v3774 = vunpack.c.l.b16 %v806
        %v3775 = vunpack.c.h.b16 %v806
        %v3776 = vunpack.c.l.b16 %v807
        %v3777 = vunpack.c.h.b16 %v807
        %v3778 = vunpack.c.l.b16 %v808
        %v3779 = vunpack.c.h.b16 %v808
        %v3780 = vunpack.c.l.b16 %v809
        %v3781 = vunpack.c.h.b16 %v809
        %v3782 = vunpack.c.l.b16 %v810
        %v3783 = vunpack.c.h.b16 %v810
        %v3784 = vunpack.c.l.b16 %v811
        %v3785 = vunpack.c.h.b16 %v811
        %v3786 = vunpack.c.l.b16 %v812
        %v3787 = vunpack.c.h.b16 %v812
        %v3788 = vunpack.c.l.b16 %v813
        %v3789 = vunpack.c.h.b16 %v813
        %v3790 = vunpack.c.l.b16 %v814
        %v3791 = vunpack.c.h.b16 %v814
        %v3792 = vunpack.c.l.b16 %v815
        %v3793 = vunpack.c.h.b16 %v815
        %v3794 = vunpack.c.l.b16 %v816
        %v3795 = vunpack.c.h.b16 %v816
        %v3796 = vunpack.c.l.b16 %v817
        %v3797 = vunpack.c.h.b16 %v817
        %v3798 = vunpack.c.l.b16 %v818
        %v3799 = vunpack.c.h.b16 %v818
        %v3800 = vunpack.c.l.b16 %v819
        %v3801 = vunpack.c.h.b16 %v819
        %v3802 = vunpack.c.l.b16 %v820
        %v3803 = vunpack.c.h.b16 %v820
        %v3804 = vunpack.c.l.b16 %v821
        %v3805 = vunpack.c.h.b16 %v821
        %v3806 = vunpack.c.l.b16 %v822
        %v3807 = vunpack.c.h.b16 %v822
        %v3808 = vunpack.c.l.b16 %v823
        %v3809 = vunpack.c.h.b16 %v823
        %v3810 = vunpack.c.l.b16 %v824
        %v3811 = vunpack.c.h.b16 %v824
        %v3812 = vunpack.c.l.b16 %v825
        %v3813 = vunpack.c.h.b16 %v825
        %v3814 = vunpack.c.l.b16 %v826
        %v3815 = vunpack.c.h.b16 %v826
        %v3816 = vunpack.c.l.b16 %v827
        %v3817 = vunpack.c.h.b16 %v827
        %v3818 = vunpack.c.l.b16 %v828
        %v3819 = vunpack.c.h.b16 %v828
        %v3820 = vunpack.c.l.b16 %v829
        %v3821 = vunpack.c.h.b16 %v829
        %v3822 = vunpack.c.l.b16 %v830
        %v3823 = vunpack.c.h.b16 %v830
        %v3824 = vunpack.c.l.b16 %v831
        %v3825 = vunpack.c.h.b16 %v831
        %v3826 = vunpack.c.l.b16 %v832
        %v3827 = vunpack.c.h.b16 %v832
        %v3828 = vunpack.c.l.b16 %v833
        %v3829 = vunpack.c.h.b16 %v833
        %v3830 = vunpack.c.l.b16 %v834
        %v3831 = vunpack.c.h.b16 %v834
        %v3832 = vunpack.c.l.b16 %v835
        %v3833 = vunpack.c.h.b16 %v835
        %v3834 = vunpack.c.l.b16 %v836
        %v3835 = vunpack.c.h.b16 %v836
        %v3836 = vunpack.c.l.b16 %v837
        %v3837 = vunpack.c.h.b16 %v837
        %v3838 = vunpack.c.l.b16 %v838
        %v3839 = vunpack.c.h.b16 %v838
        %v3840 = vunpack.c.l.b16 %v839
        %v3841 = vunpack.c.h.b16 %v839
        %v3842 = vunpack.c.l.b16 %v840
        %v3843 = vunpack.c.h.b16 %v840
        %v3844 = vunpack.c.l.b16 %v841
        %v3845 = vunpack.c.h.b16 %v841
        %v3846 = vunpack.c.l.b16 %v842
        %v3847 = vunpack.c.h.b16 %v842
        %v3848 = vunpack.c.l.b16 %v843
        %v3849 = vunpack.c.h.b16 %v843
        %v3850 = vunpack.c.l.b16 %v844
        %v3851 = vunpack.c.h.b16 %v844
        %v3852 = vunpack.c.l.b16 %v845
        %v3853 = vunpack.c.h.b16 %v845
        %v3854 = vunpack.c.l.b16 %v846
        %v3855 = vunpack.c.h.b16 %v846
        %v3856 = vunpack.c.l.b16 %v847
        %v3857 = vunpack.c.h.b16 %v847
        %v3858 = vunpack.c.l.b16 %v848
        %v3859 = vunpack.c.h.b16 %v848
        %v3860 = vunpack.c.l.b16 %v849
        %v3861 = vunpack.c.h.b16 %v849
        %v3862 = vunpack.c.l.b16 %v850
        %v3863 = vunpack.c.h.b16 %v850
        %v3864 = vunpack.c.l.b16 %v851
        %v3865 = vunpack.c.h.b16 %v851
        %v3866 = vunpack.c.l.b16 %v852
        %v3867 = vunpack.c.h.b16 %v852
        %v3868 = vunpack.c.l.b16 %v853
        %v3869 = vunpack.c.h.b16 %v853
        %v3870 = vunpack.c.l.b16 %v854
        %v3871 = vunpack.c.h.b16 %v854
        %v3872 = vunpack.c.l.b16 %v855
        %v3873 = vunpack.c.h.b16 %v855
        %v3874 = vunpack.c.l.b16 %v856
        %v3875 = vunpack.c.h.b16 %v856
        %v3876 = vunpack.c.l.b16 %v857
        %v3877 = vunpack.c.h.b16 %v857
        %v3878 = vunpack.c.l.b16 %v858
        %v3879 = vunpack.c.h.b16 %v858
        %v3880 = vunpack.c.l.b16 %v859
        %v3881 = vunpack.c.h.b16 %v859
        %v3882 = vunpack.c.l.b16 %v860
        %v3883 = vunpack.c.h.b16 %v860
        %v3884 = vunpack.c.l.b16 %v861
        %v3885 = vunpack.c.h.b16 %v861
        %v3886 = vunpack.c.l.b16 %v862
        %v3887 = vunpack.c.h.b16 %v862
        %v3888 = vunpack.c.l.b16 %v863
        %v3889 = vunpack.c.h.b16 %v863
        %v3890 = vunpack.c.l.b16 %v864
        %v3891 = vunpack.c.h.b16 %v864
        %v3892 = vunpack.c.l.b16 %v865
        %v3893 = vunpack.c.h.b16 %v865
        %v3894 = vunpack.c.l.b16 %v866
        %v3895 = vunpack.c.h.b16 %v866
        %v3896 = vunpack.c.l.b16 %v867
        %v3897 = vunpack.c.h.b16 %v867
        %v3898 = vunpack.c.l.b16 %v868
        %v3899 = vunpack.c.h.b16 %v868
        %v3900 = vunpack.c.l.b16 %v869
        %v3901 = vunpack.c.h.b16 %v869
        %v3902 = vunpack.c.l.b16 %v870
        %v3903 = vunpack.c.h.b16 %v870
        %v3904 = vunpack.c.l.b16 %v871
        %v3905 = vunpack.c.h.b16 %v871
        %v3906 = vunpack.c.l.b16 %v872
        %v3907 = vunpack.c.h.b16 %v872
        %v3908 = vunpack.c.l.b16 %v873
        %v3909 = vunpack.c.h.b16 %v873
        %v3910 = vunpack.c.l.b16 %v874
        %v3911 = vunpack.c.h.b16 %v874
        %v3912 = vunpack.c.l.b16 %v875
        %v3913 = vunpack.c.h.b16 %v875
        %v3914 = vunpack.c.l.b16 %v876
        %v3915 = vunpack.c.h.b16 %v876
        %v3916 = vunpack.c.l.b16 %v877
        %v3917 = vunpack.c.h.b16 %v877
        %v3918 = vunpack.c.l.b16 %v878
        %v3919 = vunpack.c.h.b16 %v878
        %v3920 = vunpack.c.l.b16 %v879
        %v3921 = vunpack.c.h.b16 %v879
        %v3922 = vunpack.c.l.b16 %v880
        %v3923 = vunpack.c.h.b16 %v880
        %v3924 = vunpack.c.l.b16 %v881
        %v3925 = vunpack.c.h.b16 %v881
        %v3926 = vunpack.c.l.b16 %v882
        %v3927 = vunpack.c.h.b16 %v882
        %v3928 = vunpack.c.l.b16 %v883
        %v3929 = vunpack.c.h.b16 %v883
        %v3930 = vunpack.c.l.b16 %v884
        %v3931 = vunpack.c.h.b16 %v884
        %v3932 = vunpack.c.l.b16 %v885
        %v3933 = vunpack.c.h.b16 %v885
        %v3934 = vunpack.c.l.b16 %v886
        %v3935 = vunpack.c.h.b16 %v886
        %v3936 = vunpack.c.l.b16 %v887
        %v3937 = vunpack.c.h.b16 %v887
        %v3938 = vunpack.c.l.b16 %v888
        %v3939 = vunpack.c.h.b16 %v888
        %v3940 = vunpack.c.l.b16 %v889
        %v3941 = vunpack.c.h.b16 %v889
        %v3942 = vunpack.c.l.b16 %v890
        %v3943 = vunpack.c.h.b16 %v890
        %v3944 = vunpack.c.l.b16 %v891
        %v3945 = vunpack.c.h.b16 %v891
        %v3946 = vunpack.c.l.b16 %v892
        %v3947 = vunpack.c.h.b16 %v892
        %v3948 = vunpack.c.l.b16 %v893
        %v3949 = vunpack.c.h.b16 %v893
        %v3950 = vunpack.c.l.b16 %v894
        %v3951 = vunpack.c.h.b16 %v894
        %v3952 = vunpack.c.l.b16 %v895
        %v3953 = vunpack.c.h.b16 %v895
        %v3954 = vunpack.c.l.b16 %v896
        %v3955 = vunpack.c.h.b16 %v896
        %v3956 = vunpack.c.l.b16 %v897
        %v3957 = vunpack.c.h.b16 %v897
        %v3958 = vunpack.c.l.b16 %v898
        %v3959 = vunpack.c.h.b16 %v898
        %v3960 = vunpack.c.l.b16 %v899
        %v3961 = vunpack.c.h.b16 %v899
        %v3962 = vunpack.c.l.b16 %v900
        %v3963 = vunpack.c.h.b16 %v900
        %v3964 = vunpack.c.l.b16 %v901
        %v3965 = vunpack.c.h.b16 %v901
        %v3966 = vunpack.c.l.b16 %v902
        %v3967 = vunpack.c.h.b16 %v902
        %v3968 = vunpack.c.l.b16 %v903
        %v3969 = vunpack.c.h.b16 %v903
        %v3970 = vunpack.c.l.b16 %v904
        %v3971 = vunpack.c.h.b16 %v904
        %v3972 = vunpack.c.l.b16 %v905
        %v3973 = vunpack.c.h.b16 %v905
        %v3974 = vunpack.c.l.b16 %v906
        %v3975 = vunpack.c.h.b16 %v906
        %v3976 = vunpack.c.l.b16 %v907
        %v3977 = vunpack.c.h.b16 %v907
        %v3978 = vunpack.c.l.b16 %v908
        %v3979 = vunpack.c.h.b16 %v908
        %v3980 = vunpack.c.l.b16 %v909
        %v3981 = vunpack.c.h.b16 %v909
        %v3982 = vunpack.c.l.b16 %v910
        %v3983 = vunpack.c.h.b16 %v910
        %v3984 = vunpack.c.l.b16 %v911
        %v3985 = vunpack.c.h.b16 %v911
        %v3986 = vunpack.c.l.b16 %v912
        %v3987 = vunpack.c.h.b16 %v912
        %v3988 = vunpack.c.l.b16 %v913
        %v3989 = vunpack.c.h.b16 %v913
        %v3990 = vunpack.c.l.b16 %v914
        %v3991 = vunpack.c.h.b16 %v914
        %v3992 = vunpack.c.l.b16 %v915
        %v3993 = vunpack.c.h.b16 %v915
        %v3994 = vunpack.c.l.b16 %v916
        %v3995 = vunpack.c.h.b16 %v916
        %v3996 = vunpack.c.l.b16 %v917
        %v3997 = vunpack.c.h.b16 %v917
        %v3998 = vunpack.c.l.b16 %v918
        %v3999 = vunpack.c.h.b16 %v918
        %v4000 = vunpack.c.l.b16 %v919
        %v4001 = vunpack.c.h.b16 %v919
        %v4002 = vunpack.c.l.b16 %v920
        %v4003 = vunpack.c.h.b16 %v920
        %v4004 = vunpack.c.l.b16 %v921
        %v4005 = vunpack.c.h.b16 %v921
        %v4006 = vunpack.c.l.b16 %v922
        %v4007 = vunpack.c.h.b16 %v922
        %v4008 = vunpack.c.l.b16 %v923
        %v4009 = vunpack.c.h.b16 %v923
        %v4010 = vunpack.c.l.b16 %v924
        %v4011 = vunpack.c.h.b16 %v924
        %v4012 = vunpack.c.l.b16 %v925
        %v4013 = vunpack.c.h.b16 %v925
        %v4014 = vunpack.c.l.b16 %v926
        %v4015 = vunpack.c.h.b16 %v926
        %v4016 = vunpack.c.l.b16 %v927
        %v4017 = vunpack.c.h.b16 %v927
        %v4018 = vunpack.c.l.b16 %v928
        %v4019 = vunpack.c.h.b16 %v928
        %v4020 = vunpack.c.l.b16 %v929
        %v4021 = vunpack.c.h.b16 %v929
        %v4022 = vunpack.c.l.b16 %v930
        %v4023 = vunpack.c.h.b16 %v930
        %v4024 = vunpack.c.l.b16 %v931
        %v4025 = vunpack.c.h.b16 %v931
        %v4026 = vunpack.c.l.b16 %v932
        %v4027 = vunpack.c.h.b16 %v932
        %v4028 = vunpack.c.l.b16 %v933
        %v4029 = vunpack.c.h.b16 %v933
        %v4030 = vunpack.c.l.b16 %v934
        %v4031 = vunpack.c.h.b16 %v934
        %v4032 = vunpack.c.l.b16 %v935
        %v4033 = vunpack.c.h.b16 %v935
        %v4034 = vunpack.c.l.b16 %v936
        %v4035 = vunpack.c.h.b16 %v936
        %v4036 = vunpack.c.l.b16 %v937
        %v4037 = vunpack.c.h.b16 %v937
        %v4038 = vunpack.c.l.b16 %v938
        %v4039 = vunpack.c.h.b16 %v938
        %v4040 = vunpack.c.l.b16 %v939
        %v4041 = vunpack.c.h.b16 %v939
        %v4042 = vunpack.c.l.b16 %v940
        %v4043 = vunpack.c.h.b16 %v940
        %v4044 = vunpack.c.l.b16 %v941
        %v4045 = vunpack.c.h.b16 %v941
        %v4046 = vunpack.c.l.b16 %v942
        %v4047 = vunpack.c.h.b16 %v942
        %v4048 = vunpack.c.l.b16 %v943
        %v4049 = vunpack.c.h.b16 %v943
        %v4050 = vunpack.c.l.b16 %v944
        %v4051 = vunpack.c.h.b16 %v944
        %v4052 = vunpack.c.l.b16 %v945
        %v4053 = vunpack.c.h.b16 %v945
        %v4054 = vunpack.c.l.b16 %v946
        %v4055 = vunpack.c.h.b16 %v946
        %v4056 = vunpack.c.l.b16 %v947
        %v4057 = vunpack.c.h.b16 %v947
        %v4058 = vunpack.c.l.b16 %v948
        %v4059 = vunpack.c.h.b16 %v948
        %v4060 = vunpack.c.l.b16 %v949
        %v4061 = vunpack.c.h.b16 %v949
        %v4062 = vunpack.c.l.b16 %v950
        %v4063 = vunpack.c.h.b16 %v950
        %v4064 = vunpack.c.l.b16 %v951
        %v4065 = vunpack.c.h.b16 %v951
        %v4066 = vunpack.c.l.b16 %v952
        %v4067 = vunpack.c.h.b16 %v952
        %v4068 = vunpack.c.l.b16 %v953
        %v4069 = vunpack.c.h.b16 %v953
        %v4070 = vunpack.c.l.b16 %v954
        %v4071 = vunpack.c.h.b16 %v954
        %v4072 = vunpack.c.l.b16 %v955
        %v4073 = vunpack.c.h.b16 %v955
        %v4074 = vunpack.c.l.b16 %v956
        %v4075 = vunpack.c.h.b16 %v956
        %v4076 = vunpack.c.l.b16 %v957
        %v4077 = vunpack.c.h.b16 %v957
        %v4078 = vunpack.c.l.b16 %v958
        %v4079 = vunpack.c.h.b16 %v958
        %v4080 = vunpack.c.l.b16 %v959
        %v4081 = vunpack.c.h.b16 %v959
        %v4082 = vunpack.c.l.b16 %v960
        %v4083 = vunpack.c.h.b16 %v960
        %v4084 = vunpack.c.l.b16 %v961
        %v4085 = vunpack.c.h.b16 %v961
        %v4086 = vunpack.c.l.b16 %v962
        %v4087 = vunpack.c.h.b16 %v962
        %v4088 = vunpack.c.l.b16 %v963
        %v4089 = vunpack.c.h.b16 %v963
        %v4090 = vunpack.c.l.b16 %v964
        %v4091 = vunpack.c.h.b16 %v964
        %v4092 = vunpack.c.l.b16 %v965
        %v4093 = vunpack.c.h.b16 %v965
        %v4094 = vunpack.c.l.b16 %v966
        %v4095 = vunpack.c.h.b16 %v966
        %v4096 = vunpack.c.l.b16 %v967
        %v4097 = vunpack.c.h.b16 %v967
        %v4098 = vunpack.c.l.b16 %v968
        %v4099 = vunpack.c.h.b16 %v968
        %v4100 = vunpack.c.l.b16 %v969
        %v4101 = vunpack.c.h.b16 %v969
        %v4102 = vunpack.c.l.b16 %v970
        %v4103 = vunpack.c.h.b16 %v970
        %v4104 = vunpack.c.l.b16 %v971
        %v4105 = vunpack.c.h.b16 %v971
        %v4106 = vunpack.c.l.b16 %v972
        %v4107 = vunpack.c.h.b16 %v972
        %v4108 = vunpack.c.l.b16 %v973
        %v4109 = vunpack.c.h.b16 %v973
        %v4110 = vunpack.c.l.b16 %v974
        %v4111 = vunpack.c.h.b16 %v974
        %v4112 = vunpack.c.l.b16 %v975
        %v4113 = vunpack.c.h.b16 %v975
        %v4114 = vunpack.c.l.b16 %v976
        %v4115 = vunpack.c.h.b16 %v976
        %v4116 = vunpack.c.l.b16 %v977
        %v4117 = vunpack.c.h.b16 %v977
        %v4118 = vunpack.c.l.b16 %v978
        %v4119 = vunpack.c.h.b16 %v978
        %v4120 = vunpack.c.l.b16 %v979
        %v4121 = vunpack.c.h.b16 %v979
        %v4122 = vunpack.c.l.b16 %v980
        %v4123 = vunpack.c.h.b16 %v980
        %v4124 = vunpack.c.l.b16 %v981
        %v4125 = vunpack.c.h.b16 %v981
        %v4126 = vunpack.c.l.b16 %v982
        %v4127 = vunpack.c.h.b16 %v982
        %v4128 = vunpack.c.l.b16 %v983
        %v4129 = vunpack.c.h.b16 %v983
        %v4130 = vunpack.c.l.b16 %v984
        %v4131 = vunpack.c.h.b16 %v984
        %v4132 = vunpack.c.l.b16 %v985
        %v4133 = vunpack.c.h.b16 %v985
        %v4134 = vunpack.c.l.b16 %v986
        %v4135 = vunpack.c.h.b16 %v986
        %v4136 = vunpack.c.l.b16 %v987
        %v4137 = vunpack.c.h.b16 %v987
        %v4138 = vunpack.c.l.b16 %v988
        %v4139 = vunpack.c.h.b16 %v988
        %v4140 = vunpack.c.l.b16 %v989
        %v4141 = vunpack.c.h.b16 %v989
        %v4142 = vunpack.c.l.b16 %v990
        %v4143 = vunpack.c.h.b16 %v990
        %v4144 = vunpack.c.l.b16 %v991
        %v4145 = vunpack.c.h.b16 %v991
        %v4146 = vunpack.c.l.b16 %v992
        %v4147 = vunpack.c.h.b16 %v992
        %v4148 = vunpack.c.l.b16 %v993
        %v4149 = vunpack.c.h.b16 %v993
        %v4150 = vunpack.c.l.b16 %v994
        %v4151 = vunpack.c.h.b16 %v994
        %v4152 = vunpack.c.l.b16 %v995
        %v4153 = vunpack.c.h.b16 %v995
        %v4154 = vunpack.c.l.b16 %v996
        %v4155 = vunpack.c.h.b16 %v996
        %v4156 = vunpack.c.l.b16 %v997
        %v4157 = vunpack.c.h.b16 %v997
        %v4158 = vunpack.c.l.b16 %v998
        %v4159 = vunpack.c.h.b16 %v998
        %v4160 = vunpack.c.l.b16 %v999
        %v4161 = vunpack.c.h.b16 %v999
        %v4162 = vunpack.c.l.b16 %v1000
        %v4163 = vunpack.c.h.b16 %v1000
        %v4164 = vunpack.c.l.b16 %v1001
        %v4165 = vunpack.c.h.b16 %v1001
        %v4166 = vunpack.c.l.b16 %v1002
        %v4167 = vunpack.c.h.b16 %v1002
        %v4168 = vunpack.c.l.b16 %v1003
        %v4169 = vunpack.c.h.b16 %v1003
        %v4170 = vunpack.c.l.b16 %v1004
        %v4171 = vunpack.c.h.b16 %v1004
        %v4172 = vunpack.c.l.b16 %v1005
        %v4173 = vunpack.c.h.b16 %v1005
        %v4174 = vunpack.c.l.b16 %v1006
        %v4175 = vunpack.c.h.b16 %v1006
        %v4176 = vunpack.c.l.b16 %v1007
        %v4177 = vunpack.c.h.b16 %v1007
        %v4178 = vunpack.c.l.b16 %v1008
        %v4179 = vunpack.c.h.b16 %v1008
        %v4180 = vunpack.c.l.b16 %v1009
        %v4181 = vunpack.c.h.b16 %v1009
        %v4182 = vunpack.c.l.b16 %v1010
        %v4183 = vunpack.c.h.b16 %v1010
        %v4184 = vunpack.c.l.b16 %v1011
        %v4185 = vunpack.c.h.b16 %v1011
        %v4186 = vunpack.c.l.b16 %v1012
        %v4187 = vunpack.c.h.b16 %v1012
        %v4188 = vunpack.c.l.b16 %v1013
        %v4189 = vunpack.c.h.b16 %v1013
        %v4190 = vunpack.c.l.b16 %v1014
        %v4191 = vunpack.c.h.b16 %v1014
        %v4192 = vunpack.c.l.b16 %v1015
        %v4193 = vunpack.c.h.b16 %v1015
        %v4194 = vunpack.c.l.b16 %v1016
        %v4195 = vunpack.c.h.b16 %v1016
        %v4196 = vunpack.c.l.b16 %v1017
        %v4197 = vunpack.c.h.b16 %v1017
        %v4198 = vunpack.c.l.b16 %v1018
        %v4199 = vunpack.c.h.b16 %v1018
        %v4200 = vunpack.c.l.b16 %v1019
        %v4201 = vunpack.c.h.b16 %v1019
        %v4202 = vunpack.c.l.b16 %v1020
        %v4203 = vunpack.c.h.b16 %v1020
        %v4204 = vunpack.c.l.b16 %v1021
        %v4205 = vunpack.c.h.b16 %v1021
        %v4206 = vunpack.c.l.b16 %v1022
        %v4207 = vunpack.c.h.b16 %v1022
        %v4208 = vunpack.c.l.b16 %v1023
        %v4209 = vunpack.c.h.b16 %v1023
        %v4210 = vunpack.c.l.b16 %v1024
        %v4211 = vunpack.c.h.b16 %v1024
        %v4212 = vunpack.c.l.b16 %v1025
        %v4213 = vunpack.c.h.b16 %v1025
        %v4214 = vunpack.c.l.b16 %v1026
        %v4215 = vunpack.c.h.b16 %v1026
        %v4216 = vunpack.c.l.b16 %v1027
        %v4217 = vunpack.c.h.b16 %v1027
        %v4218 = vunpack.c.l.b16 %v1028
        %v4219 = vunpack.c.h.b16 %v1028
        %v4220 = vunpack.c.l.b16 %v1029
        %v4221 = vunpack.c.h.b16 %v1029
        %v4222 = vunpack.c.l.b16 %v1030
        %v4223 = vunpack.c.h.b16 %v1030
        %v4224 = vunpack.c.l.b16 %v1031
        %v4225 = vunpack.c.h.b16 %v1031
        %v4226 = vunpack.c.l.b16 %v1032
        %v4227 = vunpack.c.h.b16 %v1032
        %v4228 = vunpack.c.l.b16 %v1033
        %v4229 = vunpack.c.h.b16 %v1033
        %v4230 = vunpack.c.l.b16 %v1034
        %v4231 = vunpack.c.h.b16 %v1034
        %v4232 = vunpack.c.l.b16 %v1035
        %v4233 = vunpack.c.h.b16 %v1035
        %v4234 = vunpack.c.l.b16 %v1036
        %v4235 = vunpack.c.h.b16 %v1036
        %v4236 = vunpack.c.l.b16 %v1037
        %v4237 = vunpack.c.h.b16 %v1037
        %v4238 = vunpack.c.l.b16 %v1038
        %v4239 = vunpack.c.h.b16 %v1038
        %v4240 = vunpack.c.l.b16 %v1039
        %v4241 = vunpack.c.h.b16 %v1039
        %v4242 = vunpack.c.l.b16 %v1040
        %v4243 = vunpack.c.h.b16 %v1040
        %v4244 = vunpack.c.l.b16 %v1041
        %v4245 = vunpack.c.h.b16 %v1041
        %v4246 = vunpack.c.l.b16 %v1042
        %v4247 = vunpack.c.h.b16 %v1042
        %v4248 = vunpack.c.l.b16 %v1043
        %v4249 = vunpack.c.h.b16 %v1043
        %v4250 = vunpack.c.l.b16 %v1044
        %v4251 = vunpack.c.h.b16 %v1044
        %v4252 = vunpack.c.l.b16 %v1045
        %v4253 = vunpack.c.h.b16 %v1045
        %v4254 = vunpack.c.l.b16 %v1046
        %v4255 = vunpack.c.h.b16 %v1046
        %v4256 = vunpack.c.l.b16 %v1047
        %v4257 = vunpack.c.h.b16 %v1047
        %v4258 = vunpack.c.l.b16 %v1048
        %v4259 = vunpack.c.h.b16 %v1048
        %v4260 = vunpack.c.l.b16 %v1049
        %v4261 = vunpack.c.h.b16 %v1049
        %v4262 = vunpack.c.l.b16 %v1050
        %v4263 = vunpack.c.h.b16 %v1050
        %v4264 = vunpack.c.l.b16 %v1051
        %v4265 = vunpack.c.h.b16 %v1051
        %v4266 = vunpack.c.l.b16 %v1052
        %v4267 = vunpack.c.h.b16 %v1052
        %v4268 = vunpack.c.l.b16 %v1053
        %v4269 = vunpack.c.h.b16 %v1053
        %v4270 = vunpack.c.l.b16 %v1054
        %v4271 = vunpack.c.h.b16 %v1054
        %v4272 = vunpack.c.l.b16 %v1055
        %v4273 = vunpack.c.h.b16 %v1055
        %v4274 = vunpack.c.l.b16 %v1056
        %v4275 = vunpack.c.h.b16 %v1056
        %v4276 = vunpack.c.l.b16 %v1057
        %v4277 = vunpack.c.h.b16 %v1057
        %v4278 = vunpack.c.l.b16 %v1058
        %v4279 = vunpack.c.h.b16 %v1058
        %v4280 = vunpack.c.l.b16 %v1059
        %v4281 = vunpack.c.h.b16 %v1059
        %v4282 = vunpack.c.l.b16 %v1060
        %v4283 = vunpack.c.h.b16 %v1060
        %v4284 = vunpack.c.l.b16 %v1061
        %v4285 = vunpack.c.h.b16 %v1061
        %v4286 = vunpack.c.l.b16 %v1062
        %v4287 = vunpack.c.h.b16 %v1062
        %v4288 = vunpack.c.l.b16 %v1063
        %v4289 = vunpack.c.h.b16 %v1063
        %v4290 = vunpack.c.l.b16 %v1064
        %v4291 = vunpack.c.h.b16 %v1064
        %v4292 = vunpack.c.l.b16 %v1065
        %v4293 = vunpack.c.h.b16 %v1065
        %v4294 = vunpack.c.l.b16 %v1066
        %v4295 = vunpack.c.h.b16 %v1066
        %v4296 = vunpack.c.l.b16 %v1067
        %v4297 = vunpack.c.h.b16 %v1067
        %v4298 = vunpack.c.l.b16 %v1068
        %v4299 = vunpack.c.h.b16 %v1068
        %v4300 = vunpack.c.l.b16 %v1069
        %v4301 = vunpack.c.h.b16 %v1069
        %v4302 = vunpack.c.l.b16 %v1070
        %v4303 = vunpack.c.h.b16 %v1070
        %v4304 = vunpack.c.l.b16 %v1071
        %v4305 = vunpack.c.h.b16 %v1071
        %v4306 = vunpack.c.l.b16 %v1072
        %v4307 = vunpack.c.h.b16 %v1072
        %v4308 = vunpack.c.l.b16 %v1073
        %v4309 = vunpack.c.h.b16 %v1073
        %v4310 = vunpack.c.l.b16 %v1074
        %v4311 = vunpack.c.h.b16 %v1074
        %v4312 = vunpack.c.l.b16 %v1075
        %v4313 = vunpack.c.h.b16 %v1075
        %v4314 = vunpack.c.l.b16 %v1076
        %v4315 = vunpack.c.h.b16 %v1076
        %v4316 = vunpack.c.l.b16 %v1077
        %v4317 = vunpack.c.h.b16 %v1077
        %v4318 = vunpack.c.l.b16 %v1078
        %v4319 = vunpack.c.h.b16 %v1078
        %v4320 = vunpack.c.l.b16 %v1079
        %v4321 = vunpack.c.h.b16 %v1079
        %v4322 = vunpack.c.l.b16 %v1080
        %v4323 = vunpack.c.h.b16 %v1080
        %v4324 = vunpack.c.l.b16 %v1081
        %v4325 = vunpack.c.h.b16 %v1081
        %v4326 = vunpack.c.l.b16 %v1082
        %v4327 = vunpack.c.h.b16 %v1082
        %v4328 = vunpack.c.l.b16 %v1083
        %v4329 = vunpack.c.h.b16 %v1083
        %v4330 = vunpack.c.l.b16 %v1084
        %v4331 = vunpack.c.h.b16 %v1084
        %v4332 = vunpack.c.l.b16 %v1085
        %v4333 = vunpack.c.h.b16 %v1085
        %v4334 = vunpack.c.l.b16 %v1086
        %v4335 = vunpack.c.h.b16 %v1086
        %v4336 = vunpack.c.l.b16 %v1087
        %v4337 = vunpack.c.h.b16 %v1087
        %v4338 = vunpack.c.l.b16 %v1088
        %v4339 = vunpack.c.h.b16 %v1088
        %v4340 = vunpack.c.l.b16 %v1089
        %v4341 = vunpack.c.h.b16 %v1089
        %v4342 = vunpack.c.l.b16 %v1090
        %v4343 = vunpack.c.h.b16 %v1090
        %v4344 = vunpack.c.l.b16 %v1091
        %v4345 = vunpack.c.h.b16 %v1091
        %v4346 = vunpack.c.l.b16 %v1092
        %v4347 = vunpack.c.h.b16 %v1092
        %v4348 = vunpack.c.l.b16 %v1093
        %v4349 = vunpack.c.h.b16 %v1093
        %v4350 = vunpack.c.l.b16 %v1094
        %v4351 = vunpack.c.h.b16 %v1094
        %v4352 = vunpack.c.l.b16 %v1095
        %v4353 = vunpack.c.h.b16 %v1095
        %v4354 = vunpack.c.l.b16 %v1096
        %v4355 = vunpack.c.h.b16 %v1096
        %v4356 = vunpack.c.l.b16 %v1097
        %v4357 = vunpack.c.h.b16 %v1097
        %v4358 = vunpack.c.l.b16 %v1098
        %v4359 = vunpack.c.h.b16 %v1098
        %v4360 = vunpack.c.l.b16 %v1099
        %v4361 = vunpack.c.h.b16 %v1099
        %v4362 = vunpack.c.l.b16 %v1100
        %v4363 = vunpack.c.h.b16 %v1100
        %v4364 = vunpack.c.l.b16 %v1101
        %v4365 = vunpack.c.h.b16 %v1101
        %v4366 = vunpack.c.l.b16 %v1102
        %v4367 = vunpack.c.h.b16 %v1102
        %v4368 = vunpack.c.l.b16 %v1103
        %v4369 = vunpack.c.h.b16 %v1103
        %v4370 = vunpack.c.l.b16 %v1104
        %v4371 = vunpack.c.h.b16 %v1104
        %v4372 = vunpack.c.l.b16 %v1105
        %v4373 = vunpack.c.h.b16 %v1105
        %v4374 = vunpack.c.l.b16 %v1106
        %v4375 = vunpack.c.h.b16 %v1106
        %v4376 = vunpack.c.l.b16 %v1107
        %v4377 = vunpack.c.h.b16 %v1107
        %v4378 = vunpack.c.l.b16 %v1108
        %v4379 = vunpack.c.h.b16 %v1108
        %v4380 = vunpack.c.l.b16 %v1109
        %v4381 = vunpack.c.h.b16 %v1109
        %v4382 = vunpack.c.l.b16 %v1110
        %v4383 = vunpack.c.h.b16 %v1110
        %v4384 = vunpack.c.l.b16 %v1111
        %v4385 = vunpack.c.h.b16 %v1111
        %v4386 = vunpack.c.l.b16 %v1112
        %v4387 = vunpack.c.h.b16 %v1112
        %v4388 = vunpack.c.l.b16 %v1113
        %v4389 = vunpack.c.h.b16 %v1113
        %v4390 = vunpack.c.l.b16 %v1114
        %v4391 = vunpack.c.h.b16 %v1114
        %v4392 = vunpack.c.l.b16 %v1115
        %v4393 = vunpack.c.h.b16 %v1115
        %v4394 = vunpack.c.l.b16 %v1116
        %v4395 = vunpack.c.h.b16 %v1116
        %v4396 = vunpack.c.l.b16 %v1117
        %v4397 = vunpack.c.h.b16 %v1117
        %v4398 = vunpack.c.l.b16 %v1118
        %v4399 = vunpack.c.h.b16 %v1118
        %v4400 = vunpack.c.l.b16 %v1119
        %v4401 = vunpack.c.h.b16 %v1119
        %v4402 = vunpack.c.l.b16 %v1120
        %v4403 = vunpack.c.h.b16 %v1120
        %v4404 = vunpack.c.l.b16 %v1121
        %v4405 = vunpack.c.h.b16 %v1121
        %v4406 = vunpack.c.l.b16 %v1122
        %v4407 = vunpack.c.h.b16 %v1122
        %v4408 = vunpack.c.l.b16 %v1123
        %v4409 = vunpack.c.h.b16 %v1123
        %v4410 = vunpack.c.l.b16 %v1124
        %v4411 = vunpack.c.h.b16 %v1124
        %v4412 = vunpack.c.l.b16 %v1125
        %v4413 = vunpack.c.h.b16 %v1125
        %v4414 = vunpack.c.l.b16 %v1126
        %v4415 = vunpack.c.h.b16 %v1126
        %v4416 = vunpack.c.l.b16 %v1127
        %v4417 = vunpack.c.h.b16 %v1127
        %v4418 = vunpack.c.l.b16 %v1128
        %v4419 = vunpack.c.h.b16 %v1128
        %v4420 = vunpack.c.l.b16 %v1129
        %v4421 = vunpack.c.h.b16 %v1129
        %v4422 = vunpack.c.l.b16 %v1130
        %v4423 = vunpack.c.h.b16 %v1130
        %v4424 = vunpack.c.l.b16 %v1131
        %v4425 = vunpack.c.h.b16 %v1131
        %v4426 = vunpack.c.l.b16 %v1132
        %v4427 = vunpack.c.h.b16 %v1132
        %v4428 = vunpack.c.l.b16 %v1133
        %v4429 = vunpack.c.h.b16 %v1133
        %v4430 = vunpack.c.l.b16 %v1134
        %v4431 = vunpack.c.h.b16 %v1134
        %v4432 = vunpack.c.l.b16 %v1135
        %v4433 = vunpack.c.h.b16 %v1135
        %v4434 = vunpack.c.l.b16 %v1136
        %v4435 = vunpack.c.h.b16 %v1136
        %v4436 = vunpack.c.l.b16 %v1137
        %v4437 = vunpack.c.h.b16 %v1137
        %v4438 = vunpack.c.l.b16 %v1138
        %v4439 = vunpack.c.h.b16 %v1138
        %v4440 = vunpack.c.l.b16 %v1139
        %v4441 = vunpack.c.h.b16 %v1139
        %v4442 = vunpack.c.l.b16 %v1140
        %v4443 = vunpack.c.h.b16 %v1140
        %v4444 = vunpack.c.l.b16 %v1141
        %v4445 = vunpack.c.h.b16 %v1141
        %v4446 = vunpack.c.l.b16 %v1142
        %v4447 = vunpack.c.h.b16 %v1142
        %v4448 = vunpack.c.l.b16 %v1143
        %v4449 = vunpack.c.h.b16 %v1143
        %v4450 = vunpack.c.l.b16 %v1144
        %v4451 = vunpack.c.h.b16 %v1144
        %v4452 = vunpack.c.l.b16 %v1145
        %v4453 = vunpack.c.h.b16 %v1145
        %v4454 = vunpack.c.l.b16 %v1146
        %v4455 = vunpack.c.h.b16 %v1146
        %v4456 = vunpack.c.l.b16 %v1147
        %v4457 = vunpack.c.h.b16 %v1147
        %v4458 = vunpack.c.l.b16 %v1148
        %v4459 = vunpack.c.h.b16 %v1148
        %v4460 = vunpack.c.l.b16 %v1149
        %v4461 = vunpack.c.h.b16 %v1149
        %v4462 = vunpack.c.l.b16 %v1150
        %v4463 = vunpack.c.h.b16 %v1150
        %v4464 = vunpack.c.l.b16 %v1151
        %v4465 = vunpack.c.h.b16 %v1151
        %v4466 = vunpack.c.l.b16 %v1152
        %v4467 = vunpack.c.h.b16 %v1152
        %v4468 = vunpack.c.l.b16 %v1153
        %v4469 = vunpack.c.h.b16 %v1153
        %v4470 = vunpack.c.l.b16 %v1154
        %v4471 = vunpack.c.h.b16 %v1154
        %v4472 = vunpack.c.l.b16 %v1155
        %v4473 = vunpack.c.h.b16 %v1155
        %v4474 = vunpack.c.l.b16 %v1156
        %v4475 = vunpack.c.h.b16 %v1156
        %v4476 = vunpack.c.l.b16 %v1157
        %v4477 = vunpack.c.h.b16 %v1157
        %v4478 = vunpack.c.l.b16 %v1158
        %v4479 = vunpack.c.h.b16 %v1158
        %v4480 = vunpack.c.l.b16 %v1159
        %v4481 = vunpack.c.h.b16 %v1159
        %v4482 = vunpack.c.l.b16 %v1160
        %v4483 = vunpack.c.h.b16 %v1160
        %v4484 = vunpack.c.l.b16 %v1161
        %v4485 = vunpack.c.h.b16 %v1161
        %v4486 = vunpack.c.l.b16 %v1162
        %v4487 = vunpack.c.h.b16 %v1162
        %v4488 = vunpack.c.l.b16 %v1163
        %v4489 = vunpack.c.h.b16 %v1163
        %v4490 = vunpack.c.l.b16 %v1164
        %v4491 = vunpack.c.h.b16 %v1164
        %v4492 = vunpack.c.l.b16 %v1165
        %v4493 = vunpack.c.h.b16 %v1165
        %v4494 = vunpack.c.l.b16 %v1166
        %v4495 = vunpack.c.h.b16 %v1166
        %v4496 = vunpack.c.l.b16 %v1167
        %v4497 = vunpack.c.h.b16 %v1167
        %v4498 = vunpack.c.l.b16 %v1168
        %v4499 = vunpack.c.h.b16 %v1168
        %v4500 = vunpack.c.l.b16 %v1169
        %v4501 = vunpack.c.h.b16 %v1169
        %v4502 = vunpack.c.l.b16 %v1170
        %v4503 = vunpack.c.h.b16 %v1170
        %v4504 = vunpack.c.l.b16 %v1171
        %v4505 = vunpack.c.h.b16 %v1171
        %v4506 = vunpack.c.l.b16 %v1172
        %v4507 = vunpack.c.h.b16 %v1172
        %v4508 = vunpack.c.l.b16 %v1173
        %v4509 = vunpack.c.h.b16 %v1173
        %v4510 = vunpack.c.l.b16 %v1174
        %v4511 = vunpack.c.h.b16 %v1174
        %v4512 = vunpack.c.l.b16 %v1175
        %v4513 = vunpack.c.h.b16 %v1175
        %v4514 = vunpack.c.l.b16 %v1176
        %v4515 = vunpack.c.h.b16 %v1176
        %v4516 = vunpack.c.l.b16 %v1177
        %v4517 = vunpack.c.h.b16 %v1177
        %v4518 = vunpack.c.l.b16 %v1178
        %v4519 = vunpack.c.h.b16 %v1178
        %v4520 = vunpack.c.l.b16 %v1179
        %v4521 = vunpack.c.h.b16 %v1179
        %v4522 = vunpack.c.l.b16 %v1180
        %v4523 = vunpack.c.h.b16 %v1180
        %v4524 = vunpack.c.l.b16 %v1181
        %v4525 = vunpack.c.h.b16 %v1181
        %v4526 = vunpack.c.l.b16 %v1182
        %v4527 = vunpack.c.h.b16 %v1182
        %v4528 = vunpack.c.l.b16 %v1183
        %v4529 = vunpack.c.h.b16 %v1183
        %v4530 = vunpack.c.l.b16 %v1184
        %v4531 = vunpack.c.h.b16 %v1184
        %v4532 = vunpack.c.l.b16 %v1185
        %v4533 = vunpack.c.h.b16 %v1185
        %v4534 = vunpack.c.l.b16 %v1186
        %v4535 = vunpack.c.h.b16 %v1186
        %v4536 = vunpack.c.l.b16 %v1187
        %v4537 = vunpack.c.h.b16 %v1187
        %v4538 = vunpack.c.l.b16 %v1188
        %v4539 = vunpack.c.h.b16 %v1188
        %v4540 = vunpack.c.l.b16 %v1189
        %v4541 = vunpack.c.h.b16 %v1189
        %v4542 = vunpack.c.l.b16 %v1190
        %v4543 = vunpack.c.h.b16 %v1190
        %v4544 = vunpack.c.l.b16 %v1191
        %v4545 = vunpack.c.h.b16 %v1191
        %v4546 = vunpack.c.l.b16 %v1192
        %v4547 = vunpack.c.h.b16 %v1192
        %v4548 = vunpack.c.l.b16 %v1193
        %v4549 = vunpack.c.h.b16 %v1193
        %v4550 = vunpack.c.l.b16 %v1194
        %v4551 = vunpack.c.h.b16 %v1194
        %v4552 = vunpack.c.l.b16 %v1195
        %v4553 = vunpack.c.h.b16 %v1195
        %v4554 = vunpack.c.l.b16 %v1196
        %v4555 = vunpack.c.h.b16 %v1196
        %v4556 = vunpack.c.l.b16 %v1197
        %v4557 = vunpack.c.h.b16 %v1197
        %v4558 = vunpack.c.l.b16 %v1198
        %v4559 = vunpack.c.h.b16 %v1198
        %v4560 = vunpack.c.l.b16 %v1199
        %v4561 = vunpack.c.h.b16 %v1199
        %v4562 = vunpack.c.l.b16 %v1200
        %v4563 = vunpack.c.h.b16 %v1200
        %v4564 = vunpack.c.l.b16 %v1201
        %v4565 = vunpack.c.h.b16 %v1201
        %v4566 = vunpack.c.l.b16 %v1202
        %v4567 = vunpack.c.h.b16 %v1202
        %v4568 = vunpack.c.l.b16 %v1203
        %v4569 = vunpack.c.h.b16 %v1203
        %v4570 = vunpack.c.l.b16 %v1204
        %v4571 = vunpack.c.h.b16 %v1204
        %v4572 = vunpack.c.l.b16 %v1205
        %v4573 = vunpack.c.h.b16 %v1205
        %v4574 = vunpack.c.l.b16 %v1206
        %v4575 = vunpack.c.h.b16 %v1206
        %v4576 = vunpack.c.l.b16 %v1207
        %v4577 = vunpack.c.h.b16 %v1207
        %v4578 = vunpack.c.l.b16 %v1208
        %v4579 = vunpack.c.h.b16 %v1208
        %v4580 = vunpack.c.l.b16 %v1209
        %v4581 = vunpack.c.h.b16 %v1209
        %v4582 = vunpack.c.l.b16 %v1210
        %v4583 = vunpack.c.h.b16 %v1210
        %v4584 = vunpack.c.l.b16 %v1211
        %v4585 = vunpack.c.h.b16 %v1211
        %v4586 = vunpack.c.l.b16 %v1212
        %v4587 = vunpack.c.h.b16 %v1212
        %v4588 = vunpack.c.l.b16 %v1213
        %v4589 = vunpack.c.h.b16 %v1213
        %v4590 = vunpack.c.l.b16 %v1214
        %v4591 = vunpack.c.h.b16 %v1214
        %v4592 = vunpack.c.l.b16 %v1215
        %v4593 = vunpack.c.h.b16 %v1215
        %v4594 = vunpack.c.l.b16 %v1216
        %v4595 = vunpack.c.h.b16 %v1216
        %v4596 = vunpack.c.l.b16 %v1217
        %v4597 = vunpack.c.h.b16 %v1217
        %v4598 = vunpack.c.l.b16 %v1218
        %v4599 = vunpack.c.h.b16 %v1218
        %v4600 = vunpack.c.l.b16 %v1219
        %v4601 = vunpack.c.h.b16 %v1219
        %v4602 = vunpack.c.l.b16 %v1220
        %v4603 = vunpack.c.h.b16 %v1220
        %v4604 = vunpack.c.l.b16 %v1221
        %v4605 = vunpack.c.h.b16 %v1221
        %v4606 = vunpack.c.l.b16 %v1222
        %v4607 = vunpack.c.h.b16 %v1222
        %v4608 = vunpack.c.l.b16 %v1223
        %v4609 = vunpack.c.h.b16 %v1223
        %v4610 = vunpack.c.l.b16 %v1224
        %v4611 = vunpack.c.h.b16 %v1224
        %v4612 = vunpack.c.l.b16 %v1225
        %v4613 = vunpack.c.h.b16 %v1225
        %v4614 = vunpack.c.l.b16 %v1226
        %v4615 = vunpack.c.h.b16 %v1226
        %v4616 = vunpack.c.l.b16 %v1227
        %v4617 = vunpack.c.h.b16 %v1227
        %v4618 = vunpack.c.l.b16 %v1228
        %v4619 = vunpack.c.h.b16 %v1228
        %v4620 = vunpack.c.l.b16 %v1229
        %v4621 = vunpack.c.h.b16 %v1229
        %v4622 = vunpack.c.l.b16 %v1230
        %v4623 = vunpack.c.h.b16 %v1230
        %v4624 = vunpack.c.l.b16 %v1231
        %v4625 = vunpack.c.h.b16 %v1231
        %v4626 = vunpack.c.l.b16 %v1232
        %v4627 = vunpack.c.h.b16 %v1232
        %v4628 = vunpack.c.l.b16 %v1233
        %v4629 = vunpack.c.h.b16 %v1233
        %v4630 = vunpack.c.l.b16 %v1234
        %v4631 = vunpack.c.h.b16 %v1234
        %v4632 = vunpack.c.l.b16 %v1235
        %v4633 = vunpack.c.h.b16 %v1235
        %v4634 = vunpack.c.l.b16 %v1236
        %v4635 = vunpack.c.h.b16 %v1236
        %v4636 = vunpack.c.l.b16 %v1237
        %v4637 = vunpack.c.h.b16 %v1237
        %v4638 = vunpack.c.l.b16 %v1238
        %v4639 = vunpack.c.h.b16 %v1238
        %v4640 = vunpack.c.l.b16 %v1239
        %v4641 = vunpack.c.h.b16 %v1239
        %v4642 = vunpack.c.l.b16 %v1240
        %v4643 = vunpack.c.h.b16 %v1240
        %v4644 = vunpack.c.l.b16 %v1241
        %v4645 = vunpack.c.h.b16 %v1241
        %v4646 = vunpack.c.l.b16 %v1242
        %v4647 = vunpack.c.h.b16 %v1242
        %v4648 = vunpack.c.l.b16 %v1243
        %v4649 = vunpack.c.h.b16 %v1243
        %v4650 = vunpack.c.l.b16 %v1244
        %v4651 = vunpack.c.h.b16 %v1244
        %v4652 = vunpack.c.l.b16 %v1245
        %v4653 = vunpack.c.h.b16 %v1245
        %v4654 = vunpack.c.l.b16 %v1246
        %v4655 = vunpack.c.h.b16 %v1246
        %v4656 = vunpack.c.l.b16 %v1247
        %v4657 = vunpack.c.h.b16 %v1247
        %v4658 = vunpack.c.l.b16 %v1248
        %v4659 = vunpack.c.h.b16 %v1248
        %v4660 = vunpack.c.l.b16 %v1249
        %v4661 = vunpack.c.h.b16 %v1249
        %v4662 = vunpack.c.l.b16 %v1250
        %v4663 = vunpack.c.h.b16 %v1250
        %v4664 = vunpack.c.l.b16 %v1251
        %v4665 = vunpack.c.h.b16 %v1251
        %v4666 = vunpack.c.l.b16 %v1252
        %v4667 = vunpack.c.h.b16 %v1252
        %v4668 = vunpack.c.l.b16 %v1253
        %v4669 = vunpack.c.h.b16 %v1253
        %v4670 = vunpack.c.l.b16 %v1254
        %v4671 = vunpack.c.h.b16 %v1254
        %v4672 = vunpack.c.l.b16 %v1255
        %v4673 = vunpack.c.h.b16 %v1255
        %v4674 = vunpack.c.l.b16 %v1256
        %v4675 = vunpack.c.h.b16 %v1256
        %v4676 = vunpack.c.l.b16 %v1257
        %v4677 = vunpack.c.h.b16 %v1257
        %v4678 = vunpack.c.l.b16 %v1258
        %v4679 = vunpack.c.h.b16 %v1258
        %v4680 = vunpack.c.l.b16 %v1259
        %v4681 = vunpack.c.h.b16 %v1259
        %v4682 = vunpack.c.l.b16 %v1260
        %v4683 = vunpack.c.h.b16 %v1260
        %v4684 = vunpack.c.l.b16 %v1261
        %v4685 = vunpack.c.h.b16 %v1261
        %v4686 = vunpack.c.l.b16 %v1262
        %v4687 = vunpack.c.h.b16 %v1262
        %v4688 = vunpack.c.l.b16 %v1263
        %v4689 = vunpack.c.h.b16 %v1263
        %v4690 = vunpack.c.l.b16 %v1264
        %v4691 = vunpack.c.h.b16 %v1264
        %v4692 = vunpack.c.l.b16 %v1265
        %v4693 = vunpack.c.h.b16 %v1265
        %v4694 = vunpack.c.l.b16 %v1266
        %v4695 = vunpack.c.h.b16 %v1266
        %v4696 = vunpack.c.l.b16 %v1267
        %v4697 = vunpack.c.h.b16 %v1267
        %v4698 = vunpack.c.l.b16 %v1268
        %v4699 = vunpack.c.h.b16 %v1268
        %v4700 = vunpack.c.l.b16 %v1269
        %v4701 = vunpack.c.h.b16 %v1269
        %v4702 = vunpack.c.l.b16 %v1270
        %v4703 = vunpack.c.h.b16 %v1270
        %v4704 = vunpack.c.l.b16 %v1271
        %v4705 = vunpack.c.h.b16 %v1271
        %v4706 = vunpack.c.l.b16 %v1272
        %v4707 = vunpack.c.h.b16 %v1272
        %v4708 = vunpack.c.l.b16 %v1273
        %v4709 = vunpack.c.h.b16 %v1273
        %v4710 = vunpack.c.l.b16 %v1274
        %v4711 = vunpack.c.h.b16 %v1274
        %v4712 = vunpack.c.l.b16 %v1275
        %v4713 = vunpack.c.h.b16 %v1275
        %v4714 = vunpack.c.l.b16 %v1276
        %v4715 = vunpack.c.h.b16 %v1276
        %v4716 = vunpack.c.l.b16 %v1277
        %v4717 = vunpack.c.h.b16 %v1277
        %v4718 = vunpack.c.l.b16 %v1278
        %v4719 = vunpack.c.h.b16 %v1278
        %v4720 = vunpack.c.l.b16 %v1279
        %v4721 = vunpack.c.h.b16 %v1279
        %v4722 = vunpack.c.l.b16 %v1280
        %v4723 = vunpack.c.h.b16 %v1280
        %v4724 = vunpack.c.l.b16 %v1281
        %v4725 = vunpack.c.h.b16 %v1281
        %v4726 = vunpack.c.l.b16 %v1282
        %v4727 = vunpack.c.h.b16 %v1282
        %v4728 = vunpack.c.l.b16 %v1283
        %v4729 = vunpack.c.h.b16 %v1283
        %v4730 = vunpack.c.l.b16 %v1284
        %v4731 = vunpack.c.h.b16 %v1284
        %v4732 = vunpack.c.l.b16 %v1285
        %v4733 = vunpack.c.h.b16 %v1285
        %v4734 = vunpack.c.l.b16 %v1286
        %v4735 = vunpack.c.h.b16 %v1286
        %v4736 = vunpack.c.l.b16 %v1287
        %v4737 = vunpack.c.h.b16 %v1287
        %v4738 = vunpack.c.l.b16 %v1288
        %v4739 = vunpack.c.h.b16 %v1288
        %v4740 = vunpack.c.l.b16 %v1289
        %v4741 = vunpack.c.h.b16 %v1289
        %v4742 = vunpack.c.l.b16 %v1290
        %v4743 = vunpack.c.h.b16 %v1290
        %v4744 = vunpack.c.l.b16 %v1291
        %v4745 = vunpack.c.h.b16 %v1291
        %v4746 = vunpack.c.l.b16 %v1292
        %v4747 = vunpack.c.h.b16 %v1292
        %v4748 = vunpack.c.l.b16 %v1293
        %v4749 = vunpack.c.h.b16 %v1293
        %v4750 = vunpack.c.l.b16 %v1294
        %v4751 = vunpack.c.h.b16 %v1294
        %v4752 = vunpack.c.l.b16 %v1295
        %v4753 = vunpack.c.h.b16 %v1295
        %v4754 = vunpack.c.l.b16 %v1296
        %v4755 = vunpack.c.h.b16 %v1296
        %v4756 = vunpack.c.l.b16 %v1297
        %v4757 = vunpack.c.h.b16 %v1297
        %v4758 = vunpack.c.l.b16 %v1298
        %v4759 = vunpack.c.h.b16 %v1298
        %v4760 = vunpack.c.l.b16 %v1299
        %v4761 = vunpack.c.h.b16 %v1299
        %v4762 = vunpack.c.l.b16 %v1300
        %v4763 = vunpack.c.h.b16 %v1300
        %v4764 = vunpack.c.l.b16 %v1301
        %v4765 = vunpack.c.h.b16 %v1301
        %v4766 = vunpack.c.l.b16 %v1302
        %v4767 = vunpack.c.h.b16 %v1302
        %v4768 = vunpack.c.l.b16 %v1303
        %v4769 = vunpack.c.h.b16 %v1303
        %v4770 = vunpack.c.l.b16 %v1304
        %v4771 = vunpack.c.h.b16 %v1304
        %v4772 = vunpack.c.l.b16 %v1305
        %v4773 = vunpack.c.h.b16 %v1305
        %v4774 = vunpack.c.l.b16 %v1306
        %v4775 = vunpack.c.h.b16 %v1306
        %v4776 = vunpack.c.l.b16 %v1307
        %v4777 = vunpack.c.h.b16 %v1307
        %v4778 = vunpack.c.l.b16 %v1308
        %v4779 = vunpack.c.h.b16 %v1308
        %v4780 = vunpack.c.l.b16 %v1309
        %v4781 = vunpack.c.h.b16 %v1309
        %v4782 = vunpack.c.l.b16 %v1310
        %v4783 = vunpack.c.h.b16 %v1310
        %v4784 = vunpack.c.l.b16 %v1311
        %v4785 = vunpack.c.h.b16 %v1311
        %v4786 = vunpack.c.l.b16 %v1312
        %v4787 = vunpack.c.h.b16 %v1312
        %v4788 = vunpack.c.l.b16 %v1313
        %v4789 = vunpack.c.h.b16 %v1313
        %v4790 = vunpack.c.l.b16 %v1314
        %v4791 = vunpack.c.h.b16 %v1314
        %v4792 = vunpack.c.l.b16 %v1315
        %v4793 = vunpack.c.h.b16 %v1315
        %v4794 = vunpack.c.l.b16 %v1316
        %v4795 = vunpack.c.h.b16 %v1316
        %v4796 = vunpack.c.l.b16 %v1317
        %v4797 = vunpack.c.h.b16 %v1317
        %v4798 = vunpack.c.l.b16 %v1318
        %v4799 = vunpack.c.h.b16 %v1318
        %v4800 = vunpack.c.l.b16 %v1319
        %v4801 = vunpack.c.h.b16 %v1319
        %v4802 = vunpack.c.l.b16 %v1320
        %v4803 = vunpack.c.h.b16 %v1320
        %v4804 = vunpack.c.l.b16 %v1321
        %v4805 = vunpack.c.h.b16 %v1321
        %v4806 = vunpack.c.l.b16 %v1322
        %v4807 = vunpack.c.h.b16 %v1322
        %v4808 = vunpack.c.l.b16 %v1323
        %v4809 = vunpack.c.h.b16 %v1323
        %v4810 = vunpack.c.l.b16 %v1324
        %v4811 = vunpack.c.h.b16 %v1324
        %v4812 = vunpack.c.l.b16 %v1325
        %v4813 = vunpack.c.h.b16 %v1325
        %v4814 = vunpack.c.l.b16 %v1326
        %v4815 = vunpack.c.h.b16 %v1326
        %v4816 = vunpack.c.l.b16 %v1327
        %v4817 = vunpack.c.h.b16 %v1327
        %v4818 = vunpack.c.l.b16 %v1328
        %v4819 = vunpack.c.h.b16 %v1328
        %v4820 = vunpack.c.l.b16 %v1329
        %v4821 = vunpack.c.h.b16 %v1329
        %v4822 = vunpack.c.l.b16 %v1330
        %v4823 = vunpack.c.h.b16 %v1330
        %v4824 = vunpack.c.l.b16 %v1331
        %v4825 = vunpack.c.h.b16 %v1331
        %v4826 = vunpack.c.l.b16 %v1332
        %v4827 = vunpack.c.h.b16 %v1332
        %v4828 = vunpack.c.l.b16 %v1333
        %v4829 = vunpack.c.h.b16 %v1333
        %v4830 = vunpack.c.l.b16 %v1334
        %v4831 = vunpack.c.h.b16 %v1334
        %v4832 = vunpack.c.l.b16 %v1335
        %v4833 = vunpack.c.h.b16 %v1335
        %v4834 = vunpack.c.l.b16 %v1336
        %v4835 = vunpack.c.h.b16 %v1336
        %v4836 = vunpack.c.l.b16 %v1337
        %v4837 = vunpack.c.h.b16 %v1337
        %v4838 = vunpack.c.l.b16 %v1338
        %v4839 = vunpack.c.h.b16 %v1338
        %v4840 = vunpack.c.l.b16 %v1339
        %v4841 = vunpack.c.h.b16 %v1339
        %v4842 = vunpack.c.l.b16 %v1340
        %v4843 = vunpack.c.h.b16 %v1340
        %v4844 = vunpack.c.l.b16 %v1341
        %v4845 = vunpack.c.h.b16 %v1341
        %v4846 = vunpack.c.l.b16 %v1342
        %v4847 = vunpack.c.h.b16 %v1342
        %v4848 = vunpack.c.l.b16 %v1343
        %v4849 = vunpack.c.h.b16 %v1343
        %v4850 = vunpack.c.l.b16 %v1344
        %v4851 = vunpack.c.h.b16 %v1344
        %v4852 = vunpack.c.l.b16 %v1345
        %v4853 = vunpack.c.h.b16 %v1345
        %v4854 = vunpack.c.l.b16 %v1346
        %v4855 = vunpack.c.h.b16 %v1346
        %v4856 = vunpack.c.l.b16 %v1347
        %v4857 = vunpack.c.h.b16 %v1347
        %v4858 = vunpack.c.l.b16 %v1348
        %v4859 = vunpack.c.h.b16 %v1348
        %v4860 = vunpack.c.l.b16 %v1349
        %v4861 = vunpack.c.h.b16 %v1349
        %v4862 = vunpack.c.l.b16 %v1350
        %v4863 = vunpack.c.h.b16 %v1350
        %v4864 = vunpack.c.l.b16 %v1351
        %v4865 = vunpack.c.h.b16 %v1351
        %v4866 = vunpack.c.l.b16 %v1352
        %v4867 = vunpack.c.h.b16 %v1352
        %v4868 = vunpack.c.l.b16 %v1353
        %v4869 = vunpack.c.h.b16 %v1353
        %v4870 = vunpack.c.l.b16 %v1354
        %v4871 = vunpack.c.h.b16 %v1354
        %v4872 = vunpack.c.l.b16 %v1355
        %v4873 = vunpack.c.h.b16 %v1355
        %v4874 = vunpack.c.l.b16 %v1356
        %v4875 = vunpack.c.h.b16 %v1356
        %v4876 = vunpack.c.l.b16 %v1357
        %v4877 = vunpack.c.h.b16 %v1357
        %v4878 = vunpack.c.l.b16 %v1358
        %v4879 = vunpack.c.h.b16 %v1358
        %v4880 = vunpack.c.l.b16 %v1359
        %v4881 = vunpack.c.h.b16 %v1359
        %v4882 = vunpack.c.l.b16 %v1360
        %v4883 = vunpack.c.h.b16 %v1360
        %v4884 = vunpack.c.l.b16 %v1361
        %v4885 = vunpack.c.h.b16 %v1361
        %v4886 = vunpack.c.l.b16 %v1362
        %v4887 = vunpack.c.h.b16 %v1362
        %v4888 = vunpack.c.l.b16 %v1363
        %v4889 = vunpack.c.h.b16 %v1363
        %v4890 = vunpack.c.l.b16 %v1364
        %v4891 = vunpack.c.h.b16 %v1364
        %v4892 = vunpack.c.l.b16 %v1365
        %v4893 = vunpack.c.h.b16 %v1365
        %v4894 = vunpack.c.l.b16 %v1366
        %v4895 = vunpack.c.h.b16 %v1366
        %v4896 = vunpack.c.l.b16 %v1367
        %v4897 = vunpack.c.h.b16 %v1367
        %v4898 = vunpack.c.l.b16 %v1368
        %v4899 = vunpack.c.h.b16 %v1368
        %v4900 = vunpack.c.l.b16 %v1369
        %v4901 = vunpack.c.h.b16 %v1369
        %v4902 = vunpack.c.l.b16 %v1370
        %v4903 = vunpack.c.h.b16 %v1370
        %v4904 = vunpack.c.l.b16 %v1371
        %v4905 = vunpack.c.h.b16 %v1371
        %v4906 = vunpack.c.l.b16 %v1372
        %v4907 = vunpack.c.h.b16 %v1372
        %v4908 = vunpack.c.l.b16 %v1373
        %v4909 = vunpack.c.h.b16 %v1373
        %v4910 = vunpack.c.l.b16 %v1374
        %v4911 = vunpack.c.h.b16 %v1374
        %v4912 = vunpack.c.l.b16 %v1375
        %v4913 = vunpack.c.h.b16 %v1375
        %v4914 = vunpack.c.l.b16 %v1376
        %v4915 = vunpack.c.h.b16 %v1376
        %v4916 = vunpack.c.l.b16 %v1377
        %v4917 = vunpack.c.h.b16 %v1377
        %v4918 = vunpack.c.l.b16 %v1378
        %v4919 = vunpack.c.h.b16 %v1378
        %v4920 = vunpack.c.l.b16 %v1379
        %v4921 = vunpack.c.h.b16 %v1379
        %v4922 = vunpack.c.l.b16 %v1380
        %v4923 = vunpack.c.h.b16 %v1380
        %v4924 = vunpack.c.l.b16 %v1381
        %v4925 = vunpack.c.h.b16 %v1381
        %v4926 = vunpack.c.l.b16 %v1382
        %v4927 = vunpack.c.h.b16 %v1382
        %v4928 = vunpack.c.l.b16 %v1383
        %v4929 = vunpack.c.h.b16 %v1383
        %v4930 = vunpack.c.l.b16 %v1384
        %v4931 = vunpack.c.h.b16 %v1384
        %v4932 = vunpack.c.l.b16 %v1385
        %v4933 = vunpack.c.h.b16 %v1385
        %v4934 = vunpack.c.l.b16 %v1386
        %v4935 = vunpack.c.h.b16 %v1386
        %v4936 = vunpack.c.l.b16 %v1387
        %v4937 = vunpack.c.h.b16 %v1387
        %v4938 = vunpack.c.l.b16 %v1388
        %v4939 = vunpack.c.h.b16 %v1388
        %v4940 = vunpack.c.l.b16 %v1389
        %v4941 = vunpack.c.h.b16 %v1389
        %v4942 = vunpack.c.l.b16 %v1390
        %v4943 = vunpack.c.h.b16 %v1390
        %v4944 = vunpack.c.l.b16 %v1391
        %v4945 = vunpack.c.h.b16 %v1391
        %v4946 = vunpack.c.l.b16 %v1392
        %v4947 = vunpack.c.h.b16 %v1392
        %v4948 = vunpack.c.l.b16 %v1393
        %v4949 = vunpack.c.h.b16 %v1393
        %v4950 = vunpack.c.l.b16 %v1394
        %v4951 = vunpack.c.h.b16 %v1394
        %v4952 = vunpack.c.l.b16 %v1395
        %v4953 = vunpack.c.h.b16 %v1395
        %v4954 = vunpack.c.l.b16 %v1396
        %v4955 = vunpack.c.h.b16 %v1396
        %v4956 = vunpack.c.l.b16 %v1397
        %v4957 = vunpack.c.h.b16 %v1397
        %v4958 = vunpack.c.l.b16 %v1398
        %v4959 = vunpack.c.h.b16 %v1398
        %v4960 = vunpack.c.l.b16 %v1399
        %v4961 = vunpack.c.h.b16 %v1399
        %v4962 = vunpack.c.l.b16 %v1400
        %v4963 = vunpack.c.h.b16 %v1400
        %v4964 = vunpack.c.l.b16 %v1401
        %v4965 = vunpack.c.h.b16 %v1401
        %v4966 = vunpack.c.l.b16 %v1402
        %v4967 = vunpack.c.h.b16 %v1402
        %v4968 = vunpack.c.l.b16 %v1403
        %v4969 = vunpack.c.h.b16 %v1403
        %v4970 = vunpack.c.l.b16 %v1404
        %v4971 = vunpack.c.h.b16 %v1404
        %v4972 = vunpack.c.l.b16 %v1405
        %v4973 = vunpack.c.h.b16 %v1405
        %v4974 = vunpack.c.l.b16 %v1406
        %v4975 = vunpack.c.h.b16 %v1406
        %v4976 = vunpack.c.l.b16 %v1407
        %v4977 = vunpack.c.h.b16 %v1407
        %v4978 = vunpack.c.l.b16 %v1408
        %v4979 = vunpack.c.h.b16 %v1408
        %v4980 = vunpack.c.l.b16 %v1409
        %v4981 = vunpack.c.h.b16 %v1409
        %v4982 = vunpack.c.l.b16 %v1410
        %v4983 = vunpack.c.h.b16 %v1410
        %v4984 = vunpack.c.l.b16 %v1411
        %v4985 = vunpack.c.h.b16 %v1411
        %v4986 = vunpack.c.l.b16 %v1412
        %v4987 = vunpack.c.h.b16 %v1412
        %v4988 = vunpack.c.l.b16 %v1413
        %v4989 = vunpack.c.h.b16 %v1413
        %v4990 = vunpack.c.l.b16 %v1414
        %v4991 = vunpack.c.h.b16 %v1414
        %v4992 = vunpack.c.l.b16 %v1415
        %v4993 = vunpack.c.h.b16 %v1415
        %v4994 = vunpack.c.l.b16 %v1416
        %v4995 = vunpack.c.h.b16 %v1416
        %v4996 = vunpack.c.l.b16 %v1417
        %v4997 = vunpack.c.h.b16 %v1417
        %v4998 = vunpack.c.l.b16 %v1418
        %v4999 = vunpack.c.h.b16 %v1418
        %v5000 = vunpack.c.l.b16 %v1419
        %v5001 = vunpack.c.h.b16 %v1419
        %v5002 = vunpack.c.l.b16 %v1420
        %v5003 = vunpack.c.h.b16 %v1420
        %v5004 = vunpack.c.l.b16 %v1421
        %v5005 = vunpack.c.h.b16 %v1421
        %v5006 = vunpack.c.l.b16 %v1422
        %v5007 = vunpack.c.h.b16 %v1422
        %v5008 = vunpack.c.l.b16 %v1423
        %v5009 = vunpack.c.h.b16 %v1423
        %v5010 = vunpack.c.l.b16 %v1424
        %v5011 = vunpack.c.h.b16 %v1424
        %v5012 = vunpack.c.l.b16 %v1425
        %v5013 = vunpack.c.h.b16 %v1425
        %v5014 = vunpack.c.l.b16 %v1426
        %v5015 = vunpack.c.h.b16 %v1426
        %v5016 = vunpack.c.l.b16 %v1427
        %v5017 = vunpack.c.h.b16 %v1427
        %v5018 = vunpack.c.l.b16 %v1428
        %v5019 = vunpack.c.h.b16 %v1428
        %v5020 = vunpack.c.l.b16 %v1429
        %v5021 = vunpack.c.h.b16 %v1429
        %v5022 = vunpack.c.l.b16 %v1430
        %v5023 = vunpack.c.h.b16 %v1430
        %v5024 = vunpack.c.l.b16 %v1431
        %v5025 = vunpack.c.h.b16 %v1431
        %v5026 = vunpack.c.l.b16 %v1432
        %v5027 = vunpack.c.h.b16 %v1432
        %v5028 = vunpack.c.l.b16 %v1433
        %v5029 = vunpack.c.h.b16 %v1433
        %v5030 = vunpack.c.l.b16 %v1434
        %v5031 = vunpack.c.h.b16 %v1434
        %v5032 = vunpack.c.l.b16 %v1435
        %v5033 = vunpack.c.h.b16 %v1435
        %v5034 = vunpack.c.l.b16 %v1436
        %v5035 = vunpack.c.h.b16 %v1436
        %v5036 = vunpack.c.l.b16 %v1437
        %v5037 = vunpack.c.h.b16 %v1437
        %v5038 = vunpack.c.l.b16 %v1438
        %v5039 = vunpack.c.h.b16 %v1438
        %v5040 = vunpack.c.l.b16 %v1439
        %v5041 = vunpack.c.h.b16 %v1439
        %v5042 = vunpack.c.l.b16 %v1440
        %v5043 = vunpack.c.h.b16 %v1440
        %v5044 = vunpack.c.l.b16 %v1441
        %v5045 = vunpack.c.h.b16 %v1441
        %v5046 = vunpack.c.l.b16 %v1442
        %v5047 = vunpack.c.h.b16 %v1442
        %v5048 = vunpack.c.l.b16 %v1443
        %v5049 = vunpack.c.h.b16 %v1443
        %v5050 = vunpack.c.l.b16 %v1444
        %v5051 = vunpack.c.h.b16 %v1444
        %v5052 = vunpack.c.l.b16 %v1445
        %v5053 = vunpack.c.h.b16 %v1445
        %v5054 = vunpack.c.l.b16 %v1446
        %v5055 = vunpack.c.h.b16 %v1446
        %v5056 = vunpack.c.l.b16 %v1447
        %v5057 = vunpack.c.h.b16 %v1447
        %v5058 = vunpack.c.l.b16 %v1448
        %v5059 = vunpack.c.h.b16 %v1448
        %v5060 = vunpack.c.l.b16 %v1449
        %v5061 = vunpack.c.h.b16 %v1449
        %v5062 = vunpack.c.l.b16 %v1450
        %v5063 = vunpack.c.h.b16 %v1450
        %v5064 = vunpack.c.l.b16 %v1451
        %v5065 = vunpack.c.h.b16 %v1451
        %v5066 = vunpack.c.l.b16 %v1452
        %v5067 = vunpack.c.h.b16 %v1452
        %v5068 = vunpack.c.l.b16 %v1453
        %v5069 = vunpack.c.h.b16 %v1453
        %v5070 = vunpack.c.l.b16 %v1454
        %v5071 = vunpack.c.h.b16 %v1454
        %v5072 = vunpack.c.l.b16 %v1455
        %v5073 = vunpack.c.h.b16 %v1455
        %v5074 = vunpack.c.l.b16 %v1456
        %v5075 = vunpack.c.h.b16 %v1456
        %v5076 = vunpack.c.l.b16 %v1457
        %v5077 = vunpack.c.h.b16 %v1457
        %v5078 = vunpack.c.l.b16 %v1458
        %v5079 = vunpack.c.h.b16 %v1458
        %v5080 = vunpack.c.l.b16 %v1459
        %v5081 = vunpack.c.h.b16 %v1459
        %v5082 = vunpack.c.l.b16 %v1460
        %v5083 = vunpack.c.h.b16 %v1460
        %v5084 = vunpack.c.l.b16 %v1461
        %v5085 = vunpack.c.h.b16 %v1461
        %v5086 = vunpack.c.l.b16 %v1462
        %v5087 = vunpack.c.h.b16 %v1462
        %v5088 = vunpack.c.l.b16 %v1463
        %v5089 = vunpack.c.h.b16 %v1463
        %v5090 = vunpack.c.l.b16 %v1464
        %v5091 = vunpack.c.h.b16 %v1464
        %v5092 = vunpack.c.l.b16 %v1465
        %v5093 = vunpack.c.h.b16 %v1465
        %v5094 = vunpack.c.l.b16 %v1466
        %v5095 = vunpack.c.h.b16 %v1466
        %v5096 = vunpack.c.l.b16 %v1467
        %v5097 = vunpack.c.h.b16 %v1467
        %v5098 = vunpack.c.l.b16 %v1468
        %v5099 = vunpack.c.h.b16 %v1468
        %v5100 = vunpack.c.l.b16 %v1469
        %v5101 = vunpack.c.h.b16 %v1469
        %v5102 = vunpack.c.l.b16 %v1470
        %v5103 = vunpack.c.h.b16 %v1470
        %v5104 = vunpack.c.l.b16 %v1471
        %v5105 = vunpack.c.h.b16 %v1471
        %v5106 = vunpack.c.l.b16 %v1472
        %v5107 = vunpack.c.h.b16 %v1472
        %v5108 = vunpack.c.l.b16 %v1473
        %v5109 = vunpack.c.h.b16 %v1473
        %v5110 = vunpack.c.l.b16 %v1474
        %v5111 = vunpack.c.h.b16 %v1474
        %v5112 = vunpack.c.l.b16 %v1475
        %v5113 = vunpack.c.h.b16 %v1475
        %v5114 = vunpack.c.l.b16 %v1476
        %v5115 = vunpack.c.h.b16 %v1476
        %v5116 = vunpack.c.l.b16 %v1477
        %v5117 = vunpack.c.h.b16 %v1477
        %v5118 = vunpack.c.l.b16 %v1478
        %v5119 = vunpack.c.h.b16 %v1478
        %v5120 = vunpack.c.l.b16 %v1479
        %v5121 = vunpack.c.h.b16 %v1479
        %v5122 = vunpack.c.l.b16 %v1480
        %v5123 = vunpack.c.h.b16 %v1480
        %v5124 = vunpack.c.l.b16 %v1481
        %v5125 = vunpack.c.h.b16 %v1481
        %v5126 = vunpack.c.l.b16 %v1482
        %v5127 = vunpack.c.h.b16 %v1482
        %v5128 = vunpack.c.l.b16 %v1483
        %v5129 = vunpack.c.h.b16 %v1483
        %v5130 = vunpack.c.l.b16 %v1484
        %v5131 = vunpack.c.h.b16 %v1484
        %v5132 = vunpack.c.l.b16 %v1485
        %v5133 = vunpack.c.h.b16 %v1485
        %v5134 = vunpack.c.l.b16 %v1486
        %v5135 = vunpack.c.h.b16 %v1486
        %v5136 = vunpack.c.l.b16 %v1487
        %v5137 = vunpack.c.h.b16 %v1487
        %v5138 = vunpack.c.l.b16 %v1488
        %v5139 = vunpack.c.h.b16 %v1488
        %v5140 = vunpack.c.l.b16 %v1489
        %v5141 = vunpack.c.h.b16 %v1489
        %v5142 = vunpack.c.l.b16 %v1490
        %v5143 = vunpack.c.h.b16 %v1490
        %v5144 = vunpack.c.l.b16 %v1491
        %v5145 = vunpack.c.h.b16 %v1491
        %v5146 = vunpack.c.l.b16 %v1492
        %v5147 = vunpack.c.h.b16 %v1492
        %v5148 = vunpack.c.l.b16 %v1493
        %v5149 = vunpack.c.h.b16 %v1493
        %v5150 = vunpack.c.l.b16 %v1494
        %v5151 = vunpack.c.h.b16 %v1494
        %v5152 = vunpack.c.l.b16 %v1495
        %v5153 = vunpack.c.h.b16 %v1495
        %v5154 = vunpack.c.l.b16 %v1496
        %v5155 = vunpack.c.h.b16 %v1496
        %v5156 = vunpack.c.l.b16 %v1497
        %v5157 = vunpack.c.h.b16 %v1497
        %v5158 = vunpack.c.l.b16 %v1498
        %v5159 = vunpack.c.h.b16 %v1498
        %v5160 = vunpack.c.l.b16 %v1499
        %v5161 = vunpack.c.h.b16 %v1499
        %v5162 = vunpack.c.l.b16 %v1500
        %v5163 = vunpack.c.h.b16 %v1500
        %v5164 = vunpack.c.l.b16 %v1501
        %v5165 = vunpack.c.h.b16 %v1501
        %v5166 = vunpack.c.l.b16 %v1502
        %v5167 = vunpack.c.h.b16 %v1502
        %v5168 = vunpack.c.l.b16 %v1503
        %v5169 = vunpack.c.h.b16 %v1503
        %v5170 = vunpack.c.l.b16 %v1504
        %v5171 = vunpack.c.h.b16 %v1504
        %v5172 = vunpack.c.l.b16 %v1505
        %v5173 = vunpack.c.h.b16 %v1505
        %v5174 = vunpack.c.l.b16 %v1506
        %v5175 = vunpack.c.h.b16 %v1506
        %v5176 = vunpack.c.l.b16 %v1507
        %v5177 = vunpack.c.h.b16 %v1507
        %v5178 = vunpack.c.l.b16 %v1508
        %v5179 = vunpack.c.h.b16 %v1508
        %v5180 = vunpack.c.l.b16 %v1509
        %v5181 = vunpack.c.h.b16 %v1509
        %v5182 = vunpack.c.l.b16 %v1510
        %v5183 = vunpack.c.h.b16 %v1510
        %v5184 = vunpack.c.l.b16 %v1511
        %v5185 = vunpack.c.h.b16 %v1511
        %v5186 = vunpack.c.l.b16 %v1512
        %v5187 = vunpack.c.h.b16 %v1512
        %v5188 = vunpack.c.l.b16 %v1513
        %v5189 = vunpack.c.h.b16 %v1513
        %v5190 = vunpack.c.l.b16 %v1514
        %v5191 = vunpack.c.h.b16 %v1514
        %v5192 = vunpack.c.l.b16 %v1515
        %v5193 = vunpack.c.h.b16 %v1515
        %v5194 = vunpack.c.l.b16 %v1516
        %v5195 = vunpack.c.h.b16 %v1516
        %v5196 = vunpack.c.l.b16 %v1517
        %v5197 = vunpack.c.h.b16 %v1517
        %v5198 = vunpack.c.l.b16 %v1518
        %v5199 = vunpack.c.h.b16 %v1518
        %v5200 = vunpack.c.l.b16 %v1519
        %v5201 = vunpack.c.h.b16 %v1519
        %v5202 = vunpack.c.l.b16 %v1520
        %v5203 = vunpack.c.h.b16 %v1520
        %v5204 = vunpack.c.l.b16 %v1521
        %v5205 = vunpack.c.h.b16 %v1521
        %v5206 = vunpack.c.l.b16 %v1522
        %v5207 = vunpack.c.h.b16 %v1522
        %v5208 = vunpack.c.l.b16 %v1523
        %v5209 = vunpack.c.h.b16 %v1523
        %v5210 = vunpack.c.l.b16 %v1524
        %v5211 = vunpack.c.h.b16 %v1524
        %v5212 = vunpack.c.l.b16 %v1525
        %v5213 = vunpack.c.h.b16 %v1525
        %v5214 = vunpack.c.l.b16 %v1526
        %v5215 = vunpack.c.h.b16 %v1526
        %v5216 = vunpack.c.l.b16 %v1527
        %v5217 = vunpack.c.h.b16 %v1527
        %v5218 = vunpack.c.l.b16 %v1528
        %v5219 = vunpack.c.h.b16 %v1528
        %v5220 = vunpack.c.l.b16 %v1529
        %v5221 = vunpack.c.h.b16 %v1529
        %v5222 = vunpack.c.l.b16 %v1530
        %v5223 = vunpack.c.h.b16 %v1530
        %v5224 = vunpack.c.l.b16 %v1531
        %v5225 = vunpack.c.h.b16 %v1531
        %v5226 = vunpack.c.l.b16 %v1532
        %v5227 = vunpack.c.h.b16 %v1532
        %v5228 = vunpack.c.l.b16 %v1533
        %v5229 = vunpack.c.h.b16 %v1533
        %v5230 = vunpack.c.l.b16 %v1534
        %v5231 = vunpack.c.h.b16 %v1534
        %v5232 = vunpack.c.l.b16 %v1535
        %v5233 = vunpack.c.h.b16 %v1535
        %v5234 = vunpack.c.l.b16 %v1536
        %v5235 = vunpack.c.h.b16 %v1536
        %v5236 = vunpack.c.l.b16 %v1537
        %v5237 = vunpack.c.h.b16 %v1537
        %v5238 = vunpack.c.l.b16 %v1538
        %v5239 = vunpack.c.h.b16 %v1538
        %v5240 = vunpack.c.l.b16 %v1539
        %v5241 = vunpack.c.h.b16 %v1539
        %v5242 = vunpack.c.l.b16 %v1540
        %v5243 = vunpack.c.h.b16 %v1540
        %v5244 = vunpack.c.l.b16 %v1541
        %v5245 = vunpack.c.h.b16 %v1541
        %v5246 = vunpack.c.l.b16 %v1542
        %v5247 = vunpack.c.h.b16 %v1542
        %v5248 = vunpack.c.l.b16 %v1543
        %v5249 = vunpack.c.h.b16 %v1543
        %v5250 = vunpack.c.l.b16 %v1544
        %v5251 = vunpack.c.h.b16 %v1544
        %v5252 = vunpack.c.l.b16 %v1545
        %v5253 = vunpack.c.h.b16 %v1545
        %v5254 = vunpack.c.l.b16 %v1546
        %v5255 = vunpack.c.h.b16 %v1546
        %v5256 = vunpack.c.l.b16 %v1547
        %v5257 = vunpack.c.h.b16 %v1547
        %v5258 = vunpack.c.l.b16 %v1548
        %v5259 = vunpack.c.h.b16 %v1548
        %v5260 = vunpack.c.l.b16 %v1549
        %v5261 = vunpack.c.h.b16 %v1549
        %v5262 = vunpack.c.l.b16 %v1550
        %v5263 = vunpack.c.h.b16 %v1550
        %v5264 = vunpack.c.l.b16 %v1551
        %v5265 = vunpack.c.h.b16 %v1551
        %v5266 = vunpack.c.l.b16 %v1552
        %v5267 = vunpack.c.h.b16 %v1552
        %v5268 = vunpack.c.l.b16 %v1553
        %v5269 = vunpack.c.h.b16 %v1553
        %v5270 = vunpack.c.l.b16 %v1554
        %v5271 = vunpack.c.h.b16 %v1554
        %v5272 = vunpack.c.l.b16 %v1555
        %v5273 = vunpack.c.h.b16 %v1555
        %v5274 = vunpack.c.l.b16 %v1556
        %v5275 = vunpack.c.h.b16 %v1556
        %v5276 = vunpack.c.l.b16 %v1557
        %v5277 = vunpack.c.h.b16 %v1557
        %v5278 = vunpack.c.l.b16 %v1558
        %v5279 = vunpack.c.h.b16 %v1558
        %v5280 = vunpack.c.l.b16 %v1559
        %v5281 = vunpack.c.h.b16 %v1559
        %v5282 = vunpack.c.l.b16 %v1560
        %v5283 = vunpack.c.h.b16 %v1560
        %v5284 = vunpack.c.l.b16 %v1561
        %v5285 = vunpack.c.h.b16 %v1561
        %v5286 = vunpack.c.l.b16 %v1562
        %v5287 = vunpack.c.h.b16 %v1562
        %v5288 = vunpack.c.l.b16 %v1563
        %v5289 = vunpack.c.h.b16 %v1563
        %v5290 = vunpack.c.l.b16 %v1564
        %v5291 = vunpack.c.h.b16 %v1564
        %v5292 = vunpack.c.l.b16 %v1565
        %v5293 = vunpack.c.h.b16 %v1565
        %v5294 = vunpack.c.l.b16 %v1566
        %v5295 = vunpack.c.h.b16 %v1566
        %v5296 = vunpack.c.l.b16 %v1567
        %v5297 = vunpack.c.h.b16 %v1567
        %v5298 = vunpack.c.l.b16 %v1568
        %v5299 = vunpack.c.h.b16 %v1568
        %v5300 = vunpack.c.l.b16 %v1569
        %v5301 = vunpack.c.h.b16 %v1569
        %v5302 = vunpack.c.l.b16 %v1570
        %v5303 = vunpack.c.h.b16 %v1570
        %v5304 = vunpack.c.l.b16 %v1571
        %v5305 = vunpack.c.h.b16 %v1571
        %v5306 = vunpack.c.l.b16 %v1572
        %v5307 = vunpack.c.h.b16 %v1572
        %v5308 = vunpack.c.l.b16 %v1573
        %v5309 = vunpack.c.h.b16 %v1573
        %v5310 = vunpack.c.l.b16 %v1574
        %v5311 = vunpack.c.h.b16 %v1574
        %v5312 = vunpack.c.l.b16 %v1575
        %v5313 = vunpack.c.h.b16 %v1575
        %v5314 = vunpack.c.l.b16 %v1576
        %v5315 = vunpack.c.h.b16 %v1576
        %v5316 = vunpack.c.l.b16 %v1577
        %v5317 = vunpack.c.h.b16 %v1577
        %v5318 = vunpack.c.l.b16 %v1578
        %v5319 = vunpack.c.h.b16 %v1578
        %v5320 = vunpack.c.l.b16 %v1579
        %v5321 = vunpack.c.h.b16 %v1579
        %v5322 = vunpack.c.l.b16 %v1580
        %v5323 = vunpack.c.h.b16 %v1580
        %v5324 = vunpack.c.l.b16 %v1581
        %v5325 = vunpack.c.h.b16 %v1581
        %v5326 = vunpack.c.l.b16 %v1582
        %v5327 = vunpack.c.h.b16 %v1582
        %v5328 = vunpack.c.l.b16 %v1583
        %v5329 = vunpack.c.h.b16 %v1583
        %v5330 = vunpack.c.l.b16 %v1584
        %v5331 = vunpack.c.h.b16 %v1584
        %v5332 = vunpack.c.l.b16 %v1585
        %v5333 = vunpack.c.h.b16 %v1585
        %v5334 = vunpack.c.l.b16 %v1586
        %v5335 = vunpack.c.h.b16 %v1586
        %v5336 = vunpack.c.l.b16 %v1587
        %v5337 = vunpack.c.h.b16 %v1587
        %v5338 = vunpack.c.l.b16 %v1588
        %v5339 = vunpack.c.h.b16 %v1588
        %v5340 = vunpack.c.l.b16 %v1589
        %v5341 = vunpack.c.h.b16 %v1589
        %v5342 = vunpack.c.l.b16 %v1590
        %v5343 = vunpack.c.h.b16 %v1590
        %v5344 = vunpack.c.l.b16 %v1591
        %v5345 = vunpack.c.h.b16 %v1591
        %v5346 = vunpack.c.l.b16 %v1592
        %v5347 = vunpack.c.h.b16 %v1592
        %v5348 = vunpack.c.l.b16 %v1593
        %v5349 = vunpack.c.h.b16 %v1593
        %v5350 = vunpack.c.l.b16 %v1594
        %v5351 = vunpack.c.h.b16 %v1594
        %v5352 = vunpack.c.l.b16 %v1595
        %v5353 = vunpack.c.h.b16 %v1595
        %v5354 = vunpack.c.l.b16 %v1596
        %v5355 = vunpack.c.h.b16 %v1596
        %v5356 = vunpack.c.l.b16 %v1597
        %v5357 = vunpack.c.h.b16 %v1597
        %v5358 = vunpack.c.l.b16 %v1598
        %v5359 = vunpack.c.h.b16 %v1598
        %v5360 = vunpack.c.l.b16 %v1599
        %v5361 = vunpack.c.h.b16 %v1599
        %v5362 = vunpack.c.l.b16 %v1600
        %v5363 = vunpack.c.h.b16 %v1600
        %v5364 = vunpack.c.l.b16 %v1601
        %v5365 = vunpack.c.h.b16 %v1601
        %v5366 = vunpack.c.l.b16 %v1602
        %v5367 = vunpack.c.h.b16 %v1602
        %v5368 = vunpack.c.l.b16 %v1603
        %v5369 = vunpack.c.h.b16 %v1603
        %v5370 = vunpack.c.l.b16 %v1604
        %v5371 = vunpack.c.h.b16 %v1604
        %v5372 = vunpack.c.l.b16 %v1605
        %v5373 = vunpack.c.h.b16 %v1605
        %v5374 = vunpack.c.l.b16 %v1606
        %v5375 = vunpack.c.h.b16 %v1606
        %v5376 = vunpack.c.l.b16 %v1607
        %v5377 = vunpack.c.h.b16 %v1607
        %v5378 = vunpack.c.l.b16 %v1608
        %v5379 = vunpack.c.h.b16 %v1608
        %v5380 = vunpack.c.l.b16 %v1609
        %v5381 = vunpack.c.h.b16 %v1609
        %v5382 = vunpack.c.l.b16 %v1610
        %v5383 = vunpack.c.h.b16 %v1610
        %v5384 = vunpack.c.l.b16 %v1611
        %v5385 = vunpack.c.h.b16 %v1611
        %v5386 = vunpack.c.l.b16 %v1612
        %v5387 = vunpack.c.h.b16 %v1612
        %v5388 = vunpack.c.l.b16 %v1613
        %v5389 = vunpack.c.h.b16 %v1613
        %v5390 = vunpack.c.l.b16 %v1614
        %v5391 = vunpack.c.h.b16 %v1614
        %v5392 = vunpack.c.l.b16 %v1615
        %v5393 = vunpack.c.h.b16 %v1615
        %v5394 = vunpack.c.l.b16 %v1616
        %v5395 = vunpack.c.h.b16 %v1616
        %v5396 = vunpack.c.l.b16 %v1617
        %v5397 = vunpack.c.h.b16 %v1617
        %v5398 = vunpack.c.l.b16 %v1618
        %v5399 = vunpack.c.h.b16 %v1618
        %v5400 = vunpack.c.l.b16 %v1619
        %v5401 = vunpack.c.h.b16 %v1619
        %v5402 = vunpack.c.l.b16 %v1620
        %v5403 = vunpack.c.h.b16 %v1620
        %v5404 = vunpack.c.l.b16 %v1621
        %v5405 = vunpack.c.h.b16 %v1621
        %v5406 = vunpack.c.l.b16 %v1622
        %v5407 = vunpack.c.h.b16 %v1622
        %v5408 = vunpack.c.l.b16 %v1623
        %v5409 = vunpack.c.h.b16 %v1623
        %v5410 = vunpack.c.l.b16 %v1624
        %v5411 = vunpack.c.h.b16 %v1624
        %v5412 = vunpack.c.l.b16 %v1625
        %v5413 = vunpack.c.h.b16 %v1625
        %v5414 = vunpack.c.l.b16 %v1626
        %v5415 = vunpack.c.h.b16 %v1626
        %v5416 = vunpack.c.l.b16 %v1627
        %v5417 = vunpack.c.h.b16 %v1627
        %v5418 = vunpack.c.l.b16 %v1628
        %v5419 = vunpack.c.h.b16 %v1628
        %v5420 = vunpack.c.l.b16 %v1629
        %v5421 = vunpack.c.h.b16 %v1629
        %v5422 = vunpack.c.l.b16 %v1630
        %v5423 = vunpack.c.h.b16 %v1630
        %v5424 = vunpack.c.l.b16 %v1631
        %v5425 = vunpack.c.h.b16 %v1631
        %v5426 = vunpack.c.l.b16 %v1632
        %v5427 = vunpack.c.h.b16 %v1632
        %v5428 = vunpack.c.l.b16 %v1633
        %v5429 = vunpack.c.h.b16 %v1633
        %v5430 = vunpack.c.l.b16 %v1634
        %v5431 = vunpack.c.h.b16 %v1634
        %v5432 = vunpack.c.l.b16 %v1635
        %v5433 = vunpack.c.h.b16 %v1635
        %v5434 = vunpack.c.l.b16 %v1636
        %v5435 = vunpack.c.h.b16 %v1636
        %v5436 = vunpack.c.l.b16 %v1637
        %v5437 = vunpack.c.h.b16 %v1637
        %v5438 = vunpack.c.l.b16 %v1638
        %v5439 = vunpack.c.h.b16 %v1638
        %v5440 = vunpack.c.l.b16 %v1639
        %v5441 = vunpack.c.h.b16 %v1639
        %v5442 = vunpack.c.l.b16 %v1640
        %v5443 = vunpack.c.h.b16 %v1640
        %v5444 = vunpack.c.l.b16 %v1641
        %v5445 = vunpack.c.h.b16 %v1641
        %v5446 = vunpack.c.l.b16 %v1642
        %v5447 = vunpack.c.h.b16 %v1642
        %v5448 = vunpack.c.l.b16 %v1643
        %v5449 = vunpack.c.h.b16 %v1643
        %v5450 = vunpack.c.l.b16 %v1644
        %v5451 = vunpack.c.h.b16 %v1644
        %v5452 = vunpack.c.l.b16 %v1645
        %v5453 = vunpack.c.h.b16 %v1645
        %v5454 = vunpack.c.l.b16 %v1646
        %v5455 = vunpack.c.h.b16 %v1646
        %v5456 = vunpack.c.l.b16 %v1647
        %v5457 = vunpack.c.h.b16 %v1647
        %v5458 = vunpack.c.l.b16 %v1648
        %v5459 = vunpack.c.h.b16 %v1648
        %v5460 = vunpack.c.l.b16 %v1649
        %v5461 = vunpack.c.h.b16 %v1649
        %v5462 = vunpack.c.l.b16 %v1650
        %v5463 = vunpack.c.h.b16 %v1650
        %v5464 = vunpack.c.l.b16 %v1651
        %v5465 = vunpack.c.h.b16 %v1651
        %v5466 = vunpack.c.l.b16 %v1652
        %v5467 = vunpack.c.h.b16 %v1652
        %v5468 = vunpack.c.l.b16 %v1653
        %v5469 = vunpack.c.h.b16 %v1653
        %v5470 = vunpack.c.l.b16 %v1654
        %v5471 = vunpack.c.h.b16 %v1654
        %v5472 = vunpack.c.l.b16 %v1655
        %v5473 = vunpack.c.h.b16 %v1655
        %v5474 = vunpack.c.l.b16 %v1656
        %v5475 = vunpack.c.h.b16 %v1656
        %v5476 = vunpack.c.l.b16 %v1657
        %v5477 = vunpack.c.h.b16 %v1657
        %v5478 = vunpack.c.l.b16 %v1658
        %v5479 = vunpack.c.h.b16 %v1658
        %v5480 = vunpack.c.l.b16 %v1659
        %v5481 = vunpack.c.h.b16 %v1659
        %v5482 = vunpack.c.l.b16 %v1660
        %v5483 = vunpack.c.h.b16 %v1660
        %v5484 = vunpack.c.l.b16 %v1661
        %v5485 = vunpack.c.h.b16 %v1661
        %v5486 = vunpack.c.l.b16 %v1662
        %v5487 = vunpack.c.h.b16 %v1662
        %v5488 = vunpack.c.l.b16 %v1663
        %v5489 = vunpack.c.h.b16 %v1663
        %v5490 = vunpack.c.l.b16 %v1664
        %v5491 = vunpack.c.h.b16 %v1664
        %v5492 = vunpack.c.l.b16 %v1665
        %v5493 = vunpack.c.h.b16 %v1665
        %v5494 = vunpack.c.l.b16 %v1666
        %v5495 = vunpack.c.h.b16 %v1666
        %v5496 = vunpack.c.l.b16 %v1667
        %v5497 = vunpack.c.h.b16 %v1667
        %v5498 = vunpack.c.l.b16 %v1668
        %v5499 = vunpack.c.h.b16 %v1668
        %v5500 = vunpack.c.l.b16 %v1669
        %v5501 = vunpack.c.h.b16 %v1669
        %v5502 = vunpack.c.l.b16 %v1670
        %v5503 = vunpack.c.h.b16 %v1670
        %v5504 = vunpack.c.l.b16 %v1671
        %v5505 = vunpack.c.h.b16 %v1671
        %v5506 = vunpack.c.l.b16 %v1672
        %v5507 = vunpack.c.h.b16 %v1672
        %v5508 = vunpack.c.l.b16 %v1673
        %v5509 = vunpack.c.h.b16 %v1673
        %v5510 = vunpack.c.l.b16 %v1674
        %v5511 = vunpack.c.h.b16 %v1674
        %v5512 = vunpack.c.l.b16 %v1675
        %v5513 = vunpack.c.h.b16 %v1675
        %v5514 = vunpack.c.l.b16 %v1676
        %v5515 = vunpack.c.h.b16 %v1676
        %v5516 = vunpack.c.l.b16 %v1677
        %v5517 = vunpack.c.h.b16 %v1677
        %v5518 = vunpack.c.l.b16 %v1678
        %v5519 = vunpack.c.h.b16 %v1678
        %v5520 = vunpack.c.l.b16 %v1679
        %v5521 = vunpack.c.h.b16 %v1679
        %v5522 = vunpack.c.l.b16 %v1680
        %v5523 = vunpack.c.h.b16 %v1680
        %v5524 = vunpack.c.l.b16 %v1681
        %v5525 = vunpack.c.h.b16 %v1681
        %v5526 = vunpack.c.l.b16 %v1682
        %v5527 = vunpack.c.h.b16 %v1682
        %v5528 = vunpack.c.l.b16 %v1683
        %v5529 = vunpack.c.h.b16 %v1683
        %v5530 = vunpack.c.l.b16 %v1684
        %v5531 = vunpack.c.h.b16 %v1684
        %v5532 = vunpack.c.l.b16 %v1685
        %v5533 = vunpack.c.h.b16 %v1685
        %v5534 = vunpack.c.l.b16 %v1686
        %v5535 = vunpack.c.h.b16 %v1686
        %v5536 = vunpack.c.l.b16 %v1687
        %v5537 = vunpack.c.h.b16 %v1687
        %v5538 = vunpack.c.l.b16 %v1688
        %v5539 = vunpack.c.h.b16 %v1688
        %v5540 = vunpack.c.l.b16 %v1689
        %v5541 = vunpack.c.h.b16 %v1689
        %v5542 = vunpack.c.l.b16 %v1690
        %v5543 = vunpack.c.h.b16 %v1690
        %v5544 = vunpack.c.l.b16 %v1691
        %v5545 = vunpack.c.h.b16 %v1691
        %v5546 = vunpack.c.l.b16 %v1692
        %v5547 = vunpack.c.h.b16 %v1692
        %v5548 = vunpack.c.l.b16 %v1693
        %v5549 = vunpack.c.h.b16 %v1693
        %v5550 = vunpack.c.l.b16 %v1694
        %v5551 = vunpack.c.h.b16 %v1694
        %v5552 = vunpack.c.l.b16 %v1695
        %v5553 = vunpack.c.h.b16 %v1695
        %v5554 = vunpack.c.l.b16 %v1696
        %v5555 = vunpack.c.h.b16 %v1696
        %v5556 = vunpack.c.l.b16 %v1697
        %v5557 = vunpack.c.h.b16 %v1697
        %v5558 = vunpack.c.l.b16 %v1698
        %v5559 = vunpack.c.h.b16 %v1698
        %v5560 = vunpack.c.l.b16 %v1699
        %v5561 = vunpack.c.h.b16 %v1699
        %v5562 = vunpack.c.l.b16 %v1700
        %v5563 = vunpack.c.h.b16 %v1700
        %v5564 = vunpack.c.l.b16 %v1701
        %v5565 = vunpack.c.h.b16 %v1701
        %v5566 = vunpack.c.l.b16 %v1702
        %v5567 = vunpack.c.h.b16 %v1702
        %v5568 = vunpack.c.l.b16 %v1703
        %v5569 = vunpack.c.h.b16 %v1703
        %v5570 = vunpack.c.l.b16 %v1704
        %v5571 = vunpack.c.h.b16 %v1704
        %v5572 = vunpack.c.l.b16 %v1705
        %v5573 = vunpack.c.h.b16 %v1705
        %v5574 = vunpack.c.l.b16 %v1706
        %v5575 = vunpack.c.h.b16 %v1706
        %v5576 = vunpack.c.l.b16 %v1707
        %v5577 = vunpack.c.h.b16 %v1707
        %v5578 = vunpack.c.l.b16 %v1708
        %v5579 = vunpack.c.h.b16 %v1708
        %v5580 = vunpack.c.l.b16 %v1709
        %v5581 = vunpack.c.h.b16 %v1709
        %v5582 = vunpack.c.l.b16 %v1710
        %v5583 = vunpack.c.h.b16 %v1710
        %v5584 = vunpack.c.l.b16 %v1711
        %v5585 = vunpack.c.h.b16 %v1711
        %v5586 = vunpack.c.l.b16 %v1712
        %v5587 = vunpack.c.h.b16 %v1712
        %v5588 = vunpack.c.l.b16 %v1713
        %v5589 = vunpack.c.h.b16 %v1713
        %v5590 = vunpack.c.l.b16 %v1714
        %v5591 = vunpack.c.h.b16 %v1714
        %v5592 = vunpack.c.l.b16 %v1715
        %v5593 = vunpack.c.h.b16 %v1715
        %v5594 = vunpack.c.l.b16 %v1716
        %v5595 = vunpack.c.h.b16 %v1716
        %v5596 = vunpack.c.l.b16 %v1717
        %v5597 = vunpack.c.h.b16 %v1717
        %v5598 = vunpack.c.l.b16 %v1718
        %v5599 = vunpack.c.h.b16 %v1718
        %v5600 = vunpack.c.l.b16 %v1719
        %v5601 = vunpack.c.h.b16 %v1719
        %v5602 = vunpack.c.l.b16 %v1720
        %v5603 = vunpack.c.h.b16 %v1720
        %v5604 = vunpack.c.l.b16 %v1721
        %v5605 = vunpack.c.h.b16 %v1721
        %v5606 = vunpack.c.l.b16 %v1722
        %v5607 = vunpack.c.h.b16 %v1722
        %v5608 = vunpack.c.l.b16 %v1723
        %v5609 = vunpack.c.h.b16 %v1723
        %v5610 = vunpack.c.l.b16 %v1724
        %v5611 = vunpack.c.h.b16 %v1724
        %v5612 = vunpack.c.l.b16 %v1725
        %v5613 = vunpack.c.h.b16 %v1725
        %v5614 = vunpack.c.l.b16 %v1726
        %v5615 = vunpack.c.h.b16 %v1726
        %v5616 = vunpack.c.l.b16 %v1727
        %v5617 = vunpack.c.h.b16 %v1727
        %v5618 = vunpack.c.l.b16 %v1728
        %v5619 = vunpack.c.h.b16 %v1728
        %v5620 = vunpack.c.l.b16 %v1729
        %v5621 = vunpack.c.h.b16 %v1729
        %v5622 = vunpack.c.l.b16 %v1730
        %v5623 = vunpack.c.h.b16 %v1730
        %v5624 = vunpack.c.l.b16 %v1731
        %v5625 = vunpack.c.h.b16 %v1731
        %v5626 = vunpack.c.l.b16 %v1732
        %v5627 = vunpack.c.h.b16 %v1732
        %v5628 = vunpack.c.l.b16 %v1733
        %v5629 = vunpack.c.h.b16 %v1733
        %v5630 = vunpack.c.l.b16 %v1734
        %v5631 = vunpack.c.h.b16 %v1734
        %v5632 = vunpack.c.l.b16 %v1735
        %v5633 = vunpack.c.h.b16 %v1735
        %v5634 = vunpack.c.l.b16 %v1736
        %v5635 = vunpack.c.h.b16 %v1736
        %v5636 = vunpack.c.l.b16 %v1737
        %v5637 = vunpack.c.h.b16 %v1737
        %v5638 = vunpack.c.l.b16 %v1738
        %v5639 = vunpack.c.h.b16 %v1738
        %v5640 = vunpack.c.l.b16 %v1739
        %v5641 = vunpack.c.h.b16 %v1739
        %v5642 = vunpack.c.l.b16 %v1740
        %v5643 = vunpack.c.h.b16 %v1740
        %v5644 = vunpack.c.l.b16 %v1741
        %v5645 = vunpack.c.h.b16 %v1741
        %v5646 = vunpack.c.l.b16 %v1742
        %v5647 = vunpack.c.h.b16 %v1742
        %v5648 = vunpack.c.l.b16 %v1743
        %v5649 = vunpack.c.h.b16 %v1743
        %v5650 = vunpack.c.l.b16 %v1744
        %v5651 = vunpack.c.h.b16 %v1744
        %v5652 = vunpack.c.l.b16 %v1745
        %v5653 = vunpack.c.h.b16 %v1745
        %v5654 = vunpack.c.l.b16 %v1746
        %v5655 = vunpack.c.h.b16 %v1746
        %v5656 = vunpack.c.l.b16 %v1747
        %v5657 = vunpack.c.h.b16 %v1747
        %v5658 = vunpack.c.l.b16 %v1748
        %v5659 = vunpack.c.h.b16 %v1748
        %v5660 = vunpack.c.l.b16 %v1749
        %v5661 = vunpack.c.h.b16 %v1749
        %v5662 = vunpack.c.l.b16 %v1750
        %v5663 = vunpack.c.h.b16 %v1750
        %v5664 = vunpack.c.l.b16 %v1751
        %v5665 = vunpack.c.h.b16 %v1751
        %v5666 = vunpack.c.l.b16 %v1752
        %v5667 = vunpack.c.h.b16 %v1752
        %v5668 = vunpack.c.l.b16 %v1753
        %v5669 = vunpack.c.h.b16 %v1753
        %v5670 = vunpack.c.l.b16 %v1754
        %v5671 = vunpack.c.h.b16 %v1754
        %v5672 = vunpack.c.l.b16 %v1755
        %v5673 = vunpack.c.h.b16 %v1755
        %v5674 = vunpack.c.l.b16 %v1756
        %v5675 = vunpack.c.h.b16 %v1756
        %v5676 = vunpack.c.l.b16 %v1757
        %v5677 = vunpack.c.h.b16 %v1757
        %v5678 = vunpack.c.l.b16 %v1758
        %v5679 = vunpack.c.h.b16 %v1758
        %v5680 = vunpack.c.l.b16 %v1759
        %v5681 = vunpack.c.h.b16 %v1759
        %v5682 = vunpack.c.l.b16 %v1760
        %v5683 = vunpack.c.h.b16 %v1760
        %v5684 = vunpack.c.l.b16 %v1761
        %v5685 = vunpack.c.h.b16 %v1761
        %v5686 = vunpack.c.l.b16 %v1762
        %v5687 = vunpack.c.h.b16 %v1762
        %v5688 = vunpack.c.l.b16 %v1763
        %v5689 = vunpack.c.h.b16 %v1763
        %v5690 = vunpack.c.l.b16 %v1764
        %v5691 = vunpack.c.h.b16 %v1764
        %v5692 = vunpack.c.l.b16 %v1765
        %v5693 = vunpack.c.h.b16 %v1765
        %v5694 = vunpack.c.l.b16 %v1766
        %v5695 = vunpack.c.h.b16 %v1766
        %v5696 = vunpack.c.l.b16 %v1767
        %v5697 = vunpack.c.h.b16 %v1767
        %v5698 = vunpack.c.l.b16 %v1768
        %v5699 = vunpack.c.h.b16 %v1768
        %v5700 = vunpack.c.l.b16 %v1769
        %v5701 = vunpack.c.h.b16 %v1769
        %v5702 = vunpack.c.l.b16 %v1770
        %v5703 = vunpack.c.h.b16 %v1770
        %v5704 = vunpack.c.l.b16 %v1771
        %v5705 = vunpack.c.h.b16 %v1771
        %v5706 = vunpack.c.l.b16 %v1772
        %v5707 = vunpack.c.h.b16 %v1772
        %v5708 = vunpack.c.l.b16 %v1773
        %v5709 = vunpack.c.h.b16 %v1773
        %v5710 = vunpack.c.l.b16 %v1774
        %v5711 = vunpack.c.h.b16 %v1774
        %v5712 = vunpack.c.l.b16 %v1775
        %v5713 = vunpack.c.h.b16 %v1775
        %v5714 = vunpack.c.l.b16 %v1776
        %v5715 = vunpack.c.h.b16 %v1776
        %v5716 = vunpack.c.l.b16 %v1777
        %v5717 = vunpack.c.h.b16 %v1777
        %v5718 = vunpack.c.l.b16 %v1778
        %v5719 = vunpack.c.h.b16 %v1778
        %v5720 = vunpack.c.l.b16 %v1779
        %v5721 = vunpack.c.h.b16 %v1779
        %v5722 = vunpack.c.l.b16 %v1780
        %v5723 = vunpack.c.h.b16 %v1780
        %v5724 = vunpack.c.l.b16 %v1781
        %v5725 = vunpack.c.h.b16 %v1781
        %v5726 = vunpack.c.l.b16 %v1782
        %v5727 = vunpack.c.h.b16 %v1782
        %v5728 = vunpack.c.l.b16 %v1783
        %v5729 = vunpack.c.h.b16 %v1783
        %v5730 = vunpack.c.l.b16 %v1784
        %v5731 = vunpack.c.h.b16 %v1784
        %v5732 = vunpack.c.l.b16 %v1785
        %v5733 = vunpack.c.h.b16 %v1785
        %v5734 = vunpack.c.l.b16 %v1786
        %v5735 = vunpack.c.h.b16 %v1786
        %v5736 = vunpack.c.l.b16 %v1787
        %v5737 = vunpack.c.h.b16 %v1787
        %v5738 = vunpack.c.l.b16 %v1788
        %v5739 = vunpack.c.h.b16 %v1788
        %v5740 = vunpack.c.l.b16 %v1789
        %v5741 = vunpack.c.h.b16 %v1789
        %v5742 = vunpack.c.l.b16 %v1790
        %v5743 = vunpack.c.h.b16 %v1790
        %v5744 = vunpack.c.l.b16 %v1791
        %v5745 = vunpack.c.h.b16 %v1791
        %v5746 = vunpack.c.l.b16 %v1792
        %v5747 = vunpack.c.h.b16 %v1792
        %v5748 = vunpack.c.l.b16 %v1793
        %v5749 = vunpack.c.h.b16 %v1793
        %v5750 = vunpack.c.l.b16 %v1794
        %v5751 = vunpack.c.h.b16 %v1794
        %v5752 = vunpack.c.l.b16 %v1795
        %v5753 = vunpack.c.h.b16 %v1795
        %v5754 = vunpack.c.l.b16 %v1796
        %v5755 = vunpack.c.h.b16 %v1796
        %v5756 = vunpack.c.l.b16 %v1797
        %v5757 = vunpack.c.h.b16 %v1797
        %v5758 = vunpack.c.l.b16 %v1798
        %v5759 = vunpack.c.h.b16 %v1798
        %v5760 = vunpack.c.l.b16 %v1799
        %v5761 = vunpack.c.h.b16 %v1799
        %v5762 = vunpack.c.l.b16 %v1800
        %v5763 = vunpack.c.h.b16 %v1800
        %v5764 = vunpack.c.l.b16 %v1801
        %v5765 = vunpack.c.h.b16 %v1801
        %v5766 = vunpack.c.l.b16 %v1802
        %v5767 = vunpack.c.h.b16 %v1802
        %v5768 = vunpack.c.l.b16 %v1803
        %v5769 = vunpack.c.h.b16 %v1803
        %v5770 = vunpack.c.l.b16 %v1804
        %v5771 = vunpack.c.h.b16 %v1804
        %v5772 = vunpack.c.l.b16 %v1805
        %v5773 = vunpack.c.h.b16 %v1805
        %v5774 = vunpack.c.l.b16 %v1806
        %v5775 = vunpack.c.h.b16 %v1806
        %v5776 = vunpack.c.l.b16 %v1807
        %v5777 = vunpack.c.h.b16 %v1807
        %v5778 = vunpack.c.l.b16 %v1808
        %v5779 = vunpack.c.h.b16 %v1808
        %v5780 = vpack.c.b16 %v3284, %v3280
        %v5781 = vpack.c.b16 %v3285, %v3281
        %v5782 = vpack.c.b16 %v3286, %v3282
        %v5783 = vpack.c.b16 %v3287, %v3283
        %v5784 = vpack.c.b16 %v3292, %v3288
        %v5785 = vpack.c.b16 %v3293, %v3289
        %v5786 = vpack.c.b16 %v3294, %v3290
        %v5787 = vpack.c.b16 %v3295, %v3291
        %v5788 = vpack.c.b16 %v3300, %v3296
        %v5789 = vpack.c.b16 %v3301, %v3297
        %v5790 = vpack.c.b16 %v3302, %v3298
        %v5791 = vpack.c.b16 %v3303, %v3299
        %v5792 = vpack.c.b16 %v3308, %v3304
        %v5793 = vpack.c.b16 %v3309, %v3305
        %v5794 = vpack.c.b16 %v3310, %v3306
        %v5795 = vpack.c.b16 %v3311, %v3307
        %v5796 = vpack.c.b16 %v3316, %v3312
        %v5797 = vpack.c.b16 %v3317, %v3313
        %v5798 = vpack.c.b16 %v3318, %v3314
        %v5799 = vpack.c.b16 %v3319, %v3315
        %v5800 = vpack.c.b16 %v3324, %v3320
        %v5801 = vpack.c.b16 %v3325, %v3321
        %v5802 = vpack.c.b16 %v3326, %v3322
        %v5803 = vpack.c.b16 %v3327, %v3323
        %v5804 = vpack.c.b16 %v3332, %v3328
        %v5805 = vpack.c.b16 %v3333, %v3329
        %v5806 = vpack.c.b16 %v3334, %v3330
        %v5807 = vpack.c.b16 %v3335, %v3331
        %v5808 = vpack.c.b16 %v3340, %v3336
        %v5809 = vpack.c.b16 %v3341, %v3337
        %v5810 = vpack.c.b16 %v3342, %v3338
        %v5811 = vpack.c.b16 %v3343, %v3339
        %v5812 = vpack.c.b16 %v3348, %v3344
        %v5813 = vpack.c.b16 %v3349, %v3345
        %v5814 = vpack.c.b16 %v3350, %v3346
        %v5815 = vpack.c.b16 %v3351, %v3347
        %v5816 = vpack.c.b16 %v3356, %v3352
        %v5817 = vpack.c.b16 %v3357, %v3353
        %v5818 = vpack.c.b16 %v3358, %v3354
        %v5819 = vpack.c.b16 %v3359, %v3355
        %v5820 = vpack.c.b16 %v3364, %v3360
        %v5821 = vpack.c.b16 %v3365, %v3361
        %v5822 = vpack.c.b16 %v3366, %v3362
        %v5823 = vpack.c.b16 %v3367, %v3363
        %v5824 = vpack.c.b16 %v3372, %v3368
        %v5825 = vpack.c.b16 %v3373, %v3369
        %v5826 = vpack.c.b16 %v3374, %v3370
        %v5827 = vpack.c.b16 %v3375, %v3371
        %v5828 = vpack.c.b16 %v3380, %v3376
        %v5829 = vpack.c.b16 %v3381, %v3377
        %v5830 = vpack.c.b16 %v3382, %v3378
        %v5831 = vpack.c.b16 %v3383, %v3379
        %v5832 = vpack.c.b16 %v3388, %v3384
        %v5833 = vpack.c.b16 %v3389, %v3385
        %v5834 = vpack.c.b16 %v3390, %v3386
        %v5835 = vpack.c.b16 %v3391, %v3387
        %v5836 = vpack.c.b16 %v3396, %v3392
        %v5837 = vpack.c.b16 %v3397, %v3393
        %v5838 = vpack.c.b16 %v3398, %v3394
        %v5839 = vpack.c.b16 %v3399, %v3395
        %v5840 = vpack.c.b16 %v3404, %v3400
        %v5841 = vpack.c.b16 %v3405, %v3401
        %v5842 = vpack.c.b16 %v3406, %v3402
        %v5843 = vpack.c.b16 %v3407, %v3403
        %v5844 = vpack.c.b16 %v3412, %v3408
        %v5845 = vpack.c.b16 %v3413, %v3409
        %v5846 = vpack.c.b16 %v3414, %v3410
        %v5847 = vpack.c.b16 %v3415, %v3411
        %v5848 = vpack.c.b16 %v3420, %v3416
        %v5849 = vpack.c.b16 %v3421, %v3417
        %v5850 = vpack.c.b16 %v3422, %v3418
        %v5851 = vpack.c.b16 %v3423, %v3419
        %v5852 = vpack.c.b16 %v3428, %v3424
        %v5853 = vpack.c.b16 %v3429, %v3425
        %v5854 = vpack.c.b16 %v3430, %v3426
        %v5855 = vpack.c.b16 %v3431, %v3427
        %v5856 = vpack.c.b16 %v3436, %v3432
        %v5857 = vpack.c.b16 %v3437, %v3433
        %v5858 = vpack.c.b16 %v3438, %v3434
        %v5859 = vpack.c.b16 %v3439, %v3435
        %v5860 = vpack.c.b16 %v3444, %v3440
        %v5861 = vpack.c.b16 %v3445, %v3441
        %v5862 = vpack.c.b16 %v3446, %v3442
        %v5863 = vpack.c.b16 %v3447, %v3443
        %v5864 = vpack.c.b16 %v3452, %v3448
        %v5865 = vpack.c.b16 %v3453, %v3449
        %v5866 = vpack.c.b16 %v3454, %v3450
        %v5867 = vpack.c.b16 %v3455, %v3451
        %v5868 = vpack.c.b16 %v3460, %v3456
        %v5869 = vpack.c.b16 %v3461, %v3457
        %v5870 = vpack.c.b16 %v3462, %v3458
        %v5871 = vpack.c.b16 %v3463, %v3459
        %v5872 = vpack.c.b16 %v3468, %v3464
        %v5873 = vpack.c.b16 %v3469, %v3465
        %v5874 = vpack.c.b16 %v3470, %v3466
        %v5875 = vpack.c.b16 %v3471, %v3467
        %v5876 = vpack.c.b16 %v3476, %v3472
        %v5877 = vpack.c.b16 %v3477, %v3473
        %v5878 = vpack.c.b16 %v3478, %v3474
        %v5879 = vpack.c.b16 %v3479, %v3475
        %v5880 = vpack.c.b16 %v3484, %v3480
        %v5881 = vpack.c.b16 %v3485, %v3481
        %v5882 = vpack.c.b16 %v3486, %v3482
        %v5883 = vpack.c.b16 %v3487, %v3483
        %v5884 = vpack.c.b16 %v3492, %v3488
        %v5885 = vpack.c.b16 %v3493, %v3489
        %v5886 = vpack.c.b16 %v3494, %v3490
        %v5887 = vpack.c.b16 %v3495, %v3491
        %v5888 = vpack.c.b16 %v3500, %v3496
        %v5889 = vpack.c.b16 %v3501, %v3497
        %v5890 = vpack.c.b16 %v3502, %v3498
        %v5891 = vpack.c.b16 %v3503, %v3499
        %v5892 = vpack.c.b16 %v3508, %v3504
        %v5893 = vpack.c.b16 %v3509, %v3505
        %v5894 = vpack.c.b16 %v3510, %v3506
        %v5895 = vpack.c.b16 %v3511, %v3507
        %v5896 = vpack.c.b16 %v3516, %v3512
        %v5897 = vpack.c.b16 %v3517, %v3513
        %v5898 = vpack.c.b16 %v3518, %v3514
        %v5899 = vpack.c.b16 %v3519, %v3515
        %v5900 = vpack.c.b16 %v3524, %v3520
        %v5901 = vpack.c.b16 %v3525, %v3521
        %v5902 = vpack.c.b16 %v3526, %v3522
        %v5903 = vpack.c.b16 %v3527, %v3523
        %v5904 = vpack.c.b16 %v3532, %v3528
        %v5905 = vpack.c.b16 %v3533, %v3529
        %v5906 = vpack.c.b16 %v3534, %v3530
        %v5907 = vpack.c.b16 %v3535, %v3531
        %v5908 = vpack.c.b16 %v3540, %v3536
        %v5909 = vpack.c.b16 %v3541, %v3537
        %v5910 = vpack.c.b16 %v3542, %v3538
        %v5911 = vpack.c.b16 %v3543, %v3539
        %v5912 = vpack.c.b16 %v3548, %v3544
        %v5913 = vpack.c.b16 %v3549, %v3545
        %v5914 = vpack.c.b16 %v3550, %v3546
        %v5915 = vpack.c.b16 %v3551, %v3547
        %v5916 = vpack.c.b16 %v3556, %v3552
        %v5917 = vpack.c.b16 %v3557, %v3553
        %v5918 = vpack.c.b16 %v3558, %v3554
        %v5919 = vpack.c.b16 %v3559, %v3555
        %v5920 = vpack.c.b16 %v3564, %v3560
        %v5921 = vpack.c.b16 %v3565, %v3561
        %v5922 = vpack.c.b16 %v3566, %v3562
        %v5923 = vpack.c.b16 %v3567, %v3563
        %v5924 = vpack.c.b16 %v3572, %v3568
        %v5925 = vpack.c.b16 %v3573, %v3569
        %v5926 = vpack.c.b16 %v3574, %v3570
        %v5927 = vpack.c.b16 %v3575, %v3571
        %v5928 = vpack.c.b16 %v3580, %v3576
        %v5929 = vpack.c.b16 %v3581, %v3577
        %v5930 = vpack.c.b16 %v3582, %v3578
        %v5931 = vpack.c.b16 %v3583, %v3579
        %v5932 = vpack.c.b16 %v3588, %v3584
        %v5933 = vpack.c.b16 %v3589, %v3585
        %v5934 = vpack.c.b16 %v3590, %v3586
        %v5935 = vpack.c.b16 %v3591, %v3587
        %v5936 = vpack.c.b16 %v3596, %v3592
        %v5937 = vpack.c.b16 %v3597, %v3593
        %v5938 = vpack.c.b16 %v3598, %v3594
        %v5939 = vpack.c.b16 %v3599, %v3595
        %v5940 = vpack.c.b16 %v3604, %v3600
        %v5941 = vpack.c.b16 %v3605, %v3601
        %v5942 = vpack.c.b16 %v3606, %v3602
        %v5943 = vpack.c.b16 %v3607, %v3603
        %v5944 = vpack.c.b16 %v3612, %v3608
        %v5945 = vpack.c.b16 %v3613, %v3609
        %v5946 = vpack.c.b16 %v3614, %v3610
        %v5947 = vpack.c.b16 %v3615, %v3611
        %v5948 = vpack.c.b16 %v3620, %v3616
        %v5949 = vpack.c.b16 %v3621, %v3617
        %v5950 = vpack.c.b16 %v3622, %v3618
        %v5951 = vpack.c.b16 %v3623, %v3619
        %v5952 = vpack.c.b16 %v3628, %v3624
        %v5953 = vpack.c.b16 %v3629, %v3625
        %v5954 = vpack.c.b16 %v3630, %v3626
        %v5955 = vpack.c.b16 %v3631, %v3627
        %v5956 = vpack.c.b16 %v3636, %v3632
        %v5957 = vpack.c.b16 %v3637, %v3633
        %v5958 = vpack.c.b16 %v3638, %v3634
        %v5959 = vpack.c.b16 %v3639, %v3635
        %v5960 = vpack.c.b16 %v3644, %v3640
        %v5961 = vpack.c.b16 %v3645, %v3641
        %v5962 = vpack.c.b16 %v3646, %v3642
        %v5963 = vpack.c.b16 %v3647, %v3643
        %v5964 = vpack.c.b16 %v3652, %v3648
        %v5965 = vpack.c.b16 %v3653, %v3649
        %v5966 = vpack.c.b16 %v3654, %v3650
        %v5967 = vpack.c.b16 %v3655, %v3651
        %v5968 = vpack.c.b16 %v3660, %v3656
        %v5969 = vpack.c.b16 %v3661, %v3657
        %v5970 = vpack.c.b16 %v3662, %v3658
        %v5971 = vpack.c.b16 %v3663, %v3659
        %v5972 = vpack.c.b16 %v3668, %v3664
        %v5973 = vpack.c.b16 %v3669, %v3665
        %v5974 = vpack.c.b16 %v3670, %v3666
        %v5975 = vpack.c.b16 %v3671, %v3667
        %v5976 = vpack.c.b16 %v3676, %v3672
        %v5977 = vpack.c.b16 %v3677, %v3673
        %v5978 = vpack.c.b16 %v3678, %v3674
        %v5979 = vpack.c.b16 %v3679, %v3675
        %v5980 = vpack.c.b16 %v3684, %v3680
        %v5981 = vpack.c.b16 %v3685, %v3681
        %v5982 = vpack.c.b16 %v3686, %v3682
        %v5983 = vpack.c.b16 %v3687, %v3683
        %v5984 = vpack.c.b16 %v3692, %v3688
        %v5985 = vpack.c.b16 %v3693, %v3689
        %v5986 = vpack.c.b16 %v3694, %v3690
        %v5987 = vpack.c.b16 %v3695, %v3691
        %v5988 = vpack.c.b16 %v3700, %v3696
        %v5989 = vpack.c.b16 %v3701, %v3697
        %v5990 = vpack.c.b16 %v3702, %v3698
        %v5991 = vpack.c.b16 %v3703, %v3699
        %v5992 = vpack.c.b16 %v3708, %v3704
        %v5993 = vpack.c.b16 %v3709, %v3705
        %v5994 = vpack.c.b16 %v3710, %v3706
        %v5995 = vpack.c.b16 %v3711, %v3707
        %v5996 = vpack.c.b16 %v3716, %v3712
        %v5997 = vpack.c.b16 %v3717, %v3713
        %v5998 = vpack.c.b16 %v3718, %v3714
        %v5999 = vpack.c.b16 %v3719, %v3715
        %v6000 = vpack.c.b16 %v3724, %v3720
        %v6001 = vpack.c.b16 %v3725, %v3721
        %v6002 = vpack.c.b16 %v3726, %v3722
        %v6003 = vpack.c.b16 %v3727, %v3723
        %v6004 = vpack.c.b16 %v3732, %v3728
        %v6005 = vpack.c.b16 %v3733, %v3729
        %v6006 = vpack.c.b16 %v3734, %v3730
        %v6007 = vpack.c.b16 %v3735, %v3731
        %v6008 = vpack.c.b16 %v3740, %v3736
        %v6009 = vpack.c.b16 %v3741, %v3737
        %v6010 = vpack.c.b16 %v3742, %v3738
        %v6011 = vpack.c.b16 %v3743, %v3739
        %v6012 = vpack.c.b16 %v3748, %v3744
        %v6013 = vpack.c.b16 %v3749, %v3745
        %v6014 = vpack.c.b16 %v3750, %v3746
        %v6015 = vpack.c.b16 %v3751, %v3747
        %v6016 = vpack.c.b16 %v3756, %v3752
        %v6017 = vpack.c.b16 %v3757, %v3753
        %v6018 = vpack.c.b16 %v3758, %v3754
        %v6019 = vpack.c.b16 %v3759, %v3755
        %v6020 = vpack.c.b16 %v3764, %v3760
        %v6021 = vpack.c.b16 %v3765, %v3761
        %v6022 = vpack.c.b16 %v3766, %v3762
        %v6023 = vpack.c.b16 %v3767, %v3763
        %v6024 = vpack.c.b16 %v3772, %v3768
        %v6025 = vpack.c.b16 %v3773, %v3769
        %v6026 = vpack.c.b16 %v3774, %v3770
        %v6027 = vpack.c.b16 %v3775, %v3771
        %v6028 = vpack.c.b16 %v3780, %v3776
        %v6029 = vpack.c.b16 %v3781, %v3777
        %v6030 = vpack.c.b16 %v3782, %v3778
        %v6031 = vpack.c.b16 %v3783, %v3779
        %v6032 = vpack.c.b16 %v3788, %v3784
        %v6033 = vpack.c.b16 %v3789, %v3785
        %v6034 = vpack.c.b16 %v3790, %v3786
        %v6035 = vpack.c.b16 %v3791, %v3787
        %v6036 = vpack.c.b16 %v3796, %v3792
        %v6037 = vpack.c.b16 %v3797, %v3793
        %v6038 = vpack.c.b16 %v3798, %v3794
        %v6039 = vpack.c.b16 %v3799, %v3795
        %v6040 = vpack.c.b16 %v3804, %v3800
        %v6041 = vpack.c.b16 %v3805, %v3801
        %v6042 = vpack.c.b16 %v3806, %v3802
        %v6043 = vpack.c.b16 %v3807, %v3803
        %v6044 = vpack.c.b16 %v3812, %v3808
        %v6045 = vpack.c.b16 %v3813, %v3809
        %v6046 = vpack.c.b16 %v3814, %v3810
        %v6047 = vpack.c.b16 %v3815, %v3811
        %v6048 = vpack.c.b16 %v3820, %v3816
        %v6049 = vpack.c.b16 %v3821, %v3817
        %v6050 = vpack.c.b16 %v3822, %v3818
        %v6051 = vpack.c.b16 %v3823, %v3819
        %v6052 = vpack.c.b16 %v3828, %v3824
        %v6053 = vpack.c.b16 %v3829, %v3825
        %v6054 = vpack.c.b16 %v3830, %v3826
        %v6055 = vpack.c.b16 %v3831, %v3827
        %v6056 = vpack.c.b16 %v3836, %v3832
        %v6057 = vpack.c.b16 %v3837, %v3833
        %v6058 = vpack.c.b16 %v3838, %v3834
        %v6059 = vpack.c.b16 %v3839, %v3835
        %v6060 = vpack.c.b16 %v3844, %v3840
        %v6061 = vpack.c.b16 %v3845, %v3841
        %v6062 = vpack.c.b16 %v3846, %v3842
        %v6063 = vpack.c.b16 %v3847, %v3843
        %v6064 = vpack.c.b16 %v3852, %v3848
        %v6065 = vpack.c.b16 %v3853, %v3849
        %v6066 = vpack.c.b16 %v3854, %v3850
        %v6067 = vpack.c.b16 %v3855, %v3851
        %v6068 = vpack.c.b16 %v3860, %v3856
        %v6069 = vpack.c.b16 %v3861, %v3857
        %v6070 = vpack.c.b16 %v3862, %v3858
        %v6071 = vpack.c.b16 %v3863, %v3859
        %v6072 = vpack.c.b16 %v3868, %v3864
        %v6073 = vpack.c.b16 %v3869, %v3865
        %v6074 = vpack.c.b16 %v3870, %v3866
        %v6075 = vpack.c.b16 %v3871, %v3867
        %v6076 = vpack.c.b16 %v3876, %v3872
        %v6077 = vpack.c.b16 %v3877, %v3873
        %v6078 = vpack.c.b16 %v3878, %v3874
        %v6079 = vpack.c.b16 %v3879, %v3875
        %v6080 = vpack.c.b16 %v3884, %v3880
        %v6081 = vpack.c.b16 %v3885, %v3881
        %v6082 = vpack.c.b16 %v3886, %v3882
        %v6083 = vpack.c.b16 %v3887, %v3883
        %v6084 = vpack.c.b16 %v3892, %v3888
        %v6085 = vpack.c.b16 %v3893, %v3889
        %v6086 = vpack.c.b16 %v3894, %v3890
        %v6087 = vpack.c.b16 %v3895, %v3891
        %v6088 = vpack.c.b16 %v3900, %v3896
        %v6089 = vpack.c.b16 %v3901, %v3897
        %v6090 = vpack.c.b16 %v3902, %v3898
        %v6091 = vpack.c.b16 %v3903, %v3899
        %v6092 = vpack.c.b16 %v3908, %v3904
        %v6093 = vpack.c.b16 %v3909, %v3905
        %v6094 = vpack.c.b16 %v3910, %v3906
        %v6095 = vpack.c.b16 %v3911, %v3907
        %v6096 = vpack.c.b16 %v3916, %v3912
        %v6097 = vpack.c.b16 %v3917, %v3913
        %v6098 = vpack.c.b16 %v3918, %v3914
        %v6099 = vpack.c.b16 %v3919, %v3915
        %v6100 = vpack.c.b16 %v3924, %v3920
        %v6101 = vpack.c.b16 %v3925, %v3921
        %v6102 = vpack.c.b16 %v3926, %v3922
        %v6103 = vpack.c.b16 %v3927, %v3923
        %v6104 = vpack.c.b16 %v3932, %v3928
        %v6105 = vpack.c.b16 %v3933, %v3929
        %v6106 = vpack.c.b16 %v3934, %v3930
        %v6107 = vpack.c.b16 %v3935, %v3931
        %v6108 = vpack.c.b16 %v3940, %v3936
        %v6109 = vpack.c.b16 %v3941, %v3937
        %v6110 = vpack.c.b16 %v3942, %v3938
        %v6111 = vpack.c.b16 %v3943, %v3939
        %v6112 = vpack.c.b16 %v3948, %v3944
        %v6113 = vpack.c.b16 %v3949, %v3945
        %v6114 = vpack.c.b16 %v3950, %v3946
        %v6115 = vpack.c.b16 %v3951, %v3947
        %v6116 = vpack.c.b16 %v3956, %v3952
        %v6117 = vpack.c.b16 %v3957, %v3953
        %v6118 = vpack.c.b16 %v3958, %v3954
        %v6119 = vpack.c.b16 %v3959, %v3955
        %v6120 = vpack.c.b16 %v3964, %v3960
        %v6121 = vpack.c.b16 %v3965, %v3961
        %v6122 = vpack.c.b16 %v3966, %v3962
        %v6123 = vpack.c.b16 %v3967, %v3963
        %v6124 = vpack.c.b16 %v3972, %v3968
        %v6125 = vpack.c.b16 %v3973, %v3969
        %v6126 = vpack.c.b16 %v3974, %v3970
        %v6127 = vpack.c.b16 %v3975, %v3971
        %v6128 = vpack.c.b16 %v3980, %v3976
        %v6129 = vpack.c.b16 %v3981, %v3977
        %v6130 = vpack.c.b16 %v3982, %v3978
        %v6131 = vpack.c.b16 %v3983, %v3979
        %v6132 = vpack.c.b16 %v3988, %v3984
        %v6133 = vpack.c.b16 %v3989, %v3985
        %v6134 = vpack.c.b16 %v3990, %v3986
        %v6135 = vpack.c.b16 %v3991, %v3987
        %v6136 = vpack.c.b16 %v3996, %v3992
        %v6137 = vpack.c.b16 %v3997, %v3993
        %v6138 = vpack.c.b16 %v3998, %v3994
        %v6139 = vpack.c.b16 %v3999, %v3995
        %v6140 = vpack.c.b16 %v4004, %v4000
        %v6141 = vpack.c.b16 %v4005, %v4001
        %v6142 = vpack.c.b16 %v4006, %v4002
        %v6143 = vpack.c.b16 %v4007, %v4003
        %v6144 = vpack.c.b16 %v4012, %v4008
        %v6145 = vpack.c.b16 %v4013, %v4009
        %v6146 = vpack.c.b16 %v4014, %v4010
        %v6147 = vpack.c.b16 %v4015, %v4011
        %v6148 = vpack.c.b16 %v4020, %v4016
        %v6149 = vpack.c.b16 %v4021, %v4017
        %v6150 = vpack.c.b16 %v4022, %v4018
        %v6151 = vpack.c.b16 %v4023, %v4019
        %v6152 = vpack.c.b16 %v4028, %v4024
        %v6153 = vpack.c.b16 %v4029, %v4025
        %v6154 = vpack.c.b16 %v4030, %v4026
        %v6155 = vpack.c.b16 %v4031, %v4027
        %v6156 = vpack.c.b16 %v4036, %v4032
        %v6157 = vpack.c.b16 %v4037, %v4033
        %v6158 = vpack.c.b16 %v4038, %v4034
        %v6159 = vpack.c.b16 %v4039, %v4035
        %v6160 = vpack.c.b16 %v4044, %v4040
        %v6161 = vpack.c.b16 %v4045, %v4041
        %v6162 = vpack.c.b16 %v4046, %v4042
        %v6163 = vpack.c.b16 %v4047, %v4043
        %v6164 = vpack.c.b16 %v4052, %v4048
        %v6165 = vpack.c.b16 %v4053, %v4049
        %v6166 = vpack.c.b16 %v4054, %v4050
        %v6167 = vpack.c.b16 %v4055, %v4051
        %v6168 = vpack.c.b16 %v4060, %v4056
        %v6169 = vpack.c.b16 %v4061, %v4057
        %v6170 = vpack.c.b16 %v4062, %v4058
        %v6171 = vpack.c.b16 %v4063, %v4059
        %v6172 = vpack.c.b16 %v4068, %v4064
        %v6173 = vpack.c.b16 %v4069, %v4065
        %v6174 = vpack.c.b16 %v4070, %v4066
        %v6175 = vpack.c.b16 %v4071, %v4067
        %v6176 = vpack.c.b16 %v4076, %v4072
        %v6177 = vpack.c.b16 %v4077, %v4073
        %v6178 = vpack.c.b16 %v4078, %v4074
        %v6179 = vpack.c.b16 %v4079, %v4075
        %v6180 = vpack.c.b16 %v4084, %v4080
        %v6181 = vpack.c.b16 %v4085, %v4081
        %v6182 = vpack.c.b16 %v4086, %v4082
        %v6183 = vpack.c.b16 %v4087, %v4083
        %v6184 = vpack.c.b16 %v4092, %v4088
        %v6185 = vpack.c.b16 %v4093, %v4089
        %v6186 = vpack.c.b16 %v4094, %v4090
        %v6187 = vpack.c.b16 %v4095, %v4091
        %v6188 = vpack.c.b16 %v4100, %v4096
        %v6189 = vpack.c.b16 %v4101, %v4097
        %v6190 = vpack.c.b16 %v4102, %v4098
        %v6191 = vpack.c.b16 %v4103, %v4099
        %v6192 = vpack.c.b16 %v4108, %v4104
        %v6193 = vpack.c.b16 %v4109, %v4105
        %v6194 = vpack.c.b16 %v4110, %v4106
        %v6195 = vpack.c.b16 %v4111, %v4107
        %v6196 = vpack.c.b16 %v4116, %v4112
        %v6197 = vpack.c.b16 %v4117, %v4113
        %v6198 = vpack.c.b16 %v4118, %v4114
        %v6199 = vpack.c.b16 %v4119, %v4115
        %v6200 = vpack.c.b16 %v4124, %v4120
        %v6201 = vpack.c.b16 %v4125, %v4121
        %v6202 = vpack.c.b16 %v4126, %v4122
        %v6203 = vpack.c.b16 %v4127, %v4123
        %v6204 = vpack.c.b16 %v4132, %v4128
        %v6205 = vpack.c.b16 %v4133, %v4129
        %v6206 = vpack.c.b16 %v4134, %v4130
        %v6207 = vpack.c.b16 %v4135, %v4131
        %v6208 = vpack.c.b16 %v4140, %v4136
        %v6209 = vpack.c.b16 %v4141, %v4137
        %v6210 = vpack.c.b16 %v4142, %v4138
        %v6211 = vpack.c.b16 %v4143, %v4139
        %v6212 = vpack.c.b16 %v4148, %v4144
        %v6213 = vpack.c.b16 %v4149, %v4145
        %v6214 = vpack.c.b16 %v4150, %v4146
        %v6215 = vpack.c.b16 %v4151, %v4147
        %v6216 = vpack.c.b16 %v4156, %v4152
        %v6217 = vpack.c.b16 %v4157, %v4153
        %v6218 = vpack.c.b16 %v4158, %v4154
        %v6219 = vpack.c.b16 %v4159, %v4155
        %v6220 = vpack.c.b16 %v4164, %v4160
        %v6221 = vpack.c.b16 %v4165, %v4161
        %v6222 = vpack.c.b16 %v4166, %v4162
        %v6223 = vpack.c.b16 %v4167, %v4163
        %v6224 = vpack.c.b16 %v4172, %v4168
        %v6225 = vpack.c.b16 %v4173, %v4169
        %v6226 = vpack.c.b16 %v4174, %v4170
        %v6227 = vpack.c.b16 %v4175, %v4171
        %v6228 = vpack.c.b16 %v4180, %v4176
        %v6229 = vpack.c.b16 %v4181, %v4177
        %v6230 = vpack.c.b16 %v4182, %v4178
        %v6231 = vpack.c.b16 %v4183, %v4179
        %v6232 = vpack.c.b16 %v4188, %v4184
        %v6233 = vpack.c.b16 %v4189, %v4185
        %v6234 = vpack.c.b16 %v4190, %v4186
        %v6235 = vpack.c.b16 %v4191, %v4187
        %v6236 = vpack.c.b16 %v4196, %v4192
        %v6237 = vpack.c.b16 %v4197, %v4193
        %v6238 = vpack.c.b16 %v4198, %v4194
        %v6239 = vpack.c.b16 %v4199, %v4195
        %v6240 = vpack.c.b16 %v4204, %v4200
        %v6241 = vpack.c.b16 %v4205, %v4201
        %v6242 = vpack.c.b16 %v4206, %v4202
        %v6243 = vpack.c.b16 %v4207, %v4203
        %v6244 = vpack.c.b16 %v4212, %v4208
        %v6245 = vpack.c.b16 %v4213, %v4209
        %v6246 = vpack.c.b16 %v4214, %v4210
        %v6247 = vpack.c.b16 %v4215, %v4211
        %v6248 = vpack.c.b16 %v4220, %v4216
        %v6249 = vpack.c.b16 %v4221, %v4217
        %v6250 = vpack.c.b16 %v4222, %v4218
        %v6251 = vpack.c.b16 %v4223, %v4219
        %v6252 = vpack.c.b16 %v4228, %v4224
        %v6253 = vpack.c.b16 %v4229, %v4225
        %v6254 = vpack.c.b16 %v4230, %v4226
        %v6255 = vpack.c.b16 %v4231, %v4227
        %v6256 = vpack.c.b16 %v4236, %v4232
        %v6257 = vpack.c.b16 %v4237, %v4233
        %v6258 = vpack.c.b16 %v4238, %v4234
        %v6259 = vpack.c.b16 %v4239, %v4235
        %v6260 = vpack.c.b16 %v4244, %v4240
        %v6261 = vpack.c.b16 %v4245, %v4241
        %v6262 = vpack.c.b16 %v4246, %v4242
        %v6263 = vpack.c.b16 %v4247, %v4243
        %v6264 = vpack.c.b16 %v4252, %v4248
        %v6265 = vpack.c.b16 %v4253, %v4249
        %v6266 = vpack.c.b16 %v4254, %v4250
        %v6267 = vpack.c.b16 %v4255, %v4251
        %v6268 = vpack.c.b16 %v4260, %v4256
        %v6269 = vpack.c.b16 %v4261, %v4257
        %v6270 = vpack.c.b16 %v4262, %v4258
        %v6271 = vpack.c.b16 %v4263, %v4259
        %v6272 = vpack.c.b16 %v4268, %v4264
        %v6273 = vpack.c.b16 %v4269, %v4265
        %v6274 = vpack.c.b16 %v4270, %v4266
        %v6275 = vpack.c.b16 %v4271, %v4267
        %v6276 = vpack.c.b16 %v4276, %v4272
        %v6277 = vpack.c.b16 %v4277, %v4273
        %v6278 = vpack.c.b16 %v4278, %v4274
        %v6279 = vpack.c.b16 %v4279, %v4275
        %v6280 = vpack.c.b16 %v4284, %v4280
        %v6281 = vpack.c.b16 %v4285, %v4281
        %v6282 = vpack.c.b16 %v4286, %v4282
        %v6283 = vpack.c.b16 %v4287, %v4283
        %v6284 = vpack.c.b16 %v4292, %v4288
        %v6285 = vpack.c.b16 %v4293, %v4289
        %v6286 = vpack.c.b16 %v4294, %v4290
        %v6287 = vpack.c.b16 %v4295, %v4291
        %v6288 = vpack.c.b16 %v4300, %v4296
        %v6289 = vpack.c.b16 %v4301, %v4297
        %v6290 = vpack.c.b16 %v4302, %v4298
        %v6291 = vpack.c.b16 %v4303, %v4299
        %v6292 = vpack.c.b16 %v4308, %v4304
        %v6293 = vpack.c.b16 %v4309, %v4305
        %v6294 = vpack.c.b16 %v4310, %v4306
        %v6295 = vpack.c.b16 %v4311, %v4307
        %v6296 = vpack.c.b16 %v4316, %v4312
        %v6297 = vpack.c.b16 %v4317, %v4313
        %v6298 = vpack.c.b16 %v4318, %v4314
        %v6299 = vpack.c.b16 %v4319, %v4315
        %v6300 = vpack.c.b16 %v4324, %v4320
        %v6301 = vpack.c.b16 %v4325, %v4321
        %v6302 = vpack.c.b16 %v4326, %v4322
        %v6303 = vpack.c.b16 %v4327, %v4323
        %v6304 = vpack.c.b16 %v4332, %v4328
        %v6305 = vpack.c.b16 %v4333, %v4329
        %v6306 = vpack.c.b16 %v4334, %v4330
        %v6307 = vpack.c.b16 %v4335, %v4331
        %v6308 = vpack.c.b16 %v4340, %v4336
        %v6309 = vpack.c.b16 %v4341, %v4337
        %v6310 = vpack.c.b16 %v4342, %v4338
        %v6311 = vpack.c.b16 %v4343, %v4339
        %v6312 = vpack.c.b16 %v4348, %v4344
        %v6313 = vpack.c.b16 %v4349, %v4345
        %v6314 = vpack.c.b16 %v4350, %v4346
        %v6315 = vpack.c.b16 %v4351, %v4347
        %v6316 = vpack.c.b16 %v4356, %v4352
        %v6317 = vpack.c.b16 %v4357, %v4353
        %v6318 = vpack.c.b16 %v4358, %v4354
        %v6319 = vpack.c.b16 %v4359, %v4355
        %v6320 = vpack.c.b16 %v4364, %v4360
        %v6321 = vpack.c.b16 %v4365, %v4361
        %v6322 = vpack.c.b16 %v4366, %v4362
        %v6323 = vpack.c.b16 %v4367, %v4363
        %v6324 = vpack.c.b16 %v4372, %v4368
        %v6325 = vpack.c.b16 %v4373, %v4369
        %v6326 = vpack.c.b16 %v4374, %v4370
        %v6327 = vpack.c.b16 %v4375, %v4371
        %v6328 = vpack.c.b16 %v4380, %v4376
        %v6329 = vpack.c.b16 %v4381, %v4377
        %v6330 = vpack.c.b16 %v4382, %v4378
        %v6331 = vpack.c.b16 %v4383, %v4379
        %v6332 = vpack.c.b16 %v4388, %v4384
        %v6333 = vpack.c.b16 %v4389, %v4385
        %v6334 = vpack.c.b16 %v4390, %v4386
        %v6335 = vpack.c.b16 %v4391, %v4387
        %v6336 = vpack.c.b16 %v4396, %v4392
        %v6337 = vpack.c.b16 %v4397, %v4393
        %v6338 = vpack.c.b16 %v4398, %v4394
        %v6339 = vpack.c.b16 %v4399, %v4395
        %v6340 = vpack.c.b16 %v4404, %v4400
        %v6341 = vpack.c.b16 %v4405, %v4401
        %v6342 = vpack.c.b16 %v4406, %v4402
        %v6343 = vpack.c.b16 %v4407, %v4403
        %v6344 = vpack.c.b16 %v4412, %v4408
        %v6345 = vpack.c.b16 %v4413, %v4409
        %v6346 = vpack.c.b16 %v4414, %v4410
        %v6347 = vpack.c.b16 %v4415, %v4411
        %v6348 = vpack.c.b16 %v4420, %v4416
        %v6349 = vpack.c.b16 %v4421, %v4417
        %v6350 = vpack.c.b16 %v4422, %v4418
        %v6351 = vpack.c.b16 %v4423, %v4419
        %v6352 = vpack.c.b16 %v4428, %v4424
        %v6353 = vpack.c.b16 %v4429, %v4425
        %v6354 = vpack.c.b16 %v4430, %v4426
        %v6355 = vpack.c.b16 %v4431, %v4427
        %v6356 = vpack.c.b16 %v4436, %v4432
        %v6357 = vpack.c.b16 %v4437, %v4433
        %v6358 = vpack.c.b16 %v4438, %v4434
        %v6359 = vpack.c.b16 %v4439, %v4435
        %v6360 = vpack.c.b16 %v4444, %v4440
        %v6361 = vpack.c.b16 %v4445, %v4441
        %v6362 = vpack.c.b16 %v4446, %v4442
        %v6363 = vpack.c.b16 %v4447, %v4443
        %v6364 = vpack.c.b16 %v4452, %v4448
        %v6365 = vpack.c.b16 %v4453, %v4449
        %v6366 = vpack.c.b16 %v4454, %v4450
        %v6367 = vpack.c.b16 %v4455, %v4451
        %v6368 = vpack.c.b16 %v4460, %v4456
        %v6369 = vpack.c.b16 %v4461, %v4457
        %v6370 = vpack.c.b16 %v4462, %v4458
        %v6371 = vpack.c.b16 %v4463, %v4459
        %v6372 = vpack.c.b16 %v4468, %v4464
        %v6373 = vpack.c.b16 %v4469, %v4465
        %v6374 = vpack.c.b16 %v4470, %v4466
        %v6375 = vpack.c.b16 %v4471, %v4467
        %v6376 = vpack.c.b16 %v4476, %v4472
        %v6377 = vpack.c.b16 %v4477, %v4473
        %v6378 = vpack.c.b16 %v4478, %v4474
        %v6379 = vpack.c.b16 %v4479, %v4475
        %v6380 = vpack.c.b16 %v4484, %v4480
        %v6381 = vpack.c.b16 %v4485, %v4481
        %v6382 = vpack.c.b16 %v4486, %v4482
        %v6383 = vpack.c.b16 %v4487, %v4483
        %v6384 = vpack.c.b16 %v4492, %v4488
        %v6385 = vpack.c.b16 %v4493, %v4489
        %v6386 = vpack.c.b16 %v4494, %v4490
        %v6387 = vpack.c.b16 %v4495, %v4491
        %v6388 = vpack.c.b16 %v4500, %v4496
        %v6389 = vpack.c.b16 %v4501, %v4497
        %v6390 = vpack.c.b16 %v4502, %v4498
        %v6391 = vpack.c.b16 %v4503, %v4499
        %v6392 = vpack.c.b16 %v4508, %v4504
        %v6393 = vpack.c.b16 %v4509, %v4505
        %v6394 = vpack.c.b16 %v4510, %v4506
        %v6395 = vpack.c.b16 %v4511, %v4507
        %v6396 = vpack.c.b16 %v4516, %v4512
        %v6397 = vpack.c.b16 %v4517, %v4513
        %v6398 = vpack.c.b16 %v4518, %v4514
        %v6399 = vpack.c.b16 %v4519, %v4515
        %v6400 = vpack.c.b16 %v4524, %v4520
        %v6401 = vpack.c.b16 %v4525, %v4521
        %v6402 = vpack.c.b16 %v4526, %v4522
        %v6403 = vpack.c.b16 %v4527, %v4523
        %v6404 = vpack.c.b16 %v4532, %v4528
        %v6405 = vpack.c.b16 %v4533, %v4529
        %v6406 = vpack.c.b16 %v4534, %v4530
        %v6407 = vpack.c.b16 %v4535, %v4531
        %v6408 = vpack.c.b16 %v4540, %v4536
        %v6409 = vpack.c.b16 %v4541, %v4537
        %v6410 = vpack.c.b16 %v4542, %v4538
        %v6411 = vpack.c.b16 %v4543, %v4539
        %v6412 = vpack.c.b16 %v4548, %v4544
        %v6413 = vpack.c.b16 %v4549, %v4545
        %v6414 = vpack.c.b16 %v4550, %v4546
        %v6415 = vpack.c.b16 %v4551, %v4547
        %v6416 = vpack.c.b16 %v4556, %v4552
        %v6417 = vpack.c.b16 %v4557, %v4553
        %v6418 = vpack.c.b16 %v4558, %v4554
        %v6419 = vpack.c.b16 %v4559, %v4555
        %v6420 = vpack.c.b16 %v4564, %v4560
        %v6421 = vpack.c.b16 %v4565, %v4561
        %v6422 = vpack.c.b16 %v4566, %v4562
        %v6423 = vpack.c.b16 %v4567, %v4563
        %v6424 = vpack.c.b16 %v4572, %v4568
        %v6425 = vpack.c.b16 %v4573, %v4569
        %v6426 = vpack.c.b16 %v4574, %v4570
        %v6427 = vpack.c.b16 %v4575, %v4571
        %v6428 = vpack.c.b16 %v4580, %v4576
        %v6429 = vpack.c.b16 %v4581, %v4577
        %v6430 = vpack.c.b16 %v4582, %v4578
        %v6431 = vpack.c.b16 %v4583, %v4579
        %v6432 = vpack.c.b16 %v4588, %v4584
        %v6433 = vpack.c.b16 %v4589, %v4585
        %v6434 = vpack.c.b16 %v4590, %v4586
        %v6435 = vpack.c.b16 %v4591, %v4587
        %v6436 = vpack.c.b16 %v4596, %v4592
        %v6437 = vpack.c.b16 %v4597, %v4593
        %v6438 = vpack.c.b16 %v4598, %v4594
        %v6439 = vpack.c.b16 %v4599, %v4595
        %v6440 = vpack.c.b16 %v4604, %v4600
        %v6441 = vpack.c.b16 %v4605, %v4601
        %v6442 = vpack.c.b16 %v4606, %v4602
        %v6443 = vpack.c.b16 %v4607, %v4603
        %v6444 = vpack.c.b16 %v4612, %v4608
        %v6445 = vpack.c.b16 %v4613, %v4609
        %v6446 = vpack.c.b16 %v4614, %v4610
        %v6447 = vpack.c.b16 %v4615, %v4611
        %v6448 = vpack.c.b16 %v4620, %v4616
        %v6449 = vpack.c.b16 %v4621, %v4617
        %v6450 = vpack.c.b16 %v4622, %v4618
        %v6451 = vpack.c.b16 %v4623, %v4619
        %v6452 = vpack.c.b16 %v4628, %v4624
        %v6453 = vpack.c.b16 %v4629, %v4625
        %v6454 = vpack.c.b16 %v4630, %v4626
        %v6455 = vpack.c.b16 %v4631, %v4627
        %v6456 = vpack.c.b16 %v4636, %v4632
        %v6457 = vpack.c.b16 %v4637, %v4633
        %v6458 = vpack.c.b16 %v4638, %v4634
        %v6459 = vpack.c.b16 %v4639, %v4635
        %v6460 = vpack.c.b16 %v4644, %v4640
        %v6461 = vpack.c.b16 %v4645, %v4641
        %v6462 = vpack.c.b16 %v4646, %v4642
        %v6463 = vpack.c.b16 %v4647, %v4643
        %v6464 = vpack.c.b16 %v4652, %v4648
        %v6465 = vpack.c.b16 %v4653, %v4649
        %v6466 = vpack.c.b16 %v4654, %v4650
        %v6467 = vpack.c.b16 %v4655, %v4651
        %v6468 = vpack.c.b16 %v4660, %v4656
        %v6469 = vpack.c.b16 %v4661, %v4657
        %v6470 = vpack.c.b16 %v4662, %v4658
        %v6471 = vpack.c.b16 %v4663, %v4659
        %v6472 = vpack.c.b16 %v4668, %v4664
        %v6473 = vpack.c.b16 %v4669, %v4665
        %v6474 = vpack.c.b16 %v4670, %v4666
        %v6475 = vpack.c.b16 %v4671, %v4667
        %v6476 = vpack.c.b16 %v4676, %v4672
        %v6477 = vpack.c.b16 %v4677, %v4673
        %v6478 = vpack.c.b16 %v4678, %v4674
        %v6479 = vpack.c.b16 %v4679, %v4675
        %v6480 = vpack.c.b16 %v4684, %v4680
        %v6481 = vpack.c.b16 %v4685, %v4681
        %v6482 = vpack.c.b16 %v4686, %v4682
        %v6483 = vpack.c.b16 %v4687, %v4683
        %v6484 = vpack.c.b16 %v4692, %v4688
        %v6485 = vpack.c.b16 %v4693, %v4689
        %v6486 = vpack.c.b16 %v4694, %v4690
        %v6487 = vpack.c.b16 %v4695, %v4691
        %v6488 = vpack.c.b16 %v4700, %v4696
        %v6489 = vpack.c.b16 %v4701, %v4697
        %v6490 = vpack.c.b16 %v4702, %v4698
        %v6491 = vpack.c.b16 %v4703, %v4699
        %v6492 = vpack.c.b16 %v4708, %v4704
        %v6493 = vpack.c.b16 %v4709, %v4705
        %v6494 = vpack.c.b16 %v4710, %v4706
        %v6495 = vpack.c.b16 %v4711, %v4707
        %v6496 = vpack.c.b16 %v4716, %v4712
        %v6497 = vpack.c.b16 %v4717, %v4713
        %v6498 = vpack.c.b16 %v4718, %v4714
        %v6499 = vpack.c.b16 %v4719, %v4715
        %v6500 = vpack.c.b16 %v4724, %v4720
        %v6501 = vpack.c.b16 %v4725, %v4721
        %v6502 = vpack.c.b16 %v4726, %v4722
        %v6503 = vpack.c.b16 %v4727, %v4723
        %v6504 = vpack.c.b16 %v4732, %v4728
        %v6505 = vpack.c.b16 %v4733, %v4729
        %v6506 = vpack.c.b16 %v4734, %v4730
        %v6507 = vpack.c.b16 %v4735, %v4731
        %v6508 = vpack.c.b16 %v4740, %v4736
        %v6509 = vpack.c.b16 %v4741, %v4737
        %v6510 = vpack.c.b16 %v4742, %v4738
        %v6511 = vpack.c.b16 %v4743, %v4739
        %v6512 = vpack.c.b16 %v4748, %v4744
        %v6513 = vpack.c.b16 %v4749, %v4745
        %v6514 = vpack.c.b16 %v4750, %v4746
        %v6515 = vpack.c.b16 %v4751, %v4747
        %v6516 = vpack.c.b16 %v4756, %v4752
        %v6517 = vpack.c.b16 %v4757, %v4753
        %v6518 = vpack.c.b16 %v4758, %v4754
        %v6519 = vpack.c.b16 %v4759, %v4755
        %v6520 = vpack.c.b16 %v4764, %v4760
        %v6521 = vpack.c.b16 %v4765, %v4761
        %v6522 = vpack.c.b16 %v4766, %v4762
        %v6523 = vpack.c.b16 %v4767, %v4763
        %v6524 = vpack.c.b16 %v4772, %v4768
        %v6525 = vpack.c.b16 %v4773, %v4769
        %v6526 = vpack.c.b16 %v4774, %v4770
        %v6527 = vpack.c.b16 %v4775, %v4771
        %v6528 = vpack.c.b16 %v4780, %v4776
        %v6529 = vpack.c.b16 %v4781, %v4777
        %v6530 = vpack.c.b16 %v4782, %v4778
        %v6531 = vpack.c.b16 %v4783, %v4779
        %v6532 = vpack.c.b16 %v4788, %v4784
        %v6533 = vpack.c.b16 %v4789, %v4785
        %v6534 = vpack.c.b16 %v4790, %v4786
        %v6535 = vpack.c.b16 %v4791, %v4787
        %v6536 = vpack.c.b16 %v4796, %v4792
        %v6537 = vpack.c.b16 %v4797, %v4793
        %v6538 = vpack.c.b16 %v4798, %v4794
        %v6539 = vpack.c.b16 %v4799, %v4795
        %v6540 = vpack.c.b16 %v4804, %v4800
        %v6541 = vpack.c.b16 %v4805, %v4801
        %v6542 = vpack.c.b16 %v4806, %v4802
        %v6543 = vpack.c.b16 %v4807, %v4803
        %v6544 = vpack.c.b16 %v4812, %v4808
        %v6545 = vpack.c.b16 %v4813, %v4809
        %v6546 = vpack.c.b16 %v4814, %v4810
        %v6547 = vpack.c.b16 %v4815, %v4811
        %v6548 = vpack.c.b16 %v4820, %v4816
        %v6549 = vpack.c.b16 %v4821, %v4817
        %v6550 = vpack.c.b16 %v4822, %v4818
        %v6551 = vpack.c.b16 %v4823, %v4819
        %v6552 = vpack.c.b16 %v4828, %v4824
        %v6553 = vpack.c.b16 %v4829, %v4825
        %v6554 = vpack.c.b16 %v4830, %v4826
        %v6555 = vpack.c.b16 %v4831, %v4827
        %v6556 = vpack.c.b16 %v4836, %v4832
        %v6557 = vpack.c.b16 %v4837, %v4833
        %v6558 = vpack.c.b16 %v4838, %v4834
        %v6559 = vpack.c.b16 %v4839, %v4835
        %v6560 = vpack.c.b16 %v4844, %v4840
        %v6561 = vpack.c.b16 %v4845, %v4841
        %v6562 = vpack.c.b16 %v4846, %v4842
        %v6563 = vpack.c.b16 %v4847, %v4843
        %v6564 = vpack.c.b16 %v4852, %v4848
        %v6565 = vpack.c.b16 %v4853, %v4849
        %v6566 = vpack.c.b16 %v4854, %v4850
        %v6567 = vpack.c.b16 %v4855, %v4851
        %v6568 = vpack.c.b16 %v4860, %v4856
        %v6569 = vpack.c.b16 %v4861, %v4857
        %v6570 = vpack.c.b16 %v4862, %v4858
        %v6571 = vpack.c.b16 %v4863, %v4859
        %v6572 = vpack.c.b16 %v4868, %v4864
        %v6573 = vpack.c.b16 %v4869, %v4865
        %v6574 = vpack.c.b16 %v4870, %v4866
        %v6575 = vpack.c.b16 %v4871, %v4867
        %v6576 = vpack.c.b16 %v4876, %v4872
        %v6577 = vpack.c.b16 %v4877, %v4873
        %v6578 = vpack.c.b16 %v4878, %v4874
        %v6579 = vpack.c.b16 %v4879, %v4875
        %v6580 = vpack.c.b16 %v4884, %v4880
        %v6581 = vpack.c.b16 %v4885, %v4881
        %v6582 = vpack.c.b16 %v4886, %v4882
        %v6583 = vpack.c.b16 %v4887, %v4883
        %v6584 = vpack.c.b16 %v4892, %v4888
        %v6585 = vpack.c.b16 %v4893, %v4889
        %v6586 = vpack.c.b16 %v4894, %v4890
        %v6587 = vpack.c.b16 %v4895, %v4891
        %v6588 = vpack.c.b16 %v4900, %v4896
        %v6589 = vpack.c.b16 %v4901, %v4897
        %v6590 = vpack.c.b16 %v4902, %v4898
        %v6591 = vpack.c.b16 %v4903, %v4899
        %v6592 = vpack.c.b16 %v4908, %v4904
        %v6593 = vpack.c.b16 %v4909, %v4905
        %v6594 = vpack.c.b16 %v4910, %v4906
        %v6595 = vpack.c.b16 %v4911, %v4907
        %v6596 = vpack.c.b16 %v4916, %v4912
        %v6597 = vpack.c.b16 %v4917, %v4913
        %v6598 = vpack.c.b16 %v4918, %v4914
        %v6599 = vpack.c.b16 %v4919, %v4915
        %v6600 = vpack.c.b16 %v4924, %v4920
        %v6601 = vpack.c.b16 %v4925, %v4921
        %v6602 = vpack.c.b16 %v4926, %v4922
        %v6603 = vpack.c.b16 %v4927, %v4923
        %v6604 = vpack.c.b16 %v4932, %v4928
        %v6605 = vpack.c.b16 %v4933, %v4929
        %v6606 = vpack.c.b16 %v4934, %v4930
        %v6607 = vpack.c.b16 %v4935, %v4931
        %v6608 = vpack.c.b16 %v4940, %v4936
        %v6609 = vpack.c.b16 %v4941, %v4937
        %v6610 = vpack.c.b16 %v4942, %v4938
        %v6611 = vpack.c.b16 %v4943, %v4939
        %v6612 = vpack.c.b16 %v4948, %v4944
        %v6613 = vpack.c.b16 %v4949, %v4945
        %v6614 = vpack.c.b16 %v4950, %v4946
        %v6615 = vpack.c.b16 %v4951, %v4947
        %v6616 = vpack.c.b16 %v4956, %v4952
        %v6617 = vpack.c.b16 %v4957, %v4953
        %v6618 = vpack.c.b16 %v4958, %v4954
        %v6619 = vpack.c.b16 %v4959, %v4955
        %v6620 = vpack.c.b16 %v4964, %v4960
        %v6621 = vpack.c.b16 %v4965, %v4961
        %v6622 = vpack.c.b16 %v4966, %v4962
        %v6623 = vpack.c.b16 %v4967, %v4963
        %v6624 = vpack.c.b16 %v4972, %v4968
        %v6625 = vpack.c.b16 %v4973, %v4969
        %v6626 = vpack.c.b16 %v4974, %v4970
        %v6627 = vpack.c.b16 %v4975, %v4971
        %v6628 = vpack.c.b16 %v4980, %v4976
        %v6629 = vpack.c.b16 %v4981, %v4977
        %v6630 = vpack.c.b16 %v4982, %v4978
        %v6631 = vpack.c.b16 %v4983, %v4979
        %v6632 = vpack.c.b16 %v4988, %v4984
        %v6633 = vpack.c.b16 %v4989, %v4985
        %v6634 = vpack.c.b16 %v4990, %v4986
        %v6635 = vpack.c.b16 %v4991, %v4987
        %v6636 = vpack.c.b16 %v4996, %v4992
        %v6637 = vpack.c.b16 %v4997, %v4993
        %v6638 = vpack.c.b16 %v4998, %v4994
        %v6639 = vpack.c.b16 %v4999, %v4995
        %v6640 = vpack.c.b16 %v5004, %v5000
        %v6641 = vpack.c.b16 %v5005, %v5001
        %v6642 = vpack.c.b16 %v5006, %v5002
        %v6643 = vpack.c.b16 %v5007, %v5003
        %v6644 = vpack.c.b16 %v5012, %v5008
        %v6645 = vpack.c.b16 %v5013, %v5009
        %v6646 = vpack.c.b16 %v5014, %v5010
        %v6647 = vpack.c.b16 %v5015, %v5011
        %v6648 = vpack.c.b16 %v5020, %v5016
        %v6649 = vpack.c.b16 %v5021, %v5017
        %v6650 = vpack.c.b16 %v5022, %v5018
        %v6651 = vpack.c.b16 %v5023, %v5019
        %v6652 = vpack.c.b16 %v5028, %v5024
        %v6653 = vpack.c.b16 %v5029, %v5025
        %v6654 = vpack.c.b16 %v5030, %v5026
        %v6655 = vpack.c.b16 %v5031, %v5027
        %v6656 = vpack.c.b16 %v5036, %v5032
        %v6657 = vpack.c.b16 %v5037, %v5033
        %v6658 = vpack.c.b16 %v5038, %v5034
        %v6659 = vpack.c.b16 %v5039, %v5035
        %v6660 = vpack.c.b16 %v5044, %v5040
        %v6661 = vpack.c.b16 %v5045, %v5041
        %v6662 = vpack.c.b16 %v5046, %v5042
        %v6663 = vpack.c.b16 %v5047, %v5043
        %v6664 = vpack.c.b16 %v5052, %v5048
        %v6665 = vpack.c.b16 %v5053, %v5049
        %v6666 = vpack.c.b16 %v5054, %v5050
        %v6667 = vpack.c.b16 %v5055, %v5051
        %v6668 = vpack.c.b16 %v5060, %v5056
        %v6669 = vpack.c.b16 %v5061, %v5057
        %v6670 = vpack.c.b16 %v5062, %v5058
        %v6671 = vpack.c.b16 %v5063, %v5059
        %v6672 = vpack.c.b16 %v5068, %v5064
        %v6673 = vpack.c.b16 %v5069, %v5065
        %v6674 = vpack.c.b16 %v5070, %v5066
        %v6675 = vpack.c.b16 %v5071, %v5067
        %v6676 = vpack.c.b16 %v5076, %v5072
        %v6677 = vpack.c.b16 %v5077, %v5073
        %v6678 = vpack.c.b16 %v5078, %v5074
        %v6679 = vpack.c.b16 %v5079, %v5075
        %v6680 = vpack.c.b16 %v5084, %v5080
        %v6681 = vpack.c.b16 %v5085, %v5081
        %v6682 = vpack.c.b16 %v5086, %v5082
        %v6683 = vpack.c.b16 %v5087, %v5083
        %v6684 = vpack.c.b16 %v5092, %v5088
        %v6685 = vpack.c.b16 %v5093, %v5089
        %v6686 = vpack.c.b16 %v5094, %v5090
        %v6687 = vpack.c.b16 %v5095, %v5091
        %v6688 = vpack.c.b16 %v5100, %v5096
        %v6689 = vpack.c.b16 %v5101, %v5097
        %v6690 = vpack.c.b16 %v5102, %v5098
        %v6691 = vpack.c.b16 %v5103, %v5099
        %v6692 = vpack.c.b16 %v5108, %v5104
        %v6693 = vpack.c.b16 %v5109, %v5105
        %v6694 = vpack.c.b16 %v5110, %v5106
        %v6695 = vpack.c.b16 %v5111, %v5107
        %v6696 = vpack.c.b16 %v5116, %v5112
        %v6697 = vpack.c.b16 %v5117, %v5113
        %v6698 = vpack.c.b16 %v5118, %v5114
        %v6699 = vpack.c.b16 %v5119, %v5115
        %v6700 = vpack.c.b16 %v5124, %v5120
        %v6701 = vpack.c.b16 %v5125, %v5121
        %v6702 = vpack.c.b16 %v5126, %v5122
        %v6703 = vpack.c.b16 %v5127, %v5123
        %v6704 = vpack.c.b16 %v5132, %v5128
        %v6705 = vpack.c.b16 %v5133, %v5129
        %v6706 = vpack.c.b16 %v5134, %v5130
        %v6707 = vpack.c.b16 %v5135, %v5131
        %v6708 = vpack.c.b16 %v5140, %v5136
        %v6709 = vpack.c.b16 %v5141, %v5137
        %v6710 = vpack.c.b16 %v5142, %v5138
        %v6711 = vpack.c.b16 %v5143, %v5139
        %v6712 = vpack.c.b16 %v5148, %v5144
        %v6713 = vpack.c.b16 %v5149, %v5145
        %v6714 = vpack.c.b16 %v5150, %v5146
        %v6715 = vpack.c.b16 %v5151, %v5147
        %v6716 = vpack.c.b16 %v5156, %v5152
        %v6717 = vpack.c.b16 %v5157, %v5153
        %v6718 = vpack.c.b16 %v5158, %v5154
        %v6719 = vpack.c.b16 %v5159, %v5155
        %v6720 = vpack.c.b16 %v5164, %v5160
        %v6721 = vpack.c.b16 %v5165, %v5161
        %v6722 = vpack.c.b16 %v5166, %v5162
        %v6723 = vpack.c.b16 %v5167, %v5163
        %v6724 = vpack.c.b16 %v5172, %v5168
        %v6725 = vpack.c.b16 %v5173, %v5169
        %v6726 = vpack.c.b16 %v5174, %v5170
        %v6727 = vpack.c.b16 %v5175, %v5171
        %v6728 = vpack.c.b16 %v5180, %v5176
        %v6729 = vpack.c.b16 %v5181, %v5177
        %v6730 = vpack.c.b16 %v5182, %v5178
        %v6731 = vpack.c.b16 %v5183, %v5179
        %v6732 = vpack.c.b16 %v5188, %v5184
        %v6733 = vpack.c.b16 %v5189, %v5185
        %v6734 = vpack.c.b16 %v5190, %v5186
        %v6735 = vpack.c.b16 %v5191, %v5187
        %v6736 = vpack.c.b16 %v5196, %v5192
        %v6737 = vpack.c.b16 %v5197, %v5193
        %v6738 = vpack.c.b16 %v5198, %v5194
        %v6739 = vpack.c.b16 %v5199, %v5195
        %v6740 = vpack.c.b16 %v5204, %v5200
        %v6741 = vpack.c.b16 %v5205, %v5201
        %v6742 = vpack.c.b16 %v5206, %v5202
        %v6743 = vpack.c.b16 %v5207, %v5203
        %v6744 = vpack.c.b16 %v5212, %v5208
        %v6745 = vpack.c.b16 %v5213, %v5209
        %v6746 = vpack.c.b16 %v5214, %v5210
        %v6747 = vpack.c.b16 %v5215, %v5211
        %v6748 = vpack.c.b16 %v5220, %v5216
        %v6749 = vpack.c.b16 %v5221, %v5217
        %v6750 = vpack.c.b16 %v5222, %v5218
        %v6751 = vpack.c.b16 %v5223, %v5219
        %v6752 = vpack.c.b16 %v5228, %v5224
        %v6753 = vpack.c.b16 %v5229, %v5225
        %v6754 = vpack.c.b16 %v5230, %v5226
        %v6755 = vpack.c.b16 %v5231, %v5227
        %v6756 = vpack.c.b16 %v5236, %v5232
        %v6757 = vpack.c.b16 %v5237, %v5233
        %v6758 = vpack.c.b16 %v5238, %v5234
        %v6759 = vpack.c.b16 %v5239, %v5235
        %v6760 = vpack.c.b16 %v5244, %v5240
        %v6761 = vpack.c.b16 %v5245, %v5241
        %v6762 = vpack.c.b16 %v5246, %v5242
        %v6763 = vpack.c.b16 %v5247, %v5243
        %v6764 = vpack.c.b16 %v5252, %v5248
        %v6765 = vpack.c.b16 %v5253, %v5249
        %v6766 = vpack.c.b16 %v5254, %v5250
        %v6767 = vpack.c.b16 %v5255, %v5251
        %v6768 = vpack.c.b16 %v5260, %v5256
        %v6769 = vpack.c.b16 %v5261, %v5257
        %v6770 = vpack.c.b16 %v5262, %v5258
        %v6771 = vpack.c.b16 %v5263, %v5259
        %v6772 = vpack.c.b16 %v5268, %v5264
        %v6773 = vpack.c.b16 %v5269, %v5265
        %v6774 = vpack.c.b16 %v5270, %v5266
        %v6775 = vpack.c.b16 %v5271, %v5267
        %v6776 = vpack.c.b16 %v5276, %v5272
        %v6777 = vpack.c.b16 %v5277, %v5273
        %v6778 = vpack.c.b16 %v5278, %v5274
        %v6779 = vpack.c.b16 %v5279, %v5275
        %v6780 = vpack.c.b16 %v5284, %v5280
        %v6781 = vpack.c.b16 %v5285, %v5281
        %v6782 = vpack.c.b16 %v5286, %v5282
        %v6783 = vpack.c.b16 %v5287, %v5283
        %v6784 = vpack.c.b16 %v5292, %v5288
        %v6785 = vpack.c.b16 %v5293, %v5289
        %v6786 = vpack.c.b16 %v5294, %v5290
        %v6787 = vpack.c.b16 %v5295, %v5291
        %v6788 = vpack.c.b16 %v5300, %v5296
        %v6789 = vpack.c.b16 %v5301, %v5297
        %v6790 = vpack.c.b16 %v5302, %v5298
        %v6791 = vpack.c.b16 %v5303, %v5299
        %v6792 = vpack.c.b16 %v5308, %v5304
        %v6793 = vpack.c.b16 %v5309, %v5305
        %v6794 = vpack.c.b16 %v5310, %v5306
        %v6795 = vpack.c.b16 %v5311, %v5307
        %v6796 = vpack.c.b16 %v5316, %v5312
        %v6797 = vpack.c.b16 %v5317, %v5313
        %v6798 = vpack.c.b16 %v5318, %v5314
        %v6799 = vpack.c.b16 %v5319, %v5315
        %v6800 = vpack.c.b16 %v5324, %v5320
        %v6801 = vpack.c.b16 %v5325, %v5321
        %v6802 = vpack.c.b16 %v5326, %v5322
        %v6803 = vpack.c.b16 %v5327, %v5323
        %v6804 = vpack.c.b16 %v5332, %v5328
        %v6805 = vpack.c.b16 %v5333, %v5329
        %v6806 = vpack.c.b16 %v5334, %v5330
        %v6807 = vpack.c.b16 %v5335, %v5331
        %v6808 = vpack.c.b16 %v5340, %v5336
        %v6809 = vpack.c.b16 %v5341, %v5337
        %v6810 = vpack.c.b16 %v5342, %v5338
        %v6811 = vpack.c.b16 %v5343, %v5339
        %v6812 = vpack.c.b16 %v5348, %v5344
        %v6813 = vpack.c.b16 %v5349, %v5345
        %v6814 = vpack.c.b16 %v5350, %v5346
        %v6815 = vpack.c.b16 %v5351, %v5347
        %v6816 = vpack.c.b16 %v5356, %v5352
        %v6817 = vpack.c.b16 %v5357, %v5353
        %v6818 = vpack.c.b16 %v5358, %v5354
        %v6819 = vpack.c.b16 %v5359, %v5355
        %v6820 = vpack.c.b16 %v5364, %v5360
        %v6821 = vpack.c.b16 %v5365, %v5361
        %v6822 = vpack.c.b16 %v5366, %v5362
        %v6823 = vpack.c.b16 %v5367, %v5363
        %v6824 = vpack.c.b16 %v5372, %v5368
        %v6825 = vpack.c.b16 %v5373, %v5369
        %v6826 = vpack.c.b16 %v5374, %v5370
        %v6827 = vpack.c.b16 %v5375, %v5371
        %v6828 = vpack.c.b16 %v5380, %v5376
        %v6829 = vpack.c.b16 %v5381, %v5377
        %v6830 = vpack.c.b16 %v5382, %v5378
        %v6831 = vpack.c.b16 %v5383, %v5379
        %v6832 = vpack.c.b16 %v5388, %v5384
        %v6833 = vpack.c.b16 %v5389, %v5385
        %v6834 = vpack.c.b16 %v5390, %v5386
        %v6835 = vpack.c.b16 %v5391, %v5387
        %v6836 = vpack.c.b16 %v5396, %v5392
        %v6837 = vpack.c.b16 %v5397, %v5393
        %v6838 = vpack.c.b16 %v5398, %v5394
        %v6839 = vpack.c.b16 %v5399, %v5395
        %v6840 = vpack.c.b16 %v5404, %v5400
        %v6841 = vpack.c.b16 %v5405, %v5401
        %v6842 = vpack.c.b16 %v5406, %v5402
        %v6843 = vpack.c.b16 %v5407, %v5403
        %v6844 = vpack.c.b16 %v5412, %v5408
        %v6845 = vpack.c.b16 %v5413, %v5409
        %v6846 = vpack.c.b16 %v5414, %v5410
        %v6847 = vpack.c.b16 %v5415, %v5411
        %v6848 = vpack.c.b16 %v5420, %v5416
        %v6849 = vpack.c.b16 %v5421, %v5417
        %v6850 = vpack.c.b16 %v5422, %v5418
        %v6851 = vpack.c.b16 %v5423, %v5419
        %v6852 = vpack.c.b16 %v5428, %v5424
        %v6853 = vpack.c.b16 %v5429, %v5425
        %v6854 = vpack.c.b16 %v5430, %v5426
        %v6855 = vpack.c.b16 %v5431, %v5427
        %v6856 = vpack.c.b16 %v5436, %v5432
        %v6857 = vpack.c.b16 %v5437, %v5433
        %v6858 = vpack.c.b16 %v5438, %v5434
        %v6859 = vpack.c.b16 %v5439, %v5435
        %v6860 = vpack.c.b16 %v5444, %v5440
        %v6861 = vpack.c.b16 %v5445, %v5441
        %v6862 = vpack.c.b16 %v5446, %v5442
        %v6863 = vpack.c.b16 %v5447, %v5443
        %v6864 = vpack.c.b16 %v5452, %v5448
        %v6865 = vpack.c.b16 %v5453, %v5449
        %v6866 = vpack.c.b16 %v5454, %v5450
        %v6867 = vpack.c.b16 %v5455, %v5451
        %v6868 = vpack.c.b16 %v5460, %v5456
        %v6869 = vpack.c.b16 %v5461, %v5457
        %v6870 = vpack.c.b16 %v5462, %v5458
        %v6871 = vpack.c.b16 %v5463, %v5459
        %v6872 = vpack.c.b16 %v5468, %v5464
        %v6873 = vpack.c.b16 %v5469, %v5465
        %v6874 = vpack.c.b16 %v5470, %v5466
        %v6875 = vpack.c.b16 %v5471, %v5467
        %v6876 = vpack.c.b16 %v5476, %v5472
        %v6877 = vpack.c.b16 %v5477, %v5473
        %v6878 = vpack.c.b16 %v5478, %v5474
        %v6879 = vpack.c.b16 %v5479, %v5475
        %v6880 = vpack.c.b16 %v5484, %v5480
        %v6881 = vpack.c.b16 %v5485, %v5481
        %v6882 = vpack.c.b16 %v5486, %v5482
        %v6883 = vpack.c.b16 %v5487, %v5483
        %v6884 = vpack.c.b16 %v5492, %v5488
        %v6885 = vpack.c.b16 %v5493, %v5489
        %v6886 = vpack.c.b16 %v5494, %v5490
        %v6887 = vpack.c.b16 %v5495, %v5491
        %v6888 = vpack.c.b16 %v5500, %v5496
        %v6889 = vpack.c.b16 %v5501, %v5497
        %v6890 = vpack.c.b16 %v5502, %v5498
        %v6891 = vpack.c.b16 %v5503, %v5499
        %v6892 = vpack.c.b16 %v5508, %v5504
        %v6893 = vpack.c.b16 %v5509, %v5505
        %v6894 = vpack.c.b16 %v5510, %v5506
        %v6895 = vpack.c.b16 %v5511, %v5507
        %v6896 = vpack.c.b16 %v5516, %v5512
        %v6897 = vpack.c.b16 %v5517, %v5513
        %v6898 = vpack.c.b16 %v5518, %v5514
        %v6899 = vpack.c.b16 %v5519, %v5515
        %v6900 = vpack.c.b16 %v5524, %v5520
        %v6901 = vpack.c.b16 %v5525, %v5521
        %v6902 = vpack.c.b16 %v5526, %v5522
        %v6903 = vpack.c.b16 %v5527, %v5523
        %v6904 = vpack.c.b16 %v5532, %v5528
        %v6905 = vpack.c.b16 %v5533, %v5529
        %v6906 = vpack.c.b16 %v5534, %v5530
        %v6907 = vpack.c.b16 %v5535, %v5531
        %v6908 = vpack.c.b16 %v5540, %v5536
        %v6909 = vpack.c.b16 %v5541, %v5537
        %v6910 = vpack.c.b16 %v5542, %v5538
        %v6911 = vpack.c.b16 %v5543, %v5539
        %v6912 = vpack.c.b16 %v5548, %v5544
        %v6913 = vpack.c.b16 %v5549, %v5545
        %v6914 = vpack.c.b16 %v5550, %v5546
        %v6915 = vpack.c.b16 %v5551, %v5547
        %v6916 = vpack.c.b16 %v5556, %v5552
        %v6917 = vpack.c.b16 %v5557, %v5553
        %v6918 = vpack.c.b16 %v5558, %v5554
        %v6919 = vpack.c.b16 %v5559, %v5555
        %v6920 = vpack.c.b16 %v5564, %v5560
        %v6921 = vpack.c.b16 %v5565, %v5561
        %v6922 = vpack.c.b16 %v5566, %v5562
        %v6923 = vpack.c.b16 %v5567, %v5563
        %v6924 = vpack.c.b16 %v5572, %v5568
        %v6925 = vpack.c.b16 %v5573, %v5569
        %v6926 = vpack.c.b16 %v5574, %v5570
        %v6927 = vpack.c.b16 %v5575, %v5571
        %v6928 = vpack.c.b16 %v5580, %v5576
        %v6929 = vpack.c.b16 %v5581, %v5577
        %v6930 = vpack.c.b16 %v5582, %v5578
        %v6931 = vpack.c.b16 %v5583, %v5579
        %v6932 = vpack.c.b16 %v5588, %v5584
        %v6933 = vpack.c.b16 %v5589, %v5585
        %v6934 = vpack.c.b16 %v5590, %v5586
        %v6935 = vpack.c.b16 %v5591, %v5587
        %v6936 = vpack.c.b16 %v5596, %v5592
        %v6937 = vpack.c.b16 %v5597, %v5593
        %v6938 = vpack.c.b16 %v5598, %v5594
        %v6939 = vpack.c.b16 %v5599, %v5595
        %v6940 = vpack.c.b16 %v5604, %v5600
        %v6941 = vpack.c.b16 %v5605, %v5601
        %v6942 = vpack.c.b16 %v5606, %v5602
        %v6943 = vpack.c.b16 %v5607, %v5603
        %v6944 = vpack.c.b16 %v5612, %v5608
        %v6945 = vpack.c.b16 %v5613, %v5609
        %v6946 = vpack.c.b16 %v5614, %v5610
        %v6947 = vpack.c.b16 %v5615, %v5611
        %v6948 = vpack.c.b16 %v5620, %v5616
        %v6949 = vpack.c.b16 %v5621, %v5617
        %v6950 = vpack.c.b16 %v5622, %v5618
        %v6951 = vpack.c.b16 %v5623, %v5619
        %v6952 = vpack.c.b16 %v5628, %v5624
        %v6953 = vpack.c.b16 %v5629, %v5625
        %v6954 = vpack.c.b16 %v5630, %v5626
        %v6955 = vpack.c.b16 %v5631, %v5627
        %v6956 = vpack.c.b16 %v5636, %v5632
        %v6957 = vpack.c.b16 %v5637, %v5633
        %v6958 = vpack.c.b16 %v5638, %v5634
        %v6959 = vpack.c.b16 %v5639, %v5635
        %v6960 = vpack.c.b16 %v5644, %v5640
        %v6961 = vpack.c.b16 %v5645, %v5641
        %v6962 = vpack.c.b16 %v5646, %v5642
        %v6963 = vpack.c.b16 %v5647, %v5643
        %v6964 = vpack.c.b16 %v5652, %v5648
        %v6965 = vpack.c.b16 %v5653, %v5649
        %v6966 = vpack.c.b16 %v5654, %v5650
        %v6967 = vpack.c.b16 %v5655, %v5651
        %v6968 = vpack.c.b16 %v5660, %v5656
        %v6969 = vpack.c.b16 %v5661, %v5657
        %v6970 = vpack.c.b16 %v5662, %v5658
        %v6971 = vpack.c.b16 %v5663, %v5659
        %v6972 = vpack.c.b16 %v5668, %v5664
        %v6973 = vpack.c.b16 %v5669, %v5665
        %v6974 = vpack.c.b16 %v5670, %v5666
        %v6975 = vpack.c.b16 %v5671, %v5667
        %v6976 = vpack.c.b16 %v5676, %v5672
        %v6977 = vpack.c.b16 %v5677, %v5673
        %v6978 = vpack.c.b16 %v5678, %v5674
        %v6979 = vpack.c.b16 %v5679, %v5675
        %v6980 = vpack.c.b16 %v5684, %v5680
        %v6981 = vpack.c.b16 %v5685, %v5681
        %v6982 = vpack.c.b16 %v5686, %v5682
        %v6983 = vpack.c.b16 %v5687, %v5683
        %v6984 = vpack.c.b16 %v5692, %v5688
        %v6985 = vpack.c.b16 %v5693, %v5689
        %v6986 = vpack.c.b16 %v5694, %v5690
        %v6987 = vpack.c.b16 %v5695, %v5691
        %v6988 = vpack.c.b16 %v5700, %v5696
        %v6989 = vpack.c.b16 %v5701, %v5697
        %v6990 = vpack.c.b16 %v5702, %v5698
        %v6991 = vpack.c.b16 %v5703, %v5699
        %v6992 = vpack.c.b16 %v5708, %v5704
        %v6993 = vpack.c.b16 %v5709, %v5705
        %v6994 = vpack.c.b16 %v5710, %v5706
        %v6995 = vpack.c.b16 %v5711, %v5707
        %v6996 = vpack.c.b16 %v5716, %v5712
        %v6997 = vpack.c.b16 %v5717, %v5713
        %v6998 = vpack.c.b16 %v5718, %v5714
        %v6999 = vpack.c.b16 %v5719, %v5715
        %v7000 = vpack.c.b16 %v5724, %v5720
        %v7001 = vpack.c.b16 %v5725, %v5721
        %v7002 = vpack.c.b16 %v5726, %v5722
        %v7003 = vpack.c.b16 %v5727, %v5723
        %v7004 = vpack.c.b16 %v5732, %v5728
        %v7005 = vpack.c.b16 %v5733, %v5729
        %v7006 = vpack.c.b16 %v5734, %v5730
        %v7007 = vpack.c.b16 %v5735, %v5731
        %v7008 = vpack.c.b16 %v5740, %v5736
        %v7009 = vpack.c.b16 %v5741, %v5737
        %v7010 = vpack.c.b16 %v5742, %v5738
        %v7011 = vpack.c.b16 %v5743, %v5739
        %v7012 = vpack.c.b16 %v5748, %v5744
        %v7013 = vpack.c.b16 %v5749, %v5745
        %v7014 = vpack.c.b16 %v5750, %v5746
        %v7015 = vpack.c.b16 %v5751, %v5747
        %v7016 = vpack.c.b16 %v5756, %v5752
        %v7017 = vpack.c.b16 %v5757, %v5753
        %v7018 = vpack.c.b16 %v5758, %v5754
        %v7019 = vpack.c.b16 %v5759, %v5755
        %v7020 = vpack.c.b16 %v5764, %v5760
        %v7021 = vpack.c.b16 %v5765, %v5761
        %v7022 = vpack.c.b16 %v5766, %v5762
        %v7023 = vpack.c.b16 %v5767, %v5763
        %v7024 = vpack.c.b16 %v5772, %v5768
        %v7025 = vpack.c.b16 %v5773, %v5769
        %v7026 = vpack.c.b16 %v5774, %v5770
        %v7027 = vpack.c.b16 %v5775, %v5771
        %v7028 = vpack.c.b16 %v5776, %v5776
        %v7029 = vpack.c.b16 %v5777, %v5777
        %v7030 = vpack.c.b16 %v5778, %v5778
        %v7031 = vpack.c.b16 %v5779, %v5779
        %vm8280 = vcmask 64512
        %v8282 = vsel %vm8280, %v1990, 0
        %vm8284 = vcmask 1043456
        %v8286 = vsel %vm8284, %v7028, 0
        %v8289 = vsel %vm8284, %v7029, 0
        %v8292 = vsel %vm8284, %v7030, 0
        %v8295 = vsel %vm8284, %v7031, 0
        %8297 = vmatprep.subr.bf16.mxu0 %v5781
        %8298 = vmatpush1.bf16.msra.mxu0 %v5780
        %8299 = vmatprep.subr.bf16.mxu0 %v5785
        %8300 = vmatpush1.bf16.msra.mxu0 %v5784
        %8301 = vmatprep.subr.bf16.mxu0 %v5789
        %8302 = vmatpush1.bf16.msra.mxu0 %v5788
        %8303 = vmatprep.subr.bf16.mxu0 %v5793
        %8304 = vmatpush1.bf16.msra.mxu0 %v5792
        %8305 = vmatprep.subr.bf16.mxu0 %v5797
        %8306 = vmatpush1.bf16.msra.mxu0 %v5796
        %8307 = vmatprep.subr.bf16.mxu0 %v5801
        %8308 = vmatpush1.bf16.msra.mxu0 %v5800
        %8309 = vmatprep.subr.bf16.mxu0 %v5805
        %8310 = vmatpush1.bf16.msra.mxu0 %v5804
        %8311 = vmatprep.subr.bf16.mxu0 %v5809
        %8312 = vmatpush1.bf16.msra.mxu0 %v5808
        %8313 = vmatprep.subr.bf16.mxu0 %v5813
        %8314 = vmatpush1.bf16.msra.mxu0 %v5812
        %8315 = vmatprep.subr.bf16.mxu0 %v5817
        %8316 = vmatpush1.bf16.msra.mxu0 %v5816
        %8317 = vmatprep.subr.bf16.mxu0 %v5821
        %8318 = vmatpush1.bf16.msra.mxu0 %v5820
        %8319 = vmatprep.subr.bf16.mxu0 %v5825
        %8320 = vmatpush1.bf16.msra.mxu0 %v5824
        %8321 = vmatprep.subr.bf16.mxu0 %v5829
        %8322 = vmatpush1.bf16.msra.mxu0 %v5828
        %8323 = vmatprep.subr.bf16.mxu0 %v5833
        %8324 = vmatpush1.bf16.msra.mxu0 %v5832
        %8325 = vmatprep.subr.bf16.mxu0 %v5837
        %8326 = vmatpush1.bf16.msra.mxu0 %v5836
        %8327 = vmatprep.subr.bf16.mxu0 %v5841
        %8328 = vmatpush1.bf16.msra.mxu0 %v5840
        %8329 = vmatprep.mubr.bf16.mxu0 %v1952
        %8330 = vmatmul.mubr.bf16.gmra.mrb[0].mxu0 %v1951
        %v8331 = vpop.f32.mrb[0].mxu0
        %v8332 = vadd.f32 %v1814, %v8331
        %v8333 = vpop.f32.mrb[0].mxu0
        %v8334 = vadd.f32 %v1818, %v8333
        %v8335 = vpop.f32.mrb[0].mxu0
        %v8336 = vadd.f32 %v1814, %v8335
        %v8337 = vpop.f32.mrb[0].mxu0
        %v8338 = vadd.f32 %v1818, %v8337
        %8339 = vdwg.mxu0
        %8340 = vmatprep.subr.bf16.mxu0 %v5845
        %8341 = vmatpush1.bf16.msra.mxu0 %v5844
        %8342 = vmatprep.subr.bf16.mxu0 %v5849
        %8343 = vmatpush1.bf16.msra.mxu0 %v5848
        %8344 = vmatprep.subr.bf16.mxu0 %v5853
        %8345 = vmatpush1.bf16.msra.mxu0 %v5852
        %8346 = vmatprep.subr.bf16.mxu0 %v5857
        %8347 = vmatpush1.bf16.msra.mxu0 %v5856
        %8348 = vmatprep.subr.bf16.mxu0 %v5861
        %8349 = vmatpush1.bf16.msra.mxu0 %v5860
        %8350 = vmatprep.subr.bf16.mxu0 %v5865
        %8351 = vmatpush1.bf16.msra.mxu0 %v5864
        %8352 = vmatprep.subr.bf16.mxu0 %v5869
        %8353 = vmatpush1.bf16.msra.mxu0 %v5868
        %8354 = vmatprep.subr.bf16.mxu0 %v5873
        %8355 = vmatpush1.bf16.msra.mxu0 %v5872
        %8356 = vmatprep.subr.bf16.mxu0 %v5877
        %8357 = vmatpush1.bf16.msra.mxu0 %v5876
        %8358 = vmatprep.subr.bf16.mxu0 %v5881
        %8359 = vmatpush1.bf16.msra.mxu0 %v5880
        %8360 = vmatprep.subr.bf16.mxu0 %v5885
        %8361 = vmatpush1.bf16.msra.mxu0 %v5884
        %8362 = vmatprep.subr.bf16.mxu0 %v5889
        %8363 = vmatpush1.bf16.msra.mxu0 %v5888
        %8364 = vmatprep.subr.bf16.mxu0 %v5893
        %8365 = vmatpush1.bf16.msra.mxu0 %v5892
        %8366 = vmatprep.subr.bf16.mxu0 %v5897
        %8367 = vmatpush1.bf16.msra.mxu0 %v5896
        %8368 = vmatprep.subr.bf16.mxu0 %v5901
        %8369 = vmatpush1.bf16.msra.mxu0 %v5900
        %8370 = vmatprep.subr.bf16.mxu0 %v5905
        %8371 = vmatpush1.bf16.msra.mxu0 %v5904
        %8372 = vmatprep.mubr.bf16.mxu0 %v1954
        %8373 = vmatmul.mubr.bf16.gmra.mrb[0].mxu0 %v1953
        %v8374 = vpop.f32.mrb[0].mxu0
        %v8375 = vadd.f32 %v8332, %v8374
        %v8376 = vpop.f32.mrb[0].mxu0
        %v8377 = vadd.f32 %v8334, %v8376
        %v8378 = vpop.f32.mrb[0].mxu0
        %v8379 = vadd.f32 %v8336, %v8378
        %v8380 = vpop.f32.mrb[0].mxu0
        %v8381 = vadd.f32 %v8338, %v8380
        %8382 = vdwg.mxu0
        %8383 = vmatprep.subr.bf16.mxu0 %v5909
        %8384 = vmatpush1.bf16.msra.mxu0 %v5908
        %8385 = vmatprep.subr.bf16.mxu0 %v5913
        %8386 = vmatpush1.bf16.msra.mxu0 %v5912
        %8387 = vmatprep.subr.bf16.mxu0 %v5917
        %8388 = vmatpush1.bf16.msra.mxu0 %v5916
        %8389 = vmatprep.subr.bf16.mxu0 %v5921
        %8390 = vmatpush1.bf16.msra.mxu0 %v5920
        %8391 = vmatprep.subr.bf16.mxu0 %v5925
        %8392 = vmatpush1.bf16.msra.mxu0 %v5924
        %8393 = vmatprep.subr.bf16.mxu0 %v5929
        %8394 = vmatpush1.bf16.msra.mxu0 %v5928
        %8395 = vmatprep.subr.bf16.mxu0 %v5933
        %8396 = vmatpush1.bf16.msra.mxu0 %v5932
        %8397 = vmatprep.subr.bf16.mxu0 %v5937
        %8398 = vmatpush1.bf16.msra.mxu0 %v5936
        %8399 = vmatprep.subr.bf16.mxu0 %v5941
        %8400 = vmatpush1.bf16.msra.mxu0 %v5940
        %8401 = vmatprep.subr.bf16.mxu0 %v5945
        %8402 = vmatpush1.bf16.msra.mxu0 %v5944
        %8403 = vmatprep.subr.bf16.mxu0 %v5949
        %8404 = vmatpush1.bf16.msra.mxu0 %v5948
        %8405 = vmatprep.subr.bf16.mxu0 %v5953
        %8406 = vmatpush1.bf16.msra.mxu0 %v5952
        %8407 = vmatprep.subr.bf16.mxu0 %v5957
        %8408 = vmatpush1.bf16.msra.mxu0 %v5956
        %8409 = vmatprep.subr.bf16.mxu0 %v5961
        %8410 = vmatpush1.bf16.msra.mxu0 %v5960
        %8411 = vmatprep.subr.bf16.mxu0 %v5965
        %8412 = vmatpush1.bf16.msra.mxu0 %v5964
        %8413 = vmatprep.subr.bf16.mxu0 %v5969
        %8414 = vmatpush1.bf16.msra.mxu0 %v5968
        %8415 = vmatprep.mubr.bf16.mxu0 %v1956
        %8416 = vmatmul.mubr.bf16.gmra.mrb[0].mxu0 %v1955
        %v8417 = vpop.f32.mrb[0].mxu0
        %v8418 = vadd.f32 %v8375, %v8417
        %v8419 = vpop.f32.mrb[0].mxu0
        %v8420 = vadd.f32 %v8377, %v8419
        %v8421 = vpop.f32.mrb[0].mxu0
        %v8422 = vadd.f32 %v8379, %v8421
        %v8423 = vpop.f32.mrb[0].mxu0
        %v8424 = vadd.f32 %v8381, %v8423
        %8425 = vdwg.mxu0
        %8426 = vmatprep.subr.bf16.mxu0 %v5973
        %8427 = vmatpush1.bf16.msra.mxu0 %v5972
        %8428 = vmatprep.subr.bf16.mxu0 %v5977
        %8429 = vmatpush1.bf16.msra.mxu0 %v5976
        %8430 = vmatprep.subr.bf16.mxu0 %v5981
        %8431 = vmatpush1.bf16.msra.mxu0 %v5980
        %8432 = vmatprep.subr.bf16.mxu0 %v5985
        %8433 = vmatpush1.bf16.msra.mxu0 %v5984
        %8434 = vmatprep.subr.bf16.mxu0 %v5989
        %8435 = vmatpush1.bf16.msra.mxu0 %v5988
        %8436 = vmatprep.subr.bf16.mxu0 %v5993
        %8437 = vmatpush1.bf16.msra.mxu0 %v5992
        %8438 = vmatprep.subr.bf16.mxu0 %v5997
        %8439 = vmatpush1.bf16.msra.mxu0 %v5996
        %8440 = vmatprep.subr.bf16.mxu0 %v6001
        %8441 = vmatpush1.bf16.msra.mxu0 %v6000
        %8442 = vmatprep.subr.bf16.mxu0 %v6005
        %8443 = vmatpush1.bf16.msra.mxu0 %v6004
        %8444 = vmatprep.subr.bf16.mxu0 %v6009
        %8445 = vmatpush1.bf16.msra.mxu0 %v6008
        %8446 = vmatprep.subr.bf16.mxu0 %v6013
        %8447 = vmatpush1.bf16.msra.mxu0 %v6012
        %8448 = vmatprep.subr.bf16.mxu0 %v6017
        %8449 = vmatpush1.bf16.msra.mxu0 %v6016
        %8450 = vmatprep.subr.bf16.mxu0 %v6021
        %8451 = vmatpush1.bf16.msra.mxu0 %v6020
        %8452 = vmatprep.subr.bf16.mxu0 %v6025
        %8453 = vmatpush1.bf16.msra.mxu0 %v6024
        %8454 = vmatprep.subr.bf16.mxu0 %v6029
        %8455 = vmatpush1.bf16.msra.mxu0 %v6028
        %8456 = vmatprep.subr.bf16.mxu0 %v6033
        %8457 = vmatpush1.bf16.msra.mxu0 %v6032
        %8458 = vmatprep.mubr.bf16.mxu0 %v1958
        %8459 = vmatmul.mubr.bf16.gmra.mrb[0].mxu0 %v1957
        %v8460 = vpop.f32.mrb[0].mxu0
        %v8461 = vadd.f32 %v8418, %v8460
        %v8462 = vpop.f32.mrb[0].mxu0
        %v8463 = vadd.f32 %v8420, %v8462
        %v8464 = vpop.f32.mrb[0].mxu0
        %v8465 = vadd.f32 %v8422, %v8464
        %v8466 = vpop.f32.mrb[0].mxu0
        %v8467 = vadd.f32 %v8424, %v8466
        %8468 = vdwg.mxu0
        %8469 = vmatprep.subr.bf16.mxu0 %v6037
        %8470 = vmatpush1.bf16.msra.mxu0 %v6036
        %8471 = vmatprep.subr.bf16.mxu0 %v6041
        %8472 = vmatpush1.bf16.msra.mxu0 %v6040
        %8473 = vmatprep.subr.bf16.mxu0 %v6045
        %8474 = vmatpush1.bf16.msra.mxu0 %v6044
        %8475 = vmatprep.subr.bf16.mxu0 %v6049
        %8476 = vmatpush1.bf16.msra.mxu0 %v6048
        %8477 = vmatprep.subr.bf16.mxu0 %v6053
        %8478 = vmatpush1.bf16.msra.mxu0 %v6052
        %8479 = vmatprep.subr.bf16.mxu0 %v6057
        %8480 = vmatpush1.bf16.msra.mxu0 %v6056
        %8481 = vmatprep.subr.bf16.mxu0 %v6061
        %8482 = vmatpush1.bf16.msra.mxu0 %v6060
        %8483 = vmatprep.subr.bf16.mxu0 %v6065
        %8484 = vmatpush1.bf16.msra.mxu0 %v6064
        %8485 = vmatprep.subr.bf16.mxu0 %v6069
        %8486 = vmatpush1.bf16.msra.mxu0 %v6068
        %8487 = vmatprep.subr.bf16.mxu0 %v6073
        %8488 = vmatpush1.bf16.msra.mxu0 %v6072
        %8489 = vmatprep.subr.bf16.mxu0 %v6077
        %8490 = vmatpush1.bf16.msra.mxu0 %v6076
        %8491 = vmatprep.subr.bf16.mxu0 %v6081
        %8492 = vmatpush1.bf16.msra.mxu0 %v6080
        %8493 = vmatprep.subr.bf16.mxu0 %v6085
        %8494 = vmatpush1.bf16.msra.mxu0 %v6084
        %8495 = vmatprep.subr.bf16.mxu0 %v6089
        %8496 = vmatpush1.bf16.msra.mxu0 %v6088
        %8497 = vmatprep.subr.bf16.mxu0 %v6093
        %8498 = vmatpush1.bf16.msra.mxu0 %v6092
        %8499 = vmatprep.subr.bf16.mxu0 %v6097
        %8500 = vmatpush1.bf16.msra.mxu0 %v6096
        %8501 = vmatprep.mubr.bf16.mxu0 %v1960
        %8502 = vmatmul.mubr.bf16.gmra.mrb[0].mxu0 %v1959
        %v8503 = vpop.f32.mrb[0].mxu0
        %v8504 = vadd.f32 %v8461, %v8503
        %v8505 = vpop.f32.mrb[0].mxu0
        %v8506 = vadd.f32 %v8463, %v8505
        %v8507 = vpop.f32.mrb[0].mxu0
        %v8508 = vadd.f32 %v8465, %v8507
        %v8509 = vpop.f32.mrb[0].mxu0
        %v8510 = vadd.f32 %v8467, %v8509
        %8511 = vdwg.mxu0
        %8512 = vmatprep.subr.bf16.mxu0 %v6101
        %8513 = vmatpush1.bf16.msra.mxu0 %v6100
        %8514 = vmatprep.subr.bf16.mxu0 %v6105
        %8515 = vmatpush1.bf16.msra.mxu0 %v6104
        %8516 = vmatprep.subr.bf16.mxu0 %v6109
        %8517 = vmatpush1.bf16.msra.mxu0 %v6108
        %8518 = vmatprep.subr.bf16.mxu0 %v6113
        %8519 = vmatpush1.bf16.msra.mxu0 %v6112
        %8520 = vmatprep.subr.bf16.mxu0 %v6117
        %8521 = vmatpush1.bf16.msra.mxu0 %v6116
        %8522 = vmatprep.subr.bf16.mxu0 %v6121
        %8523 = vmatpush1.bf16.msra.mxu0 %v6120
        %8524 = vmatprep.subr.bf16.mxu0 %v6125
        %8525 = vmatpush1.bf16.msra.mxu0 %v6124
        %8526 = vmatprep.subr.bf16.mxu0 %v6129
        %8527 = vmatpush1.bf16.msra.mxu0 %v6128
        %8528 = vmatprep.subr.bf16.mxu0 %v6133
        %8529 = vmatpush1.bf16.msra.mxu0 %v6132
        %8530 = vmatprep.subr.bf16.mxu0 %v6137
        %8531 = vmatpush1.bf16.msra.mxu0 %v6136
        %8532 = vmatprep.subr.bf16.mxu0 %v6141
        %8533 = vmatpush1.bf16.msra.mxu0 %v6140
        %8534 = vmatprep.subr.bf16.mxu0 %v6145
        %8535 = vmatpush1.bf16.msra.mxu0 %v6144
        %8536 = vmatprep.subr.bf16.mxu0 %v6149
        %8537 = vmatpush1.bf16.msra.mxu0 %v6148
        %8538 = vmatprep.subr.bf16.mxu0 %v6153
        %8539 = vmatpush1.bf16.msra.mxu0 %v6152
        %8540 = vmatprep.subr.bf16.mxu0 %v6157
        %8541 = vmatpush1.bf16.msra.mxu0 %v6156
        %8542 = vmatprep.subr.bf16.mxu0 %v6161
        %8543 = vmatpush1.bf16.msra.mxu0 %v6160
        %8544 = vmatprep.mubr.bf16.mxu0 %v1962
        %8545 = vmatmul.mubr.bf16.gmra.mrb[0].mxu0 %v1961
        %v8546 = vpop.f32.mrb[0].mxu0
        %v8547 = vadd.f32 %v8504, %v8546
        %v8548 = vpop.f32.mrb[0].mxu0
        %v8549 = vadd.f32 %v8506, %v8548
        %v8550 = vpop.f32.mrb[0].mxu0
        %v8551 = vadd.f32 %v8508, %v8550
        %v8552 = vpop.f32.mrb[0].mxu0
        %v8553 = vadd.f32 %v8510, %v8552
        %8554 = vdwg.mxu0
        %8555 = vmatprep.subr.bf16.mxu0 %v6165
        %8556 = vmatpush1.bf16.msra.mxu0 %v6164
        %8557 = vmatprep.subr.bf16.mxu0 %v6169
        %8558 = vmatpush1.bf16.msra.mxu0 %v6168
        %8559 = vmatprep.subr.bf16.mxu0 %v6173
        %8560 = vmatpush1.bf16.msra.mxu0 %v6172
        %8561 = vmatprep.subr.bf16.mxu0 %v6177
        %8562 = vmatpush1.bf16.msra.mxu0 %v6176
        %8563 = vmatprep.subr.bf16.mxu0 %v6181
        %8564 = vmatpush1.bf16.msra.mxu0 %v6180
        %8565 = vmatprep.subr.bf16.mxu0 %v6185
        %8566 = vmatpush1.bf16.msra.mxu0 %v6184
        %8567 = vmatprep.subr.bf16.mxu0 %v6189
        %8568 = vmatpush1.bf16.msra.mxu0 %v6188
        %8569 = vmatprep.subr.bf16.mxu0 %v6193
        %8570 = vmatpush1.bf16.msra.mxu0 %v6192
        %8571 = vmatprep.subr.bf16.mxu0 %v6197
        %8572 = vmatpush1.bf16.msra.mxu0 %v6196
        %8573 = vmatprep.subr.bf16.mxu0 %v6201
        %8574 = vmatpush1.bf16.msra.mxu0 %v6200
        %8575 = vmatprep.subr.bf16.mxu0 %v6205
        %8576 = vmatpush1.bf16.msra.mxu0 %v6204
        %8577 = vmatprep.subr.bf16.mxu0 %v6209
        %8578 = vmatpush1.bf16.msra.mxu0 %v6208
        %8579 = vmatprep.subr.bf16.mxu0 %v6213
        %8580 = vmatpush1.bf16.msra.mxu0 %v6212
        %8581 = vmatprep.subr.bf16.mxu0 %v6217
        %8582 = vmatpush1.bf16.msra.mxu0 %v6216
        %8583 = vmatprep.subr.bf16.mxu0 %v6221
        %8584 = vmatpush1.bf16.msra.mxu0 %v6220
        %8585 = vmatprep.subr.bf16.mxu0 %v6225
        %8586 = vmatpush1.bf16.msra.mxu0 %v6224
        %8587 = vmatprep.mubr.bf16.mxu0 %v1964
        %8588 = vmatmul.mubr.bf16.gmra.mrb[0].mxu0 %v1963
        %v8589 = vpop.f32.mrb[0].mxu0
        %v8590 = vadd.f32 %v8547, %v8589
        %v8591 = vpop.f32.mrb[0].mxu0
        %v8592 = vadd.f32 %v8549, %v8591
        %v8593 = vpop.f32.mrb[0].mxu0
        %v8594 = vadd.f32 %v8551, %v8593
        %v8595 = vpop.f32.mrb[0].mxu0
        %v8596 = vadd.f32 %v8553, %v8595
        %8597 = vdwg.mxu0
        %8598 = vmatprep.subr.bf16.mxu0 %v6229
        %8599 = vmatpush1.bf16.msra.mxu0 %v6228
        %8600 = vmatprep.subr.bf16.mxu0 %v6233
        %8601 = vmatpush1.bf16.msra.mxu0 %v6232
        %8602 = vmatprep.subr.bf16.mxu0 %v6237
        %8603 = vmatpush1.bf16.msra.mxu0 %v6236
        %8604 = vmatprep.subr.bf16.mxu0 %v6241
        %8605 = vmatpush1.bf16.msra.mxu0 %v6240
        %8606 = vmatprep.subr.bf16.mxu0 %v6245
        %8607 = vmatpush1.bf16.msra.mxu0 %v6244
        %8608 = vmatprep.subr.bf16.mxu0 %v6249
        %8609 = vmatpush1.bf16.msra.mxu0 %v6248
        %8610 = vmatprep.subr.bf16.mxu0 %v6253
        %8611 = vmatpush1.bf16.msra.mxu0 %v6252
        %8612 = vmatprep.subr.bf16.mxu0 %v6257
        %8613 = vmatpush1.bf16.msra.mxu0 %v6256
        %8614 = vmatprep.subr.bf16.mxu0 %v6261
        %8615 = vmatpush1.bf16.msra.mxu0 %v6260
        %8616 = vmatprep.subr.bf16.mxu0 %v6265
        %8617 = vmatpush1.bf16.msra.mxu0 %v6264
        %8618 = vmatprep.subr.bf16.mxu0 %v6269
        %8619 = vmatpush1.bf16.msra.mxu0 %v6268
        %8620 = vmatprep.subr.bf16.mxu0 %v6273
        %8621 = vmatpush1.bf16.msra.mxu0 %v6272
        %8622 = vmatprep.subr.bf16.mxu0 %v6277
        %8623 = vmatpush1.bf16.msra.mxu0 %v6276
        %8624 = vmatprep.subr.bf16.mxu0 %v6281
        %8625 = vmatpush1.bf16.msra.mxu0 %v6280
        %8626 = vmatprep.subr.bf16.mxu0 %v6285
        %8627 = vmatpush1.bf16.msra.mxu0 %v6284
        %8628 = vmatprep.subr.bf16.mxu0 %v6289
        %8629 = vmatpush1.bf16.msra.mxu0 %v6288
        %8630 = vmatprep.mubr.bf16.mxu0 %v1966
        %8631 = vmatmul.mubr.bf16.gmra.mrb[0].mxu0 %v1965
        %v8632 = vpop.f32.mrb[0].mxu0
        %v8633 = vadd.f32 %v8590, %v8632
        %v8634 = vpop.f32.mrb[0].mxu0
        %v8635 = vadd.f32 %v8592, %v8634
        %v8636 = vpop.f32.mrb[0].mxu0
        %v8637 = vadd.f32 %v8594, %v8636
        %v8638 = vpop.f32.mrb[0].mxu0
        %v8639 = vadd.f32 %v8596, %v8638
        %8640 = vdwg.mxu0
        %8641 = vmatprep.subr.bf16.mxu0 %v6293
        %8642 = vmatpush1.bf16.msra.mxu0 %v6292
        %8643 = vmatprep.subr.bf16.mxu0 %v6297
        %8644 = vmatpush1.bf16.msra.mxu0 %v6296
        %8645 = vmatprep.subr.bf16.mxu0 %v6301
        %8646 = vmatpush1.bf16.msra.mxu0 %v6300
        %8647 = vmatprep.subr.bf16.mxu0 %v6305
        %8648 = vmatpush1.bf16.msra.mxu0 %v6304
        %8649 = vmatprep.subr.bf16.mxu0 %v6309
        %8650 = vmatpush1.bf16.msra.mxu0 %v6308
        %8651 = vmatprep.subr.bf16.mxu0 %v6313
        %8652 = vmatpush1.bf16.msra.mxu0 %v6312
        %8653 = vmatprep.subr.bf16.mxu0 %v6317
        %8654 = vmatpush1.bf16.msra.mxu0 %v6316
        %8655 = vmatprep.subr.bf16.mxu0 %v6321
        %8656 = vmatpush1.bf16.msra.mxu0 %v6320
        %8657 = vmatprep.subr.bf16.mxu0 %v6325
        %8658 = vmatpush1.bf16.msra.mxu0 %v6324
        %8659 = vmatprep.subr.bf16.mxu0 %v6329
        %8660 = vmatpush1.bf16.msra.mxu0 %v6328
        %8661 = vmatprep.subr.bf16.mxu0 %v6333
        %8662 = vmatpush1.bf16.msra.mxu0 %v6332
        %8663 = vmatprep.subr.bf16.mxu0 %v6337
        %8664 = vmatpush1.bf16.msra.mxu0 %v6336
        %8665 = vmatprep.subr.bf16.mxu0 %v6341
        %8666 = vmatpush1.bf16.msra.mxu0 %v6340
        %8667 = vmatprep.subr.bf16.mxu0 %v6345
        %8668 = vmatpush1.bf16.msra.mxu0 %v6344
        %8669 = vmatprep.subr.bf16.mxu0 %v6349
        %8670 = vmatpush1.bf16.msra.mxu0 %v6348
        %8671 = vmatprep.subr.bf16.mxu0 %v6353
        %8672 = vmatpush1.bf16.msra.mxu0 %v6352
        %8673 = vmatprep.mubr.bf16.mxu0 %v1968
        %8674 = vmatmul.mubr.bf16.gmra.mrb[0].mxu0 %v1967
        %v8675 = vpop.f32.mrb[0].mxu0
        %v8676 = vadd.f32 %v8633, %v8675
        %v8677 = vpop.f32.mrb[0].mxu0
        %v8678 = vadd.f32 %v8635, %v8677
        %v8679 = vpop.f32.mrb[0].mxu0
        %v8680 = vadd.f32 %v8637, %v8679
        %v8681 = vpop.f32.mrb[0].mxu0
        %v8682 = vadd.f32 %v8639, %v8681
        %8683 = vdwg.mxu0
        %8684 = vmatprep.subr.bf16.mxu0 %v6357
        %8685 = vmatpush1.bf16.msra.mxu0 %v6356
        %8686 = vmatprep.subr.bf16.mxu0 %v6361
        %8687 = vmatpush1.bf16.msra.mxu0 %v6360
        %8688 = vmatprep.subr.bf16.mxu0 %v6365
        %8689 = vmatpush1.bf16.msra.mxu0 %v6364
        %8690 = vmatprep.subr.bf16.mxu0 %v6369
        %8691 = vmatpush1.bf16.msra.mxu0 %v6368
        %8692 = vmatprep.subr.bf16.mxu0 %v6373
        %8693 = vmatpush1.bf16.msra.mxu0 %v6372
        %8694 = vmatprep.subr.bf16.mxu0 %v6377
        %8695 = vmatpush1.bf16.msra.mxu0 %v6376
        %8696 = vmatprep.subr.bf16.mxu0 %v6381
        %8697 = vmatpush1.bf16.msra.mxu0 %v6380
        %8698 = vmatprep.subr.bf16.mxu0 %v6385
        %8699 = vmatpush1.bf16.msra.mxu0 %v6384
        %8700 = vmatprep.subr.bf16.mxu0 %v6389
        %8701 = vmatpush1.bf16.msra.mxu0 %v6388
        %8702 = vmatprep.subr.bf16.mxu0 %v6393
        %8703 = vmatpush1.bf16.msra.mxu0 %v6392
        %8704 = vmatprep.subr.bf16.mxu0 %v6397
        %8705 = vmatpush1.bf16.msra.mxu0 %v6396
        %8706 = vmatprep.subr.bf16.mxu0 %v6401
        %8707 = vmatpush1.bf16.msra.mxu0 %v6400
        %8708 = vmatprep.subr.bf16.mxu0 %v6405
        %8709 = vmatpush1.bf16.msra.mxu0 %v6404
        %8710 = vmatprep.subr.bf16.mxu0 %v6409
        %8711 = vmatpush1.bf16.msra.mxu0 %v6408
        %8712 = vmatprep.subr.bf16.mxu0 %v6413
        %8713 = vmatpush1.bf16.msra.mxu0 %v6412
        %8714 = vmatprep.subr.bf16.mxu0 %v6417
        %8715 = vmatpush1.bf16.msra.mxu0 %v6416
        %8716 = vmatprep.mubr.bf16.mxu0 %v1970
        %8717 = vmatmul.mubr.bf16.gmra.mrb[0].mxu0 %v1969
        %v8718 = vpop.f32.mrb[0].mxu0
        %v8719 = vadd.f32 %v8676, %v8718
        %v8720 = vpop.f32.mrb[0].mxu0
        %v8721 = vadd.f32 %v8678, %v8720
        %v8722 = vpop.f32.mrb[0].mxu0
        %v8723 = vadd.f32 %v8680, %v8722
        %v8724 = vpop.f32.mrb[0].mxu0
        %v8725 = vadd.f32 %v8682, %v8724
        %8726 = vdwg.mxu0
        %8727 = vmatprep.subr.bf16.mxu0 %v6421
        %8728 = vmatpush1.bf16.msra.mxu0 %v6420
        %8729 = vmatprep.subr.bf16.mxu0 %v6425
        %8730 = vmatpush1.bf16.msra.mxu0 %v6424
        %8731 = vmatprep.subr.bf16.mxu0 %v6429
        %8732 = vmatpush1.bf16.msra.mxu0 %v6428
        %8733 = vmatprep.subr.bf16.mxu0 %v6433
        %8734 = vmatpush1.bf16.msra.mxu0 %v6432
        %8735 = vmatprep.subr.bf16.mxu0 %v6437
        %8736 = vmatpush1.bf16.msra.mxu0 %v6436
        %8737 = vmatprep.subr.bf16.mxu0 %v6441
        %8738 = vmatpush1.bf16.msra.mxu0 %v6440
        %8739 = vmatprep.subr.bf16.mxu0 %v6445
        %8740 = vmatpush1.bf16.msra.mxu0 %v6444
        %8741 = vmatprep.subr.bf16.mxu0 %v6449
        %8742 = vmatpush1.bf16.msra.mxu0 %v6448
        %8743 = vmatprep.subr.bf16.mxu0 %v6453
        %8744 = vmatpush1.bf16.msra.mxu0 %v6452
        %8745 = vmatprep.subr.bf16.mxu0 %v6457
        %8746 = vmatpush1.bf16.msra.mxu0 %v6456
        %8747 = vmatprep.subr.bf16.mxu0 %v6461
        %8748 = vmatpush1.bf16.msra.mxu0 %v6460
        %8749 = vmatprep.subr.bf16.mxu0 %v6465
        %8750 = vmatpush1.bf16.msra.mxu0 %v6464
        %8751 = vmatprep.subr.bf16.mxu0 %v6469
        %8752 = vmatpush1.bf16.msra.mxu0 %v6468
        %8753 = vmatprep.subr.bf16.mxu0 %v6473
        %8754 = vmatpush1.bf16.msra.mxu0 %v6472
        %8755 = vmatprep.subr.bf16.mxu0 %v6477
        %8756 = vmatpush1.bf16.msra.mxu0 %v6476
        %8757 = vmatprep.subr.bf16.mxu0 %v6481
        %8758 = vmatpush1.bf16.msra.mxu0 %v6480
        %8759 = vmatprep.mubr.bf16.mxu0 %v1972
        %8760 = vmatmul.mubr.bf16.gmra.mrb[0].mxu0 %v1971
        %v8761 = vpop.f32.mrb[0].mxu0
        %v8762 = vadd.f32 %v8719, %v8761
        %v8763 = vpop.f32.mrb[0].mxu0
        %v8764 = vadd.f32 %v8721, %v8763
        %v8765 = vpop.f32.mrb[0].mxu0
        %v8766 = vadd.f32 %v8723, %v8765
        %v8767 = vpop.f32.mrb[0].mxu0
        %v8768 = vadd.f32 %v8725, %v8767
        %8769 = vdwg.mxu0
        %8770 = vmatprep.subr.bf16.mxu0 %v6485
        %8771 = vmatpush1.bf16.msra.mxu0 %v6484
        %8772 = vmatprep.subr.bf16.mxu0 %v6489
        %8773 = vmatpush1.bf16.msra.mxu0 %v6488
        %8774 = vmatprep.subr.bf16.mxu0 %v6493
        %8775 = vmatpush1.bf16.msra.mxu0 %v6492
        %8776 = vmatprep.subr.bf16.mxu0 %v6497
        %8777 = vmatpush1.bf16.msra.mxu0 %v6496
        %8778 = vmatprep.subr.bf16.mxu0 %v6501
        %8779 = vmatpush1.bf16.msra.mxu0 %v6500
        %8780 = vmatprep.subr.bf16.mxu0 %v6505
        %8781 = vmatpush1.bf16.msra.mxu0 %v6504
        %8782 = vmatprep.subr.bf16.mxu0 %v6509
        %8783 = vmatpush1.bf16.msra.mxu0 %v6508
        %8784 = vmatprep.subr.bf16.mxu0 %v6513
        %8785 = vmatpush1.bf16.msra.mxu0 %v6512
        %8786 = vmatprep.subr.bf16.mxu0 %v6517
        %8787 = vmatpush1.bf16.msra.mxu0 %v6516
        %8788 = vmatprep.subr.bf16.mxu0 %v6521
        %8789 = vmatpush1.bf16.msra.mxu0 %v6520
        %8790 = vmatprep.subr.bf16.mxu0 %v6525
        %8791 = vmatpush1.bf16.msra.mxu0 %v6524
        %8792 = vmatprep.subr.bf16.mxu0 %v6529
        %8793 = vmatpush1.bf16.msra.mxu0 %v6528
        %8794 = vmatprep.subr.bf16.mxu0 %v6533
        %8795 = vmatpush1.bf16.msra.mxu0 %v6532
        %8796 = vmatprep.subr.bf16.mxu0 %v6537
        %8797 = vmatpush1.bf16.msra.mxu0 %v6536
        %8798 = vmatprep.subr.bf16.mxu0 %v6541
        %8799 = vmatpush1.bf16.msra.mxu0 %v6540
        %8800 = vmatprep.subr.bf16.mxu0 %v6545
        %8801 = vmatpush1.bf16.msra.mxu0 %v6544
        %8802 = vmatprep.mubr.bf16.mxu0 %v1974
        %8803 = vmatmul.mubr.bf16.gmra.mrb[0].mxu0 %v1973
        %v8804 = vpop.f32.mrb[0].mxu0
        %v8805 = vadd.f32 %v8762, %v8804
        %v8806 = vpop.f32.mrb[0].mxu0
        %v8807 = vadd.f32 %v8764, %v8806
        %v8808 = vpop.f32.mrb[0].mxu0
        %v8809 = vadd.f32 %v8766, %v8808
        %v8810 = vpop.f32.mrb[0].mxu0
        %v8811 = vadd.f32 %v8768, %v8810
        %8812 = vdwg.mxu0
        %8813 = vmatprep.subr.bf16.mxu0 %v6549
        %8814 = vmatpush1.bf16.msra.mxu0 %v6548
        %8815 = vmatprep.subr.bf16.mxu0 %v6553
        %8816 = vmatpush1.bf16.msra.mxu0 %v6552
        %8817 = vmatprep.subr.bf16.mxu0 %v6557
        %8818 = vmatpush1.bf16.msra.mxu0 %v6556
        %8819 = vmatprep.subr.bf16.mxu0 %v6561
        %8820 = vmatpush1.bf16.msra.mxu0 %v6560
        %8821 = vmatprep.subr.bf16.mxu0 %v6565
        %8822 = vmatpush1.bf16.msra.mxu0 %v6564
        %8823 = vmatprep.subr.bf16.mxu0 %v6569
        %8824 = vmatpush1.bf16.msra.mxu0 %v6568
        %8825 = vmatprep.subr.bf16.mxu0 %v6573
        %8826 = vmatpush1.bf16.msra.mxu0 %v6572
        %8827 = vmatprep.subr.bf16.mxu0 %v6577
        %8828 = vmatpush1.bf16.msra.mxu0 %v6576
        %8829 = vmatprep.subr.bf16.mxu0 %v6581
        %8830 = vmatpush1.bf16.msra.mxu0 %v6580
        %8831 = vmatprep.subr.bf16.mxu0 %v6585
        %8832 = vmatpush1.bf16.msra.mxu0 %v6584
        %8833 = vmatprep.subr.bf16.mxu0 %v6589
        %8834 = vmatpush1.bf16.msra.mxu0 %v6588
        %8835 = vmatprep.subr.bf16.mxu0 %v6593
        %8836 = vmatpush1.bf16.msra.mxu0 %v6592
        %8837 = vmatprep.subr.bf16.mxu0 %v6597
        %8838 = vmatpush1.bf16.msra.mxu0 %v6596
        %8839 = vmatprep.subr.bf16.mxu0 %v6601
        %8840 = vmatpush1.bf16.msra.mxu0 %v6600
        %8841 = vmatprep.subr.bf16.mxu0 %v6605
        %8842 = vmatpush1.bf16.msra.mxu0 %v6604
        %8843 = vmatprep.subr.bf16.mxu0 %v6609
        %8844 = vmatpush1.bf16.msra.mxu0 %v6608
        %8845 = vmatprep.mubr.bf16.mxu0 %v1976
        %8846 = vmatmul.mubr.bf16.gmra.mrb[0].mxu0 %v1975
        %v8847 = vpop.f32.mrb[0].mxu0
        %v8848 = vadd.f32 %v8805, %v8847
        %v8849 = vpop.f32.mrb[0].mxu0
        %v8850 = vadd.f32 %v8807, %v8849
        %v8851 = vpop.f32.mrb[0].mxu0
        %v8852 = vadd.f32 %v8809, %v8851
        %v8853 = vpop.f32.mrb[0].mxu0
        %v8854 = vadd.f32 %v8811, %v8853
        %8855 = vdwg.mxu0
        %8856 = vmatprep.subr.bf16.mxu0 %v6613
        %8857 = vmatpush1.bf16.msra.mxu0 %v6612
        %8858 = vmatprep.subr.bf16.mxu0 %v6617
        %8859 = vmatpush1.bf16.msra.mxu0 %v6616
        %8860 = vmatprep.subr.bf16.mxu0 %v6621
        %8861 = vmatpush1.bf16.msra.mxu0 %v6620
        %8862 = vmatprep.subr.bf16.mxu0 %v6625
        %8863 = vmatpush1.bf16.msra.mxu0 %v6624
        %8864 = vmatprep.subr.bf16.mxu0 %v6629
        %8865 = vmatpush1.bf16.msra.mxu0 %v6628
        %8866 = vmatprep.subr.bf16.mxu0 %v6633
        %8867 = vmatpush1.bf16.msra.mxu0 %v6632
        %8868 = vmatprep.subr.bf16.mxu0 %v6637
        %8869 = vmatpush1.bf16.msra.mxu0 %v6636
        %8870 = vmatprep.subr.bf16.mxu0 %v6641
        %8871 = vmatpush1.bf16.msra.mxu0 %v6640
        %8872 = vmatprep.subr.bf16.mxu0 %v6645
        %8873 = vmatpush1.bf16.msra.mxu0 %v6644
        %8874 = vmatprep.subr.bf16.mxu0 %v6649
        %8875 = vmatpush1.bf16.msra.mxu0 %v6648
        %8876 = vmatprep.subr.bf16.mxu0 %v6653
        %8877 = vmatpush1.bf16.msra.mxu0 %v6652
        %8878 = vmatprep.subr.bf16.mxu0 %v6657
        %8879 = vmatpush1.bf16.msra.mxu0 %v6656
        %8880 = vmatprep.subr.bf16.mxu0 %v6661
        %8881 = vmatpush1.bf16.msra.mxu0 %v6660
        %8882 = vmatprep.subr.bf16.mxu0 %v6665
        %8883 = vmatpush1.bf16.msra.mxu0 %v6664
        %8884 = vmatprep.subr.bf16.mxu0 %v6669
        %8885 = vmatpush1.bf16.msra.mxu0 %v6668
        %8886 = vmatprep.subr.bf16.mxu0 %v6673
        %8887 = vmatpush1.bf16.msra.mxu0 %v6672
        %8888 = vmatprep.mubr.bf16.mxu0 %v1978
        %8889 = vmatmul.mubr.bf16.gmra.mrb[0].mxu0 %v1977
        %v8890 = vpop.f32.mrb[0].mxu0
        %v8891 = vadd.f32 %v8848, %v8890
        %v8892 = vpop.f32.mrb[0].mxu0
        %v8893 = vadd.f32 %v8850, %v8892
        %v8894 = vpop.f32.mrb[0].mxu0
        %v8895 = vadd.f32 %v8852, %v8894
        %v8896 = vpop.f32.mrb[0].mxu0
        %v8897 = vadd.f32 %v8854, %v8896
        %8898 = vdwg.mxu0
        %8899 = vmatprep.subr.bf16.mxu0 %v6677
        %8900 = vmatpush1.bf16.msra.mxu0 %v6676
        %8901 = vmatprep.subr.bf16.mxu0 %v6681
        %8902 = vmatpush1.bf16.msra.mxu0 %v6680
        %8903 = vmatprep.subr.bf16.mxu0 %v6685
        %8904 = vmatpush1.bf16.msra.mxu0 %v6684
        %8905 = vmatprep.subr.bf16.mxu0 %v6689
        %8906 = vmatpush1.bf16.msra.mxu0 %v6688
        %8907 = vmatprep.subr.bf16.mxu0 %v6693
        %8908 = vmatpush1.bf16.msra.mxu0 %v6692
        %8909 = vmatprep.subr.bf16.mxu0 %v6697
        %8910 = vmatpush1.bf16.msra.mxu0 %v6696
        %8911 = vmatprep.subr.bf16.mxu0 %v6701
        %8912 = vmatpush1.bf16.msra.mxu0 %v6700
        %8913 = vmatprep.subr.bf16.mxu0 %v6705
        %8914 = vmatpush1.bf16.msra.mxu0 %v6704
        %8915 = vmatprep.subr.bf16.mxu0 %v6709
        %8916 = vmatpush1.bf16.msra.mxu0 %v6708
        %8917 = vmatprep.subr.bf16.mxu0 %v6713
        %8918 = vmatpush1.bf16.msra.mxu0 %v6712
        %8919 = vmatprep.subr.bf16.mxu0 %v6717
        %8920 = vmatpush1.bf16.msra.mxu0 %v6716
        %8921 = vmatprep.subr.bf16.mxu0 %v6721
        %8922 = vmatpush1.bf16.msra.mxu0 %v6720
        %8923 = vmatprep.subr.bf16.mxu0 %v6725
        %8924 = vmatpush1.bf16.msra.mxu0 %v6724
        %8925 = vmatprep.subr.bf16.mxu0 %v6729
        %8926 = vmatpush1.bf16.msra.mxu0 %v6728
        %8927 = vmatprep.subr.bf16.mxu0 %v6733
        %8928 = vmatpush1.bf16.msra.mxu0 %v6732
        %8929 = vmatprep.subr.bf16.mxu0 %v6737
        %8930 = vmatpush1.bf16.msra.mxu0 %v6736
        %8931 = vmatprep.mubr.bf16.mxu0 %v1980
        %8932 = vmatmul.mubr.bf16.gmra.mrb[0].mxu0 %v1979
        %v8933 = vpop.f32.mrb[0].mxu0
        %v8934 = vadd.f32 %v8891, %v8933
        %v8935 = vpop.f32.mrb[0].mxu0
        %v8936 = vadd.f32 %v8893, %v8935
        %v8937 = vpop.f32.mrb[0].mxu0
        %v8938 = vadd.f32 %v8895, %v8937
        %v8939 = vpop.f32.mrb[0].mxu0
        %v8940 = vadd.f32 %v8897, %v8939
        %8941 = vdwg.mxu0
        %8942 = vmatprep.subr.bf16.mxu0 %v6741
        %8943 = vmatpush1.bf16.msra.mxu0 %v6740
        %8944 = vmatprep.subr.bf16.mxu0 %v6745
        %8945 = vmatpush1.bf16.msra.mxu0 %v6744
        %8946 = vmatprep.subr.bf16.mxu0 %v6749
        %8947 = vmatpush1.bf16.msra.mxu0 %v6748
        %8948 = vmatprep.subr.bf16.mxu0 %v6753
        %8949 = vmatpush1.bf16.msra.mxu0 %v6752
        %8950 = vmatprep.subr.bf16.mxu0 %v6757
        %8951 = vmatpush1.bf16.msra.mxu0 %v6756
        %8952 = vmatprep.subr.bf16.mxu0 %v6761
        %8953 = vmatpush1.bf16.msra.mxu0 %v6760
        %8954 = vmatprep.subr.bf16.mxu0 %v6765
        %8955 = vmatpush1.bf16.msra.mxu0 %v6764
        %8956 = vmatprep.subr.bf16.mxu0 %v6769
        %8957 = vmatpush1.bf16.msra.mxu0 %v6768
        %8958 = vmatprep.subr.bf16.mxu0 %v6773
        %8959 = vmatpush1.bf16.msra.mxu0 %v6772
        %8960 = vmatprep.subr.bf16.mxu0 %v6777
        %8961 = vmatpush1.bf16.msra.mxu0 %v6776
        %8962 = vmatprep.subr.bf16.mxu0 %v6781
        %8963 = vmatpush1.bf16.msra.mxu0 %v6780
        %8964 = vmatprep.subr.bf16.mxu0 %v6785
        %8965 = vmatpush1.bf16.msra.mxu0 %v6784
        %8966 = vmatprep.subr.bf16.mxu0 %v6789
        %8967 = vmatpush1.bf16.msra.mxu0 %v6788
        %8968 = vmatprep.subr.bf16.mxu0 %v6793
        %8969 = vmatpush1.bf16.msra.mxu0 %v6792
        %8970 = vmatprep.subr.bf16.mxu0 %v6797
        %8971 = vmatpush1.bf16.msra.mxu0 %v6796
        %8972 = vmatprep.subr.bf16.mxu0 %v6801
        %8973 = vmatpush1.bf16.msra.mxu0 %v6800
        %8974 = vmatprep.mubr.bf16.mxu0 %v1982
        %8975 = vmatmul.mubr.bf16.gmra.mrb[0].mxu0 %v1981
        %v8976 = vpop.f32.mrb[0].mxu0
        %v8977 = vadd.f32 %v8934, %v8976
        %v8978 = vpop.f32.mrb[0].mxu0
        %v8979 = vadd.f32 %v8936, %v8978
        %v8980 = vpop.f32.mrb[0].mxu0
        %v8981 = vadd.f32 %v8938, %v8980
        %v8982 = vpop.f32.mrb[0].mxu0
        %v8983 = vadd.f32 %v8940, %v8982
        %8984 = vdwg.mxu0
        %8985 = vmatprep.subr.bf16.mxu0 %v6805
        %8986 = vmatpush1.bf16.msra.mxu0 %v6804
        %8987 = vmatprep.subr.bf16.mxu0 %v6809
        %8988 = vmatpush1.bf16.msra.mxu0 %v6808
        %8989 = vmatprep.subr.bf16.mxu0 %v6813
        %8990 = vmatpush1.bf16.msra.mxu0 %v6812
        %8991 = vmatprep.subr.bf16.mxu0 %v6817
        %8992 = vmatpush1.bf16.msra.mxu0 %v6816
        %8993 = vmatprep.subr.bf16.mxu0 %v6821
        %8994 = vmatpush1.bf16.msra.mxu0 %v6820
        %8995 = vmatprep.subr.bf16.mxu0 %v6825
        %8996 = vmatpush1.bf16.msra.mxu0 %v6824
        %8997 = vmatprep.subr.bf16.mxu0 %v6829
        %8998 = vmatpush1.bf16.msra.mxu0 %v6828
        %8999 = vmatprep.subr.bf16.mxu0 %v6833
        %9000 = vmatpush1.bf16.msra.mxu0 %v6832
        %9001 = vmatprep.subr.bf16.mxu0 %v6837
        %9002 = vmatpush1.bf16.msra.mxu0 %v6836
        %9003 = vmatprep.subr.bf16.mxu0 %v6841
        %9004 = vmatpush1.bf16.msra.mxu0 %v6840
        %9005 = vmatprep.subr.bf16.mxu0 %v6845
        %9006 = vmatpush1.bf16.msra.mxu0 %v6844
        %9007 = vmatprep.subr.bf16.mxu0 %v6849
        %9008 = vmatpush1.bf16.msra.mxu0 %v6848
        %9009 = vmatprep.subr.bf16.mxu0 %v6853
        %9010 = vmatpush1.bf16.msra.mxu0 %v6852
        %9011 = vmatprep.subr.bf16.mxu0 %v6857
        %9012 = vmatpush1.bf16.msra.mxu0 %v6856
        %9013 = vmatprep.subr.bf16.mxu0 %v6861
        %9014 = vmatpush1.bf16.msra.mxu0 %v6860
        %9015 = vmatprep.subr.bf16.mxu0 %v6865
        %9016 = vmatpush1.bf16.msra.mxu0 %v6864
        %9017 = vmatprep.mubr.bf16.mxu0 %v1984
        %9018 = vmatmul.mubr.bf16.gmra.mrb[0].mxu0 %v1983
        %v9019 = vpop.f32.mrb[0].mxu0
        %v9020 = vadd.f32 %v8977, %v9019
        %v9021 = vpop.f32.mrb[0].mxu0
        %v9022 = vadd.f32 %v8979, %v9021
        %v9023 = vpop.f32.mrb[0].mxu0
        %v9024 = vadd.f32 %v8981, %v9023
        %v9025 = vpop.f32.mrb[0].mxu0
        %v9026 = vadd.f32 %v8983, %v9025
        %9027 = vdwg.mxu0
        %9028 = vmatprep.subr.bf16.mxu0 %v6869
        %9029 = vmatpush1.bf16.msra.mxu0 %v6868
        %9030 = vmatprep.subr.bf16.mxu0 %v6873
        %9031 = vmatpush1.bf16.msra.mxu0 %v6872
        %9032 = vmatprep.subr.bf16.mxu0 %v6877
        %9033 = vmatpush1.bf16.msra.mxu0 %v6876
        %9034 = vmatprep.subr.bf16.mxu0 %v6881
        %9035 = vmatpush1.bf16.msra.mxu0 %v6880
        %9036 = vmatprep.subr.bf16.mxu0 %v6885
        %9037 = vmatpush1.bf16.msra.mxu0 %v6884
        %9038 = vmatprep.subr.bf16.mxu0 %v6889
        %9039 = vmatpush1.bf16.msra.mxu0 %v6888
        %9040 = vmatprep.subr.bf16.mxu0 %v6893
        %9041 = vmatpush1.bf16.msra.mxu0 %v6892
        %9042 = vmatprep.subr.bf16.mxu0 %v6897
        %9043 = vmatpush1.bf16.msra.mxu0 %v6896
        %9044 = vmatprep.subr.bf16.mxu0 %v6901
        %9045 = vmatpush1.bf16.msra.mxu0 %v6900
        %9046 = vmatprep.subr.bf16.mxu0 %v6905
        %9047 = vmatpush1.bf16.msra.mxu0 %v6904
        %9048 = vmatprep.subr.bf16.mxu0 %v6909
        %9049 = vmatpush1.bf16.msra.mxu0 %v6908
        %9050 = vmatprep.subr.bf16.mxu0 %v6913
        %9051 = vmatpush1.bf16.msra.mxu0 %v6912
        %9052 = vmatprep.subr.bf16.mxu0 %v6917
        %9053 = vmatpush1.bf16.msra.mxu0 %v6916
        %9054 = vmatprep.subr.bf16.mxu0 %v6921
        %9055 = vmatpush1.bf16.msra.mxu0 %v6920
        %9056 = vmatprep.subr.bf16.mxu0 %v6925
        %9057 = vmatpush1.bf16.msra.mxu0 %v6924
        %9058 = vmatprep.subr.bf16.mxu0 %v6929
        %9059 = vmatpush1.bf16.msra.mxu0 %v6928
        %9060 = vmatprep.mubr.bf16.mxu0 %v1986
        %9061 = vmatmul.mubr.bf16.gmra.mrb[0].mxu0 %v1985
        %v9062 = vpop.f32.mrb[0].mxu0
        %v9063 = vadd.f32 %v9020, %v9062
        %v9064 = vpop.f32.mrb[0].mxu0
        %v9065 = vadd.f32 %v9022, %v9064
        %v9066 = vpop.f32.mrb[0].mxu0
        %v9067 = vadd.f32 %v9024, %v9066
        %v9068 = vpop.f32.mrb[0].mxu0
        %v9069 = vadd.f32 %v9026, %v9068
        %9070 = vdwg.mxu0
        %9071 = vmatprep.subr.bf16.mxu0 %v6933
        %9072 = vmatpush1.bf16.msra.mxu0 %v6932
        %9073 = vmatprep.subr.bf16.mxu0 %v6937
        %9074 = vmatpush1.bf16.msra.mxu0 %v6936
        %9075 = vmatprep.subr.bf16.mxu0 %v6941
        %9076 = vmatpush1.bf16.msra.mxu0 %v6940
        %9077 = vmatprep.subr.bf16.mxu0 %v6945
        %9078 = vmatpush1.bf16.msra.mxu0 %v6944
        %9079 = vmatprep.subr.bf16.mxu0 %v6949
        %9080 = vmatpush1.bf16.msra.mxu0 %v6948
        %9081 = vmatprep.subr.bf16.mxu0 %v6953
        %9082 = vmatpush1.bf16.msra.mxu0 %v6952
        %9083 = vmatprep.subr.bf16.mxu0 %v6957
        %9084 = vmatpush1.bf16.msra.mxu0 %v6956
        %9085 = vmatprep.subr.bf16.mxu0 %v6961
        %9086 = vmatpush1.bf16.msra.mxu0 %v6960
        %9087 = vmatprep.subr.bf16.mxu0 %v6965
        %9088 = vmatpush1.bf16.msra.mxu0 %v6964
        %9089 = vmatprep.subr.bf16.mxu0 %v6969
        %9090 = vmatpush1.bf16.msra.mxu0 %v6968
        %9091 = vmatprep.subr.bf16.mxu0 %v6973
        %9092 = vmatpush1.bf16.msra.mxu0 %v6972
        %9093 = vmatprep.subr.bf16.mxu0 %v6977
        %9094 = vmatpush1.bf16.msra.mxu0 %v6976
        %9095 = vmatprep.subr.bf16.mxu0 %v6981
        %9096 = vmatpush1.bf16.msra.mxu0 %v6980
        %9097 = vmatprep.subr.bf16.mxu0 %v6985
        %9098 = vmatpush1.bf16.msra.mxu0 %v6984
        %9099 = vmatprep.subr.bf16.mxu0 %v6989
        %9100 = vmatpush1.bf16.msra.mxu0 %v6988
        %9101 = vmatprep.subr.bf16.mxu0 %v6993
        %9102 = vmatpush1.bf16.msra.mxu0 %v6992
        %9103 = vmatprep.mubr.bf16.mxu0 %v1988
        %9104 = vmatmul.mubr.bf16.gmra.mrb[0].mxu0 %v1987
        %v9105 = vpop.f32.mrb[0].mxu0
        %v9106 = vadd.f32 %v9063, %v9105
        %v9107 = vpop.f32.mrb[0].mxu0
        %v9108 = vadd.f32 %v9065, %v9107
        %v9109 = vpop.f32.mrb[0].mxu0
        %v9110 = vadd.f32 %v9067, %v9109
        %v9111 = vpop.f32.mrb[0].mxu0
        %v9112 = vadd.f32 %v9069, %v9111
        %9113 = vdwg.mxu0
        %9114 = vmatprep.subr.bf16.mxu0 %v6997
        %9115 = vmatpush1.bf16.msra.mxu0 %v6996
        %9116 = vmatprep.subr.bf16.mxu0 %v7001
        %9117 = vmatpush1.bf16.msra.mxu0 %v7000
        %9118 = vmatprep.subr.bf16.mxu0 %v7005
        %9119 = vmatpush1.bf16.msra.mxu0 %v7004
        %9120 = vmatprep.subr.bf16.mxu0 %v7009
        %9121 = vmatpush1.bf16.msra.mxu0 %v7008
        %9122 = vmatprep.subr.bf16.mxu0 %v7013
        %9123 = vmatpush1.bf16.msra.mxu0 %v7012
        %9124 = vmatprep.subr.bf16.mxu0 %v7017
        %9125 = vmatpush1.bf16.msra.mxu0 %v7016
        %9126 = vmatprep.subr.bf16.mxu0 %v7021
        %9127 = vmatpush1.bf16.msra.mxu0 %v7020
        %9128 = vmatprep.subr.bf16.mxu0 %v7025
        %9129 = vmatpush1.bf16.msra.mxu0 %v7024
        %9130 = vmatprep.subr.bf16.mxu0 %v8289
        %9131 = vmatpush1.bf16.msra.mxu0 %v8286
        %9132 = vmatprep.subr.bf16.mxu0 0
        %9133 = vmatpush1.bf16.msra.mxu0 0
        %9134 = vmatprep.subr.bf16.mxu0 0
        %9135 = vmatpush1.bf16.msra.mxu0 0
        %9136 = vmatprep.subr.bf16.mxu0 0
        %9137 = vmatpush1.bf16.msra.mxu0 0
        %9138 = vmatprep.subr.bf16.mxu0 0
        %9139 = vmatpush1.bf16.msra.mxu0 0
        %9140 = vmatprep.subr.bf16.mxu0 0
        %9141 = vmatpush1.bf16.msra.mxu0 0
        %9142 = vmatprep.subr.bf16.mxu0 0
        %9143 = vmatpush1.bf16.msra.mxu0 0
        %9144 = vmatprep.subr.bf16.mxu0 0
        %9145 = vmatpush1.bf16.msra.mxu0 0
        %9146 = vmatprep.mubr.bf16.mxu0 %v8282
        %9147 = vmatmul.mubr.bf16.gmra.mrb[0].mxu0 %v1989
        %v9148 = vpop.f32.mrb[0].mxu0
        %v9149 = vadd.f32 %v9106, %v9148
        %v9150 = vpop.f32.mrb[0].mxu0
        %v9151 = vadd.f32 %v9108, %v9150
        %v9152 = vpop.f32.mrb[0].mxu0
        %v9153 = vadd.f32 %v9110, %v9152
        %v9154 = vpop.f32.mrb[0].mxu0
        %v9155 = vadd.f32 %v9112, %v9154
        %9156 = vdwg.mxu0
        %9157 = vmatprep.subr.bf16.mxu0 %v5783
        %9158 = vmatpush1.bf16.msra.mxu0 %v5782
        %9159 = vmatprep.subr.bf16.mxu0 %v5787
        %9160 = vmatpush1.bf16.msra.mxu0 %v5786
        %9161 = vmatprep.subr.bf16.mxu0 %v5791
        %9162 = vmatpush1.bf16.msra.mxu0 %v5790
        %9163 = vmatprep.subr.bf16.mxu0 %v5795
        %9164 = vmatpush1.bf16.msra.mxu0 %v5794
        %9165 = vmatprep.subr.bf16.mxu0 %v5799
        %9166 = vmatpush1.bf16.msra.mxu0 %v5798
        %9167 = vmatprep.subr.bf16.mxu0 %v5803
        %9168 = vmatpush1.bf16.msra.mxu0 %v5802
        %9169 = vmatprep.subr.bf16.mxu0 %v5807
        %9170 = vmatpush1.bf16.msra.mxu0 %v5806
        %9171 = vmatprep.subr.bf16.mxu0 %v5811
        %9172 = vmatpush1.bf16.msra.mxu0 %v5810
        %9173 = vmatprep.subr.bf16.mxu0 %v5815
        %9174 = vmatpush1.bf16.msra.mxu0 %v5814
        %9175 = vmatprep.subr.bf16.mxu0 %v5819
        %9176 = vmatpush1.bf16.msra.mxu0 %v5818
        %9177 = vmatprep.subr.bf16.mxu0 %v5823
        %9178 = vmatpush1.bf16.msra.mxu0 %v5822
        %9179 = vmatprep.subr.bf16.mxu0 %v5827
        %9180 = vmatpush1.bf16.msra.mxu0 %v5826
        %9181 = vmatprep.subr.bf16.mxu0 %v5831
        %9182 = vmatpush1.bf16.msra.mxu0 %v5830
        %9183 = vmatprep.subr.bf16.mxu0 %v5835
        %9184 = vmatpush1.bf16.msra.mxu0 %v5834
        %9185 = vmatprep.subr.bf16.mxu0 %v5839
        %9186 = vmatpush1.bf16.msra.mxu0 %v5838
        %9187 = vmatprep.subr.bf16.mxu0 %v5843
        %9188 = vmatpush1.bf16.msra.mxu0 %v5842
        %9189 = vmatprep.mubr.bf16.mxu0 %v1952
        %9190 = vmatmul.mubr.bf16.gmra.mrb[0].mxu0 %v1951
        %v9191 = vpop.f32.mrb[0].mxu0
        %v9192 = vadd.f32 %v1822, %v9191
        %v9193 = vpop.f32.mrb[0].mxu0
        %v9194 = vadd.f32 %v1826, %v9193
        %v9195 = vpop.f32.mrb[0].mxu0
        %v9196 = vadd.f32 %v1822, %v9195
        %v9197 = vpop.f32.mrb[0].mxu0
        %v9198 = vadd.f32 %v1826, %v9197
        %9199 = vdwg.mxu0
        %9200 = vmatprep.subr.bf16.mxu0 %v5847
        %9201 = vmatpush1.bf16.msra.mxu0 %v5846
        %9202 = vmatprep.subr.bf16.mxu0 %v5851
        %9203 = vmatpush1.bf16.msra.mxu0 %v5850
        %9204 = vmatprep.subr.bf16.mxu0 %v5855
        %9205 = vmatpush1.bf16.msra.mxu0 %v5854
        %9206 = vmatprep.subr.bf16.mxu0 %v5859
        %9207 = vmatpush1.bf16.msra.mxu0 %v5858
        %9208 = vmatprep.subr.bf16.mxu0 %v5863
        %9209 = vmatpush1.bf16.msra.mxu0 %v5862
        %9210 = vmatprep.subr.bf16.mxu0 %v5867
        %9211 = vmatpush1.bf16.msra.mxu0 %v5866
        %9212 = vmatprep.subr.bf16.mxu0 %v5871
        %9213 = vmatpush1.bf16.msra.mxu0 %v5870
        %9214 = vmatprep.subr.bf16.mxu0 %v5875
        %9215 = vmatpush1.bf16.msra.mxu0 %v5874
        %9216 = vmatprep.subr.bf16.mxu0 %v5879
        %9217 = vmatpush1.bf16.msra.mxu0 %v5878
        %9218 = vmatprep.subr.bf16.mxu0 %v5883
        %9219 = vmatpush1.bf16.msra.mxu0 %v5882
        %9220 = vmatprep.subr.bf16.mxu0 %v5887
        %9221 = vmatpush1.bf16.msra.mxu0 %v5886
        %9222 = vmatprep.subr.bf16.mxu0 %v5891
        %9223 = vmatpush1.bf16.msra.mxu0 %v5890
        %9224 = vmatprep.subr.bf16.mxu0 %v5895
        %9225 = vmatpush1.bf16.msra.mxu0 %v5894
        %9226 = vmatprep.subr.bf16.mxu0 %v5899
        %9227 = vmatpush1.bf16.msra.mxu0 %v5898
        %9228 = vmatprep.subr.bf16.mxu0 %v5903
        %9229 = vmatpush1.bf16.msra.mxu0 %v5902
        %9230 = vmatprep.subr.bf16.mxu0 %v5907
        %9231 = vmatpush1.bf16.msra.mxu0 %v5906
        %9232 = vmatprep.mubr.bf16.mxu0 %v1954
        %9233 = vmatmul.mubr.bf16.gmra.mrb[0].mxu0 %v1953
        %v9234 = vpop.f32.mrb[0].mxu0
        %v9235 = vadd.f32 %v9192, %v9234
        %v9236 = vpop.f32.mrb[0].mxu0
        %v9237 = vadd.f32 %v9194, %v9236
        %v9238 = vpop.f32.mrb[0].mxu0
        %v9239 = vadd.f32 %v9196, %v9238
        %v9240 = vpop.f32.mrb[0].mxu0
        %v9241 = vadd.f32 %v9198, %v9240
        %9242 = vdwg.mxu0
        %9243 = vmatprep.subr.bf16.mxu0 %v5911
        %9244 = vmatpush1.bf16.msra.mxu0 %v5910
        %9245 = vmatprep.subr.bf16.mxu0 %v5915
        %9246 = vmatpush1.bf16.msra.mxu0 %v5914
        %9247 = vmatprep.subr.bf16.mxu0 %v5919
        %9248 = vmatpush1.bf16.msra.mxu0 %v5918
        %9249 = vmatprep.subr.bf16.mxu0 %v5923
        %9250 = vmatpush1.bf16.msra.mxu0 %v5922
        %9251 = vmatprep.subr.bf16.mxu0 %v5927
        %9252 = vmatpush1.bf16.msra.mxu0 %v5926
        %9253 = vmatprep.subr.bf16.mxu0 %v5931
        %9254 = vmatpush1.bf16.msra.mxu0 %v5930
        %9255 = vmatprep.subr.bf16.mxu0 %v5935
        %9256 = vmatpush1.bf16.msra.mxu0 %v5934
        %9257 = vmatprep.subr.bf16.mxu0 %v5939
        %9258 = vmatpush1.bf16.msra.mxu0 %v5938
        %9259 = vmatprep.subr.bf16.mxu0 %v5943
        %9260 = vmatpush1.bf16.msra.mxu0 %v5942
        %9261 = vmatprep.subr.bf16.mxu0 %v5947
        %9262 = vmatpush1.bf16.msra.mxu0 %v5946
        %9263 = vmatprep.subr.bf16.mxu0 %v5951
        %9264 = vmatpush1.bf16.msra.mxu0 %v5950
        %9265 = vmatprep.subr.bf16.mxu0 %v5955
        %9266 = vmatpush1.bf16.msra.mxu0 %v5954
        %9267 = vmatprep.subr.bf16.mxu0 %v5959
        %9268 = vmatpush1.bf16.msra.mxu0 %v5958
        %9269 = vmatprep.subr.bf16.mxu0 %v5963
        %9270 = vmatpush1.bf16.msra.mxu0 %v5962
        %9271 = vmatprep.subr.bf16.mxu0 %v5967
        %9272 = vmatpush1.bf16.msra.mxu0 %v5966
        %9273 = vmatprep.subr.bf16.mxu0 %v5971
        %9274 = vmatpush1.bf16.msra.mxu0 %v5970
        %9275 = vmatprep.mubr.bf16.mxu0 %v1956
        %9276 = vmatmul.mubr.bf16.gmra.mrb[0].mxu0 %v1955
        %v9277 = vpop.f32.mrb[0].mxu0
        %v9278 = vadd.f32 %v9235, %v9277
        %v9279 = vpop.f32.mrb[0].mxu0
        %v9280 = vadd.f32 %v9237, %v9279
        %v9281 = vpop.f32.mrb[0].mxu0
        %v9282 = vadd.f32 %v9239, %v9281
        %v9283 = vpop.f32.mrb[0].mxu0
        %v9284 = vadd.f32 %v9241, %v9283
        %9285 = vdwg.mxu0
        %9286 = vmatprep.subr.bf16.mxu0 %v5975
        %9287 = vmatpush1.bf16.msra.mxu0 %v5974
        %9288 = vmatprep.subr.bf16.mxu0 %v5979
        %9289 = vmatpush1.bf16.msra.mxu0 %v5978
        %9290 = vmatprep.subr.bf16.mxu0 %v5983
        %9291 = vmatpush1.bf16.msra.mxu0 %v5982
        %9292 = vmatprep.subr.bf16.mxu0 %v5987
        %9293 = vmatpush1.bf16.msra.mxu0 %v5986
        %9294 = vmatprep.subr.bf16.mxu0 %v5991
        %9295 = vmatpush1.bf16.msra.mxu0 %v5990
        %9296 = vmatprep.subr.bf16.mxu0 %v5995
        %9297 = vmatpush1.bf16.msra.mxu0 %v5994
        %9298 = vmatprep.subr.bf16.mxu0 %v5999
        %9299 = vmatpush1.bf16.msra.mxu0 %v5998
        %9300 = vmatprep.subr.bf16.mxu0 %v6003
        %9301 = vmatpush1.bf16.msra.mxu0 %v6002
        %9302 = vmatprep.subr.bf16.mxu0 %v6007
        %9303 = vmatpush1.bf16.msra.mxu0 %v6006
        %9304 = vmatprep.subr.bf16.mxu0 %v6011
        %9305 = vmatpush1.bf16.msra.mxu0 %v6010
        %9306 = vmatprep.subr.bf16.mxu0 %v6015
        %9307 = vmatpush1.bf16.msra.mxu0 %v6014
        %9308 = vmatprep.subr.bf16.mxu0 %v6019
        %9309 = vmatpush1.bf16.msra.mxu0 %v6018
        %9310 = vmatprep.subr.bf16.mxu0 %v6023
        %9311 = vmatpush1.bf16.msra.mxu0 %v6022
        %9312 = vmatprep.subr.bf16.mxu0 %v6027
        %9313 = vmatpush1.bf16.msra.mxu0 %v6026
        %9314 = vmatprep.subr.bf16.mxu0 %v6031
        %9315 = vmatpush1.bf16.msra.mxu0 %v6030
        %9316 = vmatprep.subr.bf16.mxu0 %v6035
        %9317 = vmatpush1.bf16.msra.mxu0 %v6034
        %9318 = vmatprep.mubr.bf16.mxu0 %v1958
        %9319 = vmatmul.mubr.bf16.gmra.mrb[0].mxu0 %v1957
        %v9320 = vpop.f32.mrb[0].mxu0
        %v9321 = vadd.f32 %v9278, %v9320
        %v9322 = vpop.f32.mrb[0].mxu0
        %v9323 = vadd.f32 %v9280, %v9322
        %v9324 = vpop.f32.mrb[0].mxu0
        %v9325 = vadd.f32 %v9282, %v9324
        %v9326 = vpop.f32.mrb[0].mxu0
        %v9327 = vadd.f32 %v9284, %v9326
        %9328 = vdwg.mxu0
        %9329 = vmatprep.subr.bf16.mxu0 %v6039
        %9330 = vmatpush1.bf16.msra.mxu0 %v6038
        %9331 = vmatprep.subr.bf16.mxu0 %v6043
        %9332 = vmatpush1.bf16.msra.mxu0 %v6042
        %9333 = vmatprep.subr.bf16.mxu0 %v6047
        %9334 = vmatpush1.bf16.msra.mxu0 %v6046
        %9335 = vmatprep.subr.bf16.mxu0 %v6051
        %9336 = vmatpush1.bf16.msra.mxu0 %v6050
        %9337 = vmatprep.subr.bf16.mxu0 %v6055
        %9338 = vmatpush1.bf16.msra.mxu0 %v6054
        %9339 = vmatprep.subr.bf16.mxu0 %v6059
        %9340 = vmatpush1.bf16.msra.mxu0 %v6058
        %9341 = vmatprep.subr.bf16.mxu0 %v6063
        %9342 = vmatpush1.bf16.msra.mxu0 %v6062
        %9343 = vmatprep.subr.bf16.mxu0 %v6067
        %9344 = vmatpush1.bf16.msra.mxu0 %v6066
        %9345 = vmatprep.subr.bf16.mxu0 %v6071
        %9346 = vmatpush1.bf16.msra.mxu0 %v6070
        %9347 = vmatprep.subr.bf16.mxu0 %v6075
        %9348 = vmatpush1.bf16.msra.mxu0 %v6074
        %9349 = vmatprep.subr.bf16.mxu0 %v6079
        %9350 = vmatpush1.bf16.msra.mxu0 %v6078
        %9351 = vmatprep.subr.bf16.mxu0 %v6083
        %9352 = vmatpush1.bf16.msra.mxu0 %v6082
        %9353 = vmatprep.subr.bf16.mxu0 %v6087
        %9354 = vmatpush1.bf16.msra.mxu0 %v6086
        %9355 = vmatprep.subr.bf16.mxu0 %v6091
        %9356 = vmatpush1.bf16.msra.mxu0 %v6090
        %9357 = vmatprep.subr.bf16.mxu0 %v6095
        %9358 = vmatpush1.bf16.msra.mxu0 %v6094
        %9359 = vmatprep.subr.bf16.mxu0 %v6099
        %9360 = vmatpush1.bf16.msra.mxu0 %v6098
        %9361 = vmatprep.mubr.bf16.mxu0 %v1960
        %9362 = vmatmul.mubr.bf16.gmra.mrb[0].mxu0 %v1959
        %v9363 = vpop.f32.mrb[0].mxu0
        %v9364 = vadd.f32 %v9321, %v9363
        %v9365 = vpop.f32.mrb[0].mxu0
        %v9366 = vadd.f32 %v9323, %v9365
        %v9367 = vpop.f32.mrb[0].mxu0
        %v9368 = vadd.f32 %v9325, %v9367
        %v9369 = vpop.f32.mrb[0].mxu0
        %v9370 = vadd.f32 %v9327, %v9369
        %9371 = vdwg.mxu0
        %9372 = vmatprep.subr.bf16.mxu0 %v6103
        %9373 = vmatpush1.bf16.msra.mxu0 %v6102
        %9374 = vmatprep.subr.bf16.mxu0 %v6107
        %9375 = vmatpush1.bf16.msra.mxu0 %v6106
        %9376 = vmatprep.subr.bf16.mxu0 %v6111
        %9377 = vmatpush1.bf16.msra.mxu0 %v6110
        %9378 = vmatprep.subr.bf16.mxu0 %v6115
        %9379 = vmatpush1.bf16.msra.mxu0 %v6114
        %9380 = vmatprep.subr.bf16.mxu0 %v6119
        %9381 = vmatpush1.bf16.msra.mxu0 %v6118
        %9382 = vmatprep.subr.bf16.mxu0 %v6123
        %9383 = vmatpush1.bf16.msra.mxu0 %v6122
        %9384 = vmatprep.subr.bf16.mxu0 %v6127
        %9385 = vmatpush1.bf16.msra.mxu0 %v6126
        %9386 = vmatprep.subr.bf16.mxu0 %v6131
        %9387 = vmatpush1.bf16.msra.mxu0 %v6130
        %9388 = vmatprep.subr.bf16.mxu0 %v6135
        %9389 = vmatpush1.bf16.msra.mxu0 %v6134
        %9390 = vmatprep.subr.bf16.mxu0 %v6139
        %9391 = vmatpush1.bf16.msra.mxu0 %v6138
        %9392 = vmatprep.subr.bf16.mxu0 %v6143
        %9393 = vmatpush1.bf16.msra.mxu0 %v6142
        %9394 = vmatprep.subr.bf16.mxu0 %v6147
        %9395 = vmatpush1.bf16.msra.mxu0 %v6146
        %9396 = vmatprep.subr.bf16.mxu0 %v6151
        %9397 = vmatpush1.bf16.msra.mxu0 %v6150
        %9398 = vmatprep.subr.bf16.mxu0 %v6155
        %9399 = vmatpush1.bf16.msra.mxu0 %v6154
        %9400 = vmatprep.subr.bf16.mxu0 %v6159
        %9401 = vmatpush1.bf16.msra.mxu0 %v6158
        %9402 = vmatprep.subr.bf16.mxu0 %v6163
        %9403 = vmatpush1.bf16.msra.mxu0 %v6162
        %9404 = vmatprep.mubr.bf16.mxu0 %v1962
        %9405 = vmatmul.mubr.bf16.gmra.mrb[0].mxu0 %v1961
        %v9406 = vpop.f32.mrb[0].mxu0
        %v9407 = vadd.f32 %v9364, %v9406
        %v9408 = vpop.f32.mrb[0].mxu0
        %v9409 = vadd.f32 %v9366, %v9408
        %v9410 = vpop.f32.mrb[0].mxu0
        %v9411 = vadd.f32 %v9368, %v9410
        %v9412 = vpop.f32.mrb[0].mxu0
        %v9413 = vadd.f32 %v9370, %v9412
        %9414 = vdwg.mxu0
        %9415 = vmatprep.subr.bf16.mxu0 %v6167
        %9416 = vmatpush1.bf16.msra.mxu0 %v6166
        %9417 = vmatprep.subr.bf16.mxu0 %v6171
        %9418 = vmatpush1.bf16.msra.mxu0 %v6170
        %9419 = vmatprep.subr.bf16.mxu0 %v6175
        %9420 = vmatpush1.bf16.msra.mxu0 %v6174
        %9421 = vmatprep.subr.bf16.mxu0 %v6179
        %9422 = vmatpush1.bf16.msra.mxu0 %v6178
        %9423 = vmatprep.subr.bf16.mxu0 %v6183
        %9424 = vmatpush1.bf16.msra.mxu0 %v6182
        %9425 = vmatprep.subr.bf16.mxu0 %v6187
        %9426 = vmatpush1.bf16.msra.mxu0 %v6186
        %9427 = vmatprep.subr.bf16.mxu0 %v6191
        %9428 = vmatpush1.bf16.msra.mxu0 %v6190
        %9429 = vmatprep.subr.bf16.mxu0 %v6195
        %9430 = vmatpush1.bf16.msra.mxu0 %v6194
        %9431 = vmatprep.subr.bf16.mxu0 %v6199
        %9432 = vmatpush1.bf16.msra.mxu0 %v6198
        %9433 = vmatprep.subr.bf16.mxu0 %v6203
        %9434 = vmatpush1.bf16.msra.mxu0 %v6202
        %9435 = vmatprep.subr.bf16.mxu0 %v6207
        %9436 = vmatpush1.bf16.msra.mxu0 %v6206
        %9437 = vmatprep.subr.bf16.mxu0 %v6211
        %9438 = vmatpush1.bf16.msra.mxu0 %v6210
        %9439 = vmatprep.subr.bf16.mxu0 %v6215
        %9440 = vmatpush1.bf16.msra.mxu0 %v6214
        %9441 = vmatprep.subr.bf16.mxu0 %v6219
        %9442 = vmatpush1.bf16.msra.mxu0 %v6218
        %9443 = vmatprep.subr.bf16.mxu0 %v6223
        %9444 = vmatpush1.bf16.msra.mxu0 %v6222
        %9445 = vmatprep.subr.bf16.mxu0 %v6227
        %9446 = vmatpush1.bf16.msra.mxu0 %v6226
        %9447 = vmatprep.mubr.bf16.mxu0 %v1964
        %9448 = vmatmul.mubr.bf16.gmra.mrb[0].mxu0 %v1963
        %v9449 = vpop.f32.mrb[0].mxu0
        %v9450 = vadd.f32 %v9407, %v9449
        %v9451 = vpop.f32.mrb[0].mxu0
        %v9452 = vadd.f32 %v9409, %v9451
        %v9453 = vpop.f32.mrb[0].mxu0
        %v9454 = vadd.f32 %v9411, %v9453
        %v9455 = vpop.f32.mrb[0].mxu0
        %v9456 = vadd.f32 %v9413, %v9455
        %9457 = vdwg.mxu0
        %9458 = vmatprep.subr.bf16.mxu0 %v6231
        %9459 = vmatpush1.bf16.msra.mxu0 %v6230
        %9460 = vmatprep.subr.bf16.mxu0 %v6235
        %9461 = vmatpush1.bf16.msra.mxu0 %v6234
        %9462 = vmatprep.subr.bf16.mxu0 %v6239
        %9463 = vmatpush1.bf16.msra.mxu0 %v6238
        %9464 = vmatprep.subr.bf16.mxu0 %v6243
        %9465 = vmatpush1.bf16.msra.mxu0 %v6242
        %9466 = vmatprep.subr.bf16.mxu0 %v6247
        %9467 = vmatpush1.bf16.msra.mxu0 %v6246
        %9468 = vmatprep.subr.bf16.mxu0 %v6251
        %9469 = vmatpush1.bf16.msra.mxu0 %v6250
        %9470 = vmatprep.subr.bf16.mxu0 %v6255
        %9471 = vmatpush1.bf16.msra.mxu0 %v6254
        %9472 = vmatprep.subr.bf16.mxu0 %v6259
        %9473 = vmatpush1.bf16.msra.mxu0 %v6258
        %9474 = vmatprep.subr.bf16.mxu0 %v6263
        %9475 = vmatpush1.bf16.msra.mxu0 %v6262
        %9476 = vmatprep.subr.bf16.mxu0 %v6267
        %9477 = vmatpush1.bf16.msra.mxu0 %v6266
        %9478 = vmatprep.subr.bf16.mxu0 %v6271
        %9479 = vmatpush1.bf16.msra.mxu0 %v6270
        %9480 = vmatprep.subr.bf16.mxu0 %v6275
        %9481 = vmatpush1.bf16.msra.mxu0 %v6274
        %9482 = vmatprep.subr.bf16.mxu0 %v6279
        %9483 = vmatpush1.bf16.msra.mxu0 %v6278
        %9484 = vmatprep.subr.bf16.mxu0 %v6283
        %9485 = vmatpush1.bf16.msra.mxu0 %v6282
        %9486 = vmatprep.subr.bf16.mxu0 %v6287
        %9487 = vmatpush1.bf16.msra.mxu0 %v6286
        %9488 = vmatprep.subr.bf16.mxu0 %v6291
        %9489 = vmatpush1.bf16.msra.mxu0 %v6290
        %9490 = vmatprep.mubr.bf16.mxu0 %v1966
        %9491 = vmatmul.mubr.bf16.gmra.mrb[0].mxu0 %v1965
        %v9492 = vpop.f32.mrb[0].mxu0
        %v9493 = vadd.f32 %v9450, %v9492
        %v9494 = vpop.f32.mrb[0].mxu0
        %v9495 = vadd.f32 %v9452, %v9494
        %v9496 = vpop.f32.mrb[0].mxu0
        %v9497 = vadd.f32 %v9454, %v9496
        %v9498 = vpop.f32.mrb[0].mxu0
        %v9499 = vadd.f32 %v9456, %v9498
        %9500 = vdwg.mxu0
        %9501 = vmatprep.subr.bf16.mxu0 %v6295
        %9502 = vmatpush1.bf16.msra.mxu0 %v6294
        %9503 = vmatprep.subr.bf16.mxu0 %v6299
        %9504 = vmatpush1.bf16.msra.mxu0 %v6298
        %9505 = vmatprep.subr.bf16.mxu0 %v6303
        %9506 = vmatpush1.bf16.msra.mxu0 %v6302
        %9507 = vmatprep.subr.bf16.mxu0 %v6307
        %9508 = vmatpush1.bf16.msra.mxu0 %v6306
        %9509 = vmatprep.subr.bf16.mxu0 %v6311
        %9510 = vmatpush1.bf16.msra.mxu0 %v6310
        %9511 = vmatprep.subr.bf16.mxu0 %v6315
        %9512 = vmatpush1.bf16.msra.mxu0 %v6314
        %9513 = vmatprep.subr.bf16.mxu0 %v6319
        %9514 = vmatpush1.bf16.msra.mxu0 %v6318
        %9515 = vmatprep.subr.bf16.mxu0 %v6323
        %9516 = vmatpush1.bf16.msra.mxu0 %v6322
        %9517 = vmatprep.subr.bf16.mxu0 %v6327
        %9518 = vmatpush1.bf16.msra.mxu0 %v6326
        %9519 = vmatprep.subr.bf16.mxu0 %v6331
        %9520 = vmatpush1.bf16.msra.mxu0 %v6330
        %9521 = vmatprep.subr.bf16.mxu0 %v6335
        %9522 = vmatpush1.bf16.msra.mxu0 %v6334
        %9523 = vmatprep.subr.bf16.mxu0 %v6339
        %9524 = vmatpush1.bf16.msra.mxu0 %v6338
        %9525 = vmatprep.subr.bf16.mxu0 %v6343
        %9526 = vmatpush1.bf16.msra.mxu0 %v6342
        %9527 = vmatprep.subr.bf16.mxu0 %v6347
        %9528 = vmatpush1.bf16.msra.mxu0 %v6346
        %9529 = vmatprep.subr.bf16.mxu0 %v6351
        %9530 = vmatpush1.bf16.msra.mxu0 %v6350
        %9531 = vmatprep.subr.bf16.mxu0 %v6355
        %9532 = vmatpush1.bf16.msra.mxu0 %v6354
        %9533 = vmatprep.mubr.bf16.mxu0 %v1968
        %9534 = vmatmul.mubr.bf16.gmra.mrb[0].mxu0 %v1967
        %v9535 = vpop.f32.mrb[0].mxu0
        %v9536 = vadd.f32 %v9493, %v9535
        %v9537 = vpop.f32.mrb[0].mxu0
        %v9538 = vadd.f32 %v9495, %v9537
        %v9539 = vpop.f32.mrb[0].mxu0
        %v9540 = vadd.f32 %v9497, %v9539
        %v9541 = vpop.f32.mrb[0].mxu0
        %v9542 = vadd.f32 %v9499, %v9541
        %9543 = vdwg.mxu0
        %9544 = vmatprep.subr.bf16.mxu0 %v6359
        %9545 = vmatpush1.bf16.msra.mxu0 %v6358
        %9546 = vmatprep.subr.bf16.mxu0 %v6363
        %9547 = vmatpush1.bf16.msra.mxu0 %v6362
        %9548 = vmatprep.subr.bf16.mxu0 %v6367
        %9549 = vmatpush1.bf16.msra.mxu0 %v6366
        %9550 = vmatprep.subr.bf16.mxu0 %v6371
        %9551 = vmatpush1.bf16.msra.mxu0 %v6370
        %9552 = vmatprep.subr.bf16.mxu0 %v6375
        %9553 = vmatpush1.bf16.msra.mxu0 %v6374
        %9554 = vmatprep.subr.bf16.mxu0 %v6379
        %9555 = vmatpush1.bf16.msra.mxu0 %v6378
        %9556 = vmatprep.subr.bf16.mxu0 %v6383
        %9557 = vmatpush1.bf16.msra.mxu0 %v6382
        %9558 = vmatprep.subr.bf16.mxu0 %v6387
        %9559 = vmatpush1.bf16.msra.mxu0 %v6386
        %9560 = vmatprep.subr.bf16.mxu0 %v6391
        %9561 = vmatpush1.bf16.msra.mxu0 %v6390
        %9562 = vmatprep.subr.bf16.mxu0 %v6395
        %9563 = vmatpush1.bf16.msra.mxu0 %v6394
        %9564 = vmatprep.subr.bf16.mxu0 %v6399
        %9565 = vmatpush1.bf16.msra.mxu0 %v6398
        %9566 = vmatprep.subr.bf16.mxu0 %v6403
        %9567 = vmatpush1.bf16.msra.mxu0 %v6402
        %9568 = vmatprep.subr.bf16.mxu0 %v6407
        %9569 = vmatpush1.bf16.msra.mxu0 %v6406
        %9570 = vmatprep.subr.bf16.mxu0 %v6411
        %9571 = vmatpush1.bf16.msra.mxu0 %v6410
        %9572 = vmatprep.subr.bf16.mxu0 %v6415
        %9573 = vmatpush1.bf16.msra.mxu0 %v6414
        %9574 = vmatprep.subr.bf16.mxu0 %v6419
        %9575 = vmatpush1.bf16.msra.mxu0 %v6418
        %9576 = vmatprep.mubr.bf16.mxu0 %v1970
        %9577 = vmatmul.mubr.bf16.gmra.mrb[0].mxu0 %v1969
        %v9578 = vpop.f32.mrb[0].mxu0
        %v9579 = vadd.f32 %v9536, %v9578
        %v9580 = vpop.f32.mrb[0].mxu0
        %v9581 = vadd.f32 %v9538, %v9580
        %v9582 = vpop.f32.mrb[0].mxu0
        %v9583 = vadd.f32 %v9540, %v9582
        %v9584 = vpop.f32.mrb[0].mxu0
        %v9585 = vadd.f32 %v9542, %v9584
        %9586 = vdwg.mxu0
        %9587 = vmatprep.subr.bf16.mxu0 %v6423
        %9588 = vmatpush1.bf16.msra.mxu0 %v6422
        %9589 = vmatprep.subr.bf16.mxu0 %v6427
        %9590 = vmatpush1.bf16.msra.mxu0 %v6426
        %9591 = vmatprep.subr.bf16.mxu0 %v6431
        %9592 = vmatpush1.bf16.msra.mxu0 %v6430
        %9593 = vmatprep.subr.bf16.mxu0 %v6435
        %9594 = vmatpush1.bf16.msra.mxu0 %v6434
        %9595 = vmatprep.subr.bf16.mxu0 %v6439
        %9596 = vmatpush1.bf16.msra.mxu0 %v6438
        %9597 = vmatprep.subr.bf16.mxu0 %v6443
        %9598 = vmatpush1.bf16.msra.mxu0 %v6442
        %9599 = vmatprep.subr.bf16.mxu0 %v6447
        %9600 = vmatpush1.bf16.msra.mxu0 %v6446
        %9601 = vmatprep.subr.bf16.mxu0 %v6451
        %9602 = vmatpush1.bf16.msra.mxu0 %v6450
        %9603 = vmatprep.subr.bf16.mxu0 %v6455
        %9604 = vmatpush1.bf16.msra.mxu0 %v6454
        %9605 = vmatprep.subr.bf16.mxu0 %v6459
        %9606 = vmatpush1.bf16.msra.mxu0 %v6458
        %9607 = vmatprep.subr.bf16.mxu0 %v6463
        %9608 = vmatpush1.bf16.msra.mxu0 %v6462
        %9609 = vmatprep.subr.bf16.mxu0 %v6467
        %9610 = vmatpush1.bf16.msra.mxu0 %v6466
        %9611 = vmatprep.subr.bf16.mxu0 %v6471
        %9612 = vmatpush1.bf16.msra.mxu0 %v6470
        %9613 = vmatprep.subr.bf16.mxu0 %v6475
        %9614 = vmatpush1.bf16.msra.mxu0 %v6474
        %9615 = vmatprep.subr.bf16.mxu0 %v6479
        %9616 = vmatpush1.bf16.msra.mxu0 %v6478
        %9617 = vmatprep.subr.bf16.mxu0 %v6483
        %9618 = vmatpush1.bf16.msra.mxu0 %v6482
        %9619 = vmatprep.mubr.bf16.mxu0 %v1972
        %9620 = vmatmul.mubr.bf16.gmra.mrb[0].mxu0 %v1971
        %v9621 = vpop.f32.mrb[0].mxu0
        %v9622 = vadd.f32 %v9579, %v9621
        %v9623 = vpop.f32.mrb[0].mxu0
        %v9624 = vadd.f32 %v9581, %v9623
        %v9625 = vpop.f32.mrb[0].mxu0
        %v9626 = vadd.f32 %v9583, %v9625
        %v9627 = vpop.f32.mrb[0].mxu0
        %v9628 = vadd.f32 %v9585, %v9627
        %9629 = vdwg.mxu0
        %9630 = vmatprep.subr.bf16.mxu0 %v6487
        %9631 = vmatpush1.bf16.msra.mxu0 %v6486
        %9632 = vmatprep.subr.bf16.mxu0 %v6491
        %9633 = vmatpush1.bf16.msra.mxu0 %v6490
        %9634 = vmatprep.subr.bf16.mxu0 %v6495
        %9635 = vmatpush1.bf16.msra.mxu0 %v6494
        %9636 = vmatprep.subr.bf16.mxu0 %v6499
        %9637 = vmatpush1.bf16.msra.mxu0 %v6498
        %9638 = vmatprep.subr.bf16.mxu0 %v6503
        %9639 = vmatpush1.bf16.msra.mxu0 %v6502
        %9640 = vmatprep.subr.bf16.mxu0 %v6507
        %9641 = vmatpush1.bf16.msra.mxu0 %v6506
        %9642 = vmatprep.subr.bf16.mxu0 %v6511
        %9643 = vmatpush1.bf16.msra.mxu0 %v6510
        %9644 = vmatprep.subr.bf16.mxu0 %v6515
        %9645 = vmatpush1.bf16.msra.mxu0 %v6514
        %9646 = vmatprep.subr.bf16.mxu0 %v6519
        %9647 = vmatpush1.bf16.msra.mxu0 %v6518
        %9648 = vmatprep.subr.bf16.mxu0 %v6523
        %9649 = vmatpush1.bf16.msra.mxu0 %v6522
        %9650 = vmatprep.subr.bf16.mxu0 %v6527
        %9651 = vmatpush1.bf16.msra.mxu0 %v6526
        %9652 = vmatprep.subr.bf16.mxu0 %v6531
        %9653 = vmatpush1.bf16.msra.mxu0 %v6530
        %9654 = vmatprep.subr.bf16.mxu0 %v6535
        %9655 = vmatpush1.bf16.msra.mxu0 %v6534
        %9656 = vmatprep.subr.bf16.mxu0 %v6539
        %9657 = vmatpush1.bf16.msra.mxu0 %v6538
        %9658 = vmatprep.subr.bf16.mxu0 %v6543
        %9659 = vmatpush1.bf16.msra.mxu0 %v6542
        %9660 = vmatprep.subr.bf16.mxu0 %v6547
        %9661 = vmatpush1.bf16.msra.mxu0 %v6546
        %9662 = vmatprep.mubr.bf16.mxu0 %v1974
        %9663 = vmatmul.mubr.bf16.gmra.mrb[0].mxu0 %v1973
        %v9664 = vpop.f32.mrb[0].mxu0
        %v9665 = vadd.f32 %v9622, %v9664
        %v9666 = vpop.f32.mrb[0].mxu0
        %v9667 = vadd.f32 %v9624, %v9666
        %v9668 = vpop.f32.mrb[0].mxu0
        %v9669 = vadd.f32 %v9626, %v9668
        %v9670 = vpop.f32.mrb[0].mxu0
        %v9671 = vadd.f32 %v9628, %v9670
        %9672 = vdwg.mxu0
        %9673 = vmatprep.subr.bf16.mxu0 %v6551
        %9674 = vmatpush1.bf16.msra.mxu0 %v6550
        %9675 = vmatprep.subr.bf16.mxu0 %v6555
        %9676 = vmatpush1.bf16.msra.mxu0 %v6554
        %9677 = vmatprep.subr.bf16.mxu0 %v6559
        %9678 = vmatpush1.bf16.msra.mxu0 %v6558
        %9679 = vmatprep.subr.bf16.mxu0 %v6563
        %9680 = vmatpush1.bf16.msra.mxu0 %v6562
        %9681 = vmatprep.subr.bf16.mxu0 %v6567
        %9682 = vmatpush1.bf16.msra.mxu0 %v6566
        %9683 = vmatprep.subr.bf16.mxu0 %v6571
        %9684 = vmatpush1.bf16.msra.mxu0 %v6570
        %9685 = vmatprep.subr.bf16.mxu0 %v6575
        %9686 = vmatpush1.bf16.msra.mxu0 %v6574
        %9687 = vmatprep.subr.bf16.mxu0 %v6579
        %9688 = vmatpush1.bf16.msra.mxu0 %v6578
        %9689 = vmatprep.subr.bf16.mxu0 %v6583
        %9690 = vmatpush1.bf16.msra.mxu0 %v6582
        %9691 = vmatprep.subr.bf16.mxu0 %v6587
        %9692 = vmatpush1.bf16.msra.mxu0 %v6586
        %9693 = vmatprep.subr.bf16.mxu0 %v6591
        %9694 = vmatpush1.bf16.msra.mxu0 %v6590
        %9695 = vmatprep.subr.bf16.mxu0 %v6595
        %9696 = vmatpush1.bf16.msra.mxu0 %v6594
        %9697 = vmatprep.subr.bf16.mxu0 %v6599
        %9698 = vmatpush1.bf16.msra.mxu0 %v6598
        %9699 = vmatprep.subr.bf16.mxu0 %v6603
        %9700 = vmatpush1.bf16.msra.mxu0 %v6602
        %9701 = vmatprep.subr.bf16.mxu0 %v6607
        %9702 = vmatpush1.bf16.msra.mxu0 %v6606
        %9703 = vmatprep.subr.bf16.mxu0 %v6611
        %9704 = vmatpush1.bf16.msra.mxu0 %v6610
        %9705 = vmatprep.mubr.bf16.mxu0 %v1976
        %9706 = vmatmul.mubr.bf16.gmra.mrb[0].mxu0 %v1975
        %v9707 = vpop.f32.mrb[0].mxu0
        %v9708 = vadd.f32 %v9665, %v9707
        %v9709 = vpop.f32.mrb[0].mxu0
        %v9710 = vadd.f32 %v9667, %v9709
        %v9711 = vpop.f32.mrb[0].mxu0
        %v9712 = vadd.f32 %v9669, %v9711
        %v9713 = vpop.f32.mrb[0].mxu0
        %v9714 = vadd.f32 %v9671, %v9713
        %9715 = vdwg.mxu0
        %9716 = vmatprep.subr.bf16.mxu0 %v6615
        %9717 = vmatpush1.bf16.msra.mxu0 %v6614
        %9718 = vmatprep.subr.bf16.mxu0 %v6619
        %9719 = vmatpush1.bf16.msra.mxu0 %v6618
        %9720 = vmatprep.subr.bf16.mxu0 %v6623
        %9721 = vmatpush1.bf16.msra.mxu0 %v6622
        %9722 = vmatprep.subr.bf16.mxu0 %v6627
        %9723 = vmatpush1.bf16.msra.mxu0 %v6626
        %9724 = vmatprep.subr.bf16.mxu0 %v6631
        %9725 = vmatpush1.bf16.msra.mxu0 %v6630
        %9726 = vmatprep.subr.bf16.mxu0 %v6635
        %9727 = vmatpush1.bf16.msra.mxu0 %v6634
        %9728 = vmatprep.subr.bf16.mxu0 %v6639
        %9729 = vmatpush1.bf16.msra.mxu0 %v6638
        %9730 = vmatprep.subr.bf16.mxu0 %v6643
        %9731 = vmatpush1.bf16.msra.mxu0 %v6642
        %9732 = vmatprep.subr.bf16.mxu0 %v6647
        %9733 = vmatpush1.bf16.msra.mxu0 %v6646
        %9734 = vmatprep.subr.bf16.mxu0 %v6651
        %9735 = vmatpush1.bf16.msra.mxu0 %v6650
        %9736 = vmatprep.subr.bf16.mxu0 %v6655
        %9737 = vmatpush1.bf16.msra.mxu0 %v6654
        %9738 = vmatprep.subr.bf16.mxu0 %v6659
        %9739 = vmatpush1.bf16.msra.mxu0 %v6658
        %9740 = vmatprep.subr.bf16.mxu0 %v6663
        %9741 = vmatpush1.bf16.msra.mxu0 %v6662
        %9742 = vmatprep.subr.bf16.mxu0 %v6667
        %9743 = vmatpush1.bf16.msra.mxu0 %v6666
        %9744 = vmatprep.subr.bf16.mxu0 %v6671
        %9745 = vmatpush1.bf16.msra.mxu0 %v6670
        %9746 = vmatprep.subr.bf16.mxu0 %v6675
        %9747 = vmatpush1.bf16.msra.mxu0 %v6674
        %9748 = vmatprep.mubr.bf16.mxu0 %v1978
        %9749 = vmatmul.mubr.bf16.gmra.mrb[0].mxu0 %v1977
        %v9750 = vpop.f32.mrb[0].mxu0
        %v9751 = vadd.f32 %v9708, %v9750
        %v9752 = vpop.f32.mrb[0].mxu0
        %v9753 = vadd.f32 %v9710, %v9752
        %v9754 = vpop.f32.mrb[0].mxu0
        %v9755 = vadd.f32 %v9712, %v9754
        %v9756 = vpop.f32.mrb[0].mxu0
        %v9757 = vadd.f32 %v9714, %v9756
        %9758 = vdwg.mxu0
        %9759 = vmatprep.subr.bf16.mxu0 %v6679
        %9760 = vmatpush1.bf16.msra.mxu0 %v6678
        %9761 = vmatprep.subr.bf16.mxu0 %v6683
        %9762 = vmatpush1.bf16.msra.mxu0 %v6682
        %9763 = vmatprep.subr.bf16.mxu0 %v6687
        %9764 = vmatpush1.bf16.msra.mxu0 %v6686
        %9765 = vmatprep.subr.bf16.mxu0 %v6691
        %9766 = vmatpush1.bf16.msra.mxu0 %v6690
        %9767 = vmatprep.subr.bf16.mxu0 %v6695
        %9768 = vmatpush1.bf16.msra.mxu0 %v6694
        %9769 = vmatprep.subr.bf16.mxu0 %v6699
        %9770 = vmatpush1.bf16.msra.mxu0 %v6698
        %9771 = vmatprep.subr.bf16.mxu0 %v6703
        %9772 = vmatpush1.bf16.msra.mxu0 %v6702
        %9773 = vmatprep.subr.bf16.mxu0 %v6707
        %9774 = vmatpush1.bf16.msra.mxu0 %v6706
        %9775 = vmatprep.subr.bf16.mxu0 %v6711
        %9776 = vmatpush1.bf16.msra.mxu0 %v6710
        %9777 = vmatprep.subr.bf16.mxu0 %v6715
        %9778 = vmatpush1.bf16.msra.mxu0 %v6714
        %9779 = vmatprep.subr.bf16.mxu0 %v6719
        %9780 = vmatpush1.bf16.msra.mxu0 %v6718
        %9781 = vmatprep.subr.bf16.mxu0 %v6723
        %9782 = vmatpush1.bf16.msra.mxu0 %v6722
        %9783 = vmatprep.subr.bf16.mxu0 %v6727
        %9784 = vmatpush1.bf16.msra.mxu0 %v6726
        %9785 = vmatprep.subr.bf16.mxu0 %v6731
        %9786 = vmatpush1.bf16.msra.mxu0 %v6730
        %9787 = vmatprep.subr.bf16.mxu0 %v6735
        %9788 = vmatpush1.bf16.msra.mxu0 %v6734
        %9789 = vmatprep.subr.bf16.mxu0 %v6739
        %9790 = vmatpush1.bf16.msra.mxu0 %v6738
        %9791 = vmatprep.mubr.bf16.mxu0 %v1980
        %9792 = vmatmul.mubr.bf16.gmra.mrb[0].mxu0 %v1979
        %v9793 = vpop.f32.mrb[0].mxu0
        %v9794 = vadd.f32 %v9751, %v9793
        %v9795 = vpop.f32.mrb[0].mxu0
        %v9796 = vadd.f32 %v9753, %v9795
        %v9797 = vpop.f32.mrb[0].mxu0
        %v9798 = vadd.f32 %v9755, %v9797
        %v9799 = vpop.f32.mrb[0].mxu0
        %v9800 = vadd.f32 %v9757, %v9799
        %9801 = vdwg.mxu0
        %9802 = vmatprep.subr.bf16.mxu0 %v6743
        %9803 = vmatpush1.bf16.msra.mxu0 %v6742
        %9804 = vmatprep.subr.bf16.mxu0 %v6747
        %9805 = vmatpush1.bf16.msra.mxu0 %v6746
        %9806 = vmatprep.subr.bf16.mxu0 %v6751
        %9807 = vmatpush1.bf16.msra.mxu0 %v6750
        %9808 = vmatprep.subr.bf16.mxu0 %v6755
        %9809 = vmatpush1.bf16.msra.mxu0 %v6754
        %9810 = vmatprep.subr.bf16.mxu0 %v6759
        %9811 = vmatpush1.bf16.msra.mxu0 %v6758
        %9812 = vmatprep.subr.bf16.mxu0 %v6763
        %9813 = vmatpush1.bf16.msra.mxu0 %v6762
        %9814 = vmatprep.subr.bf16.mxu0 %v6767
        %9815 = vmatpush1.bf16.msra.mxu0 %v6766
        %9816 = vmatprep.subr.bf16.mxu0 %v6771
        %9817 = vmatpush1.bf16.msra.mxu0 %v6770
        %9818 = vmatprep.subr.bf16.mxu0 %v6775
        %9819 = vmatpush1.bf16.msra.mxu0 %v6774
        %9820 = vmatprep.subr.bf16.mxu0 %v6779
        %9821 = vmatpush1.bf16.msra.mxu0 %v6778
        %9822 = vmatprep.subr.bf16.mxu0 %v6783
        %9823 = vmatpush1.bf16.msra.mxu0 %v6782
        %9824 = vmatprep.subr.bf16.mxu0 %v6787
        %9825 = vmatpush1.bf16.msra.mxu0 %v6786
        %9826 = vmatprep.subr.bf16.mxu0 %v6791
        %9827 = vmatpush1.bf16.msra.mxu0 %v6790
        %9828 = vmatprep.subr.bf16.mxu0 %v6795
        %9829 = vmatpush1.bf16.msra.mxu0 %v6794
        %9830 = vmatprep.subr.bf16.mxu0 %v6799
        %9831 = vmatpush1.bf16.msra.mxu0 %v6798
        %9832 = vmatprep.subr.bf16.mxu0 %v6803
        %9833 = vmatpush1.bf16.msra.mxu0 %v6802
        %9834 = vmatprep.mubr.bf16.mxu0 %v1982
        %9835 = vmatmul.mubr.bf16.gmra.mrb[0].mxu0 %v1981
        %v9836 = vpop.f32.mrb[0].mxu0
        %v9837 = vadd.f32 %v9794, %v9836
        %v9838 = vpop.f32.mrb[0].mxu0
        %v9839 = vadd.f32 %v9796, %v9838
        %v9840 = vpop.f32.mrb[0].mxu0
        %v9841 = vadd.f32 %v9798, %v9840
        %v9842 = vpop.f32.mrb[0].mxu0
        %v9843 = vadd.f32 %v9800, %v9842
        %9844 = vdwg.mxu0
        %9845 = vmatprep.subr.bf16.mxu0 %v6807
        %9846 = vmatpush1.bf16.msra.mxu0 %v6806
        %9847 = vmatprep.subr.bf16.mxu0 %v6811
        %9848 = vmatpush1.bf16.msra.mxu0 %v6810
        %9849 = vmatprep.subr.bf16.mxu0 %v6815
        %9850 = vmatpush1.bf16.msra.mxu0 %v6814
        %9851 = vmatprep.subr.bf16.mxu0 %v6819
        %9852 = vmatpush1.bf16.msra.mxu0 %v6818
        %9853 = vmatprep.subr.bf16.mxu0 %v6823
        %9854 = vmatpush1.bf16.msra.mxu0 %v6822
        %9855 = vmatprep.subr.bf16.mxu0 %v6827
        %9856 = vmatpush1.bf16.msra.mxu0 %v6826
        %9857 = vmatprep.subr.bf16.mxu0 %v6831
        %9858 = vmatpush1.bf16.msra.mxu0 %v6830
        %9859 = vmatprep.subr.bf16.mxu0 %v6835
        %9860 = vmatpush1.bf16.msra.mxu0 %v6834
        %9861 = vmatprep.subr.bf16.mxu0 %v6839
        %9862 = vmatpush1.bf16.msra.mxu0 %v6838
        %9863 = vmatprep.subr.bf16.mxu0 %v6843
        %9864 = vmatpush1.bf16.msra.mxu0 %v6842
        %9865 = vmatprep.subr.bf16.mxu0 %v6847
        %9866 = vmatpush1.bf16.msra.mxu0 %v6846
        %9867 = vmatprep.subr.bf16.mxu0 %v6851
        %9868 = vmatpush1.bf16.msra.mxu0 %v6850
        %9869 = vmatprep.subr.bf16.mxu0 %v6855
        %9870 = vmatpush1.bf16.msra.mxu0 %v6854
        %9871 = vmatprep.subr.bf16.mxu0 %v6859
        %9872 = vmatpush1.bf16.msra.mxu0 %v6858
        %9873 = vmatprep.subr.bf16.mxu0 %v6863
        %9874 = vmatpush1.bf16.msra.mxu0 %v6862
        %9875 = vmatprep.subr.bf16.mxu0 %v6867
        %9876 = vmatpush1.bf16.msra.mxu0 %v6866
        %9877 = vmatprep.mubr.bf16.mxu0 %v1984
        %9878 = vmatmul.mubr.bf16.gmra.mrb[0].mxu0 %v1983
        %v9879 = vpop.f32.mrb[0].mxu0
        %v9880 = vadd.f32 %v9837, %v9879
        %v9881 = vpop.f32.mrb[0].mxu0
        %v9882 = vadd.f32 %v9839, %v9881
        %v9883 = vpop.f32.mrb[0].mxu0
        %v9884 = vadd.f32 %v9841, %v9883
        %v9885 = vpop.f32.mrb[0].mxu0
        %v9886 = vadd.f32 %v9843, %v9885
        %9887 = vdwg.mxu0
        %9888 = vmatprep.subr.bf16.mxu0 %v6871
        %9889 = vmatpush1.bf16.msra.mxu0 %v6870
        %9890 = vmatprep.subr.bf16.mxu0 %v6875
        %9891 = vmatpush1.bf16.msra.mxu0 %v6874
        %9892 = vmatprep.subr.bf16.mxu0 %v6879
        %9893 = vmatpush1.bf16.msra.mxu0 %v6878
        %9894 = vmatprep.subr.bf16.mxu0 %v6883
        %9895 = vmatpush1.bf16.msra.mxu0 %v6882
        %9896 = vmatprep.subr.bf16.mxu0 %v6887
        %9897 = vmatpush1.bf16.msra.mxu0 %v6886
        %9898 = vmatprep.subr.bf16.mxu0 %v6891
        %9899 = vmatpush1.bf16.msra.mxu0 %v6890
        %9900 = vmatprep.subr.bf16.mxu0 %v6895
        %9901 = vmatpush1.bf16.msra.mxu0 %v6894
        %9902 = vmatprep.subr.bf16.mxu0 %v6899
        %9903 = vmatpush1.bf16.msra.mxu0 %v6898
        %9904 = vmatprep.subr.bf16.mxu0 %v6903
        %9905 = vmatpush1.bf16.msra.mxu0 %v6902
        %9906 = vmatprep.subr.bf16.mxu0 %v6907
        %9907 = vmatpush1.bf16.msra.mxu0 %v6906
        %9908 = vmatprep.subr.bf16.mxu0 %v6911
        %9909 = vmatpush1.bf16.msra.mxu0 %v6910
        %9910 = vmatprep.subr.bf16.mxu0 %v6915
        %9911 = vmatpush1.bf16.msra.mxu0 %v6914
        %9912 = vmatprep.subr.bf16.mxu0 %v6919
        %9913 = vmatpush1.bf16.msra.mxu0 %v6918
        %9914 = vmatprep.subr.bf16.mxu0 %v6923
        %9915 = vmatpush1.bf16.msra.mxu0 %v6922
        %9916 = vmatprep.subr.bf16.mxu0 %v6927
        %9917 = vmatpush1.bf16.msra.mxu0 %v6926
        %9918 = vmatprep.subr.bf16.mxu0 %v6931
        %9919 = vmatpush1.bf16.msra.mxu0 %v6930
        %9920 = vmatprep.mubr.bf16.mxu0 %v1986
        %9921 = vmatmul.mubr.bf16.gmra.mrb[0].mxu0 %v1985
        %v9922 = vpop.f32.mrb[0].mxu0
        %v9923 = vadd.f32 %v9880, %v9922
        %v9924 = vpop.f32.mrb[0].mxu0
        %v9925 = vadd.f32 %v9882, %v9924
        %v9926 = vpop.f32.mrb[0].mxu0
        %v9927 = vadd.f32 %v9884, %v9926
        %v9928 = vpop.f32.mrb[0].mxu0
        %v9929 = vadd.f32 %v9886, %v9928
        %9930 = vdwg.mxu0
        %9931 = vmatprep.subr.bf16.mxu0 %v6935
        %9932 = vmatpush1.bf16.msra.mxu0 %v6934
        %9933 = vmatprep.subr.bf16.mxu0 %v6939
        %9934 = vmatpush1.bf16.msra.mxu0 %v6938
        %9935 = vmatprep.subr.bf16.mxu0 %v6943
        %9936 = vmatpush1.bf16.msra.mxu0 %v6942
        %9937 = vmatprep.subr.bf16.mxu0 %v6947
        %9938 = vmatpush1.bf16.msra.mxu0 %v6946
        %9939 = vmatprep.subr.bf16.mxu0 %v6951
        %9940 = vmatpush1.bf16.msra.mxu0 %v6950
        %9941 = vmatprep.subr.bf16.mxu0 %v6955
        %9942 = vmatpush1.bf16.msra.mxu0 %v6954
        %9943 = vmatprep.subr.bf16.mxu0 %v6959
        %9944 = vmatpush1.bf16.msra.mxu0 %v6958
        %9945 = vmatprep.subr.bf16.mxu0 %v6963
        %9946 = vmatpush1.bf16.msra.mxu0 %v6962
        %9947 = vmatprep.subr.bf16.mxu0 %v6967
        %9948 = vmatpush1.bf16.msra.mxu0 %v6966
        %9949 = vmatprep.subr.bf16.mxu0 %v6971
        %9950 = vmatpush1.bf16.msra.mxu0 %v6970
        %9951 = vmatprep.subr.bf16.mxu0 %v6975
        %9952 = vmatpush1.bf16.msra.mxu0 %v6974
        %9953 = vmatprep.subr.bf16.mxu0 %v6979
        %9954 = vmatpush1.bf16.msra.mxu0 %v6978
        %9955 = vmatprep.subr.bf16.mxu0 %v6983
        %9956 = vmatpush1.bf16.msra.mxu0 %v6982
        %9957 = vmatprep.subr.bf16.mxu0 %v6987
        %9958 = vmatpush1.bf16.msra.mxu0 %v6986
        %9959 = vmatprep.subr.bf16.mxu0 %v6991
        %9960 = vmatpush1.bf16.msra.mxu0 %v6990
        %9961 = vmatprep.subr.bf16.mxu0 %v6995
        %9962 = vmatpush1.bf16.msra.mxu0 %v6994
        %9963 = vmatprep.mubr.bf16.mxu0 %v1988
        %9964 = vmatmul.mubr.bf16.gmra.mrb[0].mxu0 %v1987
        %v9965 = vpop.f32.mrb[0].mxu0
        %v9966 = vadd.f32 %v9923, %v9965
        %v9967 = vpop.f32.mrb[0].mxu0
        %v9968 = vadd.f32 %v9925, %v9967
        %v9969 = vpop.f32.mrb[0].mxu0
        %v9970 = vadd.f32 %v9927, %v9969
        %v9971 = vpop.f32.mrb[0].mxu0
        %v9972 = vadd.f32 %v9929, %v9971
        %9973 = vdwg.mxu0
        %9974 = vmatprep.subr.bf16.mxu0 %v6999
        %9975 = vmatpush1.bf16.msra.mxu0 %v6998
        %9976 = vmatprep.subr.bf16.mxu0 %v7003
        %9977 = vmatpush1.bf16.msra.mxu0 %v7002
        %9978 = vmatprep.subr.bf16.mxu0 %v7007
        %9979 = vmatpush1.bf16.msra.mxu0 %v7006
        %9980 = vmatprep.subr.bf16.mxu0 %v7011
        %9981 = vmatpush1.bf16.msra.mxu0 %v7010
        %9982 = vmatprep.subr.bf16.mxu0 %v7015
        %9983 = vmatpush1.bf16.msra.mxu0 %v7014
        %9984 = vmatprep.subr.bf16.mxu0 %v7019
        %9985 = vmatpush1.bf16.msra.mxu0 %v7018
        %9986 = vmatprep.subr.bf16.mxu0 %v7023
        %9987 = vmatpush1.bf16.msra.mxu0 %v7022
        %9988 = vmatprep.subr.bf16.mxu0 %v7027
        %9989 = vmatpush1.bf16.msra.mxu0 %v7026
        %9990 = vmatprep.subr.bf16.mxu0 %v8295
        %9991 = vmatpush1.bf16.msra.mxu0 %v8292
        %9992 = vmatprep.subr.bf16.mxu0 0
        %9993 = vmatpush1.bf16.msra.mxu0 0
        %9994 = vmatprep.subr.bf16.mxu0 0
        %9995 = vmatpush1.bf16.msra.mxu0 0
        %9996 = vmatprep.subr.bf16.mxu0 0
        %9997 = vmatpush1.bf16.msra.mxu0 0
        %9998 = vmatprep.subr.bf16.mxu0 0
        %9999 = vmatpush1.bf16.msra.mxu0 0
        %10000 = vmatprep.subr.bf16.mxu0 0
        %10001 = vmatpush1.bf16.msra.mxu0 0
        %10002 = vmatprep.subr.bf16.mxu0 0
        %10003 = vmatpush1.bf16.msra.mxu0 0
        %10004 = vmatprep.subr.bf16.mxu0 0
        %10005 = vmatpush1.bf16.msra.mxu0 0
        %10006 = vmatprep.mubr.bf16.mxu0 %v8282
        %10007 = vmatmul.mubr.bf16.gmra.mrb[0].mxu0 %v1989
        %v10008 = vpop.f32.mrb[0].mxu0
        %v10009 = vadd.f32 %v9966, %v10008
        %v10010 = vpop.f32.mrb[0].mxu0
        %v10011 = vadd.f32 %v9968, %v10010
        %v10012 = vpop.f32.mrb[0].mxu0
        %v10013 = vadd.f32 %v9970, %v10012
        %v10014 = vpop.f32.mrb[0].mxu0
        %v10015 = vadd.f32 %v9972, %v10014
        %10016 = vdwg.mxu0
        %v10017 = vmax.f32 %v9149, 0.0
        %v10018 = vmax.f32 %v9151, 0.0
        %v10019 = vmax.f32 %v10009, 0.0
        %v10020 = vmax.f32 %v10011, 0.0
        %v10021 = vmax.f32 %v9153, 0.0
        %v10022 = vmax.f32 %v9155, 0.0
        %v10023 = vmax.f32 %v10013, 0.0
        %v10024 = vmax.f32 %v10015, 0.0
        %v10025 = vpack.c.bf16 %v10021, %v10017
        %v10026 = vpack.c.bf16 %v10022, %v10018
        %v10027 = vpack.c.bf16 %v10023, %v10019
        %v10028 = vpack.c.bf16 %v10024, %v10020
        %v10029 = vld [vmem:[%s432] sm:$0xff]
        %v10030 = vld [vmem:[%s432 + $0x8] sm:$0xff]
        %v10031 = vld [vmem:[%s432 + $0x10] sm:$0xff]
        %v10032 = vld [vmem:[%s432 + $0x18] sm:$0xff]
        %v10033 = vld [vmem:[%s432 + $0x20] sm:$0xff]
        %v10034 = vld [vmem:[%s432 + $0x28] sm:$0xff]
        %v10035 = vld [vmem:[%s432 + $0x30] sm:$0xff]
        %v10036 = vld [vmem:[%s432 + $0x38] sm:$0xff]
        %v10037 = vld [vmem:[%s432 + $0x40] sm:$0xff]
        %v10038 = vld [vmem:[%s432 + $0x48] sm:$0xff]
        %v10039 = vld [vmem:[%s432 + $0x50] sm:$0xff]
        %v10040 = vld [vmem:[%s432 + $0x58] sm:$0xff]
        %v10041 = vld [vmem:[%s432 + $0x60] sm:$0xff]
        %v10042 = vld [vmem:[%s432 + $0x68] sm:$0xff]
        %v10043 = vld [vmem:[%s432 + $0x70] sm:$0xff]
        %v10044 = vld [vmem:[%s432 + $0x78] sm:$0xff]
        %v10045 = vld [vmem:[%s432 + $0x80] sm:$0xff]
        %v10046 = vld [vmem:[%s432 + $0x88] sm:$0xff]
        %v10047 = vld [vmem:[%s432 + $0x90] sm:$0xff]
        %v10048 = vld [vmem:[%s432 + $0x98] sm:$0xff]
        %v10049 = vld [vmem:[%s432 + $0xa0] sm:$0xff]
        %v10050 = vld [vmem:[%s432 + $0xa8] sm:$0xff]
        %v10051 = vld [vmem:[%s432 + $0xb0] sm:$0xff]
        %v10052 = vld [vmem:[%s432 + $0xb8] sm:$0xff]
        %v10053 = vld [vmem:[%s432 + $0xc0] sm:$0xff]
        %v10054 = vld [vmem:[%s432 + $0xc8] sm:$0xff]
        %v10055 = vld [vmem:[%s432 + $0xd0] sm:$0xff]
        %v10056 = vld [vmem:[%s432 + $0xd8] sm:$0xff]
        %v10057 = vld [vmem:[%s432 + $0xe0] sm:$0xff]
        %v10058 = vld [vmem:[%s432 + $0xe8] sm:$0xff]
        %v10059 = vld [vmem:[%s432 + $0xf0] sm:$0xff]
        %v10060 = vld [vmem:[%s432 + $0xf8] sm:$0xff]
        %v10061 = vld [vmem:[%s432 + $0x100] sm:$0xff]
        %v10062 = vld [vmem:[%s432 + $0x108] sm:$0xff]
        %v10063 = vld [vmem:[%s432 + $0x110] sm:$0xff]
        %v10064 = vld [vmem:[%s432 + $0x118] sm:$0xff]
        %v10065 = vld [vmem:[%s432 + $0x120] sm:$0xff]
        %v10066 = vld [vmem:[%s432 + $0x128] sm:$0xff]
        %v10067 = vld [vmem:[%s432 + $0x130] sm:$0xff]
        %v10068 = vld [vmem:[%s432 + $0x138] sm:$0xff]
        %v10069 = vld [vmem:[%s432 + $0x140] sm:$0xff]
        %v10070 = vld [vmem:[%s432 + $0x148] sm:$0xff]
        %v10071 = vld [vmem:[%s432 + $0x150] sm:$0xff]
        %v10072 = vld [vmem:[%s432 + $0x158] sm:$0xff]
        %v10073 = vld [vmem:[%s432 + $0x160] sm:$0xff]
        %v10074 = vld [vmem:[%s432 + $0x168] sm:$0xff]
        %v10075 = vld [vmem:[%s432 + $0x170] sm:$0xff]
        %v10076 = vld [vmem:[%s432 + $0x178] sm:$0xff]
        %v10077 = vld [vmem:[%s432 + $0x180] sm:$0xff]
        %v10078 = vld [vmem:[%s432 + $0x188] sm:$0xff]
        %v10079 = vld [vmem:[%s432 + $0x190] sm:$0xff]
        %v10080 = vld [vmem:[%s432 + $0x198] sm:$0xff]
        %v10081 = vld [vmem:[%s432 + $0x1a0] sm:$0xff]
        %v10082 = vld [vmem:[%s432 + $0x1a8] sm:$0xff]
        %v10083 = vld [vmem:[%s432 + $0x1b0] sm:$0xff]
        %v10084 = vld [vmem:[%s432 + $0x1b8] sm:$0xff]
        %v10085 = vld [vmem:[%s432 + $0x1c0] sm:$0xff]
        %v10086 = vld [vmem:[%s432 + $0x1c8] sm:$0xff]
        %v10087 = vld [vmem:[%s432 + $0x1d0] sm:$0xff]
        %v10088 = vld [vmem:[%s432 + $0x1d8] sm:$0xff]
        %v10089 = vld [vmem:[%s432 + $0x1e0] sm:$0xff]
        %v10090 = vld [vmem:[%s432 + $0x1e8] sm:$0xff]
        %v10091 = vld [vmem:[%s432 + $0x1f0] sm:$0xff]
        %v10092 = vld [vmem:[%s432 + $0x1f8] sm:$0xff]
        %v10093 = vld [vmem:[%s432 + $0x200] sm:$0xff]
        %v10094 = vld [vmem:[%s432 + $0x208] sm:$0xff]
        %v10095 = vld [vmem:[%s432 + $0x210] sm:$0xff]
        %v10096 = vld [vmem:[%s432 + $0x218] sm:$0xff]
        %v10097 = vld [vmem:[%s432 + $0x220] sm:$0xff]
        %v10098 = vld [vmem:[%s432 + $0x228] sm:$0xff]
        %v10099 = vld [vmem:[%s432 + $0x230] sm:$0xff]
        %v10100 = vld [vmem:[%s432 + $0x238] sm:$0xff]
        %v10101 = vld [vmem:[%s432 + $0x240] sm:$0xff]
        %v10102 = vld [vmem:[%s432 + $0x248] sm:$0xff]
        %v10103 = vld [vmem:[%s432 + $0x250] sm:$0xff]
        %v10104 = vld [vmem:[%s432 + $0x258] sm:$0xff]
        %v10105 = vld [vmem:[%s432 + $0x260] sm:$0xff]
        %v10106 = vld [vmem:[%s432 + $0x268] sm:$0xff]
        %v10107 = vld [vmem:[%s432 + $0x270] sm:$0xff]
        %v10108 = vld [vmem:[%s432 + $0x278] sm:$0xff]
        %v10109 = vld [vmem:[%s432 + $0x280] sm:$0xff]
        %v10110 = vld [vmem:[%s432 + $0x288] sm:$0xff]
        %v10111 = vld [vmem:[%s432 + $0x290] sm:$0xff]
        %v10112 = vld [vmem:[%s432 + $0x298] sm:$0xff]
        %v10113 = vld [vmem:[%s432 + $0x2a0] sm:$0xff]
        %v10114 = vld [vmem:[%s432 + $0x2a8] sm:$0xff]
        %v10115 = vld [vmem:[%s432 + $0x2b0] sm:$0xff]
        %v10116 = vld [vmem:[%s432 + $0x2b8] sm:$0xff]
        %v10117 = vld [vmem:[%s432 + $0x2c0] sm:$0xff]
        %v10118 = vld [vmem:[%s432 + $0x2c8] sm:$0xff]
        %v10119 = vld [vmem:[%s432 + $0x2d0] sm:$0xff]
        %v10120 = vld [vmem:[%s432 + $0x2d8] sm:$0xff]
        %v10121 = vld [vmem:[%s432 + $0x2e0] sm:$0xff]
        %v10122 = vld [vmem:[%s432 + $0x2e8] sm:$0xff]
        %v10123 = vld [vmem:[%s432 + $0x2f0] sm:$0xff]
        %v10124 = vld [vmem:[%s432 + $0x2f8] sm:$0xff]
        %v10125 = vld [vmem:[%s432 + $0x300] sm:$0xff]
        %v10126 = vld [vmem:[%s432 + $0x308] sm:$0xff]
        %v10127 = vld [vmem:[%s432 + $0x310] sm:$0xff]
        %v10128 = vld [vmem:[%s432 + $0x318] sm:$0xff]
        %v10129 = vld [vmem:[%s432 + $0x320] sm:$0xff]
        %v10130 = vld [vmem:[%s432 + $0x328] sm:$0xff]
        %v10131 = vld [vmem:[%s432 + $0x330] sm:$0xff]
        %v10132 = vld [vmem:[%s432 + $0x338] sm:$0xff]
        %v10133 = vld [vmem:[%s432 + $0x340] sm:$0xff]
        %v10134 = vld [vmem:[%s432 + $0x348] sm:$0xff]
        %v10135 = vld [vmem:[%s432 + $0x350] sm:$0xff]
        %v10136 = vld [vmem:[%s432 + $0x358] sm:$0xff]
        %v10137 = vld [vmem:[%s432 + $0x360] sm:$0xff]
        %v10138 = vld [vmem:[%s432 + $0x368] sm:$0xff]
        %v10139 = vld [vmem:[%s432 + $0x370] sm:$0xff]
        %v10140 = vld [vmem:[%s432 + $0x378] sm:$0xff]
        %v10141 = vld [vmem:[%s432 + $0x380] sm:$0xff]
        %v10142 = vld [vmem:[%s432 + $0x388] sm:$0xff]
        %v10143 = vld [vmem:[%s432 + $0x390] sm:$0xff]
        %v10144 = vld [vmem:[%s432 + $0x398] sm:$0xff]
        %v10145 = vld [vmem:[%s432 + $0x3a0] sm:$0xff]
        %v10146 = vld [vmem:[%s432 + $0x3a8] sm:$0xff]
        %v10147 = vld [vmem:[%s432 + $0x3b0] sm:$0xff]
        %v10148 = vld [vmem:[%s432 + $0x3b8] sm:$0xff]
        %v10149 = vld [vmem:[%s432 + $0x3c0] sm:$0xff]
        %v10150 = vld [vmem:[%s432 + $0x3c8] sm:$0xff]
        %v10151 = vld [vmem:[%s432 + $0x3d0] sm:$0xff]
        %v10152 = vld [vmem:[%s432 + $0x3d8] sm:$0xff]
        %v10153 = vld [vmem:[%s432 + $0x3e0] sm:$0xff]
        %v10154 = vld [vmem:[%s432 + $0x3e8] sm:$0xff]
        %v10155 = vld [vmem:[%s432 + $0x3f0] sm:$0xff]
        %v10156 = vld [vmem:[%s432 + $0x3f8] sm:$0xff]
        %v10157 = vld [vmem:[%s441] sm:$0xf]
        %v10159 = vlaneseq
        %v10160 = vshrl.u32 %v10159, 7
        %v10161 = vsub.s32 0, %v10160
        %v10162 = vrot.slane %v10157, %v10161
        %v10163 = vlaneseq
        %v10164 = vshrl.u32 %v10163, 7
        %v10165 = vsub.s32 1, %v10164
        %v10166 = vrot.slane %v10157, %v10165
        %v10167 = vlaneseq
        %v10168 = vshrl.u32 %v10167, 7
        %v10169 = vsub.s32 2, %v10168
        %v10170 = vrot.slane %v10157, %v10169
        %v10171 = vlaneseq
        %v10172 = vshrl.u32 %v10171, 7
        %v10173 = vsub.s32 3, %v10172
        %v10174 = vrot.slane %v10157, %v10173
        %v10307 = vunpack.c.l.b16 %v10029
        %v10308 = vunpack.c.h.b16 %v10029
        %v10309 = vunpack.c.l.b16 %v10030
        %v10310 = vunpack.c.h.b16 %v10030
        %v10311 = vunpack.c.l.b16 %v10031
        %v10312 = vunpack.c.h.b16 %v10031
        %v10313 = vunpack.c.l.b16 %v10032
        %v10314 = vunpack.c.h.b16 %v10032
        %v10315 = vunpack.c.l.b16 %v10033
        %v10316 = vunpack.c.h.b16 %v10033
        %v10317 = vunpack.c.l.b16 %v10034
        %v10318 = vunpack.c.h.b16 %v10034
        %v10319 = vunpack.c.l.b16 %v10035
        %v10320 = vunpack.c.h.b16 %v10035
        %v10321 = vunpack.c.l.b16 %v10036
        %v10322 = vunpack.c.h.b16 %v10036
        %v10323 = vunpack.c.l.b16 %v10037
        %v10324 = vunpack.c.h.b16 %v10037
        %v10325 = vunpack.c.l.b16 %v10038
        %v10326 = vunpack.c.h.b16 %v10038
        %v10327 = vunpack.c.l.b16 %v10039
        %v10328 = vunpack.c.h.b16 %v10039
        %v10329 = vunpack.c.l.b16 %v10040
        %v10330 = vunpack.c.h.b16 %v10040
        %v10331 = vunpack.c.l.b16 %v10041
        %v10332 = vunpack.c.h.b16 %v10041
        %v10333 = vunpack.c.l.b16 %v10042
        %v10334 = vunpack.c.h.b16 %v10042
        %v10335 = vunpack.c.l.b16 %v10043
        %v10336 = vunpack.c.h.b16 %v10043
        %v10337 = vunpack.c.l.b16 %v10044
        %v10338 = vunpack.c.h.b16 %v10044
        %v10339 = vunpack.c.l.b16 %v10045
        %v10340 = vunpack.c.h.b16 %v10045
        %v10341 = vunpack.c.l.b16 %v10046
        %v10342 = vunpack.c.h.b16 %v10046
        %v10343 = vunpack.c.l.b16 %v10047
        %v10344 = vunpack.c.h.b16 %v10047
        %v10345 = vunpack.c.l.b16 %v10048
        %v10346 = vunpack.c.h.b16 %v10048
        %v10347 = vunpack.c.l.b16 %v10049
        %v10348 = vunpack.c.h.b16 %v10049
        %v10349 = vunpack.c.l.b16 %v10050
        %v10350 = vunpack.c.h.b16 %v10050
        %v10351 = vunpack.c.l.b16 %v10051
        %v10352 = vunpack.c.h.b16 %v10051
        %v10353 = vunpack.c.l.b16 %v10052
        %v10354 = vunpack.c.h.b16 %v10052
        %v10355 = vunpack.c.l.b16 %v10053
        %v10356 = vunpack.c.h.b16 %v10053
        %v10357 = vunpack.c.l.b16 %v10054
        %v10358 = vunpack.c.h.b16 %v10054
        %v10359 = vunpack.c.l.b16 %v10055
        %v10360 = vunpack.c.h.b16 %v10055
        %v10361 = vunpack.c.l.b16 %v10056
        %v10362 = vunpack.c.h.b16 %v10056
        %v10363 = vunpack.c.l.b16 %v10057
        %v10364 = vunpack.c.h.b16 %v10057
        %v10365 = vunpack.c.l.b16 %v10058
        %v10366 = vunpack.c.h.b16 %v10058
        %v10367 = vunpack.c.l.b16 %v10059
        %v10368 = vunpack.c.h.b16 %v10059
        %v10369 = vunpack.c.l.b16 %v10060
        %v10370 = vunpack.c.h.b16 %v10060
        %v10371 = vunpack.c.l.b16 %v10061
        %v10372 = vunpack.c.h.b16 %v10061
        %v10373 = vunpack.c.l.b16 %v10062
        %v10374 = vunpack.c.h.b16 %v10062
        %v10375 = vunpack.c.l.b16 %v10063
        %v10376 = vunpack.c.h.b16 %v10063
        %v10377 = vunpack.c.l.b16 %v10064
        %v10378 = vunpack.c.h.b16 %v10064
        %v10379 = vunpack.c.l.b16 %v10065
        %v10380 = vunpack.c.h.b16 %v10065
        %v10381 = vunpack.c.l.b16 %v10066
        %v10382 = vunpack.c.h.b16 %v10066
        %v10383 = vunpack.c.l.b16 %v10067
        %v10384 = vunpack.c.h.b16 %v10067
        %v10385 = vunpack.c.l.b16 %v10068
        %v10386 = vunpack.c.h.b16 %v10068
        %v10387 = vunpack.c.l.b16 %v10069
        %v10388 = vunpack.c.h.b16 %v10069
        %v10389 = vunpack.c.l.b16 %v10070
        %v10390 = vunpack.c.h.b16 %v10070
        %v10391 = vunpack.c.l.b16 %v10071
        %v10392 = vunpack.c.h.b16 %v10071
        %v10393 = vunpack.c.l.b16 %v10072
        %v10394 = vunpack.c.h.b16 %v10072
        %v10395 = vunpack.c.l.b16 %v10073
        %v10396 = vunpack.c.h.b16 %v10073
        %v10397 = vunpack.c.l.b16 %v10074
        %v10398 = vunpack.c.h.b16 %v10074
        %v10399 = vunpack.c.l.b16 %v10075
        %v10400 = vunpack.c.h.b16 %v10075
        %v10401 = vunpack.c.l.b16 %v10076
        %v10402 = vunpack.c.h.b16 %v10076
        %v10403 = vunpack.c.l.b16 %v10077
        %v10404 = vunpack.c.h.b16 %v10077
        %v10405 = vunpack.c.l.b16 %v10078
        %v10406 = vunpack.c.h.b16 %v10078
        %v10407 = vunpack.c.l.b16 %v10079
        %v10408 = vunpack.c.h.b16 %v10079
        %v10409 = vunpack.c.l.b16 %v10080
        %v10410 = vunpack.c.h.b16 %v10080
        %v10411 = vunpack.c.l.b16 %v10081
        %v10412 = vunpack.c.h.b16 %v10081
        %v10413 = vunpack.c.l.b16 %v10082
        %v10414 = vunpack.c.h.b16 %v10082
        %v10415 = vunpack.c.l.b16 %v10083
        %v10416 = vunpack.c.h.b16 %v10083
        %v10417 = vunpack.c.l.b16 %v10084
        %v10418 = vunpack.c.h.b16 %v10084
        %v10419 = vunpack.c.l.b16 %v10085
        %v10420 = vunpack.c.h.b16 %v10085
        %v10421 = vunpack.c.l.b16 %v10086
        %v10422 = vunpack.c.h.b16 %v10086
        %v10423 = vunpack.c.l.b16 %v10087
        %v10424 = vunpack.c.h.b16 %v10087
        %v10425 = vunpack.c.l.b16 %v10088
        %v10426 = vunpack.c.h.b16 %v10088
        %v10427 = vunpack.c.l.b16 %v10089
        %v10428 = vunpack.c.h.b16 %v10089
        %v10429 = vunpack.c.l.b16 %v10090
        %v10430 = vunpack.c.h.b16 %v10090
        %v10431 = vunpack.c.l.b16 %v10091
        %v10432 = vunpack.c.h.b16 %v10091
        %v10433 = vunpack.c.l.b16 %v10092
        %v10434 = vunpack.c.h.b16 %v10092
        %v10435 = vunpack.c.l.b16 %v10093
        %v10436 = vunpack.c.h.b16 %v10093
        %v10437 = vunpack.c.l.b16 %v10094
        %v10438 = vunpack.c.h.b16 %v10094
        %v10439 = vunpack.c.l.b16 %v10095
        %v10440 = vunpack.c.h.b16 %v10095
        %v10441 = vunpack.c.l.b16 %v10096
        %v10442 = vunpack.c.h.b16 %v10096
        %v10443 = vunpack.c.l.b16 %v10097
        %v10444 = vunpack.c.h.b16 %v10097
        %v10445 = vunpack.c.l.b16 %v10098
        %v10446 = vunpack.c.h.b16 %v10098
        %v10447 = vunpack.c.l.b16 %v10099
        %v10448 = vunpack.c.h.b16 %v10099
        %v10449 = vunpack.c.l.b16 %v10100
        %v10450 = vunpack.c.h.b16 %v10100
        %v10451 = vunpack.c.l.b16 %v10101
        %v10452 = vunpack.c.h.b16 %v10101
        %v10453 = vunpack.c.l.b16 %v10102
        %v10454 = vunpack.c.h.b16 %v10102
        %v10455 = vunpack.c.l.b16 %v10103
        %v10456 = vunpack.c.h.b16 %v10103
        %v10457 = vunpack.c.l.b16 %v10104
        %v10458 = vunpack.c.h.b16 %v10104
        %v10459 = vunpack.c.l.b16 %v10105
        %v10460 = vunpack.c.h.b16 %v10105
        %v10461 = vunpack.c.l.b16 %v10106
        %v10462 = vunpack.c.h.b16 %v10106
        %v10463 = vunpack.c.l.b16 %v10107
        %v10464 = vunpack.c.h.b16 %v10107
        %v10465 = vunpack.c.l.b16 %v10108
        %v10466 = vunpack.c.h.b16 %v10108
        %v10467 = vunpack.c.l.b16 %v10109
        %v10468 = vunpack.c.h.b16 %v10109
        %v10469 = vunpack.c.l.b16 %v10110
        %v10470 = vunpack.c.h.b16 %v10110
        %v10471 = vunpack.c.l.b16 %v10111
        %v10472 = vunpack.c.h.b16 %v10111
        %v10473 = vunpack.c.l.b16 %v10112
        %v10474 = vunpack.c.h.b16 %v10112
        %v10475 = vunpack.c.l.b16 %v10113
        %v10476 = vunpack.c.h.b16 %v10113
        %v10477 = vunpack.c.l.b16 %v10114
        %v10478 = vunpack.c.h.b16 %v10114
        %v10479 = vunpack.c.l.b16 %v10115
        %v10480 = vunpack.c.h.b16 %v10115
        %v10481 = vunpack.c.l.b16 %v10116
        %v10482 = vunpack.c.h.b16 %v10116
        %v10483 = vunpack.c.l.b16 %v10117
        %v10484 = vunpack.c.h.b16 %v10117
        %v10485 = vunpack.c.l.b16 %v10118
        %v10486 = vunpack.c.h.b16 %v10118
        %v10487 = vunpack.c.l.b16 %v10119
        %v10488 = vunpack.c.h.b16 %v10119
        %v10489 = vunpack.c.l.b16 %v10120
        %v10490 = vunpack.c.h.b16 %v10120
        %v10491 = vunpack.c.l.b16 %v10121
        %v10492 = vunpack.c.h.b16 %v10121
        %v10493 = vunpack.c.l.b16 %v10122
        %v10494 = vunpack.c.h.b16 %v10122
        %v10495 = vunpack.c.l.b16 %v10123
        %v10496 = vunpack.c.h.b16 %v10123
        %v10497 = vunpack.c.l.b16 %v10124
        %v10498 = vunpack.c.h.b16 %v10124
        %v10499 = vunpack.c.l.b16 %v10125
        %v10500 = vunpack.c.h.b16 %v10125
        %v10501 = vunpack.c.l.b16 %v10126
        %v10502 = vunpack.c.h.b16 %v10126
        %v10503 = vunpack.c.l.b16 %v10127
        %v10504 = vunpack.c.h.b16 %v10127
        %v10505 = vunpack.c.l.b16 %v10128
        %v10506 = vunpack.c.h.b16 %v10128
        %v10507 = vunpack.c.l.b16 %v10129
        %v10508 = vunpack.c.h.b16 %v10129
        %v10509 = vunpack.c.l.b16 %v10130
        %v10510 = vunpack.c.h.b16 %v10130
        %v10511 = vunpack.c.l.b16 %v10131
        %v10512 = vunpack.c.h.b16 %v10131
        %v10513 = vunpack.c.l.b16 %v10132
        %v10514 = vunpack.c.h.b16 %v10132
        %v10515 = vunpack.c.l.b16 %v10133
        %v10516 = vunpack.c.h.b16 %v10133
        %v10517 = vunpack.c.l.b16 %v10134
        %v10518 = vunpack.c.h.b16 %v10134
        %v10519 = vunpack.c.l.b16 %v10135
        %v10520 = vunpack.c.h.b16 %v10135
        %v10521 = vunpack.c.l.b16 %v10136
        %v10522 = vunpack.c.h.b16 %v10136
        %v10523 = vunpack.c.l.b16 %v10137
        %v10524 = vunpack.c.h.b16 %v10137
        %v10525 = vunpack.c.l.b16 %v10138
        %v10526 = vunpack.c.h.b16 %v10138
        %v10527 = vunpack.c.l.b16 %v10139
        %v10528 = vunpack.c.h.b16 %v10139
        %v10529 = vunpack.c.l.b16 %v10140
        %v10530 = vunpack.c.h.b16 %v10140
        %v10531 = vunpack.c.l.b16 %v10141
        %v10532 = vunpack.c.h.b16 %v10141
        %v10533 = vunpack.c.l.b16 %v10142
        %v10534 = vunpack.c.h.b16 %v10142
        %v10535 = vunpack.c.l.b16 %v10143
        %v10536 = vunpack.c.h.b16 %v10143
        %v10537 = vunpack.c.l.b16 %v10144
        %v10538 = vunpack.c.h.b16 %v10144
        %v10539 = vunpack.c.l.b16 %v10145
        %v10540 = vunpack.c.h.b16 %v10145
        %v10541 = vunpack.c.l.b16 %v10146
        %v10542 = vunpack.c.h.b16 %v10146
        %v10543 = vunpack.c.l.b16 %v10147
        %v10544 = vunpack.c.h.b16 %v10147
        %v10545 = vunpack.c.l.b16 %v10148
        %v10546 = vunpack.c.h.b16 %v10148
        %v10547 = vunpack.c.l.b16 %v10149
        %v10548 = vunpack.c.h.b16 %v10149
        %v10549 = vunpack.c.l.b16 %v10150
        %v10550 = vunpack.c.h.b16 %v10150
        %v10551 = vunpack.c.l.b16 %v10151
        %v10552 = vunpack.c.h.b16 %v10151
        %v10553 = vunpack.c.l.b16 %v10152
        %v10554 = vunpack.c.h.b16 %v10152
        %v10555 = vunpack.c.l.b16 %v10153
        %v10556 = vunpack.c.h.b16 %v10153
        %v10557 = vunpack.c.l.b16 %v10154
        %v10558 = vunpack.c.h.b16 %v10154
        %v10559 = vunpack.c.l.b16 %v10155
        %v10560 = vunpack.c.h.b16 %v10155
        %v10561 = vunpack.c.l.b16 %v10156
        %v10562 = vunpack.c.h.b16 %v10156
        %v10563 = vpack.c.b16 %v10311, %v10307
        %v10564 = vpack.c.b16 %v10312, %v10308
        %v10565 = vpack.c.b16 %v10313, %v10309
        %v10566 = vpack.c.b16 %v10314, %v10310
        %v10567 = vpack.c.b16 %v10319, %v10315
        %v10568 = vpack.c.b16 %v10320, %v10316
        %v10569 = vpack.c.b16 %v10321, %v10317
        %v10570 = vpack.c.b16 %v10322, %v10318
        %v10571 = vpack.c.b16 %v10327, %v10323
        %v10572 = vpack.c.b16 %v10328, %v10324
        %v10573 = vpack.c.b16 %v10329, %v10325
        %v10574 = vpack.c.b16 %v10330, %v10326
        %v10575 = vpack.c.b16 %v10335, %v10331
        %v10576 = vpack.c.b16 %v10336, %v10332
        %v10577 = vpack.c.b16 %v10337, %v10333
        %v10578 = vpack.c.b16 %v10338, %v10334
        %v10579 = vpack.c.b16 %v10343, %v10339
        %v10580 = vpack.c.b16 %v10344, %v10340
        %v10581 = vpack.c.b16 %v10345, %v10341
        %v10582 = vpack.c.b16 %v10346, %v10342
        %v10583 = vpack.c.b16 %v10351, %v10347
        %v10584 = vpack.c.b16 %v10352, %v10348
        %v10585 = vpack.c.b16 %v10353, %v10349
        %v10586 = vpack.c.b16 %v10354, %v10350
        %v10587 = vpack.c.b16 %v10359, %v10355
        %v10588 = vpack.c.b16 %v10360, %v10356
        %v10589 = vpack.c.b16 %v10361, %v10357
        %v10590 = vpack.c.b16 %v10362, %v10358
        %v10591 = vpack.c.b16 %v10367, %v10363
        %v10592 = vpack.c.b16 %v10368, %v10364
        %v10593 = vpack.c.b16 %v10369, %v10365
        %v10594 = vpack.c.b16 %v10370, %v10366
        %v10595 = vpack.c.b16 %v10375, %v10371
        %v10596 = vpack.c.b16 %v10376, %v10372
        %v10597 = vpack.c.b16 %v10377, %v10373
        %v10598 = vpack.c.b16 %v10378, %v10374
        %v10599 = vpack.c.b16 %v10383, %v10379
        %v10600 = vpack.c.b16 %v10384, %v10380
        %v10601 = vpack.c.b16 %v10385, %v10381
        %v10602 = vpack.c.b16 %v10386, %v10382
        %v10603 = vpack.c.b16 %v10391, %v10387
        %v10604 = vpack.c.b16 %v10392, %v10388
        %v10605 = vpack.c.b16 %v10393, %v10389
        %v10606 = vpack.c.b16 %v10394, %v10390
        %v10607 = vpack.c.b16 %v10399, %v10395
        %v10608 = vpack.c.b16 %v10400, %v10396
        %v10609 = vpack.c.b16 %v10401, %v10397
        %v10610 = vpack.c.b16 %v10402, %v10398
        %v10611 = vpack.c.b16 %v10407, %v10403
        %v10612 = vpack.c.b16 %v10408, %v10404
        %v10613 = vpack.c.b16 %v10409, %v10405
        %v10614 = vpack.c.b16 %v10410, %v10406
        %v10615 = vpack.c.b16 %v10415, %v10411
        %v10616 = vpack.c.b16 %v10416, %v10412
        %v10617 = vpack.c.b16 %v10417, %v10413
        %v10618 = vpack.c.b16 %v10418, %v10414
        %v10619 = vpack.c.b16 %v10423, %v10419
        %v10620 = vpack.c.b16 %v10424, %v10420
        %v10621 = vpack.c.b16 %v10425, %v10421
        %v10622 = vpack.c.b16 %v10426, %v10422
        %v10623 = vpack.c.b16 %v10431, %v10427
        %v10624 = vpack.c.b16 %v10432, %v10428
        %v10625 = vpack.c.b16 %v10433, %v10429
        %v10626 = vpack.c.b16 %v10434, %v10430
        %v10627 = vpack.c.b16 %v10439, %v10435
        %v10628 = vpack.c.b16 %v10440, %v10436
        %v10629 = vpack.c.b16 %v10441, %v10437
        %v10630 = vpack.c.b16 %v10442, %v10438
        %v10631 = vpack.c.b16 %v10447, %v10443
        %v10632 = vpack.c.b16 %v10448, %v10444
        %v10633 = vpack.c.b16 %v10449, %v10445
        %v10634 = vpack.c.b16 %v10450, %v10446
        %v10635 = vpack.c.b16 %v10455, %v10451
        %v10636 = vpack.c.b16 %v10456, %v10452
        %v10637 = vpack.c.b16 %v10457, %v10453
        %v10638 = vpack.c.b16 %v10458, %v10454
        %v10639 = vpack.c.b16 %v10463, %v10459
        %v10640 = vpack.c.b16 %v10464, %v10460
        %v10641 = vpack.c.b16 %v10465, %v10461
        %v10642 = vpack.c.b16 %v10466, %v10462
        %v10643 = vpack.c.b16 %v10471, %v10467
        %v10644 = vpack.c.b16 %v10472, %v10468
        %v10645 = vpack.c.b16 %v10473, %v10469
        %v10646 = vpack.c.b16 %v10474, %v10470
        %v10647 = vpack.c.b16 %v10479, %v10475
        %v10648 = vpack.c.b16 %v10480, %v10476
        %v10649 = vpack.c.b16 %v10481, %v10477
        %v10650 = vpack.c.b16 %v10482, %v10478
        %v10651 = vpack.c.b16 %v10487, %v10483
        %v10652 = vpack.c.b16 %v10488, %v10484
        %v10653 = vpack.c.b16 %v10489, %v10485
        %v10654 = vpack.c.b16 %v10490, %v10486
        %v10655 = vpack.c.b16 %v10495, %v10491
        %v10656 = vpack.c.b16 %v10496, %v10492
        %v10657 = vpack.c.b16 %v10497, %v10493
        %v10658 = vpack.c.b16 %v10498, %v10494
        %v10659 = vpack.c.b16 %v10503, %v10499
        %v10660 = vpack.c.b16 %v10504, %v10500
        %v10661 = vpack.c.b16 %v10505, %v10501
        %v10662 = vpack.c.b16 %v10506, %v10502
        %v10663 = vpack.c.b16 %v10511, %v10507
        %v10664 = vpack.c.b16 %v10512, %v10508
        %v10665 = vpack.c.b16 %v10513, %v10509
        %v10666 = vpack.c.b16 %v10514, %v10510
        %v10667 = vpack.c.b16 %v10519, %v10515
        %v10668 = vpack.c.b16 %v10520, %v10516
        %v10669 = vpack.c.b16 %v10521, %v10517
        %v10670 = vpack.c.b16 %v10522, %v10518
        %v10671 = vpack.c.b16 %v10527, %v10523
        %v10672 = vpack.c.b16 %v10528, %v10524
        %v10673 = vpack.c.b16 %v10529, %v10525
        %v10674 = vpack.c.b16 %v10530, %v10526
        %v10675 = vpack.c.b16 %v10535, %v10531
        %v10676 = vpack.c.b16 %v10536, %v10532
        %v10677 = vpack.c.b16 %v10537, %v10533
        %v10678 = vpack.c.b16 %v10538, %v10534
        %v10679 = vpack.c.b16 %v10543, %v10539
        %v10680 = vpack.c.b16 %v10544, %v10540
        %v10681 = vpack.c.b16 %v10545, %v10541
        %v10682 = vpack.c.b16 %v10546, %v10542
        %v10683 = vpack.c.b16 %v10551, %v10547
        %v10684 = vpack.c.b16 %v10552, %v10548
        %v10685 = vpack.c.b16 %v10553, %v10549
        %v10686 = vpack.c.b16 %v10554, %v10550
        %v10687 = vpack.c.b16 %v10559, %v10555
        %v10688 = vpack.c.b16 %v10560, %v10556
        %v10689 = vpack.c.b16 %v10561, %v10557
        %v10690 = vpack.c.b16 %v10562, %v10558
        %10819 = vmatprep.subr.bf16.mxu0 %v10564
        %10820 = vmatpush1.bf16.msra.mxu0 %v10563
        %10821 = vmatprep.subr.bf16.mxu0 %v10568
        %10822 = vmatpush1.bf16.msra.mxu0 %v10567
        %10823 = vmatprep.subr.bf16.mxu0 %v10572
        %10824 = vmatpush1.bf16.msra.mxu0 %v10571
        %10825 = vmatprep.subr.bf16.mxu0 %v10576
        %10826 = vmatpush1.bf16.msra.mxu0 %v10575
        %10827 = vmatprep.subr.bf16.mxu0 %v10580
        %10828 = vmatpush1.bf16.msra.mxu0 %v10579
        %10829 = vmatprep.subr.bf16.mxu0 %v10584
        %10830 = vmatpush1.bf16.msra.mxu0 %v10583
        %10831 = vmatprep.subr.bf16.mxu0 %v10588
        %10832 = vmatpush1.bf16.msra.mxu0 %v10587
        %10833 = vmatprep.subr.bf16.mxu0 %v10592
        %10834 = vmatpush1.bf16.msra.mxu0 %v10591
        %10835 = vmatprep.subr.bf16.mxu0 %v10596
        %10836 = vmatpush1.bf16.msra.mxu0 %v10595
        %10837 = vmatprep.subr.bf16.mxu0 %v10600
        %10838 = vmatpush1.bf16.msra.mxu0 %v10599
        %10839 = vmatprep.subr.bf16.mxu0 %v10604
        %10840 = vmatpush1.bf16.msra.mxu0 %v10603
        %10841 = vmatprep.subr.bf16.mxu0 %v10608
        %10842 = vmatpush1.bf16.msra.mxu0 %v10607
        %10843 = vmatprep.subr.bf16.mxu0 %v10612
        %10844 = vmatpush1.bf16.msra.mxu0 %v10611
        %10845 = vmatprep.subr.bf16.mxu0 %v10616
        %10846 = vmatpush1.bf16.msra.mxu0 %v10615
        %10847 = vmatprep.subr.bf16.mxu0 %v10620
        %10848 = vmatpush1.bf16.msra.mxu0 %v10619
        %10849 = vmatprep.subr.bf16.mxu0 %v10624
        %10850 = vmatpush1.bf16.msra.mxu0 %v10623
        %10851 = vmatprep.mubr.bf16.mxu0 %v10026
        %10852 = vmatmul.mubr.bf16.gmra.mrb[0].mxu0 %v10025
        %v10853 = vpop.f32.mrb[0].mxu0
        %v10854 = vadd.f32 %v10162, %v10853
        %v10855 = vpop.f32.mrb[0].mxu0
        %v10856 = vadd.f32 %v10166, %v10855
        %v10857 = vpop.f32.mrb[0].mxu0
        %v10858 = vadd.f32 %v10162, %v10857
        %v10859 = vpop.f32.mrb[0].mxu0
        %v10860 = vadd.f32 %v10166, %v10859
        %10861 = vdwg.mxu0
        %10862 = vmatprep.subr.bf16.mxu0 %v10628
        %10863 = vmatpush1.bf16.msra.mxu0 %v10627
        %10864 = vmatprep.subr.bf16.mxu0 %v10632
        %10865 = vmatpush1.bf16.msra.mxu0 %v10631
        %10866 = vmatprep.subr.bf16.mxu0 %v10636
        %10867 = vmatpush1.bf16.msra.mxu0 %v10635
        %10868 = vmatprep.subr.bf16.mxu0 %v10640
        %10869 = vmatpush1.bf16.msra.mxu0 %v10639
        %10870 = vmatprep.subr.bf16.mxu0 %v10644
        %10871 = vmatpush1.bf16.msra.mxu0 %v10643
        %10872 = vmatprep.subr.bf16.mxu0 %v10648
        %10873 = vmatpush1.bf16.msra.mxu0 %v10647
        %10874 = vmatprep.subr.bf16.mxu0 %v10652
        %10875 = vmatpush1.bf16.msra.mxu0 %v10651
        %10876 = vmatprep.subr.bf16.mxu0 %v10656
        %10877 = vmatpush1.bf16.msra.mxu0 %v10655
        %10878 = vmatprep.subr.bf16.mxu0 %v10660
        %10879 = vmatpush1.bf16.msra.mxu0 %v10659
        %10880 = vmatprep.subr.bf16.mxu0 %v10664
        %10881 = vmatpush1.bf16.msra.mxu0 %v10663
        %10882 = vmatprep.subr.bf16.mxu0 %v10668
        %10883 = vmatpush1.bf16.msra.mxu0 %v10667
        %10884 = vmatprep.subr.bf16.mxu0 %v10672
        %10885 = vmatpush1.bf16.msra.mxu0 %v10671
        %10886 = vmatprep.subr.bf16.mxu0 %v10676
        %10887 = vmatpush1.bf16.msra.mxu0 %v10675
        %10888 = vmatprep.subr.bf16.mxu0 %v10680
        %10889 = vmatpush1.bf16.msra.mxu0 %v10679
        %10890 = vmatprep.subr.bf16.mxu0 %v10684
        %10891 = vmatpush1.bf16.msra.mxu0 %v10683
        %10892 = vmatprep.subr.bf16.mxu0 %v10688
        %10893 = vmatpush1.bf16.msra.mxu0 %v10687
        %10894 = vmatprep.mubr.bf16.mxu0 %v10028
        %10895 = vmatmul.mubr.bf16.gmra.mrb[0].mxu0 %v10027
        %v10896 = vpop.f32.mrb[0].mxu0
        %v10897 = vadd.f32 %v10854, %v10896
        %v10898 = vpop.f32.mrb[0].mxu0
        %v10899 = vadd.f32 %v10856, %v10898
        %v10900 = vpop.f32.mrb[0].mxu0
        %v10901 = vadd.f32 %v10858, %v10900
        %v10902 = vpop.f32.mrb[0].mxu0
        %v10903 = vadd.f32 %v10860, %v10902
        %10904 = vdwg.mxu0
        %10905 = vmatprep.subr.bf16.mxu0 %v10566
        %10906 = vmatpush1.bf16.msra.mxu0 %v10565
        %10907 = vmatprep.subr.bf16.mxu0 %v10570
        %10908 = vmatpush1.bf16.msra.mxu0 %v10569
        %10909 = vmatprep.subr.bf16.mxu0 %v10574
        %10910 = vmatpush1.bf16.msra.mxu0 %v10573
        %10911 = vmatprep.subr.bf16.mxu0 %v10578
        %10912 = vmatpush1.bf16.msra.mxu0 %v10577
        %10913 = vmatprep.subr.bf16.mxu0 %v10582
        %10914 = vmatpush1.bf16.msra.mxu0 %v10581
        %10915 = vmatprep.subr.bf16.mxu0 %v10586
        %10916 = vmatpush1.bf16.msra.mxu0 %v10585
        %10917 = vmatprep.subr.bf16.mxu0 %v10590
        %10918 = vmatpush1.bf16.msra.mxu0 %v10589
        %10919 = vmatprep.subr.bf16.mxu0 %v10594
        %10920 = vmatpush1.bf16.msra.mxu0 %v10593
        %10921 = vmatprep.subr.bf16.mxu0 %v10598
        %10922 = vmatpush1.bf16.msra.mxu0 %v10597
        %10923 = vmatprep.subr.bf16.mxu0 %v10602
        %10924 = vmatpush1.bf16.msra.mxu0 %v10601
        %10925 = vmatprep.subr.bf16.mxu0 %v10606
        %10926 = vmatpush1.bf16.msra.mxu0 %v10605
        %10927 = vmatprep.subr.bf16.mxu0 %v10610
        %10928 = vmatpush1.bf16.msra.mxu0 %v10609
        %10929 = vmatprep.subr.bf16.mxu0 %v10614
        %10930 = vmatpush1.bf16.msra.mxu0 %v10613
        %10931 = vmatprep.subr.bf16.mxu0 %v10618
        %10932 = vmatpush1.bf16.msra.mxu0 %v10617
        %10933 = vmatprep.subr.bf16.mxu0 %v10622
        %10934 = vmatpush1.bf16.msra.mxu0 %v10621
        %10935 = vmatprep.subr.bf16.mxu0 %v10626
        %10936 = vmatpush1.bf16.msra.mxu0 %v10625
        %10937 = vmatprep.mubr.bf16.mxu0 %v10026
        %10938 = vmatmul.mubr.bf16.gmra.mrb[0].mxu0 %v10025
        %v10939 = vpop.f32.mrb[0].mxu0
        %v10940 = vadd.f32 %v10170, %v10939
        %v10941 = vpop.f32.mrb[0].mxu0
        %v10942 = vadd.f32 %v10174, %v10941
        %v10943 = vpop.f32.mrb[0].mxu0
        %v10944 = vadd.f32 %v10170, %v10943
        %v10945 = vpop.f32.mrb[0].mxu0
        %v10946 = vadd.f32 %v10174, %v10945
        %10947 = vdwg.mxu0
        %10948 = vmatprep.subr.bf16.mxu0 %v10630
        %10949 = vmatpush1.bf16.msra.mxu0 %v10629
        %10950 = vmatprep.subr.bf16.mxu0 %v10634
        %10951 = vmatpush1.bf16.msra.mxu0 %v10633
        %10952 = vmatprep.subr.bf16.mxu0 %v10638
        %10953 = vmatpush1.bf16.msra.mxu0 %v10637
        %10954 = vmatprep.subr.bf16.mxu0 %v10642
        %10955 = vmatpush1.bf16.msra.mxu0 %v10641
        %10956 = vmatprep.subr.bf16.mxu0 %v10646
        %10957 = vmatpush1.bf16.msra.mxu0 %v10645
        %10958 = vmatprep.subr.bf16.mxu0 %v10650
        %10959 = vmatpush1.bf16.msra.mxu0 %v10649
        %10960 = vmatprep.subr.bf16.mxu0 %v10654
        %10961 = vmatpush1.bf16.msra.mxu0 %v10653
        %10962 = vmatprep.subr.bf16.mxu0 %v10658
        %10963 = vmatpush1.bf16.msra.mxu0 %v10657
        %10964 = vmatprep.subr.bf16.mxu0 %v10662
        %10965 = vmatpush1.bf16.msra.mxu0 %v10661
        %10966 = vmatprep.subr.bf16.mxu0 %v10666
        %10967 = vmatpush1.bf16.msra.mxu0 %v10665
        %10968 = vmatprep.subr.bf16.mxu0 %v10670
        %10969 = vmatpush1.bf16.msra.mxu0 %v10669
        %10970 = vmatprep.subr.bf16.mxu0 %v10674
        %10971 = vmatpush1.bf16.msra.mxu0 %v10673
        %10972 = vmatprep.subr.bf16.mxu0 %v10678
        %10973 = vmatpush1.bf16.msra.mxu0 %v10677
        %10974 = vmatprep.subr.bf16.mxu0 %v10682
        %10975 = vmatpush1.bf16.msra.mxu0 %v10681
        %10976 = vmatprep.subr.bf16.mxu0 %v10686
        %10977 = vmatpush1.bf16.msra.mxu0 %v10685
        %10978 = vmatprep.subr.bf16.mxu0 %v10690
        %10979 = vmatpush1.bf16.msra.mxu0 %v10689
        %10980 = vmatprep.mubr.bf16.mxu0 %v10028
        %10981 = vmatmul.mubr.bf16.gmra.mrb[0].mxu0 %v10027
        %v10982 = vpop.f32.mrb[0].mxu0
        %v10983 = vadd.f32 %v10940, %v10982
        %v10984 = vpop.f32.mrb[0].mxu0
        %v10985 = vadd.f32 %v10942, %v10984
        %v10986 = vpop.f32.mrb[0].mxu0
        %v10987 = vadd.f32 %v10944, %v10986
        %v10988 = vpop.f32.mrb[0].mxu0
        %v10989 = vadd.f32 %v10946, %v10988
        %10990 = vdwg.mxu0
        %v10991 = vpack.c.bf16 %v10901, %v10897
        %v10992 = vpack.c.bf16 %v10903, %v10899
        %v10993 = vpack.c.bf16 %v10987, %v10983
        %v10994 = vpack.c.bf16 %v10989, %v10985
        %v10995 = vld [vmem:[%s450] sm:$0xf]
        %v10996 = vld [vmem:[%s450 + $0x4] sm:$0xf]
        %v10997 = vld [vmem:[%s450 + $0x8] sm:$0xf]
        %v10998 = vld [vmem:[%s450 + $0xc] sm:$0xf]
        %v10999 = vld [vmem:[%s450 + $0x10] sm:$0xf]
        %v11000 = vld [vmem:[%s450 + $0x14] sm:$0xf]
        %v11001 = vld [vmem:[%s450 + $0x18] sm:$0xf]
        %v11002 = vld [vmem:[%s450 + $0x1c] sm:$0xf]
        %v11003 = vld [vmem:[%s450 + $0x20] sm:$0xf]
        %v11004 = vld [vmem:[%s450 + $0x24] sm:$0xf]
        %v11005 = vld [vmem:[%s450 + $0x28] sm:$0xf]
        %v11006 = vld [vmem:[%s450 + $0x2c] sm:$0xf]
        %v11007 = vld [vmem:[%s450 + $0x30] sm:$0xf]
        %v11008 = vld [vmem:[%s450 + $0x34] sm:$0xf]
        %v11009 = vld [vmem:[%s450 + $0x38] sm:$0xf]
        %v11010 = vld [vmem:[%s450 + $0x3c] sm:$0xf]
        %v11011 = vld [vmem:[%s450 + $0x40] sm:$0xf]
        %v11012 = vld [vmem:[%s450 + $0x44] sm:$0xf]
        %v11013 = vld [vmem:[%s450 + $0x48] sm:$0xf]
        %v11014 = vld [vmem:[%s450 + $0x4c] sm:$0xf]
        %v11015 = vld [vmem:[%s450 + $0x50] sm:$0xf]
        %v11016 = vld [vmem:[%s450 + $0x54] sm:$0xf]
        %v11017 = vld [vmem:[%s450 + $0x58] sm:$0xf]
        %v11018 = vld [vmem:[%s450 + $0x5c] sm:$0xf]
        %v11019 = vld [vmem:[%s450 + $0x60] sm:$0xf]
        %v11020 = vld [vmem:[%s450 + $0x64] sm:$0xf]
        %v11021 = vld [vmem:[%s450 + $0x68] sm:$0xf]
        %v11022 = vld [vmem:[%s450 + $0x6c] sm:$0xf]
        %v11023 = vld [vmem:[%s450 + $0x70] sm:$0xf]
        %v11024 = vld [vmem:[%s450 + $0x74] sm:$0xf]
        %v11025 = vld [vmem:[%s450 + $0x78] sm:$0xf]
        %v11026 = vld [vmem:[%s450 + $0x7c] sm:$0xf]
        %v11027 = vld [vmem:[%s450 + $0x80] sm:$0xf]
        %v11028 = vld [vmem:[%s450 + $0x84] sm:$0xf]
        %v11029 = vld [vmem:[%s450 + $0x88] sm:$0xf]
        %v11030 = vld [vmem:[%s450 + $0x8c] sm:$0xf]
        %v11031 = vld [vmem:[%s450 + $0x90] sm:$0xf]
        %v11032 = vld [vmem:[%s450 + $0x94] sm:$0xf]
        %v11033 = vld [vmem:[%s450 + $0x98] sm:$0xf]
        %v11034 = vld [vmem:[%s450 + $0x9c] sm:$0xf]
        %v11035 = vld [vmem:[%s450 + $0xa0] sm:$0xf]
        %v11036 = vld [vmem:[%s450 + $0xa4] sm:$0xf]
        %v11037 = vld [vmem:[%s450 + $0xa8] sm:$0xf]
        %v11038 = vld [vmem:[%s450 + $0xac] sm:$0xf]
        %v11039 = vld [vmem:[%s450 + $0xb0] sm:$0xf]
        %v11040 = vld [vmem:[%s450 + $0xb4] sm:$0xf]
        %v11041 = vld [vmem:[%s450 + $0xb8] sm:$0xf]
        %v11042 = vld [vmem:[%s450 + $0xbc] sm:$0xf]
        %v11043 = vld [vmem:[%s450 + $0xc0] sm:$0xf]
        %v11044 = vld [vmem:[%s450 + $0xc4] sm:$0xf]
        %v11045 = vld [vmem:[%s450 + $0xc8] sm:$0xf]
        %v11046 = vld [vmem:[%s450 + $0xcc] sm:$0xf]
        %v11047 = vld [vmem:[%s450 + $0xd0] sm:$0xf]
        %v11048 = vld [vmem:[%s450 + $0xd4] sm:$0xf]
        %v11049 = vld [vmem:[%s450 + $0xd8] sm:$0xf]
        %v11050 = vld [vmem:[%s450 + $0xdc] sm:$0xf]
        %v11051 = vld [vmem:[%s450 + $0xe0] sm:$0xf]
        %v11052 = vld [vmem:[%s450 + $0xe4] sm:$0xf]
        %v11053 = vld [vmem:[%s450 + $0xe8] sm:$0xf]
        %v11054 = vld [vmem:[%s450 + $0xec] sm:$0xf]
        %v11055 = vld [vmem:[%s450 + $0xf0] sm:$0xf]
        %v11056 = vld [vmem:[%s450 + $0xf4] sm:$0xf]
        %v11057 = vld [vmem:[%s450 + $0xf8] sm:$0xf]
        %v11058 = vld [vmem:[%s450 + $0xfc] sm:$0xf]
        %v11059 = vld [vmem:[%s458] sm:$0x1]
        %v11061 = vlaneseq
        %v11062 = vshrl.u32 %v11061, 7
        %v11063 = vsub.s32 0, %v11062
        %v11064 = vrot.slane %v11059, %v11063
        %v11130 = vunpack.c.l.b16 %v10995
        %v11131 = vunpack.c.l.b16 %v10996
        %v11132 = vunpack.c.l.b16 %v10997
        %v11133 = vunpack.c.l.b16 %v10998
        %v11134 = vunpack.c.l.b16 %v10999
        %v11135 = vunpack.c.l.b16 %v11000
        %v11136 = vunpack.c.l.b16 %v11001
        %v11137 = vunpack.c.l.b16 %v11002
        %v11138 = vunpack.c.l.b16 %v11003
        %v11139 = vunpack.c.l.b16 %v11004
        %v11140 = vunpack.c.l.b16 %v11005
        %v11141 = vunpack.c.l.b16 %v11006
        %v11142 = vunpack.c.l.b16 %v11007
        %v11143 = vunpack.c.l.b16 %v11008
        %v11144 = vunpack.c.l.b16 %v11009
        %v11145 = vunpack.c.l.b16 %v11010
        %v11146 = vunpack.c.l.b16 %v11011
        %v11147 = vunpack.c.l.b16 %v11012
        %v11148 = vunpack.c.l.b16 %v11013
        %v11149 = vunpack.c.l.b16 %v11014
        %v11150 = vunpack.c.l.b16 %v11015
        %v11151 = vunpack.c.l.b16 %v11016
        %v11152 = vunpack.c.l.b16 %v11017
        %v11153 = vunpack.c.l.b16 %v11018
        %v11154 = vunpack.c.l.b16 %v11019
        %v11155 = vunpack.c.l.b16 %v11020
        %v11156 = vunpack.c.l.b16 %v11021
        %v11157 = vunpack.c.l.b16 %v11022
        %v11158 = vunpack.c.l.b16 %v11023
        %v11159 = vunpack.c.l.b16 %v11024
        %v11160 = vunpack.c.l.b16 %v11025
        %v11161 = vunpack.c.l.b16 %v11026
        %v11162 = vunpack.c.l.b16 %v11027
        %v11163 = vunpack.c.l.b16 %v11028
        %v11164 = vunpack.c.l.b16 %v11029
        %v11165 = vunpack.c.l.b16 %v11030
        %v11166 = vunpack.c.l.b16 %v11031
        %v11167 = vunpack.c.l.b16 %v11032
        %v11168 = vunpack.c.l.b16 %v11033
        %v11169 = vunpack.c.l.b16 %v11034
        %v11170 = vunpack.c.l.b16 %v11035
        %v11171 = vunpack.c.l.b16 %v11036
        %v11172 = vunpack.c.l.b16 %v11037
        %v11173 = vunpack.c.l.b16 %v11038
        %v11174 = vunpack.c.l.b16 %v11039
        %v11175 = vunpack.c.l.b16 %v11040
        %v11176 = vunpack.c.l.b16 %v11041
        %v11177 = vunpack.c.l.b16 %v11042
        %v11178 = vunpack.c.l.b16 %v11043
        %v11179 = vunpack.c.l.b16 %v11044
        %v11180 = vunpack.c.l.b16 %v11045
        %v11181 = vunpack.c.l.b16 %v11046
        %v11182 = vunpack.c.l.b16 %v11047
        %v11183 = vunpack.c.l.b16 %v11048
        %v11184 = vunpack.c.l.b16 %v11049
        %v11185 = vunpack.c.l.b16 %v11050
        %v11186 = vunpack.c.l.b16 %v11051
        %v11187 = vunpack.c.l.b16 %v11052
        %v11188 = vunpack.c.l.b16 %v11053
        %v11189 = vunpack.c.l.b16 %v11054
        %v11190 = vunpack.c.l.b16 %v11055
        %v11191 = vunpack.c.l.b16 %v11056
        %v11192 = vunpack.c.l.b16 %v11057
        %v11193 = vunpack.c.l.b16 %v11058
        %v11194 = vpack.c.b16 %v11131, %v11130
        %v11195 = vpack.c.b16 %v11133, %v11132
        %v11196 = vpack.c.b16 %v11135, %v11134
        %v11197 = vpack.c.b16 %v11137, %v11136
        %v11198 = vpack.c.b16 %v11139, %v11138
        %v11199 = vpack.c.b16 %v11141, %v11140
        %v11200 = vpack.c.b16 %v11143, %v11142
        %v11201 = vpack.c.b16 %v11145, %v11144
        %v11202 = vpack.c.b16 %v11147, %v11146
        %v11203 = vpack.c.b16 %v11149, %v11148
        %v11204 = vpack.c.b16 %v11151, %v11150
        %v11205 = vpack.c.b16 %v11153, %v11152
        %v11206 = vpack.c.b16 %v11155, %v11154
        %v11207 = vpack.c.b16 %v11157, %v11156
        %v11208 = vpack.c.b16 %v11159, %v11158
        %v11209 = vpack.c.b16 %v11161, %v11160
        %v11210 = vpack.c.b16 %v11163, %v11162
        %v11211 = vpack.c.b16 %v11165, %v11164
        %v11212 = vpack.c.b16 %v11167, %v11166
        %v11213 = vpack.c.b16 %v11169, %v11168
        %v11214 = vpack.c.b16 %v11171, %v11170
        %v11215 = vpack.c.b16 %v11173, %v11172
        %v11216 = vpack.c.b16 %v11175, %v11174
        %v11217 = vpack.c.b16 %v11177, %v11176
        %v11218 = vpack.c.b16 %v11179, %v11178
        %v11219 = vpack.c.b16 %v11181, %v11180
        %v11220 = vpack.c.b16 %v11183, %v11182
        %v11221 = vpack.c.b16 %v11185, %v11184
        %v11222 = vpack.c.b16 %v11187, %v11186
        %v11223 = vpack.c.b16 %v11189, %v11188
        %v11224 = vpack.c.b16 %v11191, %v11190
        %v11225 = vpack.c.b16 %v11193, %v11192
        %11258 = vmatprep.subr.bf16.mxu0 0
        %11259 = vmatpush1.bf16.msra.mxu0 %v11194
        %11260 = vmatprep.subr.bf16.mxu0 0
        %11261 = vmatpush1.bf16.msra.mxu0 %v11195
        %11262 = vmatprep.subr.bf16.mxu0 0
        %11263 = vmatpush1.bf16.msra.mxu0 %v11196
        %11264 = vmatprep.subr.bf16.mxu0 0
        %11265 = vmatpush1.bf16.msra.mxu0 %v11197
        %11266 = vmatprep.subr.bf16.mxu0 0
        %11267 = vmatpush1.bf16.msra.mxu0 %v11198
        %11268 = vmatprep.subr.bf16.mxu0 0
        %11269 = vmatpush1.bf16.msra.mxu0 %v11199
        %11270 = vmatprep.subr.bf16.mxu0 0
        %11271 = vmatpush1.bf16.msra.mxu0 %v11200
        %11272 = vmatprep.subr.bf16.mxu0 0
        %11273 = vmatpush1.bf16.msra.mxu0 %v11201
        %11274 = vmatprep.subr.bf16.mxu0 0
        %11275 = vmatpush1.bf16.msra.mxu0 %v11202
        %11276 = vmatprep.subr.bf16.mxu0 0
        %11277 = vmatpush1.bf16.msra.mxu0 %v11203
        %11278 = vmatprep.subr.bf16.mxu0 0
        %11279 = vmatpush1.bf16.msra.mxu0 %v11204
        %11280 = vmatprep.subr.bf16.mxu0 0
        %11281 = vmatpush1.bf16.msra.mxu0 %v11205
        %11282 = vmatprep.subr.bf16.mxu0 0
        %11283 = vmatpush1.bf16.msra.mxu0 %v11206
        %11284 = vmatprep.subr.bf16.mxu0 0
        %11285 = vmatpush1.bf16.msra.mxu0 %v11207
        %11286 = vmatprep.subr.bf16.mxu0 0
        %11287 = vmatpush1.bf16.msra.mxu0 %v11208
        %11288 = vmatprep.subr.bf16.mxu0 0
        %11289 = vmatpush1.bf16.msra.mxu0 %v11209
        %11290 = vmatprep.mubr.bf16.mxu0 %v10992
        %11291 = vmatmul.mubr.bf16.gmra.mrb[0].mxu0 %v10991
        %v11292 = vpop.f32.mrb[0].mxu0
        %v11293 = vadd.f32 %v11064, %v11292
        %v11294 = vpop.f32.mrb[0].mxu0
        %v11295 = vpop.f32.mrb[0].mxu0
        %v11296 = vadd.f32 %v11064, %v11295
        %v11297 = vpop.f32.mrb[0].mxu0
        %11298 = vdwg.mxu0
        %11299 = vmatprep.subr.bf16.mxu0 0
        %11300 = vmatpush1.bf16.msra.mxu0 %v11210
        %11301 = vmatprep.subr.bf16.mxu0 0
        %11302 = vmatpush1.bf16.msra.mxu0 %v11211
        %11303 = vmatprep.subr.bf16.mxu0 0
        %11304 = vmatpush1.bf16.msra.mxu0 %v11212
        %11305 = vmatprep.subr.bf16.mxu0 0
        %11306 = vmatpush1.bf16.msra.mxu0 %v11213
        %11307 = vmatprep.subr.bf16.mxu0 0
        %11308 = vmatpush1.bf16.msra.mxu0 %v11214
        %11309 = vmatprep.subr.bf16.mxu0 0
        %11310 = vmatpush1.bf16.msra.mxu0 %v11215
        %11311 = vmatprep.subr.bf16.mxu0 0
        %11312 = vmatpush1.bf16.msra.mxu0 %v11216
        %11313 = vmatprep.subr.bf16.mxu0 0
        %11314 = vmatpush1.bf16.msra.mxu0 %v11217
        %11315 = vmatprep.subr.bf16.mxu0 0
        %11316 = vmatpush1.bf16.msra.mxu0 %v11218
        %11317 = vmatprep.subr.bf16.mxu0 0
        %11318 = vmatpush1.bf16.msra.mxu0 %v11219
        %11319 = vmatprep.subr.bf16.mxu0 0
        %11320 = vmatpush1.bf16.msra.mxu0 %v11220
        %11321 = vmatprep.subr.bf16.mxu0 0
        %11322 = vmatpush1.bf16.msra.mxu0 %v11221
        %11323 = vmatprep.subr.bf16.mxu0 0
        %11324 = vmatpush1.bf16.msra.mxu0 %v11222
        %11325 = vmatprep.subr.bf16.mxu0 0
        %11326 = vmatpush1.bf16.msra.mxu0 %v11223
        %11327 = vmatprep.subr.bf16.mxu0 0
        %11328 = vmatpush1.bf16.msra.mxu0 %v11224
        %11329 = vmatprep.subr.bf16.mxu0 0
        %11330 = vmatpush1.bf16.msra.mxu0 %v11225
        %11331 = vmatprep.mubr.bf16.mxu0 %v10994
        %11332 = vmatmul.mubr.bf16.gmra.mrb[0].mxu0 %v10993
        %v11333 = vpop.f32.mrb[0].mxu0
        %v11334 = vadd.f32 %v11293, %v11333
        %v11335 = vpop.f32.mrb[0].mxu0
        %v11336 = vpop.f32.mrb[0].mxu0
        %v11337 = vadd.f32 %v11296, %v11336
        %v11338 = vpop.f32.mrb[0].mxu0
        %11339 = vdwg.mxu0
        %11340 = vmax.xlane.f32.xlu0 %v11334
        %v11341 = vpop.xlane.xlu0 %11340
        %11342 = vmax.xlane.f32.xlu0 %v11337
        %v11343 = vpop.xlane.xlu0 %11342
        %v11344 = vsub.f32 %v11334, %v11341
        %v11345 = vsub.f32 %v11337, %v11343
        %v11346 = vmul.f32 %v11344, 1.442695
        %v11347 = vpow.pop %v11346
        %v11348 = vmul.f32 %v11345, 1.442695
        %v11349 = vpow.pop %v11348
        %11350 = vadd.xlane.f32.xlu0 %v11347
        %v11351 = vpop.xlane.xlu0 %11350
        %11352 = vadd.xlane.f32.xlu0 %v11349
        %v11353 = vpop.xlane.xlu0 %11352
        %v11354 = vrcp.pop %v11351
        %v11355 = vrcp.pop %v11353
        %v11356 = vmul.f32 %v11347, %v11354
        %v11357 = vmul.f32 %v11349, %v11355
        %11358 = vst [vmem:[%s517] sm:$0xff] %v11356
        %11359 = vst [vmem:[%s517 + $0x8] sm:$0xff] %v11357
        %s11360 = sand.u32 %s223, 1
        %s11361 = scalar_lea.sflag [#allocation4], %s11360
        %s11362 = sand.u32 %s223, 1
        %s11363 = smul.addr %s11362, 16
        %s11364 = scalar_lea.vmem [#allocation14], %s11363
        // Predicated region
        $region77: #{tpu_custom_call.1} parent=47 // pred_check
          %p11365 = pneg %p233
        $region78: #{tpu_custom_call.1} parent=47 // pred_check_branch
          %11367 = sbr.rel (%p11365) target = $region80
        $region79: #{tpu_custom_call.1} parent=47 // pred_region
          %s11369 = ssub.s32 256, 256
          %11370 = vsyncadd %s11361, %s11369
          %s11371 = smul.addr %s33, 2
          %s11372 = smul.addr %s11371, 128
          %s11373 = scalar_lea.hbm %s7, %s11372
          %s11374 = sshll.u32 %s11364, 4
          %s11375 = int_to_ptr.vmem [resolvable:$true] %s11374
          %11380 = dma.vmem_to_hbm [thread:$0]  %s11375, 256, %s11373, %s11361, 128, 128, 8
        $region80: #{tpu_custom_call.1} parent=47 // pred_fallthru
          _
      $region48: #{tpu_custom_call.1} parent=5 // pred_fallthru
        _
      %p11381 = scmp.le.s32.totalorder 2, %s28
      // Predicated region
      $region81: #{tpu_custom_call.1} parent=5 // pred_check
        %p11382 = pneg %p11381
      $region82: #{tpu_custom_call.1} parent=5 // pred_check_branch
        %11384 = sbr.rel (%p11382) target = $region84
      $region83: #{tpu_custom_call.1} parent=5 // pred_region
        %s11385 = ssub.s32 %s28, 2
        // Predicated region
        $region85: #{tpu_custom_call.1} parent=83 // pred_check
          %p11386 = pneg %p239
        $region86: #{tpu_custom_call.1} parent=83 // pred_check_branch
          %11388 = sbr.rel (%p11386) target = $region88
        $region87: #{tpu_custom_call.1} parent=83 // pred_region
          %s11389 = sand.u32 %s224, 1
          %s11390 = scalar_lea.sflag [#allocation4], %s11389
          %s11391 = sand.u32 %s224, 1
          %s11392 = smul.addr %s11391, 16
          %s11393 = scalar_lea.vmem [#allocation14], %s11392
          %11394 = dma.done %s11390, 256
        $region88: #{tpu_custom_call.1} parent=83 // pred_fallthru
          _
      $region84: #{tpu_custom_call.1} parent=5 // pred_fallthru
        _
    $region6: #{tpu_custom_call.1} parent=1 // loop_footer
      %s32 = sadd.s32 1, %s28
    $region7: #{tpu_custom_call.1} parent=1 // loop_footer_branch
      %27 = sbr.rel target = $region3
    $region8: #{tpu_custom_call.1} parent=1 // loop_exit
      _
    %11395 = vsyncpa [#allocation3], 1
    %s11396 = scalar_lea.sflag [#allocation3], 1
    %11397 = vsyncpa %s11396, 1
    %11398 = vsyncpa [#allocation6], 1
    %s11399 = scalar_lea.sflag [#allocation6], 1
    %11400 = vsyncpa %s11399, 1
    %11401 = vsyncpa [#allocation9], 1
    %s11402 = scalar_lea.sflag [#allocation9], 1
    %11403 = vsyncpa %s11402, 1
    %11404 = vsyncpa [#allocation12], 1
    %s11405 = scalar_lea.sflag [#allocation12], 1
    %11406 = vsyncpa %s11405, 1
    %11407 = vsyncpa [#allocation4], 1
    %s11408 = scalar_lea.sflag [#allocation4], 1
    %11409 = vsyncpa %s11408, 1

</llo_original>
